<compile_context>
chip_gen: v6e
topology: v6e:2x2x1
jax: 0.10.0
libtpu: 0.0.40
codegen_flags: <defaults>
</compile_context>

<pallas_src>
import functools
import math

import jax
import jax.numpy as jnp
from jax import lax
from jax.experimental import pallas as pl
from jax.experimental.pallas import tpu as pltpu

# ----------------------------- small MViT config -----------------------------
BATCH = 2
IN_CHANS = 3
NUM_FRAMES = 4
CROP_SIZE = 16
PATCH_KERNEL = [3, 7, 7]
PATCH_STRIDE = [2, 4, 4]
PATCH_PADDING = [1, 3, 3]
EMBED_DIM = 32
NUM_HEADS = 1
MLP_RATIO = 4.0
DEPTH = 2
CLS_EMBED_ON = True
DIM_MUL = [[1, 2.0]]
HEAD_MUL = [[1, 2.0]]
POOL_KVQ_KERNEL = [3, 3, 3]
POOL_Q_STRIDE = [[1, 1, 2, 2]]
POOL_KV_STRIDE_ADAPTIVE = [1, 2, 2]
TASKS = ["action"]
NUM_CLASSES = [8]
HEAD_ACT = ["softmax"]

PATCH_DIMS = [NUM_FRAMES // PATCH_STRIDE[0],
              CROP_SIZE // PATCH_STRIDE[1],
              CROP_SIZE // PATCH_STRIDE[2]]
NUM_PATCHES = math.prod(PATCH_DIMS)

TM_MAX = 256          # row tile for M-tiled kernels (fits v7x's 64 MiB VMEM if scaled)
USE_BF16_MATMUL = False  # set True on v6e/v7x for scaled configs (deviates from f32 ref)


def round_width(width, multiplier, min_width=1, divisor=1):
    """Same as slowfast round_width."""
    if not multiplier:
        return width
    width *= multiplier
    min_width = min_width or divisor
    width_out = max(min_width, int(width + divisor / 2) // divisor * divisor)
    if width_out < 0.9 * width:
        width_out += divisor
    return int(width_out)


def _pick_tm(M):
    return M if M <= TM_MAX else TM_MAX


def _mm(x):
    """Optional bf16 cast of MXU operands (accumulation stays f32)."""
    return x.astype(jnp.bfloat16) if USE_BF16_MATMUL else x


# ----------------------------- in-kernel helpers -----------------------------
def _ln_stat(x, w, b, eps):
    """Row-wise LayerNorm over the last dim (f32 math on the VPU)."""
    mu = jnp.mean(x, axis=-1, keepdims=True)
    xc = x - mu
    var = jnp.mean(xc * xc, axis=-1, keepdims=True)
    return xc * lax.rsqrt(var + eps) * w + b


def _softmax_last(x, approx=True):
    m = jnp.max(x, axis=-1, keepdims=True)
    e = jnp.exp(x - m)
    s = jnp.sum(e, axis=-1, keepdims=True)
    if approx:
        return e * pl.reciprocal(s, approx=True)
    return e / s


def _gelu_erf(x):
    """GELU with exact-erf semantics; erf via Abramowitz-Stegun 7.1.26 (|err|<1.5e-7),
    uses only exp/div so it lowers cleanly on the EUP (no XLA round-trip)."""
    a1, a2, a3, a4, a5 = 0.254829592, -0.284496736, 1.421413741, -1.453152027, 1.061405429
    p = 0.3275911
    z = x * 0.7071067811865476                 # x / sqrt(2)
    az = jnp.abs(z)
    t = 1.0 / (1.0 + p * az)
    poly = ((((a5 * t + a4) * t + a3) * t + a2) * t + a1) * t
    erf_abs = 1.0 - poly * jnp.exp(-az * az)
    erf = jnp.where(z >= 0, erf_abs, -erf_abs)
    return 0.5 * x * (1.0 + erf)


# ----------------------------- fused LN + Linear (+softmax) -----------------------------
def _ln_linear_kernel(x_ref, lw_ref, lb_ref, w_ref, b_ref, o_ref, *,
                      eps, apply_ln, activation):
    x = x_ref[...]
    if apply_ln:
        x = _ln_stat(x, lw_ref[...], lb_ref[...], eps)
    acc = jnp.dot(_mm(x), _mm(w_ref[...]), preferred_element_type=jnp.float32) + b_ref[...]
    if activation == "softmax":           # fused eval-mode head activation
        acc = _softmax_last(acc, approx=False)   # exact recip: probs sum to 1
    o_ref[...] = acc.astype(o_ref.dtype)


def ln_linear(x2d, ln_w, ln_b, w, b, *, eps=1e-6, apply_ln=True, activation=None,
              pad_lanes=False):
    """Fused (optional) LayerNorm + Linear (+ optional softmax).
    x2d: (M, K); w: (K, N) (PyTorch weight transposed); b: (N,).
    pad_lanes=True zero-pads the output to a multiple of 128 lanes (lane-dense,
    unmasked stores) and slices it back in XLA (pad folds into constants)."""
    M, K = x2d.shape
    N = w.shape[1]
    n_out = N
    if pad_lanes and activation is None and N % 128 != 0:
        n_pad = ((N + 127) // 128) * 128
        w = jnp.pad(w, ((0, 0), (0, n_pad - N)))
        b = jnp.pad(b, ((0, n_pad - N),))
        N = n_pad
    tm = _pick_tm(M)
    cost = pl.CostEstimate(
        flops=2 * M * K * N + 8 * M * K,
        transcendentals=(M * N) if activation == "softmax" else 0,
        bytes_accessed=4 * (M * K + K * N + M * N + 2 * K + N))
    out = pl.pallas_call(
        functools.partial(_ln_linear_kernel, eps=eps, apply_ln=apply_ln,
                          activation=activation),
        out_shape=jax.ShapeDtypeStruct((M, N), jnp.float32),
        grid=(pl.cdiv(M, tm),),
        in_specs=[pl.BlockSpec((tm, K), lambda i: (i, 0)),
                  pl.BlockSpec((1, K), lambda i: (0, 0)),
                  pl.BlockSpec((1, K), lambda i: (0, 0)),
                  pl.BlockSpec((K, N), lambda i: (0, 0)),
                  pl.BlockSpec((1, N), lambda i: (0, 0))],
        out_specs=pl.BlockSpec((tm, N), lambda i: (i, 0)),
        compiler_params=pltpu.CompilerParams(dimension_semantics=("parallel",)),
        cost_estimate=cost,
    )(x2d, ln_w.reshape(1, K), ln_b.reshape(1, K), w, b.reshape(1, N))
    if N != n_out:
        out = out[:, :n_out]
    return out


# ----------------------------- standalone LayerNorm (non-cls fallback path only) -----------------------------
def _ln_kernel(x_ref, w_ref, b_ref, o_ref, *, eps):
    o_ref[...] = _ln_stat(x_ref[...], w_ref[...], b_ref[...], eps).astype(o_ref.dtype)


def layer_norm(x, w, b, eps=1e-6):
    shape = x.shape
    C = shape[-1]
    x2 = x.reshape(-1, C)
    M = x2.shape[0]
    tm = _pick_tm(M)
    out = pl.pallas_call(
        functools.partial(_ln_kernel, eps=eps),
        out_shape=jax.ShapeDtypeStruct((M, C), jnp.float32),
        grid=(pl.cdiv(M, tm),),
        in_specs=[pl.BlockSpec((tm, C), lambda i: (i, 0)),
                  pl.BlockSpec((1, C), lambda i: (0, 0)),
                  pl.BlockSpec((1, C), lambda i: (0, 0))],
        out_specs=pl.BlockSpec((tm, C), lambda i: (i, 0)),
        compiler_params=pltpu.CompilerParams(dimension_semantics=("parallel",)),
    )(x2, w.reshape(1, C), b.reshape(1, C))
    return out.reshape(shape)


# ----------------------------- fused attention: LN(q/k/v) + attn + proj + residual -----------------------------
def _attn_kernel(*refs, scale, eps, has_lnq, has_lnk, has_lnv, num_heads, batch):
    it = iter(refs)
    q_ref, k_ref, v_ref = next(it), next(it), next(it)
    qw = qb = kw = kb = vw = vb = None
    if has_lnq:
        qw, qb = next(it), next(it)
    if has_lnk:
        kw, kb = next(it), next(it)
    if has_lnv:
        vw, vb = next(it), next(it)
    pw_ref, pb_ref, xres_ref = next(it), next(it), next(it)
    o_ref = next(it)

    q = q_ref[...]                     # (B*H, Nq, D)
    k = k_ref[...]                     # (B*H, Nk, D)
    v = v_ref[...]                     # (B*H, Nk, D)
    if has_lnq:
        q = _ln_stat(q, qw[...], qb[...], eps)
    q = q * scale                      # scale folded into q (Nq*D mul, not Nq*Nk)
    if has_lnk:
        k = _ln_stat(k, kw[...], kb[...], eps)
    if has_lnv:
        v = _ln_stat(v, vw[...], vb[...], eps)

    # batched QK^T (NT form, no in-kernel transpose), softmax, PV over all (b,h)
    s = jnp.einsum('bqd,bkd->bqk', _mm(q), _mm(k), preferred_element_type=jnp.float32)
    p = _softmax_last(s, approx=True)
    o = jnp.einsum('bqk,bkd->bqd', _mm(p), _mm(v), preferred_element_type=jnp.float32)

    pw = pw_ref[...]                   # (dim, dim)
    pb = pb_ref[...]                   # (1, dim)
    for b in range(batch):             # static unroll (B small); heads lane-concatenated
        if num_heads == 1:
            o_b = o[b]
        else:
            o_b = jnp.concatenate([o[b * num_heads + h] for h in range(num_heads)],
                                  axis=-1)                       # (Nq, dim)
        out_b = xres_ref[b] + pb + jnp.dot(_mm(o_b), _mm(pw),
                                           preferred_element_type=jnp.float32)
        o_ref[b] = out_b.astype(o_ref.dtype)


def attention_proj(q, k, v, x_res, proj_w, proj_b, *, scale,
                   ln_q=None, ln_k=None, ln_v=None, eps=1e-5):
    """q/k/v: (B, H, N, D) pooled (cls included) but NOT yet layer-normed.
    ln_* are (weight, bias) tuples or None.  Fuses norm_q/k/v + attention +
    head-concatenated output projection + residual add in a single grid step.
    Returns (B, Nq, H*D)."""
    B, H, Nq, D = q.shape
    Nk = k.shape[2]
    dim = H * D
    BH = B * H
    qf = q.reshape(BH, Nq, D)
    kf = k.reshape(BH, Nk, D)
    vf = v.reshape(BH, Nk, D)

    args = [qf, kf, vf]
    in_specs = [pl.BlockSpec((BH, Nq, D), lambda i: (0, 0, 0)),
                pl.BlockSpec((BH, Nk, D), lambda i: (0, 0, 0)),
                pl.BlockSpec((BH, Nk, D), lambda i: (0, 0, 0))]
    for ln in (ln_q, ln_k, ln_v):
        if ln is not None:
            args += [ln[0].reshape(1, D), ln[1].reshape(1, D)]
            in_specs += [pl.BlockSpec((1, D), lambda i: (0, 0)),
                         pl.BlockSpec((1, D), lambda i: (0, 0))]
    args += [proj_w, proj_b.reshape(1, dim), x_res]
    in_specs += [pl.BlockSpec((dim, dim), lambda i: (0, 0)),
                 pl.BlockSpec((1, dim), lambda i: (0, 0)),
                 pl.BlockSpec((B, Nq, dim), lambda i: (0, 0, 0))]

    cost = pl.CostEstimate(
        flops=4 * BH * Nq * Nk * D + 2 * B * Nq * dim * dim,
        transcendentals=BH * Nq * Nk,
        bytes_accessed=4 * (BH * (Nq + 2 * Nk) * D + dim * dim + 2 * B * Nq * dim))

    out = pl.pallas_call(
        functools.partial(_attn_kernel, scale=scale, eps=eps,
                          has_lnq=ln_q is not None, has_lnk=ln_k is not None,
                          has_lnv=ln_v is not None, num_heads=H, batch=B),
        out_shape=jax.ShapeDtypeStruct((B, Nq, dim), jnp.float32),
        grid=(1,),
        in_specs=in_specs,
        out_specs=pl.BlockSpec((B, Nq, dim), lambda i: (0, 0, 0)),
        compiler_params=pltpu.CompilerParams(dimension_semantics=("arbitrary",)),
        cost_estimate=cost,
    )(*args)
    return out


# ----------------------------- fully fused MLP half of the block -----------------------------
def _mlp_kernel(*refs, eps, has_proj):
    if has_proj:
        (x_ref, nw_ref, nb_ref, w1_ref, b1_ref, w2_ref, b2_ref,
         pw_ref, pb_ref, o_ref) = refs
    else:
        (x_ref, nw_ref, nb_ref, w1_ref, b1_ref, w2_ref, b2_ref, o_ref) = refs
    x = x_ref[...]
    xn = _ln_stat(x, nw_ref[...], nb_ref[...], eps)
    h = jnp.dot(_mm(xn), _mm(w1_ref[...]), preferred_element_type=jnp.float32) + b1_ref[...]
    g = _gelu_erf(h)                                    # in-kernel exact-erf GELU
    y = jnp.dot(_mm(g), _mm(w2_ref[...]), preferred_element_type=jnp.float32) + b2_ref[...]
    if has_proj:
        r = jnp.dot(_mm(xn), _mm(pw_ref[...]), preferred_element_type=jnp.float32) + pb_ref[...]
    else:
        r = x
    o_ref[...] = (r + y).astype(o_ref.dtype)


def block_mlp(x, p):
    """Fused second half of MultiScaleBlock in ONE kernel:
       xn = norm2(x); out = [blk_proj(xn) if dim!=dim_out else x] + fc2(GELU(fc1(xn)))."""
    B, Nq, dim = x.shape
    dim_out = p["dim_out"]
    hidden = p["fc1_w"].shape[1]
    has_proj = dim != dim_out
    M = B * Nq
    x2 = x.reshape(M, dim)
    tm = _pick_tm(M)
    grid = (pl.cdiv(M, tm),)

    args = [x2, p["norm2_w"].reshape(1, dim), p["norm2_b"].reshape(1, dim),
            p["fc1_w"], p["fc1_b"].reshape(1, hidden),
            p["fc2_w"], p["fc2_b"].reshape(1, dim_out)]
    in_specs = [pl.BlockSpec((tm, dim), lambda i: (i, 0)),
                pl.BlockSpec((1, dim), lambda i: (0, 0)),
                pl.BlockSpec((1, dim), lambda i: (0, 0)),
                pl.BlockSpec((dim, hidden), lambda i: (0, 0)),
                pl.BlockSpec((1, hidden), lambda i: (0, 0)),
                pl.BlockSpec((hidden, dim_out), lambda i: (0, 0)),
                pl.BlockSpec((1, dim_out), lambda i: (0, 0))]
    if has_proj:
        args += [p["blk_proj_w"], p["blk_proj_b"].reshape(1, dim_out)]
        in_specs += [pl.BlockSpec((dim, dim_out), lambda i: (0, 0)),
                     pl.BlockSpec((1, dim_out), lambda i: (0, 0))]

    out = pl.pallas_call(
        functools.partial(_mlp_kernel, eps=1e-6, has_proj=has_proj),
        out_shape=jax.ShapeDtypeStruct((M, dim_out), jnp.float32),
        grid=grid,
        in_specs=in_specs,
        out_specs=pl.BlockSpec((tm, dim_out), lambda i: (i, 0)),
        compiler_params=pltpu.CompilerParams(dimension_semantics=("parallel",)),
        cost_estimate=pl.CostEstimate(
            flops=2 * M * dim * hidden + 2 * M * hidden * dim_out
                  + (2 * M * dim * dim_out if has_proj else 0),
            transcendentals=M * hidden,
            bytes_accessed=4 * (M * dim + dim * hidden + hidden * dim_out
                                + (dim * dim_out if has_proj else 0) + M * dim_out)),
    )(*args)
    return out.reshape(B, Nq, dim_out)


# ----------------------------- JAX glue (patch embed conv, pooling; channels-last) -----------------------------
# TODO(synk): the 3D convolutions (patch embed, depthwise q/kv pooling) and MaxPool3d
#             stay in XLA — windowed convs have no clean small-Pallas equivalent here.
def patch_embed_conv(x, w, b):
    """Conv3d patch embed, channels-last so the output reshapes straight to (B, N, C).
    x: (B, C_in, T, H, W) (PyTorch layout); w: (embed_dim, C_in, kt, kh, kw)."""
    x_cl = jnp.transpose(x, (0, 2, 3, 4, 1))               # (B, T, H, W, C_in)
    w_cl = jnp.transpose(w, (2, 3, 4, 1, 0))               # (kt, kh, kw, I, O)
    y = lax.conv_general_dilated(
        x_cl, w_cl, window_strides=tuple(PATCH_STRIDE),
        padding=[(p, p) for p in PATCH_PADDING],
        dimension_numbers=("NDHWC", "DHWIO", "NDHWC"))
    B, C = y.shape[0], y.shape[-1]
    return y.reshape(B, -1, C) + b.reshape(1, 1, C)


def depthwise_conv3d_cl(x, w, stride, padding):
    """x: (N, T, H, W, C) channels-last; w: (C, 1, kt, kh, kw) PyTorch depthwise layout."""
    w_cl = jnp.transpose(w, (2, 3, 4, 1, 0))               # (kt, kh, kw, 1, C)
    return lax.conv_general_dilated(
        x, w_cl, window_strides=tuple(stride),
        padding=[(p, p) for p in padding],
        dimension_numbers=("NDHWC", "DHWIO", "NDHWC"),
        feature_group_count=x.shape[-1])


def pool_q_conv(q, spec, thw, has_cls):
    """Depthwise conv pooling of q (its per-head LayerNorm is fused into the attn kernel)."""
    if spec is None:
        return q, thw
    B, Nh, L, C = q.shape
    if has_cls:
        cls_tok, q_ = q[:, :, :1, :], q[:, :, 1:, :]
    else:
        q_ = q
    T, H, W = thw
    qs = depthwise_conv3d_cl(q_.reshape(B * Nh, T, H, W, C), spec["conv_w"],
                             spec["stride"], spec["padding"])
    new_thw = [int(qs.shape[1]), int(qs.shape[2]), int(qs.shape[3])]
    q_ = qs.reshape(B, Nh, -1, C)
    if has_cls:
        q_ = jnp.concatenate([cls_tok, q_], axis=2)
    return q_, new_thw


def pool_kv_conv(k, v, spec_k, spec_v, thw, has_cls):
    """k and v depthwise pooling convs batched into ONE grouped conv (channels stacked);
    their per-head LayerNorms are fused into the attention kernel."""
    if spec_k is None:
        return k, v, thw
    B, Nh, L, C = k.shape
    if has_cls:
        k_cls, k_ = k[:, :, :1, :], k[:, :, 1:, :]
        v_cls, v_ = v[:, :, :1, :], v[:, :, 1:, :]
    else:
        k_, v_ = k, v
    T, H, W = thw
    kv = jnp.concatenate([k_.reshape(B * Nh, T, H, W, C),
                          v_.reshape(B * Nh, T, H, W, C)], axis=-1)     # (B*Nh, T,H,W, 2C)
    w = jnp.concatenate([spec_k["conv_w"], spec_v["conv_w"]], axis=0)   # (2C, 1, kt, kh, kw)
    kv = depthwise_conv3d_cl(kv, w, spec_k["stride"], spec_k["padding"])
    new_thw = [int(kv.shape[1]), int(kv.shape[2]), int(kv.shape[3])]
    Lp = math.prod(new_thw)
    kv = kv.reshape(B, Nh, Lp, 2, C)
    k_p, v_p = kv[:, :, :, 0, :], kv[:, :, :, 1, :]
    if has_cls:
        k_p = jnp.concatenate([k_cls, k_p], axis=2)
        v_p = jnp.concatenate([v_cls, v_p], axis=2)
    return k_p, v_p, new_thw


def pool_skip(x, cfg, thw, has_cls):
    """MaxPool3d on the residual path (channels-last, no transposes). x: (B, L, C)."""
    if cfg is None:
        return x
    kernel, stride, pad = cfg
    B, L, C = x.shape
    if has_cls:
        cls_tok, t = x[:, :1, :], x[:, 1:, :]
    else:
        t = x
    T, H, W = thw
    t = t.reshape(B, T, H, W, C)
    t = lax.reduce_window(
        t, -jnp.inf, lax.max,
        window_dimensions=(1,) + tuple(kernel) + (1,),
        window_strides=(1,) + tuple(stride) + (1,),
        padding=((0, 0),) + tuple((p, p) for p in pad) + ((0, 0),))
    t = t.reshape(B, -1, C)
    if has_cls:
        t = jnp.concatenate([cls_tok, t], axis=1)
    return t


# ----------------------------- MultiScaleBlock forward -----------------------------
def multiscale_block_forward(x, thw, p):
    dim, dim_out, num_heads = p["dim"], p["dim_out"], p["num_heads"]
    head_dim = dim // num_heads
    scale = head_dim ** -0.5
    B, N, _ = x.shape

    # fused norm1 + qkv projection (output zero-padded to 128-lane multiple)
    qkv = ln_linear(x.reshape(B * N, dim), p["norm1_w"], p["norm1_b"],
                    p["qkv_w"], p["qkv_b"], eps=1e-6, pad_lanes=True)
    qkv = qkv.reshape(B, N, 3, num_heads, head_dim).transpose(2, 0, 3, 1, 4)
    q, k, v = qkv[0], qkv[1], qkv[2]                                    # (B, heads, N, head_dim)

    # pooling convs (XLA glue, channels-last); pool LayerNorms deferred to the attn kernel
    q, q_shape = pool_q_conv(q, p["pool_q"], thw, CLS_EMBED_ON)
    k, v, _ = pool_kv_conv(k, v, p["pool_k"], p["pool_v"], thw, CLS_EMBED_ON)

    # pooled residual path (MaxPool3d skip)
    x_res = pool_skip(x, p["pool_skip"], thw, CLS_EMBED_ON)

    # fused LN(q/k/v) + attention + head-concat output proj + first residual add
    x = attention_proj(
        q, k, v, x_res, p["proj_w"], p["proj_b"], scale=scale,
        ln_q=(p["pool_q"]["norm_w"], p["pool_q"]["norm_b"]) if p["pool_q"] else None,
        ln_k=(p["pool_k"]["norm_w"], p["pool_k"]["norm_b"]) if p["pool_k"] else None,
        ln_v=(p["pool_v"]["norm_w"], p["pool_v"]["norm_b"]) if p["pool_v"] else None,
        eps=1e-5)

    # fully fused norm2 + fc1 + GELU + fc2 (+ optional block projection) + residual
    x = block_mlp(x, p)
    return x, q_shape


# ----------------------------- full MViT forward -----------------------------
def mvit_forward(inputs, params):
    x = inputs[0]                                                       # forward does x = x[0]
    x = patch_embed_conv(x, params["patch_w"], params["patch_b"])
    B, N, C = x.shape
    if CLS_EMBED_ON:
        cls_tokens = jnp.broadcast_to(params["cls_token"], (B, 1, C))
        x = jnp.concatenate([cls_tokens, x], axis=1)
    x = x + params["pos_embed"]                                         # sep_pos_embed = False
    thw = list(PATCH_DIMS)
    for bp in params["blocks"]:
        x, thw = multiscale_block_forward(x, thw, bp)

    out = {}
    for task, act in zip(TASKS, HEAD_ACT):
        hp = params["heads"][task]
        if CLS_EMBED_ON:
            # norm(x)[:, 0] == norm(x[:, 0]) since LN is per-token:
            # fuse final norm + head linear + softmax into one kernel on the cls row.
            feat = x[:, 0, :]
            out[task] = ln_linear(feat, params["norm_w"], params["norm_b"],
                                  hp["w"], hp["b"], eps=1e-6, activation=act)
        else:
            xn = layer_norm(x, params["norm_w"], params["norm_b"], eps=1e-6)
            feat = xn.mean(axis=1)
            out[task] = ln_linear(feat, params["norm_w"], params["norm_b"],
                                  hp["w"], hp["b"], eps=1e-6, apply_ln=False,
                                  activation=act)
    return out


# ----------------------------- deterministic parameter construction -----------------------------
def build_params(key):
    keys = iter(jax.random.split(key, 128))

    def randn(shape, std=0.02):
        return std * jax.random.normal(next(keys), shape, dtype=jnp.float32)

    params = {}
    kt, kh, kw = PATCH_KERNEL
    params["patch_w"] = randn((EMBED_DIM, IN_CHANS, kt, kh, kw))        # nn.Conv3d weight
    params["patch_b"] = jnp.zeros((EMBED_DIM,), jnp.float32)
    pos_dim = NUM_PATCHES + (1 if CLS_EMBED_ON else 0)
    params["pos_embed"] = randn((1, pos_dim, EMBED_DIM))
    params["cls_token"] = randn((1, 1, EMBED_DIM))

    # --- replicate __init__ pooling-schedule computation ---
    dim_mul = [1.0] * (DEPTH + 1)
    head_mul = [1.0] * (DEPTH + 1)
    for i, m in DIM_MUL:
        dim_mul[i] = m
    for i, m in HEAD_MUL:
        head_mul[i] = m
    pool_q = [[] for _ in range(DEPTH)]
    pool_kv = [[] for _ in range(DEPTH)]
    stride_q = [[] for _ in range(DEPTH)]
    stride_kv = [[] for _ in range(DEPTH)]
    for cfg_i in POOL_Q_STRIDE:
        stride_q[cfg_i[0]] = cfg_i[1:]
        pool_q[cfg_i[0]] = POOL_KVQ_KERNEL
    pool_kv_stride = []
    _skv = list(POOL_KV_STRIDE_ADAPTIVE)
    for i in range(DEPTH):
        if len(stride_q[i]) > 0:
            _skv = [max(_skv[d] // stride_q[i][d], 1) for d in range(len(_skv))]
        pool_kv_stride.append([i] + _skv)
    for cfg_i in pool_kv_stride:
        stride_kv[cfg_i[0]] = cfg_i[1:]
        pool_kv[cfg_i[0]] = POOL_KVQ_KERNEL

    blocks = []
    nh = NUM_HEADS
    ed = EMBED_DIM
    for i in range(DEPTH):
        nh = round_width(nh, head_mul[i])
        ed = round_width(ed, dim_mul[i], divisor=nh)
        dim_out = round_width(ed, dim_mul[i + 1],
                              divisor=round_width(nh, head_mul[i + 1]))
        head_dim = ed // nh
        hidden = int(ed * MLP_RATIO)
        bp = {"dim": ed, "dim_out": dim_out, "num_heads": nh}
        bp["norm1_w"] = jnp.ones((ed,), jnp.float32)
        bp["norm1_b"] = jnp.zeros((ed,), jnp.float32)
        bp["qkv_w"] = randn((ed, 3 * ed))
        bp["qkv_b"] = jnp.zeros((3 * ed,), jnp.float32)
        bp["proj_w"] = randn((ed, ed))
        bp["proj_b"] = jnp.zeros((ed,), jnp.float32)
        if len(pool_q[i]) > 0:
            bp["pool_q"] = dict(conv_w=randn((head_dim, 1, *pool_q[i])),
                                stride=list(stride_q[i]),
                                padding=[kk // 2 for kk in pool_q[i]],
                                norm_w=jnp.ones((head_dim,), jnp.float32),
                                norm_b=jnp.zeros((head_dim,), jnp.float32))
        else:
            bp["pool_q"] = None
        if len(pool_kv[i]) > 0:
            for name in ("pool_k", "pool_v"):
                bp[name] = dict(conv_w=randn((head_dim, 1, *pool_kv[i])),
                                stride=list(stride_kv[i]),
                                padding=[kk // 2 for kk in pool_kv[i]],
                                norm_w=jnp.ones((head_dim,), jnp.float32),
                                norm_b=jnp.zeros((head_dim,), jnp.float32))
        else:
            bp["pool_k"] = None
            bp["pool_v"] = None
        kernel_skip = [s + 1 if s > 1 else s for s in stride_q[i]]
        if len(kernel_skip) > 0:
            bp["pool_skip"] = (kernel_skip, list(stride_q[i]),
                               [kk // 2 for kk in kernel_skip])
        else:
            bp["pool_skip"] = None
        bp["norm2_w"] = jnp.ones((ed,), jnp.float32)
        bp["norm2_b"] = jnp.zeros((ed,), jnp.float32)
        bp["fc1_w"] = randn((ed, hidden))
        bp["fc1_b"] = jnp.zeros((hidden,), jnp.float32)
        bp["fc2_w"] = randn((hidden, dim_out))
        bp["fc2_b"] = jnp.zeros((dim_out,), jnp.float32)
        if ed != dim_out:
            bp["blk_proj_w"] = randn((ed, dim_out))
            bp["blk_proj_b"] = jnp.zeros((dim_out,), jnp.float32)
        blocks.append(bp)
    params["blocks"] = blocks

    final_dim = blocks[-1]["dim_out"]
    params["norm_w"] = jnp.ones((final_dim,), jnp.float32)
    params["norm_b"] = jnp.zeros((final_dim,), jnp.float32)
    params["heads"] = {}
    for task, nc in zip(TASKS, NUM_CLASSES):
        params["heads"][task] = {"w": randn((final_dim, nc)),
                                 "b": jnp.zeros((nc,), jnp.float32)}
    return params


if __name__ == "__main__":
    key = jax.random.PRNGKey(0)
    pkey, dkey = jax.random.split(key)
    params = build_params(pkey)
    x = jax.random.normal(dkey, (BATCH, IN_CHANS, NUM_FRAMES, CROP_SIZE, CROP_SIZE),
                          dtype=jnp.float32)

    # jit with the params closed over so the static config (ints/lists) stays Python-side
    # and XLA can schedule the glue ops around the Pallas custom calls.
    fwd = jax.jit(lambda inp: mvit_forward([inp], params))
    out = fwd(x)
    jax.block_until_ready(out)
    assert out["action"].shape == (BATCH, NUM_CLASSES[0])
    print("KERNEL_OK")
</pallas_src>

<mosaic_0001>
module attributes {stable_mosaic.version = 11 : i64} {
  func.func @_ln_linear_kernel(%arg0: i32, %arg1: memref<66x32xf32, #tpu.memory_space<vmem>>, %arg2: memref<1x32xf32, #tpu.memory_space<vmem>>, %arg3: memref<1x32xf32, #tpu.memory_space<vmem>>, %arg4: memref<32x128xf32, #tpu.memory_space<vmem>>, %arg5: memref<1x128xf32, #tpu.memory_space<vmem>>, %arg6: memref<66x128xf32, #tpu.memory_space<vmem>>) attributes {dimension_semantics = [#tpu.dimension_semantics<parallel>], iteration_bounds = array<i64: 1>, scalar_prefetch = 0 : i64, scratch_operands = 0 : i64, tpu.core_type = #tpu.core_type<tc>, window_params = [{transform_indices = @transform_0, window_bounds = array<i64: 66, 32>}, {pipeline_mode = #tpu.pipeline_mode<synchronous>, transform_indices = @transform_1, window_bounds = array<i64: 1, 32>}, {pipeline_mode = #tpu.pipeline_mode<synchronous>, transform_indices = @transform_2, window_bounds = array<i64: 1, 32>}, {pipeline_mode = #tpu.pipeline_mode<synchronous>, transform_indices = @transform_3, window_bounds = array<i64: 32, 128>}, {pipeline_mode = #tpu.pipeline_mode<synchronous>, transform_indices = @transform_4, window_bounds = array<i64: 1, 128>}, {transform_indices = @transform_5, window_bounds = array<i64: 66, 128>}]} {
    %c0 = arith.constant 0 : index
    %c0_0 = arith.constant 0 : index
    %0 = vector.load %arg1[%c0, %c0_0] : memref<66x32xf32, #tpu.memory_space<vmem>>, vector<66x32xf32>
    %c0_1 = arith.constant 0 : index
    %c0_2 = arith.constant 0 : index
    %1 = vector.load %arg2[%c0_1, %c0_2] : memref<1x32xf32, #tpu.memory_space<vmem>>, vector<1x32xf32>
    %c0_3 = arith.constant 0 : index
    %c0_4 = arith.constant 0 : index
    %2 = vector.load %arg3[%c0_3, %c0_4] : memref<1x32xf32, #tpu.memory_space<vmem>>, vector<1x32xf32>
    %cst = arith.constant dense<0.000000e+00> : vector<66xf32>
    %3 = vector.multi_reduction <add>, %0, %cst [1] : vector<66x32xf32> to vector<66xf32>
    %4 = vector.shape_cast %3 : vector<66xf32> to vector<66x1xf32>
    %cst_5 = arith.constant 3.200000e+01 : f32
    %5 = vector.broadcast %cst_5 : f32 to vector<66x1xf32>
    %6 = arith.divf %4, %5 : vector<66x1xf32>
    %7 = vector.broadcast %6 : vector<66x1xf32> to vector<66x32xf32>
    %8 = arith.subf %0, %7 : vector<66x32xf32>
    %9 = arith.mulf %8, %8 : vector<66x32xf32>
    %cst_6 = arith.constant dense<0.000000e+00> : vector<66xf32>
    %10 = vector.multi_reduction <add>, %9, %cst_6 [1] : vector<66x32xf32> to vector<66xf32>
    %11 = vector.shape_cast %10 : vector<66xf32> to vector<66x1xf32>
    %cst_7 = arith.constant 3.200000e+01 : f32
    %12 = vector.broadcast %cst_7 : f32 to vector<66x1xf32>
    %13 = arith.divf %11, %12 : vector<66x1xf32>
    %cst_8 = arith.constant 9.99999997E-7 : f32
    %14 = vector.broadcast %cst_8 : f32 to vector<66x1xf32>
    %15 = arith.addf %13, %14 : vector<66x1xf32>
    %16 = math.rsqrt %15 : vector<66x1xf32>
    %17 = vector.broadcast %16 : vector<66x1xf32> to vector<66x32xf32>
    %18 = arith.mulf %8, %17 : vector<66x32xf32>
    %19 = vector.broadcast %1 : vector<1x32xf32> to vector<66x32xf32>
    %20 = arith.mulf %18, %19 : vector<66x32xf32>
    %21 = vector.broadcast %2 : vector<1x32xf32> to vector<66x32xf32>
    %22 = arith.addf %20, %21 : vector<66x32xf32>
    %c0_9 = arith.constant 0 : index
    %c0_10 = arith.constant 0 : index
    %23 = vector.load %arg4[%c0_9, %c0_10] : memref<32x128xf32, #tpu.memory_space<vmem>>, vector<32x128xf32>
    %cst_11 = arith.constant dense<0.000000e+00> : vector<66x128xf32>
    %24 = tpu.matmul %22, %23, %cst_11 {dimension_numbers = #tpu.dot_dimension_numbers<[1], [0], [0], [1], [0, 0, 1, 1], [], []>} : vector<66x32xf32>, vector<32x128xf32>, vector<66x128xf32> -> vector<66x128xf32>
    %c0_12 = arith.constant 0 : index
    %c0_13 = arith.constant 0 : index
    %25 = vector.load %arg5[%c0_12, %c0_13] : memref<1x128xf32, #tpu.memory_space<vmem>>, vector<1x128xf32>
    %26 = vector.broadcast %25 : vector<1x128xf32> to vector<66x128xf32>
    %27 = arith.addf %24, %26 : vector<66x128xf32>
    %c0_14 = arith.constant 0 : index
    %c0_15 = arith.constant 0 : index
    %28 = vector.load %arg6[%c0_14, %c0_15] : memref<66x128xf32, #tpu.memory_space<vmem>>, vector<66x128xf32>
    tpu.vector_store %arg6[%c0_14, %c0_15], %27 {strides = array<i32>} : memref<66x128xf32, #tpu.memory_space<vmem>>, vector<66x128xf32>,
    return
  }
  func.func @transform_0(%arg0: i32) -> (i32, i32) {
    %c0_i32 = arith.constant 0 : i32
    %c0_i32_0 = arith.constant 0 : i32
    return %arg0, %c0_i32 : i32, i32
  }
  func.func @transform_1(%arg0: i32) -> (i32, i32) {
    %c0_i32 = arith.constant 0 : i32
    %c0_i32_0 = arith.constant 0 : i32
    %c0_i32_1 = arith.constant 0 : i32
    return %c0_i32, %c0_i32_0 : i32, i32
  }
  func.func @transform_2(%arg0: i32) -> (i32, i32) {
    %c0_i32 = arith.constant 0 : i32
    %c0_i32_0 = arith.constant 0 : i32
    %c0_i32_1 = arith.constant 0 : i32
    return %c0_i32, %c0_i32_0 : i32, i32
  }
  func.func @transform_3(%arg0: i32) -> (i32, i32) {
    %c0_i32 = arith.constant 0 : i32
    %c0_i32_0 = arith.constant 0 : i32
    %c0_i32_1 = arith.constant 0 : i32
    return %c0_i32, %c0_i32_0 : i32, i32
  }
  func.func @transform_4(%arg0: i32) -> (i32, i32) {
    %c0_i32 = arith.constant 0 : i32
    %c0_i32_0 = arith.constant 0 : i32
    %c0_i32_1 = arith.constant 0 : i32
    return %c0_i32, %c0_i32_0 : i32, i32
  }
  func.func @transform_5(%arg0: i32) -> (i32, i32) {
    %c0_i32 = arith.constant 0 : i32
    %c0_i32_0 = arith.constant 0 : i32
    return %arg0, %c0_i32 : i32, i32
  }
}

module attributes {stable_mosaic.version = 11 : i64} {
  func.func @_attn_kernel(%arg0: i32, %arg1: memref<2x33x32xf32, #tpu.memory_space<vmem>>, %arg2: memref<2x9x32xf32, #tpu.memory_space<vmem>>, %arg3: memref<2x9x32xf32, #tpu.memory_space<vmem>>, %arg4: memref<1x32xf32, #tpu.memory_space<vmem>>, %arg5: memref<1x32xf32, #tpu.memory_space<vmem>>, %arg6: memref<1x32xf32, #tpu.memory_space<vmem>>, %arg7: memref<1x32xf32, #tpu.memory_space<vmem>>, %arg8: memref<32x32xf32, #tpu.memory_space<vmem>>, %arg9: memref<1x32xf32, #tpu.memory_space<vmem>>, %arg10: memref<2x33x32xf32, #tpu.memory_space<vmem>>, %arg11: memref<2x33x32xf32, #tpu.memory_space<vmem>>) attributes {dimension_semantics = [#tpu.dimension_semantics<arbitrary>], iteration_bounds = array<i64: 1>, scalar_prefetch = 0 : i64, scratch_operands = 0 : i64, tpu.core_type = #tpu.core_type<tc>, window_params = [{pipeline_mode = #tpu.pipeline_mode<synchronous>, transform_indices = @transform_0, window_bounds = array<i64: 2, 33, 32>}, {pipeline_mode = #tpu.pipeline_mode<synchronous>, transform_indices = @transform_1, window_bounds = array<i64: 2, 9, 32>}, {pipeline_mode = #tpu.pipeline_mode<synchronous>, transform_indices = @transform_2, window_bounds = array<i64: 2, 9, 32>}, {pipeline_mode = #tpu.pipeline_mode<synchronous>, transform_indices = @transform_3, window_bounds = array<i64: 1, 32>}, {pipeline_mode = #tpu.pipeline_mode<synchronous>, transform_indices = @transform_4, window_bounds = array<i64: 1, 32>}, {pipeline_mode = #tpu.pipeline_mode<synchronous>, transform_indices = @transform_5, window_bounds = array<i64: 1, 32>}, {pipeline_mode = #tpu.pipeline_mode<synchronous>, transform_indices = @transform_6, window_bounds = array<i64: 1, 32>}, {pipeline_mode = #tpu.pipeline_mode<synchronous>, transform_indices = @transform_7, window_bounds = array<i64: 32, 32>}, {pipeline_mode = #tpu.pipeline_mode<synchronous>, transform_indices = @transform_8, window_bounds = array<i64: 1, 32>}, {pipeline_mode = #tpu.pipeline_mode<synchronous>, transform_indices = @transform_9, window_bounds = array<i64: 2, 33, 32>}, {pipeline_mode = #tpu.pipeline_mode<synchronous>, transform_indices = @transform_10, window_bounds = array<i64: 2, 33, 32>}]} {
    %c0 = arith.constant 0 : index
    %c0_0 = arith.constant 0 : index
    %c0_1 = arith.constant 0 : index
    %0 = vector.load %arg1[%c0, %c0_0, %c0_1] : memref<2x33x32xf32, #tpu.memory_space<vmem>>, vector<2x33x32xf32>
    %c0_2 = arith.constant 0 : index
    %c0_3 = arith.constant 0 : index
    %c0_4 = arith.constant 0 : index
    %1 = vector.load %arg2[%c0_2, %c0_3, %c0_4] : memref<2x9x32xf32, #tpu.memory_space<vmem>>, vector<2x9x32xf32>
    %c0_5 = arith.constant 0 : index
    %c0_6 = arith.constant 0 : index
    %c0_7 = arith.constant 0 : index
    %2 = vector.load %arg3[%c0_5, %c0_6, %c0_7] : memref<2x9x32xf32, #tpu.memory_space<vmem>>, vector<2x9x32xf32>
    %cst = arith.constant 0.176776692 : f32
    %3 = vector.broadcast %cst : f32 to vector<2x33x32xf32>
    %4 = arith.mulf %0, %3 : vector<2x33x32xf32>
    %c0_8 = arith.constant 0 : index
    %c0_9 = arith.constant 0 : index
    %5 = vector.load %arg4[%c0_8, %c0_9] : memref<1x32xf32, #tpu.memory_space<vmem>>, vector<1x32xf32>
    %c0_10 = arith.constant 0 : index
    %c0_11 = arith.constant 0 : index
    %6 = vector.load %arg5[%c0_10, %c0_11] : memref<1x32xf32, #tpu.memory_space<vmem>>, vector<1x32xf32>
    %cst_12 = arith.constant dense<0.000000e+00> : vector<2x9xf32>
    %7 = vector.multi_reduction <add>, %1, %cst_12 [2] : vector<2x9x32xf32> to vector<2x9xf32>
    %8 = vector.shape_cast %7 : vector<2x9xf32> to vector<2x9x1xf32>
    %cst_13 = arith.constant 3.200000e+01 : f32
    %9 = vector.broadcast %cst_13 : f32 to vector<2x9x1xf32>
    %10 = arith.divf %8, %9 : vector<2x9x1xf32>
    %11 = vector.broadcast %10 : vector<2x9x1xf32> to vector<2x9x32xf32>
    %12 = arith.subf %1, %11 : vector<2x9x32xf32>
    %13 = arith.mulf %12, %12 : vector<2x9x32xf32>
    %cst_14 = arith.constant dense<0.000000e+00> : vector<2x9xf32>
    %14 = vector.multi_reduction <add>, %13, %cst_14 [2] : vector<2x9x32xf32> to vector<2x9xf32>
    %15 = vector.shape_cast %14 : vector<2x9xf32> to vector<2x9x1xf32>
    %cst_15 = arith.constant 3.200000e+01 : f32
    %16 = vector.broadcast %cst_15 : f32 to vector<2x9x1xf32>
    %17 = arith.divf %15, %16 : vector<2x9x1xf32>
    %cst_16 = arith.constant 9.99999974E-6 : f32
    %18 = vector.broadcast %cst_16 : f32 to vector<2x9x1xf32>
    %19 = arith.addf %17, %18 : vector<2x9x1xf32>
    %20 = math.rsqrt %19 : vector<2x9x1xf32>
    %21 = vector.broadcast %20 : vector<2x9x1xf32> to vector<2x9x32xf32>
    %22 = arith.mulf %12, %21 : vector<2x9x32xf32>
    %23 = vector.shape_cast %5 : vector<1x32xf32> to vector<1x1x32xf32>
    %24 = vector.broadcast %23 : vector<1x1x32xf32> to vector<2x9x32xf32>
    %25 = arith.mulf %22, %24 : vector<2x9x32xf32>
    %26 = vector.shape_cast %6 : vector<1x32xf32> to vector<1x1x32xf32>
    %27 = vector.broadcast %26 : vector<1x1x32xf32> to vector<2x9x32xf32>
    %28 = arith.addf %25, %27 : vector<2x9x32xf32>
    %c0_17 = arith.constant 0 : index
    %c0_18 = arith.constant 0 : index
    %29 = vector.load %arg6[%c0_17, %c0_18] : memref<1x32xf32, #tpu.memory_space<vmem>>, vector<1x32xf32>
    %c0_19 = arith.constant 0 : index
    %c0_20 = arith.constant 0 : index
    %30 = vector.load %arg7[%c0_19, %c0_20] : memref<1x32xf32, #tpu.memory_space<vmem>>, vector<1x32xf32>
    %cst_21 = arith.constant dense<0.000000e+00> : vector<2x9xf32>
    %31 = vector.multi_reduction <add>, %2, %cst_21 [2] : vector<2x9x32xf32> to vector<2x9xf32>
    %32 = vector.shape_cast %31 : vector<2x9xf32> to vector<2x9x1xf32>
    %cst_22 = arith.constant 3.200000e+01 : f32
    %33 = vector.broadcast %cst_22 : f32 to vector<2x9x1xf32>
    %34 = arith.divf %32, %33 : vector<2x9x1xf32>
    %35 = vector.broadcast %34 : vector<2x9x1xf32> to vector<2x9x32xf32>
    %36 = arith.subf %2, %35 : vector<2x9x32xf32>
    %37 = arith.mulf %36, %36 : vector<2x9x32xf32>
    %cst_23 = arith.constant dense<0.000000e+00> : vector<2x9xf32>
    %38 = vector.multi_reduction <add>, %37, %cst_23 [2] : vector<2x9x32xf32> to vector<2x9xf32>
    %39 = vector.shape_cast %38 : vector<2x9xf32> to vector<2x9x1xf32>
    %cst_24 = arith.constant 3.200000e+01 : f32
    %40 = vector.broadcast %cst_24 : f32 to vector<2x9x1xf32>
    %41 = arith.divf %39, %40 : vector<2x9x1xf32>
    %cst_25 = arith.constant 9.99999974E-6 : f32
    %42 = vector.broadcast %cst_25 : f32 to vector<2x9x1xf32>
    %43 = arith.addf %41, %42 : vector<2x9x1xf32>
    %44 = math.rsqrt %43 : vector<2x9x1xf32>
    %45 = vector.broadcast %44 : vector<2x9x1xf32> to vector<2x9x32xf32>
    %46 = arith.mulf %36, %45 : vector<2x9x32xf32>
    %47 = vector.shape_cast %29 : vector<1x32xf32> to vector<1x1x32xf32>
    %48 = vector.broadcast %47 : vector<1x1x32xf32> to vector<2x9x32xf32>
    %49 = arith.mulf %46, %48 : vector<2x9x32xf32>
    %50 = vector.shape_cast %30 : vector<1x32xf32> to vector<1x1x32xf32>
    %51 = vector.broadcast %50 : vector<1x1x32xf32> to vector<2x9x32xf32>
    %52 = arith.addf %49, %51 : vector<2x9x32xf32>
    "tpu.trace_start"() <{level = 10 : i32, message = "bqd,bkd->bqk"}> : () -> ()
    %cst_26 = arith.constant dense<0.000000e+00> : vector<2x33x9xf32>
    %53 = tpu.matmul %4, %28, %cst_26 {dimension_numbers = #tpu.dot_dimension_numbers<[2], [2], [1], [1], [0, 0, 0, 1, 1, 1], [0], [0]>} : vector<2x33x32xf32>, vector<2x9x32xf32>, vector<2x33x9xf32> -> vector<2x33x9xf32>
    "tpu.trace_stop"() : () -> ()
    %cst_27 = arith.constant dense<0xFF800000> : vector<2x33xf32>
    %54 = vector.multi_reduction <maximumf>, %53, %cst_27 [2] : vector<2x33x9xf32> to vector<2x33xf32>
    %55 = vector.shape_cast %54 : vector<2x33xf32> to vector<2x33x1xf32>
    %56 = vector.broadcast %55 : vector<2x33x1xf32> to vector<2x33x9xf32>
    %57 = arith.subf %53, %56 : vector<2x33x9xf32>
    %58 = math.exp %57 : vector<2x33x9xf32>
    %cst_28 = arith.constant dense<0.000000e+00> : vector<2x33xf32>
    %59 = vector.multi_reduction <add>, %58, %cst_28 [2] : vector<2x33x9xf32> to vector<2x33xf32>
    %60 = vector.shape_cast %59 : vector<2x33xf32> to vector<2x33x1xf32>
    %61 = tpu.reciprocal %60 {approx = true} : vector<2x33x1xf32> -> vector<2x33x1xf32>
    %62 = vector.broadcast %61 : vector<2x33x1xf32> to vector<2x33x9xf32>
    %63 = arith.mulf %58, %62 : vector<2x33x9xf32>
    "tpu.trace_start"() <{level = 10 : i32, message = "bqk,bkd->bqd"}> : () -> ()
    %cst_29 = arith.constant dense<0.000000e+00> : vector<2x33x32xf32>
    %64 = tpu.matmul %63, %52, %cst_29 {dimension_numbers = #tpu.dot_dimension_numbers<[2], [1], [1], [2], [0, 0, 0, 1, 1, 2], [0], [0]>} : vector<2x33x9xf32>, vector<2x9x32xf32>, vector<2x33x32xf32> -> vector<2x33x32xf32>
    "tpu.trace_stop"() : () -> ()
    %c0_30 = arith.constant 0 : index
    %c0_31 = arith.constant 0 : index
    %65 = vector.load %arg8[%c0_30, %c0_31] : memref<32x32xf32, #tpu.memory_space<vmem>>, vector<32x32xf32>
    %c0_32 = arith.constant 0 : index
    %c0_33 = arith.constant 0 : index
    %66 = vector.load %arg9[%c0_32, %c0_33] : memref<1x32xf32, #tpu.memory_space<vmem>>, vector<1x32xf32>
    %67 = vector.extract_strided_slice %64 {offsets = [0, 0, 0], sizes = [1, 33, 32], strides = [1, 1, 1]} : vector<2x33x32xf32> to vector<1x33x32xf32>
    %68 = vector.shape_cast %67 : vector<1x33x32xf32> to vector<33x32xf32>
    %c0_34 = arith.constant 0 : index
    %c0_35 = arith.constant 0 : index
    %c0_36 = arith.constant 0 : index
    %69 = vector.load %arg10[%c0_34, %c0_35, %c0_36] : memref<2x33x32xf32, #tpu.memory_space<vmem>>, vector<1x33x32xf32>
    %70 = vector.shape_cast %69 : vector<1x33x32xf32> to vector<33x32xf32>
    %71 = vector.broadcast %66 : vector<1x32xf32> to vector<33x32xf32>
    %72 = arith.addf %70, %71 : vector<33x32xf32>
    %cst_37 = arith.constant dense<0.000000e+00> : vector<33x32xf32>
    %73 = tpu.matmul %68, %65, %cst_37 {dimension_numbers = #tpu.dot_dimension_numbers<[1], [0], [0], [1], [0, 0, 1, 1], [], []>} : vector<33x32xf32>, vector<32x32xf32>, vector<33x32xf32> -> vector<33x32xf32>
    %74 = arith.addf %72, %73 : vector<33x32xf32>
    %c0_38 = arith.constant 0 : index
    %c0_39 = arith.constant 0 : index
    %c0_40 = arith.constant 0 : index
    %75 = vector.load %arg11[%c0_38, %c0_39, %c0_40] : memref<2x33x32xf32, #tpu.memory_space<vmem>>, vector<1x33x32xf32>
    %76 = vector.shape_cast %75 : vector<1x33x32xf32> to vector<33x32xf32>
    %77 = vector.shape_cast %74 : vector<33x32xf32> to vector<1x33x32xf32>
    tpu.vector_store %arg11[%c0_38, %c0_39, %c0_40], %77 {strides = array<i32>} : memref<2x33x32xf32, #tpu.memory_space<vmem>>, vector<1x33x32xf32>,
    %78 = vector.extract_strided_slice %64 {offsets = [1, 0, 0], sizes = [1, 33, 32], strides = [1, 1, 1]} : vector<2x33x32xf32> to vector<1x33x32xf32>
    %79 = vector.shape_cast %78 : vector<1x33x32xf32> to vector<33x32xf32>
    %c1 = arith.constant 1 : index
    %c0_41 = arith.constant 0 : index
    %c0_42 = arith.constant 0 : index
    %80 = vector.load %arg10[%c1, %c0_41, %c0_42] : memref<2x33x32xf32, #tpu.memory_space<vmem>>, vector<1x33x32xf32>
    %81 = vector.shape_cast %80 : vector<1x33x32xf32> to vector<33x32xf32>
    %82 = vector.broadcast %66 : vector<1x32xf32> to vector<33x32xf32>
    %83 = arith.addf %81, %82 : vector<33x32xf32>
    %cst_43 = arith.constant dense<0.000000e+00> : vector<33x32xf32>
    %84 = tpu.matmul %79, %65, %cst_43 {dimension_numbers = #tpu.dot_dimension_numbers<[1], [0], [0], [1], [0, 0, 1, 1], [], []>} : vector<33x32xf32>, vector<32x32xf32>, vector<33x32xf32> -> vector<33x32xf32>
    %85 = arith.addf %83, %84 : vector<33x32xf32>
    %c1_44 = arith.constant 1 : index
    %c0_45 = arith.constant 0 : index
    %c0_46 = arith.constant 0 : index
    %86 = vector.load %arg11[%c1_44, %c0_45, %c0_46] : memref<2x33x32xf32, #tpu.memory_space<vmem>>, vector<1x33x32xf32>
    %87 = vector.shape_cast %86 : vector<1x33x32xf32> to vector<33x32xf32>
    %88 = vector.shape_cast %85 : vector<33x32xf32> to vector<1x33x32xf32>
    tpu.vector_store %arg11[%c1_44, %c0_45, %c0_46], %88 {strides = array<i32>} : memref<2x33x32xf32, #tpu.memory_space<vmem>>, vector<1x33x32xf32>,
    return
  }
  func.func @transform_0(%arg0: i32) -> (i32, i32, i32) {
    %c0_i32 = arith.constant 0 : i32
    %c0_i32_0 = arith.constant 0 : i32
    %c0_i32_1 = arith.constant 0 : i32
    %c0_i32_2 = arith.constant 0 : i32
    return %c0_i32, %c0_i32_0, %c0_i32_1 : i32, i32, i32
  }
  func.func @transform_1(%arg0: i32) -> (i32, i32, i32) {
    %c0_i32 = arith.constant 0 : i32
    %c0_i32_0 = arith.constant 0 : i32
    %c0_i32_1 = arith.constant 0 : i32
    %c0_i32_2 = arith.constant 0 : i32
    return %c0_i32, %c0_i32_0, %c0_i32_1 : i32, i32, i32
  }
  func.func @transform_2(%arg0: i32) -> (i32, i32, i32) {
    %c0_i32 = arith.constant 0 : i32
    %c0_i32_0 = arith.constant 0 : i32
    %c0_i32_1 = arith.constant 0 : i32
    %c0_i32_2 = arith.constant 0 : i32
    return %c0_i32, %c0_i32_0, %c0_i32_1 : i32, i32, i32
  }
  func.func @transform_3(%arg0: i32) -> (i32, i32) {
    %c0_i32 = arith.constant 0 : i32
    %c0_i32_0 = arith.constant 0 : i32
    %c0_i32_1 = arith.constant 0 : i32
    return %c0_i32, %c0_i32_0 : i32, i32
  }
  func.func @transform_4(%arg0: i32) -> (i32, i32) {
    %c0_i32 = arith.constant 0 : i32
    %c0_i32_0 = arith.constant 0 : i32
    %c0_i32_1 = arith.constant 0 : i32
    return %c0_i32, %c0_i32_0 : i32, i32
  }
  func.func @transform_5(%arg0: i32) -> (i32, i32) {
    %c0_i32 = arith.constant 0 : i32
    %c0_i32_0 = arith.constant 0 : i32
    %c0_i32_1 = arith.constant 0 : i32
    return %c0_i32, %c0_i32_0 : i32, i32
  }
  func.func @transform_6(%arg0: i32) -> (i32, i32) {
    %c0_i32 = arith.constant 0 : i32
    %c0_i32_0 = arith.constant 0 : i32
    %c0_i32_1 = arith.constant 0 : i32
    return %c0_i32, %c0_i32_0 : i32, i32
  }
  func.func @transform_7(%arg0: i32) -> (i32, i32) {
    %c0_i32 = arith.constant 0 : i32
    %c0_i32_0 = arith.constant 0 : i32
    %c0_i32_1 = arith.constant 0 : i32
    return %c0_i32, %c0_i32_0 : i32, i32
  }
  func.func @transform_8(%arg0: i32) -> (i32, i32) {
    %c0_i32 = arith.constant 0 : i32
    %c0_i32_0 = arith.constant 0 : i32
    %c0_i32_1 = arith.constant 0 : i32
    return %c0_i32, %c0_i32_0 : i32, i32
  }
  func.func @transform_9(%arg0: i32) -> (i32, i32, i32) {
    %c0_i32 = arith.constant 0 : i32
    %c0_i32_0 = arith.constant 0 : i32
    %c0_i32_1 = arith.constant 0 : i32
    %c0_i32_2 = arith.constant 0 : i32
    return %c0_i32, %c0_i32_0, %c0_i32_1 : i32, i32, i32
  }
  func.func @transform_10(%arg0: i32) -> (i32, i32, i32) {
    %c0_i32 = arith.constant 0 : i32
    %c0_i32_0 = arith.constant 0 : i32
    %c0_i32_1 = arith.constant 0 : i32
    %c0_i32_2 = arith.constant 0 : i32
    return %c0_i32, %c0_i32_0, %c0_i32_1 : i32, i32, i32
  }
}

module attributes {stable_mosaic.version = 11 : i64} {
  func.func @_mlp_kernel(%arg0: i32, %arg1: memref<66x32xf32, #tpu.memory_space<vmem>>, %arg2: memref<1x32xf32, #tpu.memory_space<vmem>>, %arg3: memref<1x32xf32, #tpu.memory_space<vmem>>, %arg4: memref<32x128xf32, #tpu.memory_space<vmem>>, %arg5: memref<1x128xf32, #tpu.memory_space<vmem>>, %arg6: memref<128x64xf32, #tpu.memory_space<vmem>>, %arg7: memref<1x64xf32, #tpu.memory_space<vmem>>, %arg8: memref<32x64xf32, #tpu.memory_space<vmem>>, %arg9: memref<1x64xf32, #tpu.memory_space<vmem>>, %arg10: memref<66x64xf32, #tpu.memory_space<vmem>>) attributes {dimension_semantics = [#tpu.dimension_semantics<parallel>], iteration_bounds = array<i64: 1>, scalar_prefetch = 0 : i64, scratch_operands = 0 : i64, tpu.core_type = #tpu.core_type<tc>, window_params = [{transform_indices = @transform_0, window_bounds = array<i64: 66, 32>}, {pipeline_mode = #tpu.pipeline_mode<synchronous>, transform_indices = @transform_1, window_bounds = array<i64: 1, 32>}, {pipeline_mode = #tpu.pipeline_mode<synchronous>, transform_indices = @transform_2, window_bounds = array<i64: 1, 32>}, {pipeline_mode = #tpu.pipeline_mode<synchronous>, transform_indices = @transform_3, window_bounds = array<i64: 32, 128>}, {pipeline_mode = #tpu.pipeline_mode<synchronous>, transform_indices = @transform_4, window_bounds = array<i64: 1, 128>}, {pipeline_mode = #tpu.pipeline_mode<synchronous>, transform_indices = @transform_5, window_bounds = array<i64: 128, 64>}, {pipeline_mode = #tpu.pipeline_mode<synchronous>, transform_indices = @transform_6, window_bounds = array<i64: 1, 64>}, {pipeline_mode = #tpu.pipeline_mode<synchronous>, transform_indices = @transform_7, window_bounds = array<i64: 32, 64>}, {pipeline_mode = #tpu.pipeline_mode<synchronous>, transform_indices = @transform_8, window_bounds = array<i64: 1, 64>}, {transform_indices = @transform_9, window_bounds = array<i64: 66, 64>}]} {
    %c0 = arith.constant 0 : index
    %c0_0 = arith.constant 0 : index
    %0 = vector.load %arg1[%c0, %c0_0] : memref<66x32xf32, #tpu.memory_space<vmem>>, vector<66x32xf32>
    %c0_1 = arith.constant 0 : index
    %c0_2 = arith.constant 0 : index
    %1 = vector.load %arg2[%c0_1, %c0_2] : memref<1x32xf32, #tpu.memory_space<vmem>>, vector<1x32xf32>
    %c0_3 = arith.constant 0 : index
    %c0_4 = arith.constant 0 : index
    %2 = vector.load %arg3[%c0_3, %c0_4] : memref<1x32xf32, #tpu.memory_space<vmem>>, vector<1x32xf32>
    %cst = arith.constant dense<0.000000e+00> : vector<66xf32>
    %3 = vector.multi_reduction <add>, %0, %cst [1] : vector<66x32xf32> to vector<66xf32>
    %4 = vector.shape_cast %3 : vector<66xf32> to vector<66x1xf32>
    %cst_5 = arith.constant 3.200000e+01 : f32
    %5 = vector.broadcast %cst_5 : f32 to vector<66x1xf32>
    %6 = arith.divf %4, %5 : vector<66x1xf32>
    %7 = vector.broadcast %6 : vector<66x1xf32> to vector<66x32xf32>
    %8 = arith.subf %0, %7 : vector<66x32xf32>
    %9 = arith.mulf %8, %8 : vector<66x32xf32>
    %cst_6 = arith.constant dense<0.000000e+00> : vector<66xf32>
    %10 = vector.multi_reduction <add>, %9, %cst_6 [1] : vector<66x32xf32> to vector<66xf32>
    %11 = vector.shape_cast %10 : vector<66xf32> to vector<66x1xf32>
    %cst_7 = arith.constant 3.200000e+01 : f32
    %12 = vector.broadcast %cst_7 : f32 to vector<66x1xf32>
    %13 = arith.divf %11, %12 : vector<66x1xf32>
    %cst_8 = arith.constant 9.99999997E-7 : f32
    %14 = vector.broadcast %cst_8 : f32 to vector<66x1xf32>
    %15 = arith.addf %13, %14 : vector<66x1xf32>
    %16 = math.rsqrt %15 : vector<66x1xf32>
    %17 = vector.broadcast %16 : vector<66x1xf32> to vector<66x32xf32>
    %18 = arith.mulf %8, %17 : vector<66x32xf32>
    %19 = vector.broadcast %1 : vector<1x32xf32> to vector<66x32xf32>
    %20 = arith.mulf %18, %19 : vector<66x32xf32>
    %21 = vector.broadcast %2 : vector<1x32xf32> to vector<66x32xf32>
    %22 = arith.addf %20, %21 : vector<66x32xf32>
    %c0_9 = arith.constant 0 : index
    %c0_10 = arith.constant 0 : index
    %23 = vector.load %arg4[%c0_9, %c0_10] : memref<32x128xf32, #tpu.memory_space<vmem>>, vector<32x128xf32>
    %cst_11 = arith.constant dense<0.000000e+00> : vector<66x128xf32>
    %24 = tpu.matmul %22, %23, %cst_11 {dimension_numbers = #tpu.dot_dimension_numbers<[1], [0], [0], [1], [0, 0, 1, 1], [], []>} : vector<66x32xf32>, vector<32x128xf32>, vector<66x128xf32> -> vector<66x128xf32>
    %c0_12 = arith.constant 0 : index
    %c0_13 = arith.constant 0 : index
    %25 = vector.load %arg5[%c0_12, %c0_13] : memref<1x128xf32, #tpu.memory_space<vmem>>, vector<1x128xf32>
    %26 = vector.broadcast %25 : vector<1x128xf32> to vector<66x128xf32>
    %27 = arith.addf %24, %26 : vector<66x128xf32>
    %cst_14 = arith.constant 0.707106769 : f32
    %28 = vector.broadcast %cst_14 : f32 to vector<66x128xf32>
    %29 = arith.mulf %27, %28 : vector<66x128xf32>
    %30 = math.absf %29 : vector<66x128xf32>
    %cst_15 = arith.constant 0.327591091 : f32
    %31 = vector.broadcast %cst_15 : f32 to vector<66x128xf32>
    %32 = arith.mulf %31, %30 : vector<66x128xf32>
    %cst_16 = arith.constant 1.000000e+00 : f32
    %33 = vector.broadcast %cst_16 : f32 to vector<66x128xf32>
    %34 = arith.addf %33, %32 : vector<66x128xf32>
    %cst_17 = arith.constant 1.000000e+00 : f32
    %35 = vector.broadcast %cst_17 : f32 to vector<66x128xf32>
    %36 = arith.divf %35, %34 : vector<66x128xf32>
    %cst_18 = arith.constant 1.06140542 : f32
    %37 = vector.broadcast %cst_18 : f32 to vector<66x128xf32>
    %38 = arith.mulf %37, %36 : vector<66x128xf32>
    %cst_19 = arith.constant -1.45315206 : f32
    %39 = vector.broadcast %cst_19 : f32 to vector<66x128xf32>
    %40 = arith.addf %38, %39 : vector<66x128xf32>
    %41 = arith.mulf %40, %36 : vector<66x128xf32>
    %cst_20 = arith.constant 1.42141378 : f32
    %42 = vector.broadcast %cst_20 : f32 to vector<66x128xf32>
    %43 = arith.addf %41, %42 : vector<66x128xf32>
    %44 = arith.mulf %43, %36 : vector<66x128xf32>
    %cst_21 = arith.constant -0.284496725 : f32
    %45 = vector.broadcast %cst_21 : f32 to vector<66x128xf32>
    %46 = arith.addf %44, %45 : vector<66x128xf32>
    %47 = arith.mulf %46, %36 : vector<66x128xf32>
    %cst_22 = arith.constant 0.254829586 : f32
    %48 = vector.broadcast %cst_22 : f32 to vector<66x128xf32>
    %49 = arith.addf %47, %48 : vector<66x128xf32>
    %50 = arith.mulf %49, %36 : vector<66x128xf32>
    %cst_23 = arith.constant 0.000000e+00 : f32
    %51 = vector.broadcast %cst_23 : f32 to vector<66x128xf32>
    %52 = arith.subf %51, %30 : vector<66x128xf32>
    %53 = arith.mulf %52, %30 : vector<66x128xf32>
    %54 = math.exp %53 : vector<66x128xf32>
    %55 = arith.mulf %50, %54 : vector<66x128xf32>
    %cst_24 = arith.constant 1.000000e+00 : f32
    %56 = vector.broadcast %cst_24 : f32 to vector<66x128xf32>
    %57 = arith.subf %56, %55 : vector<66x128xf32>
    %cst_25 = arith.constant 0.000000e+00 : f32
    %58 = vector.broadcast %cst_25 : f32 to vector<66x128xf32>
    %59 = arith.cmpf oge, %29, %58 : vector<66x128xf32>
    %cst_26 = arith.constant 0.000000e+00 : f32
    %60 = vector.broadcast %cst_26 : f32 to vector<66x128xf32>
    %61 = arith.subf %60, %57 : vector<66x128xf32>
    %62 = arith.select %59, %57, %61 : vector<66x128xi1>, vector<66x128xf32>
    %cst_27 = arith.constant 5.000000e-01 : f32
    %63 = vector.broadcast %cst_27 : f32 to vector<66x128xf32>
    %64 = arith.mulf %63, %27 : vector<66x128xf32>
    %cst_28 = arith.constant 1.000000e+00 : f32
    %65 = vector.broadcast %cst_28 : f32 to vector<66x128xf32>
    %66 = arith.addf %65, %62 : vector<66x128xf32>
    %67 = arith.mulf %64, %66 : vector<66x128xf32>
    %c0_29 = arith.constant 0 : index
    %c0_30 = arith.constant 0 : index
    %68 = vector.load %arg6[%c0_29, %c0_30] : memref<128x64xf32, #tpu.memory_space<vmem>>, vector<128x64xf32>
    %cst_31 = arith.constant dense<0.000000e+00> : vector<66x64xf32>
    %69 = tpu.matmul %67, %68, %cst_31 {dimension_numbers = #tpu.dot_dimension_numbers<[1], [0], [0], [1], [0, 0, 1, 1], [], []>} : vector<66x128xf32>, vector<128x64xf32>, vector<66x64xf32> -> vector<66x64xf32>
    %c0_32 = arith.constant 0 : index
    %c0_33 = arith.constant 0 : index
    %70 = vector.load %arg7[%c0_32, %c0_33] : memref<1x64xf32, #tpu.memory_space<vmem>>, vector<1x64xf32>
    %71 = vector.broadcast %70 : vector<1x64xf32> to vector<66x64xf32>
    %72 = arith.addf %69, %71 : vector<66x64xf32>
    %c0_34 = arith.constant 0 : index
    %c0_35 = arith.constant 0 : index
    %73 = vector.load %arg8[%c0_34, %c0_35] : memref<32x64xf32, #tpu.memory_space<vmem>>, vector<32x64xf32>
    %cst_36 = arith.constant dense<0.000000e+00> : vector<66x64xf32>
    %74 = tpu.matmul %22, %73, %cst_36 {dimension_numbers = #tpu.dot_dimension_numbers<[1], [0], [0], [1], [0, 0, 1, 1], [], []>} : vector<66x32xf32>, vector<32x64xf32>, vector<66x64xf32> -> vector<66x64xf32>
    %c0_37 = arith.constant 0 : index
    %c0_38 = arith.constant 0 : index
    %75 = vector.load %arg9[%c0_37, %c0_38] : memref<1x64xf32, #tpu.memory_space<vmem>>, vector<1x64xf32>
    %76 = vector.broadcast %75 : vector<1x64xf32> to vector<66x64xf32>
    %77 = arith.addf %74, %76 : vector<66x64xf32>
    %78 = arith.addf %77, %72 : vector<66x64xf32>
    %c0_39 = arith.constant 0 : index
    %c0_40 = arith.constant 0 : index
    %79 = vector.load %arg10[%c0_39, %c0_40] : memref<66x64xf32, #tpu.memory_space<vmem>>, vector<66x64xf32>
    tpu.vector_store %arg10[%c0_39, %c0_40], %78 {strides = array<i32>} : memref<66x64xf32, #tpu.memory_space<vmem>>, vector<66x64xf32>,
    return
  }
  func.func @transform_0(%arg0: i32) -> (i32, i32) {
    %c0_i32 = arith.constant 0 : i32
    %c0_i32_0 = arith.constant 0 : i32
    return %arg0, %c0_i32 : i32, i32
  }
  func.func @transform_1(%arg0: i32) -> (i32, i32) {
    %c0_i32 = arith.constant 0 : i32
    %c0_i32_0 = arith.constant 0 : i32
    %c0_i32_1 = arith.constant 0 : i32
    return %c0_i32, %c0_i32_0 : i32, i32
  }
  func.func @transform_2(%arg0: i32) -> (i32, i32) {
    %c0_i32 = arith.constant 0 : i32
    %c0_i32_0 = arith.constant 0 : i32
    %c0_i32_1 = arith.constant 0 : i32
    return %c0_i32, %c0_i32_0 : i32, i32
  }
  func.func @transform_3(%arg0: i32) -> (i32, i32) {
    %c0_i32 = arith.constant 0 : i32
    %c0_i32_0 = arith.constant 0 : i32
    %c0_i32_1 = arith.constant 0 : i32
    return %c0_i32, %c0_i32_0 : i32, i32
  }
  func.func @transform_4(%arg0: i32) -> (i32, i32) {
    %c0_i32 = arith.constant 0 : i32
    %c0_i32_0 = arith.constant 0 : i32
    %c0_i32_1 = arith.constant 0 : i32
    return %c0_i32, %c0_i32_0 : i32, i32
  }
  func.func @transform_5(%arg0: i32) -> (i32, i32) {
    %c0_i32 = arith.constant 0 : i32
    %c0_i32_0 = arith.constant 0 : i32
    %c0_i32_1 = arith.constant 0 : i32
    return %c0_i32, %c0_i32_0 : i32, i32
  }
  func.func @transform_6(%arg0: i32) -> (i32, i32) {
    %c0_i32 = arith.constant 0 : i32
    %c0_i32_0 = arith.constant 0 : i32
    %c0_i32_1 = arith.constant 0 : i32
    return %c0_i32, %c0_i32_0 : i32, i32
  }
  func.func @transform_7(%arg0: i32) -> (i32, i32) {
    %c0_i32 = arith.constant 0 : i32
    %c0_i32_0 = arith.constant 0 : i32
    %c0_i32_1 = arith.constant 0 : i32
    return %c0_i32, %c0_i32_0 : i32, i32
  }
  func.func @transform_8(%arg0: i32) -> (i32, i32) {
    %c0_i32 = arith.constant 0 : i32
    %c0_i32_0 = arith.constant 0 : i32
    %c0_i32_1 = arith.constant 0 : i32
    return %c0_i32, %c0_i32_0 : i32, i32
  }
  func.func @transform_9(%arg0: i32) -> (i32, i32) {
    %c0_i32 = arith.constant 0 : i32
    %c0_i32_0 = arith.constant 0 : i32
    return %arg0, %c0_i32 : i32, i32
  }
}

module attributes {stable_mosaic.version = 11 : i64} {
  func.func @_ln_linear_kernel(%arg0: i32, %arg1: memref<66x64xf32, #tpu.memory_space<vmem>>, %arg2: memref<1x64xf32, #tpu.memory_space<vmem>>, %arg3: memref<1x64xf32, #tpu.memory_space<vmem>>, %arg4: memref<64x256xf32, #tpu.memory_space<vmem>>, %arg5: memref<1x256xf32, #tpu.memory_space<vmem>>, %arg6: memref<66x256xf32, #tpu.memory_space<vmem>>) attributes {dimension_semantics = [#tpu.dimension_semantics<parallel>], iteration_bounds = array<i64: 1>, scalar_prefetch = 0 : i64, scratch_operands = 0 : i64, tpu.core_type = #tpu.core_type<tc>, window_params = [{transform_indices = @transform_0, window_bounds = array<i64: 66, 64>}, {pipeline_mode = #tpu.pipeline_mode<synchronous>, transform_indices = @transform_1, window_bounds = array<i64: 1, 64>}, {pipeline_mode = #tpu.pipeline_mode<synchronous>, transform_indices = @transform_2, window_bounds = array<i64: 1, 64>}, {pipeline_mode = #tpu.pipeline_mode<synchronous>, transform_indices = @transform_3, window_bounds = array<i64: 64, 256>}, {pipeline_mode = #tpu.pipeline_mode<synchronous>, transform_indices = @transform_4, window_bounds = array<i64: 1, 256>}, {transform_indices = @transform_5, window_bounds = array<i64: 66, 256>}]} {
    %c0 = arith.constant 0 : index
    %c0_0 = arith.constant 0 : index
    %0 = vector.load %arg1[%c0, %c0_0] : memref<66x64xf32, #tpu.memory_space<vmem>>, vector<66x64xf32>
    %c0_1 = arith.constant 0 : index
    %c0_2 = arith.constant 0 : index
    %1 = vector.load %arg2[%c0_1, %c0_2] : memref<1x64xf32, #tpu.memory_space<vmem>>, vector<1x64xf32>
    %c0_3 = arith.constant 0 : index
    %c0_4 = arith.constant 0 : index
    %2 = vector.load %arg3[%c0_3, %c0_4] : memref<1x64xf32, #tpu.memory_space<vmem>>, vector<1x64xf32>
    %cst = arith.constant dense<0.000000e+00> : vector<66xf32>
    %3 = vector.multi_reduction <add>, %0, %cst [1] : vector<66x64xf32> to vector<66xf32>
    %4 = vector.shape_cast %3 : vector<66xf32> to vector<66x1xf32>
    %cst_5 = arith.constant 6.400000e+01 : f32
    %5 = vector.broadcast %cst_5 : f32 to vector<66x1xf32>
    %6 = arith.divf %4, %5 : vector<66x1xf32>
    %7 = vector.broadcast %6 : vector<66x1xf32> to vector<66x64xf32>
    %8 = arith.subf %0, %7 : vector<66x64xf32>
    %9 = arith.mulf %8, %8 : vector<66x64xf32>
    %cst_6 = arith.constant dense<0.000000e+00> : vector<66xf32>
    %10 = vector.multi_reduction <add>, %9, %cst_6 [1] : vector<66x64xf32> to vector<66xf32>
    %11 = vector.shape_cast %10 : vector<66xf32> to vector<66x1xf32>
    %cst_7 = arith.constant 6.400000e+01 : f32
    %12 = vector.broadcast %cst_7 : f32 to vector<66x1xf32>
    %13 = arith.divf %11, %12 : vector<66x1xf32>
    %cst_8 = arith.constant 9.99999997E-7 : f32
    %14 = vector.broadcast %cst_8 : f32 to vector<66x1xf32>
    %15 = arith.addf %13, %14 : vector<66x1xf32>
    %16 = math.rsqrt %15 : vector<66x1xf32>
    %17 = vector.broadcast %16 : vector<66x1xf32> to vector<66x64xf32>
    %18 = arith.mulf %8, %17 : vector<66x64xf32>
    %19 = vector.broadcast %1 : vector<1x64xf32> to vector<66x64xf32>
    %20 = arith.mulf %18, %19 : vector<66x64xf32>
    %21 = vector.broadcast %2 : vector<1x64xf32> to vector<66x64xf32>
    %22 = arith.addf %20, %21 : vector<66x64xf32>
    %c0_9 = arith.constant 0 : index
    %c0_10 = arith.constant 0 : index
    %23 = vector.load %arg4[%c0_9, %c0_10] : memref<64x256xf32, #tpu.memory_space<vmem>>, vector<64x256xf32>
    %cst_11 = arith.constant dense<0.000000e+00> : vector<66x256xf32>
    %24 = tpu.matmul %22, %23, %cst_11 {dimension_numbers = #tpu.dot_dimension_numbers<[1], [0], [0], [1], [0, 0, 1, 1], [], []>} : vector<66x64xf32>, vector<64x256xf32>, vector<66x256xf32> -> vector<66x256xf32>
    %c0_12 = arith.constant 0 : index
    %c0_13 = arith.constant 0 : index
    %25 = vector.load %arg5[%c0_12, %c0_13] : memref<1x256xf32, #tpu.memory_space<vmem>>, vector<1x256xf32>
    %26 = vector.broadcast %25 : vector<1x256xf32> to vector<66x256xf32>
    %27 = arith.addf %24, %26 : vector<66x256xf32>
    %c0_14 = arith.constant 0 : index
    %c0_15 = arith.constant 0 : index
    %28 = vector.load %arg6[%c0_14, %c0_15] : memref<66x256xf32, #tpu.memory_space<vmem>>, vector<66x256xf32>
    tpu.vector_store %arg6[%c0_14, %c0_15], %27 {strides = array<i32>} : memref<66x256xf32, #tpu.memory_space<vmem>>, vector<66x256xf32>,
    return
  }
  func.func @transform_0(%arg0: i32) -> (i32, i32) {
    %c0_i32 = arith.constant 0 : i32
    %c0_i32_0 = arith.constant 0 : i32
    return %arg0, %c0_i32 : i32, i32
  }
  func.func @transform_1(%arg0: i32) -> (i32, i32) {
    %c0_i32 = arith.constant 0 : i32
    %c0_i32_0 = arith.constant 0 : i32
    %c0_i32_1 = arith.constant 0 : i32
    return %c0_i32, %c0_i32_0 : i32, i32
  }
  func.func @transform_2(%arg0: i32) -> (i32, i32) {
    %c0_i32 = arith.constant 0 : i32
    %c0_i32_0 = arith.constant 0 : i32
    %c0_i32_1 = arith.constant 0 : i32
    return %c0_i32, %c0_i32_0 : i32, i32
  }
  func.func @transform_3(%arg0: i32) -> (i32, i32) {
    %c0_i32 = arith.constant 0 : i32
    %c0_i32_0 = arith.constant 0 : i32
    %c0_i32_1 = arith.constant 0 : i32
    return %c0_i32, %c0_i32_0 : i32, i32
  }
  func.func @transform_4(%arg0: i32) -> (i32, i32) {
    %c0_i32 = arith.constant 0 : i32
    %c0_i32_0 = arith.constant 0 : i32
    %c0_i32_1 = arith.constant 0 : i32
    return %c0_i32, %c0_i32_0 : i32, i32
  }
  func.func @transform_5(%arg0: i32) -> (i32, i32) {
    %c0_i32 = arith.constant 0 : i32
    %c0_i32_0 = arith.constant 0 : i32
    return %arg0, %c0_i32 : i32, i32
  }
}

module attributes {stable_mosaic.version = 11 : i64} {
  func.func @_attn_kernel(%arg0: i32, %arg1: memref<4x9x32xf32, #tpu.memory_space<vmem>>, %arg2: memref<4x33x32xf32, #tpu.memory_space<vmem>>, %arg3: memref<4x33x32xf32, #tpu.memory_space<vmem>>, %arg4: memref<1x32xf32, #tpu.memory_space<vmem>>, %arg5: memref<1x32xf32, #tpu.memory_space<vmem>>, %arg6: memref<1x32xf32, #tpu.memory_space<vmem>>, %arg7: memref<1x32xf32, #tpu.memory_space<vmem>>, %arg8: memref<1x32xf32, #tpu.memory_space<vmem>>, %arg9: memref<1x32xf32, #tpu.memory_space<vmem>>, %arg10: memref<64x64xf32, #tpu.memory_space<vmem>>, %arg11: memref<1x64xf32, #tpu.memory_space<vmem>>, %arg12: memref<2x9x64xf32, #tpu.memory_space<vmem>>, %arg13: memref<2x9x64xf32, #tpu.memory_space<vmem>>) attributes {dimension_semantics = [#tpu.dimension_semantics<arbitrary>], iteration_bounds = array<i64: 1>, scalar_prefetch = 0 : i64, scratch_operands = 0 : i64, tpu.core_type = #tpu.core_type<tc>, window_params = [{pipeline_mode = #tpu.pipeline_mode<synchronous>, transform_indices = @transform_0, window_bounds = array<i64: 4, 9, 32>}, {pipeline_mode = #tpu.pipeline_mode<synchronous>, transform_indices = @transform_1, window_bounds = array<i64: 4, 33, 32>}, {pipeline_mode = #tpu.pipeline_mode<synchronous>, transform_indices = @transform_2, window_bounds = array<i64: 4, 33, 32>}, {pipeline_mode = #tpu.pipeline_mode<synchronous>, transform_indices = @transform_3, window_bounds = array<i64: 1, 32>}, {pipeline_mode = #tpu.pipeline_mode<synchronous>, transform_indices = @transform_4, window_bounds = array<i64: 1, 32>}, {pipeline_mode = #tpu.pipeline_mode<synchronous>, transform_indices = @transform_5, window_bounds = array<i64: 1, 32>}, {pipeline_mode = #tpu.pipeline_mode<synchronous>, transform_indices = @transform_6, window_bounds = array<i64: 1, 32>}, {pipeline_mode = #tpu.pipeline_mode<synchronous>, transform_indices = @transform_7, window_bounds = array<i64: 1, 32>}, {pipeline_mode = #tpu.pipeline_mode<synchronous>, transform_indices = @transform_8, window_bounds = array<i64: 1, 32>}, {pipeline_mode = #tpu.pipeline_mode<synchronous>, transform_indices = @transform_9, window_bounds = array<i64: 64, 64>}, {pipeline_mode = #tpu.pipeline_mode<synchronous>, transform_indices = @transform_10, window_bounds = array<i64: 1, 64>}, {pipeline_mode = #tpu.pipeline_mode<synchronous>, transform_indices = @transform_11, window_bounds = array<i64: 2, 9, 64>}, {pipeline_mode = #tpu.pipeline_mode<synchronous>, transform_indices = @transform_12, window_bounds = array<i64: 2, 9, 64>}]} {
    %c0 = arith.constant 0 : index
    %c0_0 = arith.constant 0 : index
    %c0_1 = arith.constant 0 : index
    %0 = vector.load %arg1[%c0, %c0_0, %c0_1] : memref<4x9x32xf32, #tpu.memory_space<vmem>>, vector<4x9x32xf32>
    %c0_2 = arith.constant 0 : index
    %c0_3 = arith.constant 0 : index
    %c0_4 = arith.constant 0 : index
    %1 = vector.load %arg2[%c0_2, %c0_3, %c0_4] : memref<4x33x32xf32, #tpu.memory_space<vmem>>, vector<4x33x32xf32>
    %c0_5 = arith.constant 0 : index
    %c0_6 = arith.constant 0 : index
    %c0_7 = arith.constant 0 : index
    %2 = vector.load %arg3[%c0_5, %c0_6, %c0_7] : memref<4x33x32xf32, #tpu.memory_space<vmem>>, vector<4x33x32xf32>
    %c0_8 = arith.constant 0 : index
    %c0_9 = arith.constant 0 : index
    %3 = vector.load %arg4[%c0_8, %c0_9] : memref<1x32xf32, #tpu.memory_space<vmem>>, vector<1x32xf32>
    %c0_10 = arith.constant 0 : index
    %c0_11 = arith.constant 0 : index
    %4 = vector.load %arg5[%c0_10, %c0_11] : memref<1x32xf32, #tpu.memory_space<vmem>>, vector<1x32xf32>
    %cst = arith.constant dense<0.000000e+00> : vector<4x9xf32>
    %5 = vector.multi_reduction <add>, %0, %cst [2] : vector<4x9x32xf32> to vector<4x9xf32>
    %6 = vector.shape_cast %5 : vector<4x9xf32> to vector<4x9x1xf32>
    %cst_12 = arith.constant 3.200000e+01 : f32
    %7 = vector.broadcast %cst_12 : f32 to vector<4x9x1xf32>
    %8 = arith.divf %6, %7 : vector<4x9x1xf32>
    %9 = vector.broadcast %8 : vector<4x9x1xf32> to vector<4x9x32xf32>
    %10 = arith.subf %0, %9 : vector<4x9x32xf32>
    %11 = arith.mulf %10, %10 : vector<4x9x32xf32>
    %cst_13 = arith.constant dense<0.000000e+00> : vector<4x9xf32>
    %12 = vector.multi_reduction <add>, %11, %cst_13 [2] : vector<4x9x32xf32> to vector<4x9xf32>
    %13 = vector.shape_cast %12 : vector<4x9xf32> to vector<4x9x1xf32>
    %cst_14 = arith.constant 3.200000e+01 : f32
    %14 = vector.broadcast %cst_14 : f32 to vector<4x9x1xf32>
    %15 = arith.divf %13, %14 : vector<4x9x1xf32>
    %cst_15 = arith.constant 9.99999974E-6 : f32
    %16 = vector.broadcast %cst_15 : f32 to vector<4x9x1xf32>
    %17 = arith.addf %15, %16 : vector<4x9x1xf32>
    %18 = math.rsqrt %17 : vector<4x9x1xf32>
    %19 = vector.broadcast %18 : vector<4x9x1xf32> to vector<4x9x32xf32>
    %20 = arith.mulf %10, %19 : vector<4x9x32xf32>
    %21 = vector.shape_cast %3 : vector<1x32xf32> to vector<1x1x32xf32>
    %22 = vector.broadcast %21 : vector<1x1x32xf32> to vector<4x9x32xf32>
    %23 = arith.mulf %20, %22 : vector<4x9x32xf32>
    %24 = vector.shape_cast %4 : vector<1x32xf32> to vector<1x1x32xf32>
    %25 = vector.broadcast %24 : vector<1x1x32xf32> to vector<4x9x32xf32>
    %26 = arith.addf %23, %25 : vector<4x9x32xf32>
    %cst_16 = arith.constant 0.176776692 : f32
    %27 = vector.broadcast %cst_16 : f32 to vector<4x9x32xf32>
    %28 = arith.mulf %26, %27 : vector<4x9x32xf32>
    %c0_17 = arith.constant 0 : index
    %c0_18 = arith.constant 0 : index
    %29 = vector.load %arg6[%c0_17, %c0_18] : memref<1x32xf32, #tpu.memory_space<vmem>>, vector<1x32xf32>
    %c0_19 = arith.constant 0 : index
    %c0_20 = arith.constant 0 : index
    %30 = vector.load %arg7[%c0_19, %c0_20] : memref<1x32xf32, #tpu.memory_space<vmem>>, vector<1x32xf32>
    %cst_21 = arith.constant dense<0.000000e+00> : vector<4x33xf32>
    %31 = vector.multi_reduction <add>, %1, %cst_21 [2] : vector<4x33x32xf32> to vector<4x33xf32>
    %32 = vector.shape_cast %31 : vector<4x33xf32> to vector<4x33x1xf32>
    %cst_22 = arith.constant 3.200000e+01 : f32
    %33 = vector.broadcast %cst_22 : f32 to vector<4x33x1xf32>
    %34 = arith.divf %32, %33 : vector<4x33x1xf32>
    %35 = vector.broadcast %34 : vector<4x33x1xf32> to vector<4x33x32xf32>
    %36 = arith.subf %1, %35 : vector<4x33x32xf32>
    %37 = arith.mulf %36, %36 : vector<4x33x32xf32>
    %cst_23 = arith.constant dense<0.000000e+00> : vector<4x33xf32>
    %38 = vector.multi_reduction <add>, %37, %cst_23 [2] : vector<4x33x32xf32> to vector<4x33xf32>
    %39 = vector.shape_cast %38 : vector<4x33xf32> to vector<4x33x1xf32>
    %cst_24 = arith.constant 3.200000e+01 : f32
    %40 = vector.broadcast %cst_24 : f32 to vector<4x33x1xf32>
    %41 = arith.divf %39, %40 : vector<4x33x1xf32>
    %cst_25 = arith.constant 9.99999974E-6 : f32
    %42 = vector.broadcast %cst_25 : f32 to vector<4x33x1xf32>
    %43 = arith.addf %41, %42 : vector<4x33x1xf32>
    %44 = math.rsqrt %43 : vector<4x33x1xf32>
    %45 = vector.broadcast %44 : vector<4x33x1xf32> to vector<4x33x32xf32>
    %46 = arith.mulf %36, %45 : vector<4x33x32xf32>
    %47 = vector.shape_cast %29 : vector<1x32xf32> to vector<1x1x32xf32>
    %48 = vector.broadcast %47 : vector<1x1x32xf32> to vector<4x33x32xf32>
    %49 = arith.mulf %46, %48 : vector<4x33x32xf32>
    %50 = vector.shape_cast %30 : vector<1x32xf32> to vector<1x1x32xf32>
    %51 = vector.broadcast %50 : vector<1x1x32xf32> to vector<4x33x32xf32>
    %52 = arith.addf %49, %51 : vector<4x33x32xf32>
    %c0_26 = arith.constant 0 : index
    %c0_27 = arith.constant 0 : index
    %53 = vector.load %arg8[%c0_26, %c0_27] : memref<1x32xf32, #tpu.memory_space<vmem>>, vector<1x32xf32>
    %c0_28 = arith.constant 0 : index
    %c0_29 = arith.constant 0 : index
    %54 = vector.load %arg9[%c0_28, %c0_29] : memref<1x32xf32, #tpu.memory_space<vmem>>, vector<1x32xf32>
    %cst_30 = arith.constant dense<0.000000e+00> : vector<4x33xf32>
    %55 = vector.multi_reduction <add>, %2, %cst_30 [2] : vector<4x33x32xf32> to vector<4x33xf32>
    %56 = vector.shape_cast %55 : vector<4x33xf32> to vector<4x33x1xf32>
    %cst_31 = arith.constant 3.200000e+01 : f32
    %57 = vector.broadcast %cst_31 : f32 to vector<4x33x1xf32>
    %58 = arith.divf %56, %57 : vector<4x33x1xf32>
    %59 = vector.broadcast %58 : vector<4x33x1xf32> to vector<4x33x32xf32>
    %60 = arith.subf %2, %59 : vector<4x33x32xf32>
    %61 = arith.mulf %60, %60 : vector<4x33x32xf32>
    %cst_32 = arith.constant dense<0.000000e+00> : vector<4x33xf32>
    %62 = vector.multi_reduction <add>, %61, %cst_32 [2] : vector<4x33x32xf32> to vector<4x33xf32>
    %63 = vector.shape_cast %62 : vector<4x33xf32> to vector<4x33x1xf32>
    %cst_33 = arith.constant 3.200000e+01 : f32
    %64 = vector.broadcast %cst_33 : f32 to vector<4x33x1xf32>
    %65 = arith.divf %63, %64 : vector<4x33x1xf32>
    %cst_34 = arith.constant 9.99999974E-6 : f32
    %66 = vector.broadcast %cst_34 : f32 to vector<4x33x1xf32>
    %67 = arith.addf %65, %66 : vector<4x33x1xf32>
    %68 = math.rsqrt %67 : vector<4x33x1xf32>
    %69 = vector.broadcast %68 : vector<4x33x1xf32> to vector<4x33x32xf32>
    %70 = arith.mulf %60, %69 : vector<4x33x32xf32>
    %71 = vector.shape_cast %53 : vector<1x32xf32> to vector<1x1x32xf32>
    %72 = vector.broadcast %71 : vector<1x1x32xf32> to vector<4x33x32xf32>
    %73 = arith.mulf %70, %72 : vector<4x33x32xf32>
    %74 = vector.shape_cast %54 : vector<1x32xf32> to vector<1x1x32xf32>
    %75 = vector.broadcast %74 : vector<1x1x32xf32> to vector<4x33x32xf32>
    %76 = arith.addf %73, %75 : vector<4x33x32xf32>
    "tpu.trace_start"() <{level = 10 : i32, message = "bqd,bkd->bqk"}> : () -> ()
    %cst_35 = arith.constant dense<0.000000e+00> : vector<4x9x33xf32>
    %77 = tpu.matmul %28, %52, %cst_35 {dimension_numbers = #tpu.dot_dimension_numbers<[2], [2], [1], [1], [0, 0, 0, 1, 1, 1], [0], [0]>} : vector<4x9x32xf32>, vector<4x33x32xf32>, vector<4x9x33xf32> -> vector<4x9x33xf32>
    "tpu.trace_stop"() : () -> ()
    %cst_36 = arith.constant dense<0xFF800000> : vector<4x9xf32>
    %78 = vector.multi_reduction <maximumf>, %77, %cst_36 [2] : vector<4x9x33xf32> to vector<4x9xf32>
    %79 = vector.shape_cast %78 : vector<4x9xf32> to vector<4x9x1xf32>
    %80 = vector.broadcast %79 : vector<4x9x1xf32> to vector<4x9x33xf32>
    %81 = arith.subf %77, %80 : vector<4x9x33xf32>
    %82 = math.exp %81 : vector<4x9x33xf32>
    %cst_37 = arith.constant dense<0.000000e+00> : vector<4x9xf32>
    %83 = vector.multi_reduction <add>, %82, %cst_37 [2] : vector<4x9x33xf32> to vector<4x9xf32>
    %84 = vector.shape_cast %83 : vector<4x9xf32> to vector<4x9x1xf32>
    %85 = tpu.reciprocal %84 {approx = true} : vector<4x9x1xf32> -> vector<4x9x1xf32>
    %86 = vector.broadcast %85 : vector<4x9x1xf32> to vector<4x9x33xf32>
    %87 = arith.mulf %82, %86 : vector<4x9x33xf32>
    "tpu.trace_start"() <{level = 10 : i32, message = "bqk,bkd->bqd"}> : () -> ()
    %cst_38 = arith.constant dense<0.000000e+00> : vector<4x9x32xf32>
    %88 = tpu.matmul %87, %76, %cst_38 {dimension_numbers = #tpu.dot_dimension_numbers<[2], [1], [1], [2], [0, 0, 0, 1, 1, 2], [0], [0]>} : vector<4x9x33xf32>, vector<4x33x32xf32>, vector<4x9x32xf32> -> vector<4x9x32xf32>
    "tpu.trace_stop"() : () -> ()
    %c0_39 = arith.constant 0 : index
    %c0_40 = arith.constant 0 : index
    %89 = vector.load %arg10[%c0_39, %c0_40] : memref<64x64xf32, #tpu.memory_space<vmem>>, vector<64x64xf32>
    %c0_41 = arith.constant 0 : index
    %c0_42 = arith.constant 0 : index
    %90 = vector.load %arg11[%c0_41, %c0_42] : memref<1x64xf32, #tpu.memory_space<vmem>>, vector<1x64xf32>
    %91 = vector.extract_strided_slice %88 {offsets = [0, 0, 0], sizes = [1, 9, 32], strides = [1, 1, 1]} : vector<4x9x32xf32> to vector<1x9x32xf32>
    %92 = vector.shape_cast %91 : vector<1x9x32xf32> to vector<9x32xf32>
    %93 = vector.extract_strided_slice %88 {offsets = [1, 0, 0], sizes = [1, 9, 32], strides = [1, 1, 1]} : vector<4x9x32xf32> to vector<1x9x32xf32>
    %94 = vector.shape_cast %93 : vector<1x9x32xf32> to vector<9x32xf32>
    %95 = tpu.concatenate %92, %94 in 1 : vector<9x32xf32>, vector<9x32xf32> -> vector<9x64xf32>
    %c0_43 = arith.constant 0 : index
    %c0_44 = arith.constant 0 : index
    %c0_45 = arith.constant 0 : index
    %96 = vector.load %arg12[%c0_43, %c0_44, %c0_45] : memref<2x9x64xf32, #tpu.memory_space<vmem>>, vector<1x9x64xf32>
    %97 = vector.shape_cast %96 : vector<1x9x64xf32> to vector<9x64xf32>
    %98 = vector.broadcast %90 : vector<1x64xf32> to vector<9x64xf32>
    %99 = arith.addf %97, %98 : vector<9x64xf32>
    %cst_46 = arith.constant dense<0.000000e+00> : vector<9x64xf32>
    %100 = tpu.matmul %95, %89, %cst_46 {dimension_numbers = #tpu.dot_dimension_numbers<[1], [0], [0], [1], [0, 0, 1, 1], [], []>} : vector<9x64xf32>, vector<64x64xf32>, vector<9x64xf32> -> vector<9x64xf32>
    %101 = arith.addf %99, %100 : vector<9x64xf32>
    %c0_47 = arith.constant 0 : index
    %c0_48 = arith.constant 0 : index
    %c0_49 = arith.constant 0 : index
    %102 = vector.load %arg13[%c0_47, %c0_48, %c0_49] : memref<2x9x64xf32, #tpu.memory_space<vmem>>, vector<1x9x64xf32>
    %103 = vector.shape_cast %102 : vector<1x9x64xf32> to vector<9x64xf32>
    %104 = vector.shape_cast %101 : vector<9x64xf32> to vector<1x9x64xf32>
    tpu.vector_store %arg13[%c0_47, %c0_48, %c0_49], %104 {strides = array<i32>} : memref<2x9x64xf32, #tpu.memory_space<vmem>>, vector<1x9x64xf32>,
    %105 = vector.extract_strided_slice %88 {offsets = [2, 0, 0], sizes = [1, 9, 32], strides = [1, 1, 1]} : vector<4x9x32xf32> to vector<1x9x32xf32>
    %106 = vector.shape_cast %105 : vector<1x9x32xf32> to vector<9x32xf32>
    %107 = vector.extract_strided_slice %88 {offsets = [3, 0, 0], sizes = [1, 9, 32], strides = [1, 1, 1]} : vector<4x9x32xf32> to vector<1x9x32xf32>
    %108 = vector.shape_cast %107 : vector<1x9x32xf32> to vector<9x32xf32>
    %109 = tpu.concatenate %106, %108 in 1 : vector<9x32xf32>, vector<9x32xf32> -> vector<9x64xf32>
    %c1 = arith.constant 1 : index
    %c0_50 = arith.constant 0 : index
    %c0_51 = arith.constant 0 : index
    %110 = vector.load %arg12[%c1, %c0_50, %c0_51] : memref<2x9x64xf32, #tpu.memory_space<vmem>>, vector<1x9x64xf32>
    %111 = vector.shape_cast %110 : vector<1x9x64xf32> to vector<9x64xf32>
    %112 = vector.broadcast %90 : vector<1x64xf32> to vector<9x64xf32>
    %113 = arith.addf %111, %112 : vector<9x64xf32>
    %cst_52 = arith.constant dense<0.000000e+00> : vector<9x64xf32>
    %114 = tpu.matmul %109, %89, %cst_52 {dimension_numbers = #tpu.dot_dimension_numbers<[1], [0], [0], [1], [0, 0, 1, 1], [], []>} : vector<9x64xf32>, vector<64x64xf32>, vector<9x64xf32> -> vector<9x64xf32>
    %115 = arith.addf %113, %114 : vector<9x64xf32>
    %c1_53 = arith.constant 1 : index
    %c0_54 = arith.constant 0 : index
    %c0_55 = arith.constant 0 : index
    %116 = vector.load %arg13[%c1_53, %c0_54, %c0_55] : memref<2x9x64xf32, #tpu.memory_space<vmem>>, vector<1x9x64xf32>
    %117 = vector.shape_cast %116 : vector<1x9x64xf32> to vector<9x64xf32>
    %118 = vector.shape_cast %115 : vector<9x64xf32> to vector<1x9x64xf32>
    tpu.vector_store %arg13[%c1_53, %c0_54, %c0_55], %118 {strides = array<i32>} : memref<2x9x64xf32, #tpu.memory_space<vmem>>, vector<1x9x64xf32>,
    return
  }
  func.func @transform_0(%arg0: i32) -> (i32, i32, i32) {
    %c0_i32 = arith.constant 0 : i32
    %c0_i32_0 = arith.constant 0 : i32
    %c0_i32_1 = arith.constant 0 : i32
    %c0_i32_2 = arith.constant 0 : i32
    return %c0_i32, %c0_i32_0, %c0_i32_1 : i32, i32, i32
  }
  func.func @transform_1(%arg0: i32) -> (i32, i32, i32) {
    %c0_i32 = arith.constant 0 : i32
    %c0_i32_0 = arith.constant 0 : i32
    %c0_i32_1 = arith.constant 0 : i32
    %c0_i32_2 = arith.constant 0 : i32
    return %c0_i32, %c0_i32_0, %c0_i32_1 : i32, i32, i32
  }
  func.func @transform_2(%arg0: i32) -> (i32, i32, i32) {
    %c0_i32 = arith.constant 0 : i32
    %c0_i32_0 = arith.constant 0 : i32
    %c0_i32_1 = arith.constant 0 : i32
    %c0_i32_2 = arith.constant 0 : i32
    return %c0_i32, %c0_i32_0, %c0_i32_1 : i32, i32, i32
  }
  func.func @transform_3(%arg0: i32) -> (i32, i32) {
    %c0_i32 = arith.constant 0 : i32
    %c0_i32_0 = arith.constant 0 : i32
    %c0_i32_1 = arith.constant 0 : i32
    return %c0_i32, %c0_i32_0 : i32, i32
  }
  func.func @transform_4(%arg0: i32) -> (i32, i32) {
    %c0_i32 = arith.constant 0 : i32
    %c0_i32_0 = arith.constant 0 : i32
    %c0_i32_1 = arith.constant 0 : i32
    return %c0_i32, %c0_i32_0 : i32, i32
  }
  func.func @transform_5(%arg0: i32) -> (i32, i32) {
    %c0_i32 = arith.constant 0 : i32
    %c0_i32_0 = arith.constant 0 : i32
    %c0_i32_1 = arith.constant 0 : i32
    return %c0_i32, %c0_i32_0 : i32, i32
  }
  func.func @transform_6(%arg0: i32) -> (i32, i32) {
    %c0_i32 = arith.constant 0 : i32
    %c0_i32_0 = arith.constant 0 : i32
    %c0_i32_1 = arith.constant 0 : i32
    return %c0_i32, %c0_i32_0 : i32, i32
  }
  func.func @transform_7(%arg0: i32) -> (i32, i32) {
    %c0_i32 = arith.constant 0 : i32
    %c0_i32_0 = arith.constant 0 : i32
    %c0_i32_1 = arith.constant 0 : i32
    return %c0_i32, %c0_i32_0 : i32, i32
  }
  func.func @transform_8(%arg0: i32) -> (i32, i32) {
    %c0_i32 = arith.constant 0 : i32
    %c0_i32_0 = arith.constant 0 : i32
    %c0_i32_1 = arith.constant 0 : i32
    return %c0_i32, %c0_i32_0 : i32, i32
  }
  func.func @transform_9(%arg0: i32) -> (i32, i32) {
    %c0_i32 = arith.constant 0 : i32
    %c0_i32_0 = arith.constant 0 : i32
    %c0_i32_1 = arith.constant 0 : i32
    return %c0_i32, %c0_i32_0 : i32, i32
  }
  func.func @transform_10(%arg0: i32) -> (i32, i32) {
    %c0_i32 = arith.constant 0 : i32
    %c0_i32_0 = arith.constant 0 : i32
    %c0_i32_1 = arith.constant 0 : i32
    return %c0_i32, %c0_i32_0 : i32, i32
  }
  func.func @transform_11(%arg0: i32) -> (i32, i32, i32) {
    %c0_i32 = arith.constant 0 : i32
    %c0_i32_0 = arith.constant 0 : i32
    %c0_i32_1 = arith.constant 0 : i32
    %c0_i32_2 = arith.constant 0 : i32
    return %c0_i32, %c0_i32_0, %c0_i32_1 : i32, i32, i32
  }
  func.func @transform_12(%arg0: i32) -> (i32, i32, i32) {
    %c0_i32 = arith.constant 0 : i32
    %c0_i32_0 = arith.constant 0 : i32
    %c0_i32_1 = arith.constant 0 : i32
    %c0_i32_2 = arith.constant 0 : i32
    return %c0_i32, %c0_i32_0, %c0_i32_1 : i32, i32, i32
  }
}

module attributes {stable_mosaic.version = 11 : i64} {
  func.func @_mlp_kernel(%arg0: i32, %arg1: memref<18x64xf32, #tpu.memory_space<vmem>>, %arg2: memref<1x64xf32, #tpu.memory_space<vmem>>, %arg3: memref<1x64xf32, #tpu.memory_space<vmem>>, %arg4: memref<64x256xf32, #tpu.memory_space<vmem>>, %arg5: memref<1x256xf32, #tpu.memory_space<vmem>>, %arg6: memref<256x64xf32, #tpu.memory_space<vmem>>, %arg7: memref<1x64xf32, #tpu.memory_space<vmem>>, %arg8: memref<18x64xf32, #tpu.memory_space<vmem>>) attributes {dimension_semantics = [#tpu.dimension_semantics<parallel>], iteration_bounds = array<i64: 1>, scalar_prefetch = 0 : i64, scratch_operands = 0 : i64, tpu.core_type = #tpu.core_type<tc>, window_params = [{transform_indices = @transform_0, window_bounds = array<i64: 18, 64>}, {pipeline_mode = #tpu.pipeline_mode<synchronous>, transform_indices = @transform_1, window_bounds = array<i64: 1, 64>}, {pipeline_mode = #tpu.pipeline_mode<synchronous>, transform_indices = @transform_2, window_bounds = array<i64: 1, 64>}, {pipeline_mode = #tpu.pipeline_mode<synchronous>, transform_indices = @transform_3, window_bounds = array<i64: 64, 256>}, {pipeline_mode = #tpu.pipeline_mode<synchronous>, transform_indices = @transform_4, window_bounds = array<i64: 1, 256>}, {pipeline_mode = #tpu.pipeline_mode<synchronous>, transform_indices = @transform_5, window_bounds = array<i64: 256, 64>}, {pipeline_mode = #tpu.pipeline_mode<synchronous>, transform_indices = @transform_6, window_bounds = array<i64: 1, 64>}, {transform_indices = @transform_7, window_bounds = array<i64: 18, 64>}]} {
    %c0 = arith.constant 0 : index
    %c0_0 = arith.constant 0 : index
    %0 = vector.load %arg1[%c0, %c0_0] : memref<18x64xf32, #tpu.memory_space<vmem>>, vector<18x64xf32>
    %c0_1 = arith.constant 0 : index
    %c0_2 = arith.constant 0 : index
    %1 = vector.load %arg2[%c0_1, %c0_2] : memref<1x64xf32, #tpu.memory_space<vmem>>, vector<1x64xf32>
    %c0_3 = arith.constant 0 : index
    %c0_4 = arith.constant 0 : index
    %2 = vector.load %arg3[%c0_3, %c0_4] : memref<1x64xf32, #tpu.memory_space<vmem>>, vector<1x64xf32>
    %cst = arith.constant dense<0.000000e+00> : vector<18xf32>
    %3 = vector.multi_reduction <add>, %0, %cst [1] : vector<18x64xf32> to vector<18xf32>
    %4 = vector.shape_cast %3 : vector<18xf32> to vector<18x1xf32>
    %cst_5 = arith.constant 6.400000e+01 : f32
    %5 = vector.broadcast %cst_5 : f32 to vector<18x1xf32>
    %6 = arith.divf %4, %5 : vector<18x1xf32>
    %7 = vector.broadcast %6 : vector<18x1xf32> to vector<18x64xf32>
    %8 = arith.subf %0, %7 : vector<18x64xf32>
    %9 = arith.mulf %8, %8 : vector<18x64xf32>
    %cst_6 = arith.constant dense<0.000000e+00> : vector<18xf32>
    %10 = vector.multi_reduction <add>, %9, %cst_6 [1] : vector<18x64xf32> to vector<18xf32>
    %11 = vector.shape_cast %10 : vector<18xf32> to vector<18x1xf32>
    %cst_7 = arith.constant 6.400000e+01 : f32
    %12 = vector.broadcast %cst_7 : f32 to vector<18x1xf32>
    %13 = arith.divf %11, %12 : vector<18x1xf32>
    %cst_8 = arith.constant 9.99999997E-7 : f32
    %14 = vector.broadcast %cst_8 : f32 to vector<18x1xf32>
    %15 = arith.addf %13, %14 : vector<18x1xf32>
    %16 = math.rsqrt %15 : vector<18x1xf32>
    %17 = vector.broadcast %16 : vector<18x1xf32> to vector<18x64xf32>
    %18 = arith.mulf %8, %17 : vector<18x64xf32>
    %19 = vector.broadcast %1 : vector<1x64xf32> to vector<18x64xf32>
    %20 = arith.mulf %18, %19 : vector<18x64xf32>
    %21 = vector.broadcast %2 : vector<1x64xf32> to vector<18x64xf32>
    %22 = arith.addf %20, %21 : vector<18x64xf32>
    %c0_9 = arith.constant 0 : index
    %c0_10 = arith.constant 0 : index
    %23 = vector.load %arg4[%c0_9, %c0_10] : memref<64x256xf32, #tpu.memory_space<vmem>>, vector<64x256xf32>
    %cst_11 = arith.constant dense<0.000000e+00> : vector<18x256xf32>
    %24 = tpu.matmul %22, %23, %cst_11 {dimension_numbers = #tpu.dot_dimension_numbers<[1], [0], [0], [1], [0, 0, 1, 1], [], []>} : vector<18x64xf32>, vector<64x256xf32>, vector<18x256xf32> -> vector<18x256xf32>
    %c0_12 = arith.constant 0 : index
    %c0_13 = arith.constant 0 : index
    %25 = vector.load %arg5[%c0_12, %c0_13] : memref<1x256xf32, #tpu.memory_space<vmem>>, vector<1x256xf32>
    %26 = vector.broadcast %25 : vector<1x256xf32> to vector<18x256xf32>
    %27 = arith.addf %24, %26 : vector<18x256xf32>
    %cst_14 = arith.constant 0.707106769 : f32
    %28 = vector.broadcast %cst_14 : f32 to vector<18x256xf32>
    %29 = arith.mulf %27, %28 : vector<18x256xf32>
    %30 = math.absf %29 : vector<18x256xf32>
    %cst_15 = arith.constant 0.327591091 : f32
    %31 = vector.broadcast %cst_15 : f32 to vector<18x256xf32>
    %32 = arith.mulf %31, %30 : vector<18x256xf32>
    %cst_16 = arith.constant 1.000000e+00 : f32
    %33 = vector.broadcast %cst_16 : f32 to vector<18x256xf32>
    %34 = arith.addf %33, %32 : vector<18x256xf32>
    %cst_17 = arith.constant 1.000000e+00 : f32
    %35 = vector.broadcast %cst_17 : f32 to vector<18x256xf32>
    %36 = arith.divf %35, %34 : vector<18x256xf32>
    %cst_18 = arith.constant 1.06140542 : f32
    %37 = vector.broadcast %cst_18 : f32 to vector<18x256xf32>
    %38 = arith.mulf %37, %36 : vector<18x256xf32>
    %cst_19 = arith.constant -1.45315206 : f32
    %39 = vector.broadcast %cst_19 : f32 to vector<18x256xf32>
    %40 = arith.addf %38, %39 : vector<18x256xf32>
    %41 = arith.mulf %40, %36 : vector<18x256xf32>
    %cst_20 = arith.constant 1.42141378 : f32
    %42 = vector.broadcast %cst_20 : f32 to vector<18x256xf32>
    %43 = arith.addf %41, %42 : vector<18x256xf32>
    %44 = arith.mulf %43, %36 : vector<18x256xf32>
    %cst_21 = arith.constant -0.284496725 : f32
    %45 = vector.broadcast %cst_21 : f32 to vector<18x256xf32>
    %46 = arith.addf %44, %45 : vector<18x256xf32>
    %47 = arith.mulf %46, %36 : vector<18x256xf32>
    %cst_22 = arith.constant 0.254829586 : f32
    %48 = vector.broadcast %cst_22 : f32 to vector<18x256xf32>
    %49 = arith.addf %47, %48 : vector<18x256xf32>
    %50 = arith.mulf %49, %36 : vector<18x256xf32>
    %cst_23 = arith.constant 0.000000e+00 : f32
    %51 = vector.broadcast %cst_23 : f32 to vector<18x256xf32>
    %52 = arith.subf %51, %30 : vector<18x256xf32>
    %53 = arith.mulf %52, %30 : vector<18x256xf32>
    %54 = math.exp %53 : vector<18x256xf32>
    %55 = arith.mulf %50, %54 : vector<18x256xf32>
    %cst_24 = arith.constant 1.000000e+00 : f32
    %56 = vector.broadcast %cst_24 : f32 to vector<18x256xf32>
    %57 = arith.subf %56, %55 : vector<18x256xf32>
    %cst_25 = arith.constant 0.000000e+00 : f32
    %58 = vector.broadcast %cst_25 : f32 to vector<18x256xf32>
    %59 = arith.cmpf oge, %29, %58 : vector<18x256xf32>
    %cst_26 = arith.constant 0.000000e+00 : f32
    %60 = vector.broadcast %cst_26 : f32 to vector<18x256xf32>
    %61 = arith.subf %60, %57 : vector<18x256xf32>
    %62 = arith.select %59, %57, %61 : vector<18x256xi1>, vector<18x256xf32>
    %cst_27 = arith.constant 5.000000e-01 : f32
    %63 = vector.broadcast %cst_27 : f32 to vector<18x256xf32>
    %64 = arith.mulf %63, %27 : vector<18x256xf32>
    %cst_28 = arith.constant 1.000000e+00 : f32
    %65 = vector.broadcast %cst_28 : f32 to vector<18x256xf32>
    %66 = arith.addf %65, %62 : vector<18x256xf32>
    %67 = arith.mulf %64, %66 : vector<18x256xf32>
    %c0_29 = arith.constant 0 : index
    %c0_30 = arith.constant 0 : index
    %68 = vector.load %arg6[%c0_29, %c0_30] : memref<256x64xf32, #tpu.memory_space<vmem>>, vector<256x64xf32>
    %cst_31 = arith.constant dense<0.000000e+00> : vector<18x64xf32>
    %69 = tpu.matmul %67, %68, %cst_31 {dimension_numbers = #tpu.dot_dimension_numbers<[1], [0], [0], [1], [0, 0, 1, 1], [], []>} : vector<18x256xf32>, vector<256x64xf32>, vector<18x64xf32> -> vector<18x64xf32>
    %c0_32 = arith.constant 0 : index
    %c0_33 = arith.constant 0 : index
    %70 = vector.load %arg7[%c0_32, %c0_33] : memref<1x64xf32, #tpu.memory_space<vmem>>, vector<1x64xf32>
    %71 = vector.broadcast %70 : vector<1x64xf32> to vector<18x64xf32>
    %72 = arith.addf %69, %71 : vector<18x64xf32>
    %73 = arith.addf %0, %72 : vector<18x64xf32>
    %c0_34 = arith.constant 0 : index
    %c0_35 = arith.constant 0 : index
    %74 = vector.load %arg8[%c0_34, %c0_35] : memref<18x64xf32, #tpu.memory_space<vmem>>, vector<18x64xf32>
    tpu.vector_store %arg8[%c0_34, %c0_35], %73 {strides = array<i32>} : memref<18x64xf32, #tpu.memory_space<vmem>>, vector<18x64xf32>,
    return
  }
  func.func @transform_0(%arg0: i32) -> (i32, i32) {
    %c0_i32 = arith.constant 0 : i32
    %c0_i32_0 = arith.constant 0 : i32
    return %arg0, %c0_i32 : i32, i32
  }
  func.func @transform_1(%arg0: i32) -> (i32, i32) {
    %c0_i32 = arith.constant 0 : i32
    %c0_i32_0 = arith.constant 0 : i32
    %c0_i32_1 = arith.constant 0 : i32
    return %c0_i32, %c0_i32_0 : i32, i32
  }
  func.func @transform_2(%arg0: i32) -> (i32, i32) {
    %c0_i32 = arith.constant 0 : i32
    %c0_i32_0 = arith.constant 0 : i32
    %c0_i32_1 = arith.constant 0 : i32
    return %c0_i32, %c0_i32_0 : i32, i32
  }
  func.func @transform_3(%arg0: i32) -> (i32, i32) {
    %c0_i32 = arith.constant 0 : i32
    %c0_i32_0 = arith.constant 0 : i32
    %c0_i32_1 = arith.constant 0 : i32
    return %c0_i32, %c0_i32_0 : i32, i32
  }
  func.func @transform_4(%arg0: i32) -> (i32, i32) {
    %c0_i32 = arith.constant 0 : i32
    %c0_i32_0 = arith.constant 0 : i32
    %c0_i32_1 = arith.constant 0 : i32
    return %c0_i32, %c0_i32_0 : i32, i32
  }
  func.func @transform_5(%arg0: i32) -> (i32, i32) {
    %c0_i32 = arith.constant 0 : i32
    %c0_i32_0 = arith.constant 0 : i32
    %c0_i32_1 = arith.constant 0 : i32
    return %c0_i32, %c0_i32_0 : i32, i32
  }
  func.func @transform_6(%arg0: i32) -> (i32, i32) {
    %c0_i32 = arith.constant 0 : i32
    %c0_i32_0 = arith.constant 0 : i32
    %c0_i32_1 = arith.constant 0 : i32
    return %c0_i32, %c0_i32_0 : i32, i32
  }
  func.func @transform_7(%arg0: i32) -> (i32, i32) {
    %c0_i32 = arith.constant 0 : i32
    %c0_i32_0 = arith.constant 0 : i32
    return %arg0, %c0_i32 : i32, i32
  }
}

module attributes {stable_mosaic.version = 11 : i64} {
  func.func @_ln_linear_kernel(%arg0: i32, %arg1: memref<2x64xf32, #tpu.memory_space<vmem>>, %arg2: memref<1x64xf32, #tpu.memory_space<vmem>>, %arg3: memref<1x64xf32, #tpu.memory_space<vmem>>, %arg4: memref<64x8xf32, #tpu.memory_space<vmem>>, %arg5: memref<1x8xf32, #tpu.memory_space<vmem>>, %arg6: memref<2x8xf32, #tpu.memory_space<vmem>>) attributes {dimension_semantics = [#tpu.dimension_semantics<parallel>], iteration_bounds = array<i64: 1>, scalar_prefetch = 0 : i64, scratch_operands = 0 : i64, tpu.core_type = #tpu.core_type<tc>, window_params = [{transform_indices = @transform_0, window_bounds = array<i64: 2, 64>}, {pipeline_mode = #tpu.pipeline_mode<synchronous>, transform_indices = @transform_1, window_bounds = array<i64: 1, 64>}, {pipeline_mode = #tpu.pipeline_mode<synchronous>, transform_indices = @transform_2, window_bounds = array<i64: 1, 64>}, {pipeline_mode = #tpu.pipeline_mode<synchronous>, transform_indices = @transform_3, window_bounds = array<i64: 64, 8>}, {pipeline_mode = #tpu.pipeline_mode<synchronous>, transform_indices = @transform_4, window_bounds = array<i64: 1, 8>}, {transform_indices = @transform_5, window_bounds = array<i64: 2, 8>}]} {
    %c0 = arith.constant 0 : index
    %c0_0 = arith.constant 0 : index
    %0 = vector.load %arg1[%c0, %c0_0] : memref<2x64xf32, #tpu.memory_space<vmem>>, vector<2x64xf32>
    %c0_1 = arith.constant 0 : index
    %c0_2 = arith.constant 0 : index
    %1 = vector.load %arg2[%c0_1, %c0_2] : memref<1x64xf32, #tpu.memory_space<vmem>>, vector<1x64xf32>
    %c0_3 = arith.constant 0 : index
    %c0_4 = arith.constant 0 : index
    %2 = vector.load %arg3[%c0_3, %c0_4] : memref<1x64xf32, #tpu.memory_space<vmem>>, vector<1x64xf32>
    %cst = arith.constant dense<0.000000e+00> : vector<2xf32>
    %3 = vector.multi_reduction <add>, %0, %cst [1] : vector<2x64xf32> to vector<2xf32>
    %4 = vector.shape_cast %3 : vector<2xf32> to vector<2x1xf32>
    %cst_5 = arith.constant 6.400000e+01 : f32
    %5 = vector.broadcast %cst_5 : f32 to vector<2x1xf32>
    %6 = arith.divf %4, %5 : vector<2x1xf32>
    %7 = vector.broadcast %6 : vector<2x1xf32> to vector<2x64xf32>
    %8 = arith.subf %0, %7 : vector<2x64xf32>
    %9 = arith.mulf %8, %8 : vector<2x64xf32>
    %cst_6 = arith.constant dense<0.000000e+00> : vector<2xf32>
    %10 = vector.multi_reduction <add>, %9, %cst_6 [1] : vector<2x64xf32> to vector<2xf32>
    %11 = vector.shape_cast %10 : vector<2xf32> to vector<2x1xf32>
    %cst_7 = arith.constant 6.400000e+01 : f32
    %12 = vector.broadcast %cst_7 : f32 to vector<2x1xf32>
    %13 = arith.divf %11, %12 : vector<2x1xf32>
    %cst_8 = arith.constant 9.99999997E-7 : f32
    %14 = vector.broadcast %cst_8 : f32 to vector<2x1xf32>
    %15 = arith.addf %13, %14 : vector<2x1xf32>
    %16 = math.rsqrt %15 : vector<2x1xf32>
    %17 = vector.broadcast %16 : vector<2x1xf32> to vector<2x64xf32>
    %18 = arith.mulf %8, %17 : vector<2x64xf32>
    %19 = vector.broadcast %1 : vector<1x64xf32> to vector<2x64xf32>
    %20 = arith.mulf %18, %19 : vector<2x64xf32>
    %21 = vector.broadcast %2 : vector<1x64xf32> to vector<2x64xf32>
    %22 = arith.addf %20, %21 : vector<2x64xf32>
    %c0_9 = arith.constant 0 : index
    %c0_10 = arith.constant 0 : index
    %23 = vector.load %arg4[%c0_9, %c0_10] : memref<64x8xf32, #tpu.memory_space<vmem>>, vector<64x8xf32>
    %cst_11 = arith.constant dense<0.000000e+00> : vector<2x8xf32>
    %24 = tpu.matmul %22, %23, %cst_11 {dimension_numbers = #tpu.dot_dimension_numbers<[1], [0], [0], [1], [0, 0, 1, 1], [], []>} : vector<2x64xf32>, vector<64x8xf32>, vector<2x8xf32> -> vector<2x8xf32>
    %c0_12 = arith.constant 0 : index
    %c0_13 = arith.constant 0 : index
    %25 = vector.load %arg5[%c0_12, %c0_13] : memref<1x8xf32, #tpu.memory_space<vmem>>, vector<1x8xf32>
    %26 = vector.broadcast %25 : vector<1x8xf32> to vector<2x8xf32>
    %27 = arith.addf %24, %26 : vector<2x8xf32>
    %cst_14 = arith.constant dense<0xFF800000> : vector<2xf32>
    %28 = vector.multi_reduction <maximumf>, %27, %cst_14 [1] : vector<2x8xf32> to vector<2xf32>
    %29 = vector.shape_cast %28 : vector<2xf32> to vector<2x1xf32>
    %30 = vector.broadcast %29 : vector<2x1xf32> to vector<2x8xf32>
    %31 = arith.subf %27, %30 : vector<2x8xf32>
    %32 = math.exp %31 : vector<2x8xf32>
    %cst_15 = arith.constant dense<0.000000e+00> : vector<2xf32>
    %33 = vector.multi_reduction <add>, %32, %cst_15 [1] : vector<2x8xf32> to vector<2xf32>
    %34 = vector.shape_cast %33 : vector<2xf32> to vector<2x1xf32>
    %35 = vector.broadcast %34 : vector<2x1xf32> to vector<2x8xf32>
    %36 = arith.divf %32, %35 : vector<2x8xf32>
    %c0_16 = arith.constant 0 : index
    %c0_17 = arith.constant 0 : index
    %37 = vector.load %arg6[%c0_16, %c0_17] : memref<2x8xf32, #tpu.memory_space<vmem>>, vector<2x8xf32>
    tpu.vector_store %arg6[%c0_16, %c0_17], %36 {strides = array<i32>} : memref<2x8xf32, #tpu.memory_space<vmem>>, vector<2x8xf32>,
    return
  }
  func.func @transform_0(%arg0: i32) -> (i32, i32) {
    %c0_i32 = arith.constant 0 : i32
    %c0_i32_0 = arith.constant 0 : i32
    return %arg0, %c0_i32 : i32, i32
  }
  func.func @transform_1(%arg0: i32) -> (i32, i32) {
    %c0_i32 = arith.constant 0 : i32
    %c0_i32_0 = arith.constant 0 : i32
    %c0_i32_1 = arith.constant 0 : i32
    return %c0_i32, %c0_i32_0 : i32, i32
  }
  func.func @transform_2(%arg0: i32) -> (i32, i32) {
    %c0_i32 = arith.constant 0 : i32
    %c0_i32_0 = arith.constant 0 : i32
    %c0_i32_1 = arith.constant 0 : i32
    return %c0_i32, %c0_i32_0 : i32, i32
  }
  func.func @transform_3(%arg0: i32) -> (i32, i32) {
    %c0_i32 = arith.constant 0 : i32
    %c0_i32_0 = arith.constant 0 : i32
    %c0_i32_1 = arith.constant 0 : i32
    return %c0_i32, %c0_i32_0 : i32, i32
  }
  func.func @transform_4(%arg0: i32) -> (i32, i32) {
    %c0_i32 = arith.constant 0 : i32
    %c0_i32_0 = arith.constant 0 : i32
    %c0_i32_1 = arith.constant 0 : i32
    return %c0_i32, %c0_i32_0 : i32, i32
  }
  func.func @transform_5(%arg0: i32) -> (i32, i32) {
    %c0_i32 = arith.constant 0 : i32
    %c0_i32_0 = arith.constant 0 : i32
    return %arg0, %c0_i32 : i32, i32
  }
}

</mosaic_0001>

<llo_original>
// kernel: _lambda_.7
$region0: #{_lambda_.7}
  #allocation0 [shape = 'u32[]', space=smem, size = 0x4, offset = 0x4, fixed_abs, tag = 'smem constant byte address 0x4 - core index']
  #allocation1 [shape = 'u32[144,128]{1,0:T(1,128)}', space=vmem, size = 0x12000, scoped, tag = 'internal scratch']
  %s0 = inlined_call_operand.vmem [shape: f32[66,32], index: 0, kind: input, shape index: {}]
  %s1 = inlined_call_operand.vmem [shape: f32[1,32], index: 1, kind: input, shape index: {}]
  %s2 = inlined_call_operand.vmem [shape: f32[1,32], index: 2, kind: input, shape index: {}]
  %s3 = inlined_call_operand.vmem [shape: f32[32,128], index: 3, kind: input, shape index: {}]
  %s4 = inlined_call_operand.vmem [shape: f32[1,128], index: 4, kind: input, shape index: {}]
  %s5 = inlined_call_operand.vmem [shape: f32[66,128], index: 5, kind: output, shape index: {}]
  %s6 = sld [smem:[#allocation0]]
  $region30: #{_lambda_.7} parent=0
    _
  %s8 = ssub.s32 1, %s6
  %s9 = scalar_select 0, %s8, %s6
  // Predicated region
  $region2: #{_lambda_.7} parent=0 // pred_check
    _
  $region3: #{_lambda_.7} parent=0 // pred_check_branch
    %11 = sbr.rel (0) target = $region5
  $region4: #{_lambda_.7} parent=0 // pred_region
    _
  $region5: #{_lambda_.7} parent=0 // pred_fallthru
    _
  // Predicated region
  $region6: #{_lambda_.7} parent=0 // pred_check
    _
  $region7: #{_lambda_.7} parent=0 // pred_check_branch
    %13 = sbr.rel (0) target = $region9
  $region8: #{_lambda_.7} parent=0 // pred_region
    _
  $region9: #{_lambda_.7} parent=0 // pred_fallthru
    _
  // Predicated region
  $region10: #{_lambda_.7} parent=0 // pred_check
    _
  $region11: #{_lambda_.7} parent=0 // pred_check_branch
    %15 = sbr.rel (0) target = $region13
  $region12: #{_lambda_.7} parent=0 // pred_region
    _
  $region13: #{_lambda_.7} parent=0 // pred_fallthru
    _
  // Predicated region
  $region14: #{_lambda_.7} parent=0 // pred_check
    _
  $region15: #{_lambda_.7} parent=0 // pred_check_branch
    %17 = sbr.rel (0) target = $region17
  $region16: #{_lambda_.7} parent=0 // pred_region
    _
  $region17: #{_lambda_.7} parent=0 // pred_fallthru
    _
  // Predicated region
  $region18: #{_lambda_.7} parent=0 // pred_check
    _
  $region19: #{_lambda_.7} parent=0 // pred_check_branch
    %19 = sbr.rel (0) target = $region21
  $region20: #{_lambda_.7} parent=0 // pred_region
    _
  $region21: #{_lambda_.7} parent=0 // pred_fallthru
    _
  %v20 = vld [vmem:[%s0] sm:$0xff]
  %v21 = vld [vmem:[%s0 + $0x8] sm:$0xff]
  %v22 = vld [vmem:[%s0 + $0x10] sm:$0xff]
  %v23 = vld [vmem:[%s0 + $0x18] sm:$0xff]
  %v24 = vld [vmem:[%s0 + $0x20] sm:$0xff]
  %v25 = vld [vmem:[%s0 + $0x28] sm:$0xff]
  %v26 = vld [vmem:[%s0 + $0x30] sm:$0xff]
  %v27 = vld [vmem:[%s0 + $0x38] sm:$0xff]
  %v28 = vld [vmem:[%s0 + $0x40] sm:$0x3]
  %v29 = vld [vmem:[%s1] sm:$0x1]
  %v30 = vld [vmem:[%s2] sm:$0x1]
  %vm31 = vcmask 261120
  %v32 = vsel %vm31, %v20, 0.0
  %33 = vadd.xlane.f32.xlu0 %v32
  %v34 = vpop.xlane.xlu0 %33
  %v35 = vsel %vm31, %v21, 0.0
  %36 = vadd.xlane.f32.xlu0 %v35
  %v37 = vpop.xlane.xlu0 %36
  %v38 = vsel %vm31, %v22, 0.0
  %39 = vadd.xlane.f32.xlu0 %v38
  %v40 = vpop.xlane.xlu0 %39
  %v41 = vsel %vm31, %v23, 0.0
  %42 = vadd.xlane.f32.xlu0 %v41
  %v43 = vpop.xlane.xlu0 %42
  %v44 = vsel %vm31, %v24, 0.0
  %45 = vadd.xlane.f32.xlu0 %v44
  %v46 = vpop.xlane.xlu0 %45
  %v47 = vsel %vm31, %v25, 0.0
  %48 = vadd.xlane.f32.xlu0 %v47
  %v49 = vpop.xlane.xlu0 %48
  %v50 = vsel %vm31, %v26, 0.0
  %51 = vadd.xlane.f32.xlu0 %v50
  %v52 = vpop.xlane.xlu0 %51
  %v53 = vsel %vm31, %v27, 0.0
  %54 = vadd.xlane.f32.xlu0 %v53
  %v55 = vpop.xlane.xlu0 %54
  %vm56 = vcmask 254976
  %v57 = vsel %vm56, %v28, 0.0
  %58 = vadd.xlane.f32.xlu0 %v57
  %v59 = vpop.xlane.xlu0 %58
  %v60 = vrcp.pop 32.0
  %v61 = vmul.f32 %v34, %v60
  %v62 = vmul.f32 %v37, %v60
  %v63 = vmul.f32 %v40, %v60
  %v64 = vmul.f32 %v43, %v60
  %v65 = vmul.f32 %v46, %v60
  %v66 = vmul.f32 %v49, %v60
  %v67 = vmul.f32 %v52, %v60
  %v68 = vmul.f32 %v55, %v60
  %v69 = vmul.f32 %v59, %v60
  %v70 = vsub.f32 %v20, %v61
  %v71 = vsub.f32 %v21, %v62
  %v72 = vsub.f32 %v22, %v63
  %v73 = vsub.f32 %v23, %v64
  %v74 = vsub.f32 %v24, %v65
  %v75 = vsub.f32 %v25, %v66
  %v76 = vsub.f32 %v26, %v67
  %v77 = vsub.f32 %v27, %v68
  %v78 = vsub.f32 %v28, %v69
  %v79 = vmul.f32 %v70, %v70
  %v80 = vmul.f32 %v71, %v71
  %v81 = vmul.f32 %v72, %v72
  %v82 = vmul.f32 %v73, %v73
  %v83 = vmul.f32 %v74, %v74
  %v84 = vmul.f32 %v75, %v75
  %v85 = vmul.f32 %v76, %v76
  %v86 = vmul.f32 %v77, %v77
  %v87 = vmul.f32 %v78, %v78
  %v88 = vsel %vm31, %v79, 0.0
  %89 = vadd.xlane.f32.xlu0 %v88
  %v90 = vpop.xlane.xlu0 %89
  %v91 = vsel %vm31, %v80, 0.0
  %92 = vadd.xlane.f32.xlu0 %v91
  %v93 = vpop.xlane.xlu0 %92
  %v94 = vsel %vm31, %v81, 0.0
  %95 = vadd.xlane.f32.xlu0 %v94
  %v96 = vpop.xlane.xlu0 %95
  %v97 = vsel %vm31, %v82, 0.0
  %98 = vadd.xlane.f32.xlu0 %v97
  %v99 = vpop.xlane.xlu0 %98
  %v100 = vsel %vm31, %v83, 0.0
  %101 = vadd.xlane.f32.xlu0 %v100
  %v102 = vpop.xlane.xlu0 %101
  %v103 = vsel %vm31, %v84, 0.0
  %104 = vadd.xlane.f32.xlu0 %v103
  %v105 = vpop.xlane.xlu0 %104
  %v106 = vsel %vm31, %v85, 0.0
  %107 = vadd.xlane.f32.xlu0 %v106
  %v108 = vpop.xlane.xlu0 %107
  %v109 = vsel %vm31, %v86, 0.0
  %110 = vadd.xlane.f32.xlu0 %v109
  %v111 = vpop.xlane.xlu0 %110
  %v112 = vsel %vm56, %v87, 0.0
  %113 = vadd.xlane.f32.xlu0 %v112
  %v114 = vpop.xlane.xlu0 %113
  %v115 = vmul.f32 %v90, %v60
  %v116 = vmul.f32 %v93, %v60
  %v117 = vmul.f32 %v96, %v60
  %v118 = vmul.f32 %v99, %v60
  %v119 = vmul.f32 %v102, %v60
  %v120 = vmul.f32 %v105, %v60
  %v121 = vmul.f32 %v108, %v60
  %v122 = vmul.f32 %v111, %v60
  %v123 = vmul.f32 %v114, %v60
  %v124 = vadd.f32 %v115, 1e-06
  %v125 = vadd.f32 %v116, 1e-06
  %v126 = vadd.f32 %v117, 1e-06
  %v127 = vadd.f32 %v118, 1e-06
  %v128 = vadd.f32 %v119, 1e-06
  %v129 = vadd.f32 %v120, 1e-06
  %v130 = vadd.f32 %v121, 1e-06
  %v131 = vadd.f32 %v122, 1e-06
  %v132 = vadd.f32 %v123, 1e-06
  %v133 = vrsqrt.pop %v124
  %v134 = vrsqrt.pop %v125
  %v135 = vrsqrt.pop %v126
  %v136 = vrsqrt.pop %v127
  %v137 = vrsqrt.pop %v128
  %v138 = vrsqrt.pop %v129
  %v139 = vrsqrt.pop %v130
  %v140 = vrsqrt.pop %v131
  %v141 = vrsqrt.pop %v132
  %v142 = vmul.f32 %v70, %v133
  %v143 = vmul.f32 %v71, %v134
  %v144 = vmul.f32 %v72, %v135
  %v145 = vmul.f32 %v73, %v136
  %v146 = vmul.f32 %v74, %v137
  %v147 = vmul.f32 %v75, %v138
  %v148 = vmul.f32 %v76, %v139
  %v149 = vmul.f32 %v77, %v140
  %v150 = vmul.f32 %v78, %v141
  %v152 = vlaneseq
  %v153 = vshrl.u32 %v152, 7
  %v154 = vsub.s32 0, %v153
  %v155 = vrot.slane %v29, %v154
  %v157 = vmul.f32 %v142, %v155
  %v158 = vmul.f32 %v143, %v155
  %v159 = vmul.f32 %v144, %v155
  %v160 = vmul.f32 %v145, %v155
  %v161 = vmul.f32 %v146, %v155
  %v162 = vmul.f32 %v147, %v155
  %v163 = vmul.f32 %v148, %v155
  %v164 = vmul.f32 %v149, %v155
  %v165 = vmul.f32 %v150, %v155
  %v167 = vlaneseq
  %v168 = vshrl.u32 %v167, 7
  %v169 = vsub.s32 0, %v168
  %v170 = vrot.slane %v30, %v169
  %v172 = vadd.f32 %v157, %v170
  %v173 = vadd.f32 %v158, %v170
  %v174 = vadd.f32 %v159, %v170
  %v175 = vadd.f32 %v160, %v170
  %v176 = vadd.f32 %v161, %v170
  %v177 = vadd.f32 %v162, %v170
  %v178 = vadd.f32 %v163, %v170
  %v179 = vadd.f32 %v164, %v170
  %v180 = vadd.f32 %v165, %v170
  %v181 = vld [vmem:[%s3] sm:$0xff]
  %v182 = vld [vmem:[%s3 + $0x8] sm:$0xff]
  %v183 = vld [vmem:[%s3 + $0x10] sm:$0xff]
  %v184 = vld [vmem:[%s3 + $0x18] sm:$0xff]
  %v185 = vld [vmem:[%s4] sm:$0x1]
  %v187 = vlaneseq
  %v188 = vshrl.u32 %v187, 7
  %v189 = vsub.s32 0, %v188
  %v190 = vrot.slane %v185, %v189
  %v193 = vsel %vm31, %v172, 0
  %v196 = vsel %vm31, %v173, 0
  %v199 = vsel %vm31, %v174, 0
  %v202 = vsel %vm31, %v175, 0
  %v205 = vsel %vm31, %v176, 0
  %v208 = vsel %vm31, %v177, 0
  %v211 = vsel %vm31, %v178, 0
  %v214 = vsel %vm31, %v179, 0
  %v217 = vsel %vm31, %v180, 0
  %219 = vmatprep.subr.mxu0 0.0
  %220 = vmatpush1.msra.mxu0 0.0
  %221 = vmatprep.subr.mxu0 0.0
  %222 = vmatpush1.msra.mxu0 0.0
  %223 = vmatprep.subr.mxu0 0.0
  %224 = vmatpush1.msra.mxu0 0.0
  %225 = vmatprep.subr.mxu0 0.0
  %226 = vmatpush1.msra.mxu0 0.0
  %227 = vmatprep.subr.mxu0 0.0
  %228 = vmatpush1.msra.mxu0 0.0
  %229 = vmatprep.subr.mxu0 0.0
  %230 = vmatpush1.msra.mxu0 0.0
  %231 = vmatprep.subr.mxu0 0.0
  %232 = vmatpush1.msra.mxu0 0.0
  %233 = vmatprep.subr.mxu0 0.0
  %234 = vmatpush1.msra.mxu0 0.0
  %235 = vmatprep.subr.mxu0 0.0
  %236 = vmatpush1.msra.mxu0 0.0
  %237 = vmatprep.subr.mxu0 0.0
  %238 = vmatpush1.msra.mxu0 0.0
  %239 = vmatprep.subr.mxu0 0.0
  %240 = vmatpush1.msra.mxu0 0.0
  %241 = vmatprep.subr.mxu0 0.0
  %242 = vmatpush1.msra.mxu0 0.0
  %243 = vmatprep.subr.mxu0 0.0
  %244 = vmatpush1.msra.mxu0 %v184
  %245 = vmatprep.subr.mxu0 0.0
  %246 = vmatpush1.msra.mxu0 %v183
  %247 = vmatprep.subr.mxu0 0.0
  %248 = vmatpush1.msra.mxu0 %v182
  %249 = vmatprep.subr.mxu0 0.0
  %250 = vmatpush1.msra.mxu0 %v181
  %251 = vmatprep.subr.mxu0 0.0
  %252 = vmatpush2.msra.mxu0 0.0
  %253 = vmatprep.subr.mxu0 0.0
  %254 = vmatpush2.msra.mxu0 0.0
  %255 = vmatprep.subr.mxu0 0.0
  %256 = vmatpush2.msra.mxu0 0.0
  %257 = vmatprep.subr.mxu0 0.0
  %258 = vmatpush2.msra.mxu0 0.0
  %259 = vmatprep.subr.mxu0 0.0
  %260 = vmatpush2.msra.mxu0 0.0
  %261 = vmatprep.subr.mxu0 0.0
  %262 = vmatpush2.msra.mxu0 0.0
  %263 = vmatprep.subr.mxu0 0.0
  %264 = vmatpush2.msra.mxu0 0.0
  %265 = vmatprep.subr.mxu0 0.0
  %266 = vmatpush2.msra.mxu0 0.0
  %267 = vmatprep.subr.mxu0 0.0
  %268 = vmatpush2.msra.mxu0 0.0
  %269 = vmatprep.subr.mxu0 0.0
  %270 = vmatpush2.msra.mxu0 0.0
  %271 = vmatprep.subr.mxu0 0.0
  %272 = vmatpush2.msra.mxu0 0.0
  %273 = vmatprep.subr.mxu0 0.0
  %274 = vmatpush2.msra.mxu0 0.0
  %275 = vmatprep.subr.mxu0 0.0
  %276 = vmatpush2.msra.mxu0 0.0
  %277 = vmatprep.subr.mxu0 0.0
  %278 = vmatpush2.msra.mxu0 0.0
  %279 = vmatprep.subr.mxu0 0.0
  %280 = vmatpush2.msra.mxu0 0.0
  %281 = vmatprep.subr.mxu0 0.0
  %282 = vmatpush2.msra.mxu0 0.0
  %283 = vmatprep.mubr.f32.mxu0 0.0
  %284 = vmatmul.mubr.f32.gmra.mxu0 %v193
  %v285 = vpop.f32.mrf.mxu0
  %v286 = vadd.f32 %v190, %v285
  %v287 = vpop.f32.mrf.mxu0
  %288 = vmatprep.mubr.f32.mxu0 0.0
  %289 = vmatmul.mubr.f32.gmra.mxu0 %v196
  %v290 = vpop.f32.mrf.mxu0
  %v291 = vadd.f32 %v190, %v290
  %v292 = vpop.f32.mrf.mxu0
  %293 = vmatprep.mubr.f32.mxu0 0.0
  %294 = vmatmul.mubr.f32.gmra.mxu0 %v199
  %v295 = vpop.f32.mrf.mxu0
  %v296 = vadd.f32 %v190, %v295
  %v297 = vpop.f32.mrf.mxu0
  %298 = vmatprep.mubr.f32.mxu0 0.0
  %299 = vmatmul.mubr.f32.gmra.mxu0 %v202
  %v300 = vpop.f32.mrf.mxu0
  %v301 = vadd.f32 %v190, %v300
  %v302 = vpop.f32.mrf.mxu0
  %303 = vmatprep.mubr.f32.mxu0 0.0
  %304 = vmatmul.mubr.f32.gmra.mxu0 %v205
  %v305 = vpop.f32.mrf.mxu0
  %v306 = vadd.f32 %v190, %v305
  %v307 = vpop.f32.mrf.mxu0
  %308 = vmatprep.mubr.f32.mxu0 0.0
  %309 = vmatmul.mubr.f32.gmra.mxu0 %v208
  %v310 = vpop.f32.mrf.mxu0
  %v311 = vadd.f32 %v190, %v310
  %v312 = vpop.f32.mrf.mxu0
  %313 = vmatprep.mubr.f32.mxu0 0.0
  %314 = vmatmul.mubr.f32.gmra.mxu0 %v211
  %v315 = vpop.f32.mrf.mxu0
  %v316 = vadd.f32 %v190, %v315
  %v317 = vpop.f32.mrf.mxu0
  %318 = vmatprep.mubr.f32.mxu0 0.0
  %319 = vmatmul.mubr.f32.gmra.mxu0 %v214
  %v320 = vpop.f32.mrf.mxu0
  %v321 = vadd.f32 %v190, %v320
  %v322 = vpop.f32.mrf.mxu0
  %323 = vmatprep.mubr.f32.mxu0 0.0
  %324 = vmatmul.mubr.f32.gmra.mxu0 %v217
  %v325 = vpop.f32.mrf.mxu0
  %v326 = vadd.f32 %v190, %v325
  %v327 = vpop.f32.mrf.mxu0
  %328 = vdwg.mxu0
  %329 = vst [vmem:[%s5] sm:$0xff] %v286
  %330 = vst [vmem:[%s5 + $0x8] sm:$0xff] %v291
  %331 = vst [vmem:[%s5 + $0x10] sm:$0xff] %v296
  %332 = vst [vmem:[%s5 + $0x18] sm:$0xff] %v301
  %333 = vst [vmem:[%s5 + $0x20] sm:$0xff] %v306
  %334 = vst [vmem:[%s5 + $0x28] sm:$0xff] %v311
  %335 = vst [vmem:[%s5 + $0x30] sm:$0xff] %v316
  %336 = vst [vmem:[%s5 + $0x38] sm:$0xff] %v321
  %337 = vst [vmem:[%s5 + $0x40] sm:$0x3] %v326
  // Predicated region
  $region22: #{_lambda_.7} parent=0 // pred_check
    _
  $region23: #{_lambda_.7} parent=0 // pred_check_branch
    %339 = sbr.rel (0) target = $region25
  $region24: #{_lambda_.7} parent=0 // pred_region
    _
  $region25: #{_lambda_.7} parent=0 // pred_fallthru
    _
  // Predicated region
  $region26: #{_lambda_.7} parent=0 // pred_check
    _
  $region27: #{_lambda_.7} parent=0 // pred_check_branch
    %341 = sbr.rel (0) target = $region29
  $region28: #{_lambda_.7} parent=0 // pred_region
    _
  $region29: #{_lambda_.7} parent=0 // pred_fallthru
    _

// kernel: _lambda_.9
$region0: #{_lambda_.9}
  #allocation0 [shape = 'u32[]', space=smem, size = 0x4, offset = 0x4, fixed_abs, tag = 'smem constant byte address 0x4 - core index']
  #allocation1 [shape = 'u32[144,128]{1,0:T(1,128)}', space=vmem, size = 0x12000, scoped, tag = 'internal scratch']
  %s0 = inlined_call_operand.vmem [shape: f32[66,32], index: 0, kind: input, shape index: {}]
  %s1 = inlined_call_operand.vmem [shape: f32[1,32], index: 1, kind: input, shape index: {}]
  %s2 = inlined_call_operand.vmem [shape: f32[1,32], index: 2, kind: input, shape index: {}]
  %s3 = inlined_call_operand.vmem [shape: f32[32,128], index: 3, kind: input, shape index: {}]
  %s4 = inlined_call_operand.vmem [shape: f32[1,128], index: 4, kind: input, shape index: {}]
  %s5 = inlined_call_operand.vmem [shape: f32[128,64], index: 5, kind: input, shape index: {}]
  %s6 = inlined_call_operand.vmem [shape: f32[1,64], index: 6, kind: input, shape index: {}, may-alias: {6,8}]
  %s7 = inlined_call_operand.vmem [shape: f32[32,64], index: 7, kind: input, shape index: {}]
  %s8 = inlined_call_operand.vmem [shape: f32[1,64], index: 8, kind: input, shape index: {}, may-alias: {6,8}]
  %s9 = inlined_call_operand.vmem [shape: f32[66,64], index: 9, kind: output, shape index: {}]
  %s10 = sld [smem:[#allocation0]]
  $region46: #{_lambda_.9} parent=0
    _
  %s12 = ssub.s32 1, %s10
  %s13 = scalar_select 0, %s12, %s10
  // Predicated region
  $region2: #{_lambda_.9} parent=0 // pred_check
    _
  $region3: #{_lambda_.9} parent=0 // pred_check_branch
    %15 = sbr.rel (0) target = $region5
  $region4: #{_lambda_.9} parent=0 // pred_region
    _
  $region5: #{_lambda_.9} parent=0 // pred_fallthru
    _
  // Predicated region
  $region6: #{_lambda_.9} parent=0 // pred_check
    _
  $region7: #{_lambda_.9} parent=0 // pred_check_branch
    %17 = sbr.rel (0) target = $region9
  $region8: #{_lambda_.9} parent=0 // pred_region
    _
  $region9: #{_lambda_.9} parent=0 // pred_fallthru
    _
  // Predicated region
  $region10: #{_lambda_.9} parent=0 // pred_check
    _
  $region11: #{_lambda_.9} parent=0 // pred_check_branch
    %19 = sbr.rel (0) target = $region13
  $region12: #{_lambda_.9} parent=0 // pred_region
    _
  $region13: #{_lambda_.9} parent=0 // pred_fallthru
    _
  // Predicated region
  $region14: #{_lambda_.9} parent=0 // pred_check
    _
  $region15: #{_lambda_.9} parent=0 // pred_check_branch
    %21 = sbr.rel (0) target = $region17
  $region16: #{_lambda_.9} parent=0 // pred_region
    _
  $region17: #{_lambda_.9} parent=0 // pred_fallthru
    _
  // Predicated region
  $region18: #{_lambda_.9} parent=0 // pred_check
    _
  $region19: #{_lambda_.9} parent=0 // pred_check_branch
    %23 = sbr.rel (0) target = $region21
  $region20: #{_lambda_.9} parent=0 // pred_region
    _
  $region21: #{_lambda_.9} parent=0 // pred_fallthru
    _
  // Predicated region
  $region22: #{_lambda_.9} parent=0 // pred_check
    _
  $region23: #{_lambda_.9} parent=0 // pred_check_branch
    %25 = sbr.rel (0) target = $region25
  $region24: #{_lambda_.9} parent=0 // pred_region
    _
  $region25: #{_lambda_.9} parent=0 // pred_fallthru
    _
  // Predicated region
  $region26: #{_lambda_.9} parent=0 // pred_check
    _
  $region27: #{_lambda_.9} parent=0 // pred_check_branch
    %27 = sbr.rel (0) target = $region29
  $region28: #{_lambda_.9} parent=0 // pred_region
    _
  $region29: #{_lambda_.9} parent=0 // pred_fallthru
    _
  // Predicated region
  $region30: #{_lambda_.9} parent=0 // pred_check
    _
  $region31: #{_lambda_.9} parent=0 // pred_check_branch
    %29 = sbr.rel (0) target = $region33
  $region32: #{_lambda_.9} parent=0 // pred_region
    _
  $region33: #{_lambda_.9} parent=0 // pred_fallthru
    _
  // Predicated region
  $region34: #{_lambda_.9} parent=0 // pred_check
    _
  $region35: #{_lambda_.9} parent=0 // pred_check_branch
    %31 = sbr.rel (0) target = $region37
  $region36: #{_lambda_.9} parent=0 // pred_region
    _
  $region37: #{_lambda_.9} parent=0 // pred_fallthru
    _
  %v32 = vld [vmem:[%s0] sm:$0xff]
  %v33 = vld [vmem:[%s0 + $0x8] sm:$0xff]
  %v34 = vld [vmem:[%s0 + $0x10] sm:$0xff]
  %v35 = vld [vmem:[%s0 + $0x18] sm:$0xff]
  %v36 = vld [vmem:[%s0 + $0x20] sm:$0xff]
  %v37 = vld [vmem:[%s0 + $0x28] sm:$0xff]
  %v38 = vld [vmem:[%s0 + $0x30] sm:$0xff]
  %v39 = vld [vmem:[%s0 + $0x38] sm:$0xff]
  %v40 = vld [vmem:[%s0 + $0x40] sm:$0x3]
  %v41 = vld [vmem:[%s1] sm:$0x1]
  %v42 = vld [vmem:[%s2] sm:$0x1]
  %vm43 = vcmask 261120
  %v44 = vsel %vm43, %v32, 0.0
  %45 = vadd.xlane.f32.xlu0 %v44
  %v46 = vpop.xlane.xlu0 %45
  %v47 = vsel %vm43, %v33, 0.0
  %48 = vadd.xlane.f32.xlu0 %v47
  %v49 = vpop.xlane.xlu0 %48
  %v50 = vsel %vm43, %v34, 0.0
  %51 = vadd.xlane.f32.xlu0 %v50
  %v52 = vpop.xlane.xlu0 %51
  %v53 = vsel %vm43, %v35, 0.0
  %54 = vadd.xlane.f32.xlu0 %v53
  %v55 = vpop.xlane.xlu0 %54
  %v56 = vsel %vm43, %v36, 0.0
  %57 = vadd.xlane.f32.xlu0 %v56
  %v58 = vpop.xlane.xlu0 %57
  %v59 = vsel %vm43, %v37, 0.0
  %60 = vadd.xlane.f32.xlu0 %v59
  %v61 = vpop.xlane.xlu0 %60
  %v62 = vsel %vm43, %v38, 0.0
  %63 = vadd.xlane.f32.xlu0 %v62
  %v64 = vpop.xlane.xlu0 %63
  %v65 = vsel %vm43, %v39, 0.0
  %66 = vadd.xlane.f32.xlu0 %v65
  %v67 = vpop.xlane.xlu0 %66
  %vm68 = vcmask 254976
  %v69 = vsel %vm68, %v40, 0.0
  %70 = vadd.xlane.f32.xlu0 %v69
  %v71 = vpop.xlane.xlu0 %70
  %v72 = vrcp.pop 32.0
  %v73 = vmul.f32 %v46, %v72
  %v74 = vmul.f32 %v49, %v72
  %v75 = vmul.f32 %v52, %v72
  %v76 = vmul.f32 %v55, %v72
  %v77 = vmul.f32 %v58, %v72
  %v78 = vmul.f32 %v61, %v72
  %v79 = vmul.f32 %v64, %v72
  %v80 = vmul.f32 %v67, %v72
  %v81 = vmul.f32 %v71, %v72
  %v82 = vsub.f32 %v32, %v73
  %v83 = vsub.f32 %v33, %v74
  %v84 = vsub.f32 %v34, %v75
  %v85 = vsub.f32 %v35, %v76
  %v86 = vsub.f32 %v36, %v77
  %v87 = vsub.f32 %v37, %v78
  %v88 = vsub.f32 %v38, %v79
  %v89 = vsub.f32 %v39, %v80
  %v90 = vsub.f32 %v40, %v81
  %v91 = vmul.f32 %v82, %v82
  %v92 = vmul.f32 %v83, %v83
  %v93 = vmul.f32 %v84, %v84
  %v94 = vmul.f32 %v85, %v85
  %v95 = vmul.f32 %v86, %v86
  %v96 = vmul.f32 %v87, %v87
  %v97 = vmul.f32 %v88, %v88
  %v98 = vmul.f32 %v89, %v89
  %v99 = vmul.f32 %v90, %v90
  %v100 = vsel %vm43, %v91, 0.0
  %101 = vadd.xlane.f32.xlu0 %v100
  %v102 = vpop.xlane.xlu0 %101
  %v103 = vsel %vm43, %v92, 0.0
  %104 = vadd.xlane.f32.xlu0 %v103
  %v105 = vpop.xlane.xlu0 %104
  %v106 = vsel %vm43, %v93, 0.0
  %107 = vadd.xlane.f32.xlu0 %v106
  %v108 = vpop.xlane.xlu0 %107
  %v109 = vsel %vm43, %v94, 0.0
  %110 = vadd.xlane.f32.xlu0 %v109
  %v111 = vpop.xlane.xlu0 %110
  %v112 = vsel %vm43, %v95, 0.0
  %113 = vadd.xlane.f32.xlu0 %v112
  %v114 = vpop.xlane.xlu0 %113
  %v115 = vsel %vm43, %v96, 0.0
  %116 = vadd.xlane.f32.xlu0 %v115
  %v117 = vpop.xlane.xlu0 %116
  %v118 = vsel %vm43, %v97, 0.0
  %119 = vadd.xlane.f32.xlu0 %v118
  %v120 = vpop.xlane.xlu0 %119
  %v121 = vsel %vm43, %v98, 0.0
  %122 = vadd.xlane.f32.xlu0 %v121
  %v123 = vpop.xlane.xlu0 %122
  %v124 = vsel %vm68, %v99, 0.0
  %125 = vadd.xlane.f32.xlu0 %v124
  %v126 = vpop.xlane.xlu0 %125
  %v127 = vmul.f32 %v102, %v72
  %v128 = vmul.f32 %v105, %v72
  %v129 = vmul.f32 %v108, %v72
  %v130 = vmul.f32 %v111, %v72
  %v131 = vmul.f32 %v114, %v72
  %v132 = vmul.f32 %v117, %v72
  %v133 = vmul.f32 %v120, %v72
  %v134 = vmul.f32 %v123, %v72
  %v135 = vmul.f32 %v126, %v72
  %v136 = vadd.f32 %v127, 1e-06
  %v137 = vadd.f32 %v128, 1e-06
  %v138 = vadd.f32 %v129, 1e-06
  %v139 = vadd.f32 %v130, 1e-06
  %v140 = vadd.f32 %v131, 1e-06
  %v141 = vadd.f32 %v132, 1e-06
  %v142 = vadd.f32 %v133, 1e-06
  %v143 = vadd.f32 %v134, 1e-06
  %v144 = vadd.f32 %v135, 1e-06
  %v145 = vrsqrt.pop %v136
  %v146 = vrsqrt.pop %v137
  %v147 = vrsqrt.pop %v138
  %v148 = vrsqrt.pop %v139
  %v149 = vrsqrt.pop %v140
  %v150 = vrsqrt.pop %v141
  %v151 = vrsqrt.pop %v142
  %v152 = vrsqrt.pop %v143
  %v153 = vrsqrt.pop %v144
  %v154 = vmul.f32 %v82, %v145
  %v155 = vmul.f32 %v83, %v146
  %v156 = vmul.f32 %v84, %v147
  %v157 = vmul.f32 %v85, %v148
  %v158 = vmul.f32 %v86, %v149
  %v159 = vmul.f32 %v87, %v150
  %v160 = vmul.f32 %v88, %v151
  %v161 = vmul.f32 %v89, %v152
  %v162 = vmul.f32 %v90, %v153
  %v164 = vlaneseq
  %v165 = vshrl.u32 %v164, 7
  %v166 = vsub.s32 0, %v165
  %v167 = vrot.slane %v41, %v166
  %v169 = vmul.f32 %v154, %v167
  %v170 = vmul.f32 %v155, %v167
  %v171 = vmul.f32 %v156, %v167
  %v172 = vmul.f32 %v157, %v167
  %v173 = vmul.f32 %v158, %v167
  %v174 = vmul.f32 %v159, %v167
  %v175 = vmul.f32 %v160, %v167
  %v176 = vmul.f32 %v161, %v167
  %v177 = vmul.f32 %v162, %v167
  %v179 = vlaneseq
  %v180 = vshrl.u32 %v179, 7
  %v181 = vsub.s32 0, %v180
  %v182 = vrot.slane %v42, %v181
  %v184 = vadd.f32 %v169, %v182
  %v185 = vadd.f32 %v170, %v182
  %v186 = vadd.f32 %v171, %v182
  %v187 = vadd.f32 %v172, %v182
  %v188 = vadd.f32 %v173, %v182
  %v189 = vadd.f32 %v174, %v182
  %v190 = vadd.f32 %v175, %v182
  %v191 = vadd.f32 %v176, %v182
  %v192 = vadd.f32 %v177, %v182
  %v193 = vld [vmem:[%s3] sm:$0xff]
  %v194 = vld [vmem:[%s3 + $0x8] sm:$0xff]
  %v195 = vld [vmem:[%s3 + $0x10] sm:$0xff]
  %v196 = vld [vmem:[%s3 + $0x18] sm:$0xff]
  %v197 = vld [vmem:[%s4] sm:$0x1]
  %v199 = vlaneseq
  %v200 = vshrl.u32 %v199, 7
  %v201 = vsub.s32 0, %v200
  %v202 = vrot.slane %v197, %v201
  %v205 = vsel %vm43, %v184, 0
  %v208 = vsel %vm43, %v185, 0
  %v211 = vsel %vm43, %v186, 0
  %v214 = vsel %vm43, %v187, 0
  %v217 = vsel %vm43, %v188, 0
  %v220 = vsel %vm43, %v189, 0
  %v223 = vsel %vm43, %v190, 0
  %v226 = vsel %vm43, %v191, 0
  %v229 = vsel %vm43, %v192, 0
  %231 = vmatprep.subr.mxu0 0.0
  %232 = vmatpush1.msra.mxu0 0.0
  %233 = vmatprep.subr.mxu0 0.0
  %234 = vmatpush1.msra.mxu0 0.0
  %235 = vmatprep.subr.mxu0 0.0
  %236 = vmatpush1.msra.mxu0 0.0
  %237 = vmatprep.subr.mxu0 0.0
  %238 = vmatpush1.msra.mxu0 0.0
  %239 = vmatprep.subr.mxu0 0.0
  %240 = vmatpush1.msra.mxu0 0.0
  %241 = vmatprep.subr.mxu0 0.0
  %242 = vmatpush1.msra.mxu0 0.0
  %243 = vmatprep.subr.mxu0 0.0
  %244 = vmatpush1.msra.mxu0 0.0
  %245 = vmatprep.subr.mxu0 0.0
  %246 = vmatpush1.msra.mxu0 0.0
  %247 = vmatprep.subr.mxu0 0.0
  %248 = vmatpush1.msra.mxu0 0.0
  %249 = vmatprep.subr.mxu0 0.0
  %250 = vmatpush1.msra.mxu0 0.0
  %251 = vmatprep.subr.mxu0 0.0
  %252 = vmatpush1.msra.mxu0 0.0
  %253 = vmatprep.subr.mxu0 0.0
  %254 = vmatpush1.msra.mxu0 0.0
  %255 = vmatprep.subr.mxu0 0.0
  %256 = vmatpush1.msra.mxu0 %v196
  %257 = vmatprep.subr.mxu0 0.0
  %258 = vmatpush1.msra.mxu0 %v195
  %259 = vmatprep.subr.mxu0 0.0
  %260 = vmatpush1.msra.mxu0 %v194
  %261 = vmatprep.subr.mxu0 0.0
  %262 = vmatpush1.msra.mxu0 %v193
  %263 = vmatprep.subr.mxu0 0.0
  %264 = vmatpush2.msra.mxu0 0.0
  %265 = vmatprep.subr.mxu0 0.0
  %266 = vmatpush2.msra.mxu0 0.0
  %267 = vmatprep.subr.mxu0 0.0
  %268 = vmatpush2.msra.mxu0 0.0
  %269 = vmatprep.subr.mxu0 0.0
  %270 = vmatpush2.msra.mxu0 0.0
  %271 = vmatprep.subr.mxu0 0.0
  %272 = vmatpush2.msra.mxu0 0.0
  %273 = vmatprep.subr.mxu0 0.0
  %274 = vmatpush2.msra.mxu0 0.0
  %275 = vmatprep.subr.mxu0 0.0
  %276 = vmatpush2.msra.mxu0 0.0
  %277 = vmatprep.subr.mxu0 0.0
  %278 = vmatpush2.msra.mxu0 0.0
  %279 = vmatprep.subr.mxu0 0.0
  %280 = vmatpush2.msra.mxu0 0.0
  %281 = vmatprep.subr.mxu0 0.0
  %282 = vmatpush2.msra.mxu0 0.0
  %283 = vmatprep.subr.mxu0 0.0
  %284 = vmatpush2.msra.mxu0 0.0
  %285 = vmatprep.subr.mxu0 0.0
  %286 = vmatpush2.msra.mxu0 0.0
  %287 = vmatprep.subr.mxu0 0.0
  %288 = vmatpush2.msra.mxu0 0.0
  %289 = vmatprep.subr.mxu0 0.0
  %290 = vmatpush2.msra.mxu0 0.0
  %291 = vmatprep.subr.mxu0 0.0
  %292 = vmatpush2.msra.mxu0 0.0
  %293 = vmatprep.subr.mxu0 0.0
  %294 = vmatpush2.msra.mxu0 0.0
  %295 = vmatprep.mubr.f32.mxu0 0.0
  %296 = vmatmul.mubr.f32.gmra.mxu0 %v205
  %v297 = vpop.f32.mrf.mxu0
  %v298 = vadd.f32 %v202, %v297
  %v299 = vpop.f32.mrf.mxu0
  %300 = vmatprep.mubr.f32.mxu0 0.0
  %301 = vmatmul.mubr.f32.gmra.mxu0 %v208
  %v302 = vpop.f32.mrf.mxu0
  %v303 = vadd.f32 %v202, %v302
  %v304 = vpop.f32.mrf.mxu0
  %305 = vmatprep.mubr.f32.mxu0 0.0
  %306 = vmatmul.mubr.f32.gmra.mxu0 %v211
  %v307 = vpop.f32.mrf.mxu0
  %v308 = vadd.f32 %v202, %v307
  %v309 = vpop.f32.mrf.mxu0
  %310 = vmatprep.mubr.f32.mxu0 0.0
  %311 = vmatmul.mubr.f32.gmra.mxu0 %v214
  %v312 = vpop.f32.mrf.mxu0
  %v313 = vadd.f32 %v202, %v312
  %v314 = vpop.f32.mrf.mxu0
  %315 = vmatprep.mubr.f32.mxu0 0.0
  %316 = vmatmul.mubr.f32.gmra.mxu0 %v217
  %v317 = vpop.f32.mrf.mxu0
  %v318 = vadd.f32 %v202, %v317
  %v319 = vpop.f32.mrf.mxu0
  %320 = vmatprep.mubr.f32.mxu0 0.0
  %321 = vmatmul.mubr.f32.gmra.mxu0 %v220
  %v322 = vpop.f32.mrf.mxu0
  %v323 = vadd.f32 %v202, %v322
  %v324 = vpop.f32.mrf.mxu0
  %325 = vmatprep.mubr.f32.mxu0 0.0
  %326 = vmatmul.mubr.f32.gmra.mxu0 %v223
  %v327 = vpop.f32.mrf.mxu0
  %v328 = vadd.f32 %v202, %v327
  %v329 = vpop.f32.mrf.mxu0
  %330 = vmatprep.mubr.f32.mxu0 0.0
  %331 = vmatmul.mubr.f32.gmra.mxu0 %v226
  %v332 = vpop.f32.mrf.mxu0
  %v333 = vadd.f32 %v202, %v332
  %v334 = vpop.f32.mrf.mxu0
  %335 = vmatprep.mubr.f32.mxu0 0.0
  %336 = vmatmul.mubr.f32.gmra.mxu0 %v229
  %v337 = vpop.f32.mrf.mxu0
  %v338 = vadd.f32 %v202, %v337
  %v339 = vpop.f32.mrf.mxu0
  %340 = vdwg.mxu0
  %v341 = vmul.f32 %v298, 0.70710677
  %v342 = vmul.f32 %v303, 0.70710677
  %v343 = vmul.f32 %v308, 0.70710677
  %v344 = vmul.f32 %v313, 0.70710677
  %v345 = vmul.f32 %v318, 0.70710677
  %v346 = vmul.f32 %v323, 0.70710677
  %v347 = vmul.f32 %v328, 0.70710677
  %v348 = vmul.f32 %v333, 0.70710677
  %v349 = vmul.f32 %v338, 0.70710677
  %v350 = vand.u32 2147483647, %v341
  %v351 = vand.u32 2147483647, %v342
  %v352 = vand.u32 2147483647, %v343
  %v353 = vand.u32 2147483647, %v344
  %v354 = vand.u32 2147483647, %v345
  %v355 = vand.u32 2147483647, %v346
  %v356 = vand.u32 2147483647, %v347
  %v357 = vand.u32 2147483647, %v348
  %v358 = vand.u32 2147483647, %v349
  %v359 = vmul.f32 %v350, 0.3275911
  %v360 = vmul.f32 %v351, 0.3275911
  %v361 = vmul.f32 %v352, 0.3275911
  %v362 = vmul.f32 %v353, 0.3275911
  %v363 = vmul.f32 %v354, 0.3275911
  %v364 = vmul.f32 %v355, 0.3275911
  %v365 = vmul.f32 %v356, 0.3275911
  %v366 = vmul.f32 %v357, 0.3275911
  %v367 = vmul.f32 %v358, 0.3275911
  %v368 = vadd.f32 %v359, 1.0
  %v369 = vadd.f32 %v360, 1.0
  %v370 = vadd.f32 %v361, 1.0
  %v371 = vadd.f32 %v362, 1.0
  %v372 = vadd.f32 %v363, 1.0
  %v373 = vadd.f32 %v364, 1.0
  %v374 = vadd.f32 %v365, 1.0
  %v375 = vadd.f32 %v366, 1.0
  %v376 = vadd.f32 %v367, 1.0
  %v377 = vrcp.pop %v368
  %v378 = vmul.f32 1.0, %v377
  %v379 = vrcp.pop %v369
  %v380 = vmul.f32 1.0, %v379
  %v381 = vrcp.pop %v370
  %v382 = vmul.f32 1.0, %v381
  %v383 = vrcp.pop %v371
  %v384 = vmul.f32 1.0, %v383
  %v385 = vrcp.pop %v372
  %v386 = vmul.f32 1.0, %v385
  %v387 = vrcp.pop %v373
  %v388 = vmul.f32 1.0, %v387
  %v389 = vrcp.pop %v374
  %v390 = vmul.f32 1.0, %v389
  %v391 = vrcp.pop %v375
  %v392 = vmul.f32 1.0, %v391
  %v393 = vrcp.pop %v376
  %v394 = vmul.f32 1.0, %v393
  %v395 = vmul.f32 %v378, 1.0614054
  %v396 = vmul.f32 %v380, 1.0614054
  %v397 = vmul.f32 %v382, 1.0614054
  %v398 = vmul.f32 %v384, 1.0614054
  %v399 = vmul.f32 %v386, 1.0614054
  %v400 = vmul.f32 %v388, 1.0614054
  %v401 = vmul.f32 %v390, 1.0614054
  %v402 = vmul.f32 %v392, 1.0614054
  %v403 = vmul.f32 %v394, 1.0614054
  %v404 = vadd.f32 %v395, -1.4531521
  %v405 = vadd.f32 %v396, -1.4531521
  %v406 = vadd.f32 %v397, -1.4531521
  %v407 = vadd.f32 %v398, -1.4531521
  %v408 = vadd.f32 %v399, -1.4531521
  %v409 = vadd.f32 %v400, -1.4531521
  %v410 = vadd.f32 %v401, -1.4531521
  %v411 = vadd.f32 %v402, -1.4531521
  %v412 = vadd.f32 %v403, -1.4531521
  %v413 = vmul.f32 %v404, %v378
  %v414 = vmul.f32 %v405, %v380
  %v415 = vmul.f32 %v406, %v382
  %v416 = vmul.f32 %v407, %v384
  %v417 = vmul.f32 %v408, %v386
  %v418 = vmul.f32 %v409, %v388
  %v419 = vmul.f32 %v410, %v390
  %v420 = vmul.f32 %v411, %v392
  %v421 = vmul.f32 %v412, %v394
  %v422 = vadd.f32 %v413, 1.4214138
  %v423 = vadd.f32 %v414, 1.4214138
  %v424 = vadd.f32 %v415, 1.4214138
  %v425 = vadd.f32 %v416, 1.4214138
  %v426 = vadd.f32 %v417, 1.4214138
  %v427 = vadd.f32 %v418, 1.4214138
  %v428 = vadd.f32 %v419, 1.4214138
  %v429 = vadd.f32 %v420, 1.4214138
  %v430 = vadd.f32 %v421, 1.4214138
  %v431 = vmul.f32 %v422, %v378
  %v432 = vmul.f32 %v423, %v380
  %v433 = vmul.f32 %v424, %v382
  %v434 = vmul.f32 %v425, %v384
  %v435 = vmul.f32 %v426, %v386
  %v436 = vmul.f32 %v427, %v388
  %v437 = vmul.f32 %v428, %v390
  %v438 = vmul.f32 %v429, %v392
  %v439 = vmul.f32 %v430, %v394
  %v440 = vadd.f32 %v431, -0.28449672
  %v441 = vadd.f32 %v432, -0.28449672
  %v442 = vadd.f32 %v433, -0.28449672
  %v443 = vadd.f32 %v434, -0.28449672
  %v444 = vadd.f32 %v435, -0.28449672
  %v445 = vadd.f32 %v436, -0.28449672
  %v446 = vadd.f32 %v437, -0.28449672
  %v447 = vadd.f32 %v438, -0.28449672
  %v448 = vadd.f32 %v439, -0.28449672
  %v449 = vmul.f32 %v440, %v378
  %v450 = vmul.f32 %v441, %v380
  %v451 = vmul.f32 %v442, %v382
  %v452 = vmul.f32 %v443, %v384
  %v453 = vmul.f32 %v444, %v386
  %v454 = vmul.f32 %v445, %v388
  %v455 = vmul.f32 %v446, %v390
  %v456 = vmul.f32 %v447, %v392
  %v457 = vmul.f32 %v448, %v394
  %v458 = vadd.f32 %v449, 0.2548296
  %v459 = vadd.f32 %v450, 0.2548296
  %v460 = vadd.f32 %v451, 0.2548296
  %v461 = vadd.f32 %v452, 0.2548296
  %v462 = vadd.f32 %v453, 0.2548296
  %v463 = vadd.f32 %v454, 0.2548296
  %v464 = vadd.f32 %v455, 0.2548296
  %v465 = vadd.f32 %v456, 0.2548296
  %v466 = vadd.f32 %v457, 0.2548296
  %v467 = vmul.f32 %v458, %v378
  %v468 = vmul.f32 %v459, %v380
  %v469 = vmul.f32 %v460, %v382
  %v470 = vmul.f32 %v461, %v384
  %v471 = vmul.f32 %v462, %v386
  %v472 = vmul.f32 %v463, %v388
  %v473 = vmul.f32 %v464, %v390
  %v474 = vmul.f32 %v465, %v392
  %v475 = vmul.f32 %v466, %v394
  %v476 = vsub.f32 0.0, %v350
  %v477 = vsub.f32 0.0, %v351
  %v478 = vsub.f32 0.0, %v352
  %v479 = vsub.f32 0.0, %v353
  %v480 = vsub.f32 0.0, %v354
  %v481 = vsub.f32 0.0, %v355
  %v482 = vsub.f32 0.0, %v356
  %v483 = vsub.f32 0.0, %v357
  %v484 = vsub.f32 0.0, %v358
  %v485 = vmul.f32 %v476, %v350
  %v486 = vmul.f32 %v477, %v351
  %v487 = vmul.f32 %v478, %v352
  %v488 = vmul.f32 %v479, %v353
  %v489 = vmul.f32 %v480, %v354
  %v490 = vmul.f32 %v481, %v355
  %v491 = vmul.f32 %v482, %v356
  %v492 = vmul.f32 %v483, %v357
  %v493 = vmul.f32 %v484, %v358
  %v494 = vmul.f32 %v485, 1.442695
  %v495 = vpow.pop %v494
  %v496 = vmul.f32 %v486, 1.442695
  %v497 = vpow.pop %v496
  %v498 = vmul.f32 %v487, 1.442695
  %v499 = vpow.pop %v498
  %v500 = vmul.f32 %v488, 1.442695
  %v501 = vpow.pop %v500
  %v502 = vmul.f32 %v489, 1.442695
  %v503 = vpow.pop %v502
  %v504 = vmul.f32 %v490, 1.442695
  %v505 = vpow.pop %v504
  %v506 = vmul.f32 %v491, 1.442695
  %v507 = vpow.pop %v506
  %v508 = vmul.f32 %v492, 1.442695
  %v509 = vpow.pop %v508
  %v510 = vmul.f32 %v493, 1.442695
  %v511 = vpow.pop %v510
  %v512 = vmul.f32 %v467, %v495
  %v513 = vmul.f32 %v468, %v497
  %v514 = vmul.f32 %v469, %v499
  %v515 = vmul.f32 %v470, %v501
  %v516 = vmul.f32 %v471, %v503
  %v517 = vmul.f32 %v472, %v505
  %v518 = vmul.f32 %v473, %v507
  %v519 = vmul.f32 %v474, %v509
  %v520 = vmul.f32 %v475, %v511
  %v521 = vsub.f32 1.0, %v512
  %v522 = vsub.f32 1.0, %v513
  %v523 = vsub.f32 1.0, %v514
  %v524 = vsub.f32 1.0, %v515
  %v525 = vsub.f32 1.0, %v516
  %v526 = vsub.f32 1.0, %v517
  %v527 = vsub.f32 1.0, %v518
  %v528 = vsub.f32 1.0, %v519
  %v529 = vsub.f32 1.0, %v520
  %vm530 = vcmp.ge.f32.partialorder %v341, 0.0
  %vm531 = vcmp.ge.f32.partialorder %v342, 0.0
  %vm532 = vcmp.ge.f32.partialorder %v343, 0.0
  %vm533 = vcmp.ge.f32.partialorder %v344, 0.0
  %vm534 = vcmp.ge.f32.partialorder %v345, 0.0
  %vm535 = vcmp.ge.f32.partialorder %v346, 0.0
  %vm536 = vcmp.ge.f32.partialorder %v347, 0.0
  %vm537 = vcmp.ge.f32.partialorder %v348, 0.0
  %vm538 = vcmp.ge.f32.partialorder %v349, 0.0
  %v539 = vsub.f32 0.0, %v521
  %v540 = vsub.f32 0.0, %v522
  %v541 = vsub.f32 0.0, %v523
  %v542 = vsub.f32 0.0, %v524
  %v543 = vsub.f32 0.0, %v525
  %v544 = vsub.f32 0.0, %v526
  %v545 = vsub.f32 0.0, %v527
  %v546 = vsub.f32 0.0, %v528
  %v547 = vsub.f32 0.0, %v529
  %v548 = vsel %vm530, %v521, %v539
  %v549 = vsel %vm531, %v522, %v540
  %v550 = vsel %vm532, %v523, %v541
  %v551 = vsel %vm533, %v524, %v542
  %v552 = vsel %vm534, %v525, %v543
  %v553 = vsel %vm535, %v526, %v544
  %v554 = vsel %vm536, %v527, %v545
  %v555 = vsel %vm537, %v528, %v546
  %v556 = vsel %vm538, %v529, %v547
  %v557 = vmul.f32 %v298, 0.5
  %v558 = vmul.f32 %v303, 0.5
  %v559 = vmul.f32 %v308, 0.5
  %v560 = vmul.f32 %v313, 0.5
  %v561 = vmul.f32 %v318, 0.5
  %v562 = vmul.f32 %v323, 0.5
  %v563 = vmul.f32 %v328, 0.5
  %v564 = vmul.f32 %v333, 0.5
  %v565 = vmul.f32 %v338, 0.5
  %v566 = vadd.f32 %v548, 1.0
  %v567 = vadd.f32 %v549, 1.0
  %v568 = vadd.f32 %v550, 1.0
  %v569 = vadd.f32 %v551, 1.0
  %v570 = vadd.f32 %v552, 1.0
  %v571 = vadd.f32 %v553, 1.0
  %v572 = vadd.f32 %v554, 1.0
  %v573 = vadd.f32 %v555, 1.0
  %v574 = vadd.f32 %v556, 1.0
  %v575 = vmul.f32 %v557, %v566
  %v576 = vmul.f32 %v558, %v567
  %v577 = vmul.f32 %v559, %v568
  %v578 = vmul.f32 %v560, %v569
  %v579 = vmul.f32 %v561, %v570
  %v580 = vmul.f32 %v562, %v571
  %v581 = vmul.f32 %v563, %v572
  %v582 = vmul.f32 %v564, %v573
  %v583 = vmul.f32 %v565, %v574
  %v584 = vld [vmem:[%s5] sm:$0xff]
  %v585 = vld [vmem:[%s5 + $0x8] sm:$0xff]
  %v586 = vld [vmem:[%s5 + $0x10] sm:$0xff]
  %v587 = vld [vmem:[%s5 + $0x18] sm:$0xff]
  %v588 = vld [vmem:[%s5 + $0x20] sm:$0xff]
  %v589 = vld [vmem:[%s5 + $0x28] sm:$0xff]
  %v590 = vld [vmem:[%s5 + $0x30] sm:$0xff]
  %v591 = vld [vmem:[%s5 + $0x38] sm:$0xff]
  %v592 = vld [vmem:[%s5 + $0x40] sm:$0xff]
  %v593 = vld [vmem:[%s5 + $0x48] sm:$0xff]
  %v594 = vld [vmem:[%s5 + $0x50] sm:$0xff]
  %v595 = vld [vmem:[%s5 + $0x58] sm:$0xff]
  %v596 = vld [vmem:[%s5 + $0x60] sm:$0xff]
  %v597 = vld [vmem:[%s5 + $0x68] sm:$0xff]
  %v598 = vld [vmem:[%s5 + $0x70] sm:$0xff]
  %v599 = vld [vmem:[%s5 + $0x78] sm:$0xff]
  %v600 = vld [vmem:[%s6] sm:$0x1]
  %v602 = vlaneseq
  %v603 = vshrl.u32 %v602, 7
  %v604 = vsub.s32 0, %v603
  %v605 = vrot.slane %v600, %v604
  %607 = vmatprep.subr.mxu0 0.0
  %608 = vmatpush1.msra.mxu0 %v599
  %609 = vmatprep.subr.mxu0 0.0
  %610 = vmatpush1.msra.mxu0 %v598
  %611 = vmatprep.subr.mxu0 0.0
  %612 = vmatpush1.msra.mxu0 %v597
  %613 = vmatprep.subr.mxu0 0.0
  %614 = vmatpush1.msra.mxu0 %v596
  %615 = vmatprep.subr.mxu0 0.0
  %616 = vmatpush1.msra.mxu0 %v595
  %617 = vmatprep.subr.mxu0 0.0
  %618 = vmatpush1.msra.mxu0 %v594
  %619 = vmatprep.subr.mxu0 0.0
  %620 = vmatpush1.msra.mxu0 %v593
  %621 = vmatprep.subr.mxu0 0.0
  %622 = vmatpush1.msra.mxu0 %v592
  %623 = vmatprep.subr.mxu0 0.0
  %624 = vmatpush1.msra.mxu0 %v591
  %625 = vmatprep.subr.mxu0 0.0
  %626 = vmatpush1.msra.mxu0 %v590
  %627 = vmatprep.subr.mxu0 0.0
  %628 = vmatpush1.msra.mxu0 %v589
  %629 = vmatprep.subr.mxu0 0.0
  %630 = vmatpush1.msra.mxu0 %v588
  %631 = vmatprep.subr.mxu0 0.0
  %632 = vmatpush1.msra.mxu0 %v587
  %633 = vmatprep.subr.mxu0 0.0
  %634 = vmatpush1.msra.mxu0 %v586
  %635 = vmatprep.subr.mxu0 0.0
  %636 = vmatpush1.msra.mxu0 %v585
  %637 = vmatprep.subr.mxu0 0.0
  %638 = vmatpush1.msra.mxu0 %v584
  %639 = vmatprep.subr.mxu0 0.0
  %640 = vmatpush2.msra.mxu0 0.0
  %641 = vmatprep.subr.mxu0 0.0
  %642 = vmatpush2.msra.mxu0 0.0
  %643 = vmatprep.subr.mxu0 0.0
  %644 = vmatpush2.msra.mxu0 0.0
  %645 = vmatprep.subr.mxu0 0.0
  %646 = vmatpush2.msra.mxu0 0.0
  %647 = vmatprep.subr.mxu0 0.0
  %648 = vmatpush2.msra.mxu0 0.0
  %649 = vmatprep.subr.mxu0 0.0
  %650 = vmatpush2.msra.mxu0 0.0
  %651 = vmatprep.subr.mxu0 0.0
  %652 = vmatpush2.msra.mxu0 0.0
  %653 = vmatprep.subr.mxu0 0.0
  %654 = vmatpush2.msra.mxu0 0.0
  %655 = vmatprep.subr.mxu0 0.0
  %656 = vmatpush2.msra.mxu0 0.0
  %657 = vmatprep.subr.mxu0 0.0
  %658 = vmatpush2.msra.mxu0 0.0
  %659 = vmatprep.subr.mxu0 0.0
  %660 = vmatpush2.msra.mxu0 0.0
  %661 = vmatprep.subr.mxu0 0.0
  %662 = vmatpush2.msra.mxu0 0.0
  %663 = vmatprep.subr.mxu0 0.0
  %664 = vmatpush2.msra.mxu0 0.0
  %665 = vmatprep.subr.mxu0 0.0
  %666 = vmatpush2.msra.mxu0 0.0
  %667 = vmatprep.subr.mxu0 0.0
  %668 = vmatpush2.msra.mxu0 0.0
  %669 = vmatprep.subr.mxu0 0.0
  %670 = vmatpush2.msra.mxu0 0.0
  %671 = vmatprep.mubr.f32.mxu0 0.0
  %672 = vmatmul.mubr.f32.gmra.mxu0 %v575
  %v673 = vpop.f32.mrf.mxu0
  %v674 = vadd.f32 %v605, %v673
  %v675 = vpop.f32.mrf.mxu0
  %676 = vmatprep.mubr.f32.mxu0 0.0
  %677 = vmatmul.mubr.f32.gmra.mxu0 %v576
  %v678 = vpop.f32.mrf.mxu0
  %v679 = vadd.f32 %v605, %v678
  %v680 = vpop.f32.mrf.mxu0
  %681 = vmatprep.mubr.f32.mxu0 0.0
  %682 = vmatmul.mubr.f32.gmra.mxu0 %v577
  %v683 = vpop.f32.mrf.mxu0
  %v684 = vadd.f32 %v605, %v683
  %v685 = vpop.f32.mrf.mxu0
  %686 = vmatprep.mubr.f32.mxu0 0.0
  %687 = vmatmul.mubr.f32.gmra.mxu0 %v578
  %v688 = vpop.f32.mrf.mxu0
  %v689 = vadd.f32 %v605, %v688
  %v690 = vpop.f32.mrf.mxu0
  %691 = vmatprep.mubr.f32.mxu0 0.0
  %692 = vmatmul.mubr.f32.gmra.mxu0 %v579
  %v693 = vpop.f32.mrf.mxu0
  %v694 = vadd.f32 %v605, %v693
  %v695 = vpop.f32.mrf.mxu0
  %696 = vmatprep.mubr.f32.mxu0 0.0
  %697 = vmatmul.mubr.f32.gmra.mxu0 %v580
  %v698 = vpop.f32.mrf.mxu0
  %v699 = vadd.f32 %v605, %v698
  %v700 = vpop.f32.mrf.mxu0
  %701 = vmatprep.mubr.f32.mxu0 0.0
  %702 = vmatmul.mubr.f32.gmra.mxu0 %v581
  %v703 = vpop.f32.mrf.mxu0
  %v704 = vadd.f32 %v605, %v703
  %v705 = vpop.f32.mrf.mxu0
  %706 = vmatprep.mubr.f32.mxu0 0.0
  %707 = vmatmul.mubr.f32.gmra.mxu0 %v582
  %v708 = vpop.f32.mrf.mxu0
  %v709 = vadd.f32 %v605, %v708
  %v710 = vpop.f32.mrf.mxu0
  %711 = vmatprep.mubr.f32.mxu0 0.0
  %712 = vmatmul.mubr.f32.gmra.mxu0 %v583
  %v713 = vpop.f32.mrf.mxu0
  %v714 = vadd.f32 %v605, %v713
  %v715 = vpop.f32.mrf.mxu0
  %716 = vdwg.mxu0
  %v717 = vld [vmem:[%s7] sm:$0xff]
  %v718 = vld [vmem:[%s7 + $0x8] sm:$0xff]
  %v719 = vld [vmem:[%s7 + $0x10] sm:$0xff]
  %v720 = vld [vmem:[%s7 + $0x18] sm:$0xff]
  %v721 = vld [vmem:[%s8] sm:$0x1]
  %v723 = vlaneseq
  %v724 = vshrl.u32 %v723, 7
  %v725 = vsub.s32 0, %v724
  %v726 = vrot.slane %v721, %v725
  %728 = vmatprep.subr.mxu0 0.0
  %729 = vmatpush1.msra.mxu0 0.0
  %730 = vmatprep.subr.mxu0 0.0
  %731 = vmatpush1.msra.mxu0 0.0
  %732 = vmatprep.subr.mxu0 0.0
  %733 = vmatpush1.msra.mxu0 0.0
  %734 = vmatprep.subr.mxu0 0.0
  %735 = vmatpush1.msra.mxu0 0.0
  %736 = vmatprep.subr.mxu0 0.0
  %737 = vmatpush1.msra.mxu0 0.0
  %738 = vmatprep.subr.mxu0 0.0
  %739 = vmatpush1.msra.mxu0 0.0
  %740 = vmatprep.subr.mxu0 0.0
  %741 = vmatpush1.msra.mxu0 0.0
  %742 = vmatprep.subr.mxu0 0.0
  %743 = vmatpush1.msra.mxu0 0.0
  %744 = vmatprep.subr.mxu0 0.0
  %745 = vmatpush1.msra.mxu0 0.0
  %746 = vmatprep.subr.mxu0 0.0
  %747 = vmatpush1.msra.mxu0 0.0
  %748 = vmatprep.subr.mxu0 0.0
  %749 = vmatpush1.msra.mxu0 0.0
  %750 = vmatprep.subr.mxu0 0.0
  %751 = vmatpush1.msra.mxu0 0.0
  %752 = vmatprep.subr.mxu0 0.0
  %753 = vmatpush1.msra.mxu0 %v720
  %754 = vmatprep.subr.mxu0 0.0
  %755 = vmatpush1.msra.mxu0 %v719
  %756 = vmatprep.subr.mxu0 0.0
  %757 = vmatpush1.msra.mxu0 %v718
  %758 = vmatprep.subr.mxu0 0.0
  %759 = vmatpush1.msra.mxu0 %v717
  %760 = vmatprep.subr.mxu0 0.0
  %761 = vmatpush2.msra.mxu0 0.0
  %762 = vmatprep.subr.mxu0 0.0
  %763 = vmatpush2.msra.mxu0 0.0
  %764 = vmatprep.subr.mxu0 0.0
  %765 = vmatpush2.msra.mxu0 0.0
  %766 = vmatprep.subr.mxu0 0.0
  %767 = vmatpush2.msra.mxu0 0.0
  %768 = vmatprep.subr.mxu0 0.0
  %769 = vmatpush2.msra.mxu0 0.0
  %770 = vmatprep.subr.mxu0 0.0
  %771 = vmatpush2.msra.mxu0 0.0
  %772 = vmatprep.subr.mxu0 0.0
  %773 = vmatpush2.msra.mxu0 0.0
  %774 = vmatprep.subr.mxu0 0.0
  %775 = vmatpush2.msra.mxu0 0.0
  %776 = vmatprep.subr.mxu0 0.0
  %777 = vmatpush2.msra.mxu0 0.0
  %778 = vmatprep.subr.mxu0 0.0
  %779 = vmatpush2.msra.mxu0 0.0
  %780 = vmatprep.subr.mxu0 0.0
  %781 = vmatpush2.msra.mxu0 0.0
  %782 = vmatprep.subr.mxu0 0.0
  %783 = vmatpush2.msra.mxu0 0.0
  %784 = vmatprep.subr.mxu0 0.0
  %785 = vmatpush2.msra.mxu0 0.0
  %786 = vmatprep.subr.mxu0 0.0
  %787 = vmatpush2.msra.mxu0 0.0
  %788 = vmatprep.subr.mxu0 0.0
  %789 = vmatpush2.msra.mxu0 0.0
  %790 = vmatprep.subr.mxu0 0.0
  %791 = vmatpush2.msra.mxu0 0.0
  %792 = vmatprep.mubr.f32.mxu0 0.0
  %793 = vmatmul.mubr.f32.gmra.mxu0 %v205
  %v794 = vpop.f32.mrf.mxu0
  %v795 = vadd.f32 %v726, %v794
  %v796 = vpop.f32.mrf.mxu0
  %797 = vmatprep.mubr.f32.mxu0 0.0
  %798 = vmatmul.mubr.f32.gmra.mxu0 %v208
  %v799 = vpop.f32.mrf.mxu0
  %v800 = vadd.f32 %v726, %v799
  %v801 = vpop.f32.mrf.mxu0
  %802 = vmatprep.mubr.f32.mxu0 0.0
  %803 = vmatmul.mubr.f32.gmra.mxu0 %v211
  %v804 = vpop.f32.mrf.mxu0
  %v805 = vadd.f32 %v726, %v804
  %v806 = vpop.f32.mrf.mxu0
  %807 = vmatprep.mubr.f32.mxu0 0.0
  %808 = vmatmul.mubr.f32.gmra.mxu0 %v214
  %v809 = vpop.f32.mrf.mxu0
  %v810 = vadd.f32 %v726, %v809
  %v811 = vpop.f32.mrf.mxu0
  %812 = vmatprep.mubr.f32.mxu0 0.0
  %813 = vmatmul.mubr.f32.gmra.mxu0 %v217
  %v814 = vpop.f32.mrf.mxu0
  %v815 = vadd.f32 %v726, %v814
  %v816 = vpop.f32.mrf.mxu0
  %817 = vmatprep.mubr.f32.mxu0 0.0
  %818 = vmatmul.mubr.f32.gmra.mxu0 %v220
  %v819 = vpop.f32.mrf.mxu0
  %v820 = vadd.f32 %v726, %v819
  %v821 = vpop.f32.mrf.mxu0
  %822 = vmatprep.mubr.f32.mxu0 0.0
  %823 = vmatmul.mubr.f32.gmra.mxu0 %v223
  %v824 = vpop.f32.mrf.mxu0
  %v825 = vadd.f32 %v726, %v824
  %v826 = vpop.f32.mrf.mxu0
  %827 = vmatprep.mubr.f32.mxu0 0.0
  %828 = vmatmul.mubr.f32.gmra.mxu0 %v226
  %v829 = vpop.f32.mrf.mxu0
  %v830 = vadd.f32 %v726, %v829
  %v831 = vpop.f32.mrf.mxu0
  %832 = vmatprep.mubr.f32.mxu0 0.0
  %833 = vmatmul.mubr.f32.gmra.mxu0 %v229
  %v834 = vpop.f32.mrf.mxu0
  %v835 = vadd.f32 %v726, %v834
  %v836 = vpop.f32.mrf.mxu0
  %837 = vdwg.mxu0
  %v838 = vadd.f32 %v795, %v674
  %v839 = vadd.f32 %v800, %v679
  %v840 = vadd.f32 %v805, %v684
  %v841 = vadd.f32 %v810, %v689
  %v842 = vadd.f32 %v815, %v694
  %v843 = vadd.f32 %v820, %v699
  %v844 = vadd.f32 %v825, %v704
  %v845 = vadd.f32 %v830, %v709
  %v846 = vadd.f32 %v835, %v714
  %vm847 = vcmask 523264
  %848 = vst.msk [vmem:[%s9] sm:$0xff] %vm847, %v838
  %849 = vst.msk [vmem:[%s9 + $0x8] sm:$0xff] %vm847, %v839
  %850 = vst.msk [vmem:[%s9 + $0x10] sm:$0xff] %vm847, %v840
  %851 = vst.msk [vmem:[%s9 + $0x18] sm:$0xff] %vm847, %v841
  %852 = vst.msk [vmem:[%s9 + $0x20] sm:$0xff] %vm847, %v842
  %853 = vst.msk [vmem:[%s9 + $0x28] sm:$0xff] %vm847, %v843
  %854 = vst.msk [vmem:[%s9 + $0x30] sm:$0xff] %vm847, %v844
  %855 = vst.msk [vmem:[%s9 + $0x38] sm:$0xff] %vm847, %v845
  %vm856 = vcmask 517120
  %857 = vst.msk [vmem:[%s9 + $0x40] sm:$0x3] %vm856, %v846
  // Predicated region
  $region38: #{_lambda_.9} parent=0 // pred_check
    _
  $region39: #{_lambda_.9} parent=0 // pred_check_branch
    %859 = sbr.rel (0) target = $region41
  $region40: #{_lambda_.9} parent=0 // pred_region
    _
  $region41: #{_lambda_.9} parent=0 // pred_fallthru
    _
  // Predicated region
  $region42: #{_lambda_.9} parent=0 // pred_check
    _
  $region43: #{_lambda_.9} parent=0 // pred_check_branch
    %861 = sbr.rel (0) target = $region45
  $region44: #{_lambda_.9} parent=0 // pred_region
    _
  $region45: #{_lambda_.9} parent=0 // pred_fallthru
    _

// kernel: _lambda_.8
$region0: #{_lambda_.8}
  #allocation0 [shape = 'u32[]', space=smem, size = 0x4, offset = 0x4, fixed_abs, tag = 'smem constant byte address 0x4 - core index']
  #allocation1 [shape = 'u32[144,128]{1,0:T(1,128)}', space=vmem, size = 0x12000, scoped, tag = 'internal scratch']
  %s0 = inlined_call_operand.vmem [shape: f32[2,33,32], index: 0, kind: input, shape index: {}]
  %s1 = inlined_call_operand.vmem [shape: f32[2,9,32], index: 1, kind: input, shape index: {}]
  %s2 = inlined_call_operand.vmem [shape: f32[2,9,32], index: 2, kind: input, shape index: {}]
  %s3 = inlined_call_operand.vmem [shape: f32[1,32], index: 3, kind: input, shape index: {}, may-alias: {3,5}]
  %s4 = inlined_call_operand.vmem [shape: f32[1,32], index: 4, kind: input, shape index: {}, may-alias: {4,6,8}]
  %s5 = inlined_call_operand.vmem [shape: f32[1,32], index: 5, kind: input, shape index: {}, may-alias: {3,5}]
  %s6 = inlined_call_operand.vmem [shape: f32[1,32], index: 6, kind: input, shape index: {}, may-alias: {4,6,8}]
  %s7 = inlined_call_operand.vmem [shape: f32[32,32], index: 7, kind: input, shape index: {}]
  %s8 = inlined_call_operand.vmem [shape: f32[1,32], index: 8, kind: input, shape index: {}, may-alias: {4,6,8}]
  %s9 = inlined_call_operand.vmem [shape: f32[2,33,32], index: 9, kind: input, shape index: {}]
  %s10 = inlined_call_operand.vmem [shape: f32[2,33,32], index: 10, kind: output, shape index: {}]
  %s11 = sld [smem:[#allocation0]]
  $region50: #{_lambda_.8} parent=0
    _
  %s13 = ssub.s32 1, %s11
  %s14 = scalar_select 0, %s13, %s11
  // Predicated region
  $region2: #{_lambda_.8} parent=0 // pred_check
    _
  $region3: #{_lambda_.8} parent=0 // pred_check_branch
    %16 = sbr.rel (0) target = $region5
  $region4: #{_lambda_.8} parent=0 // pred_region
    _
  $region5: #{_lambda_.8} parent=0 // pred_fallthru
    _
  // Predicated region
  $region6: #{_lambda_.8} parent=0 // pred_check
    _
  $region7: #{_lambda_.8} parent=0 // pred_check_branch
    %18 = sbr.rel (0) target = $region9
  $region8: #{_lambda_.8} parent=0 // pred_region
    _
  $region9: #{_lambda_.8} parent=0 // pred_fallthru
    _
  // Predicated region
  $region10: #{_lambda_.8} parent=0 // pred_check
    _
  $region11: #{_lambda_.8} parent=0 // pred_check_branch
    %20 = sbr.rel (0) target = $region13
  $region12: #{_lambda_.8} parent=0 // pred_region
    _
  $region13: #{_lambda_.8} parent=0 // pred_fallthru
    _
  // Predicated region
  $region14: #{_lambda_.8} parent=0 // pred_check
    _
  $region15: #{_lambda_.8} parent=0 // pred_check_branch
    %22 = sbr.rel (0) target = $region17
  $region16: #{_lambda_.8} parent=0 // pred_region
    _
  $region17: #{_lambda_.8} parent=0 // pred_fallthru
    _
  // Predicated region
  $region18: #{_lambda_.8} parent=0 // pred_check
    _
  $region19: #{_lambda_.8} parent=0 // pred_check_branch
    %24 = sbr.rel (0) target = $region21
  $region20: #{_lambda_.8} parent=0 // pred_region
    _
  $region21: #{_lambda_.8} parent=0 // pred_fallthru
    _
  // Predicated region
  $region22: #{_lambda_.8} parent=0 // pred_check
    _
  $region23: #{_lambda_.8} parent=0 // pred_check_branch
    %26 = sbr.rel (0) target = $region25
  $region24: #{_lambda_.8} parent=0 // pred_region
    _
  $region25: #{_lambda_.8} parent=0 // pred_fallthru
    _
  // Predicated region
  $region26: #{_lambda_.8} parent=0 // pred_check
    _
  $region27: #{_lambda_.8} parent=0 // pred_check_branch
    %28 = sbr.rel (0) target = $region29
  $region28: #{_lambda_.8} parent=0 // pred_region
    _
  $region29: #{_lambda_.8} parent=0 // pred_fallthru
    _
  // Predicated region
  $region30: #{_lambda_.8} parent=0 // pred_check
    _
  $region31: #{_lambda_.8} parent=0 // pred_check_branch
    %30 = sbr.rel (0) target = $region33
  $region32: #{_lambda_.8} parent=0 // pred_region
    _
  $region33: #{_lambda_.8} parent=0 // pred_fallthru
    _
  // Predicated region
  $region34: #{_lambda_.8} parent=0 // pred_check
    _
  $region35: #{_lambda_.8} parent=0 // pred_check_branch
    %32 = sbr.rel (0) target = $region37
  $region36: #{_lambda_.8} parent=0 // pred_region
    _
  $region37: #{_lambda_.8} parent=0 // pred_fallthru
    _
  // Predicated region
  $region38: #{_lambda_.8} parent=0 // pred_check
    _
  $region39: #{_lambda_.8} parent=0 // pred_check_branch
    %34 = sbr.rel (0) target = $region41
  $region40: #{_lambda_.8} parent=0 // pred_region
    _
  $region41: #{_lambda_.8} parent=0 // pred_fallthru
    _
  %v35 = vld [vmem:[%s0] sm:$0xff]
  %v36 = vld [vmem:[%s0 + $0x8] sm:$0xff]
  %v37 = vld [vmem:[%s0 + $0x10] sm:$0xff]
  %v38 = vld [vmem:[%s0 + $0x18] sm:$0xff]
  %v39 = vld [vmem:[%s0 + $0x20] sm:$0x1]
  %v40 = vld [vmem:[%s0 + $0x28] sm:$0xff]
  %v41 = vld [vmem:[%s0 + $0x30] sm:$0xff]
  %v42 = vld [vmem:[%s0 + $0x38] sm:$0xff]
  %v43 = vld [vmem:[%s0 + $0x40] sm:$0xff]
  %v44 = vld [vmem:[%s0 + $0x48] sm:$0x1]
  %v45 = vld [vmem:[%s1] sm:$0xff]
  %v46 = vld [vmem:[%s1 + $0x8] sm:$0x1]
  %v47 = vld [vmem:[%s1 + $0x10] sm:$0xff]
  %v48 = vld [vmem:[%s1 + $0x18] sm:$0x1]
  %v49 = vld [vmem:[%s2] sm:$0xff]
  %v50 = vld [vmem:[%s2 + $0x8] sm:$0x1]
  %v51 = vld [vmem:[%s2 + $0x10] sm:$0xff]
  %v52 = vld [vmem:[%s2 + $0x18] sm:$0x1]
  %v53 = vmul.f32 %v35, 0.17677669
  %v54 = vmul.f32 %v36, 0.17677669
  %v55 = vmul.f32 %v37, 0.17677669
  %v56 = vmul.f32 %v38, 0.17677669
  %v57 = vmul.f32 %v39, 0.17677669
  %v58 = vmul.f32 %v40, 0.17677669
  %v59 = vmul.f32 %v41, 0.17677669
  %v60 = vmul.f32 %v42, 0.17677669
  %v61 = vmul.f32 %v43, 0.17677669
  %v62 = vmul.f32 %v44, 0.17677669
  %v63 = vld [vmem:[%s3] sm:$0x1]
  %v64 = vld [vmem:[%s4] sm:$0x1]
  %vm65 = vcmask 261120
  %v66 = vsel %vm65, %v45, 0.0
  %67 = vadd.xlane.f32.xlu0 %v66
  %v68 = vpop.xlane.xlu0 %67
  %vm69 = vcmask 253952
  %v70 = vsel %vm69, %v46, 0.0
  %71 = vadd.xlane.f32.xlu0 %v70
  %v72 = vpop.xlane.xlu0 %71
  %v73 = vsel %vm65, %v47, 0.0
  %74 = vadd.xlane.f32.xlu0 %v73
  %v75 = vpop.xlane.xlu0 %74
  %v76 = vsel %vm69, %v48, 0.0
  %77 = vadd.xlane.f32.xlu0 %v76
  %v78 = vpop.xlane.xlu0 %77
  %v79 = vrcp.pop 32.0
  %v80 = vmul.f32 %v68, %v79
  %v81 = vmul.f32 %v72, %v79
  %v82 = vmul.f32 %v75, %v79
  %v83 = vmul.f32 %v78, %v79
  %v84 = vsub.f32 %v45, %v80
  %v85 = vsub.f32 %v46, %v81
  %v86 = vsub.f32 %v47, %v82
  %v87 = vsub.f32 %v48, %v83
  %v88 = vmul.f32 %v84, %v84
  %v89 = vmul.f32 %v85, %v85
  %v90 = vmul.f32 %v86, %v86
  %v91 = vmul.f32 %v87, %v87
  %v92 = vsel %vm65, %v88, 0.0
  %93 = vadd.xlane.f32.xlu0 %v92
  %v94 = vpop.xlane.xlu0 %93
  %v95 = vsel %vm69, %v89, 0.0
  %96 = vadd.xlane.f32.xlu0 %v95
  %v97 = vpop.xlane.xlu0 %96
  %v98 = vsel %vm65, %v90, 0.0
  %99 = vadd.xlane.f32.xlu0 %v98
  %v100 = vpop.xlane.xlu0 %99
  %v101 = vsel %vm69, %v91, 0.0
  %102 = vadd.xlane.f32.xlu0 %v101
  %v103 = vpop.xlane.xlu0 %102
  %v104 = vmul.f32 %v94, %v79
  %v105 = vmul.f32 %v97, %v79
  %v106 = vmul.f32 %v100, %v79
  %v107 = vmul.f32 %v103, %v79
  %v108 = vadd.f32 %v104, 1e-05
  %v109 = vadd.f32 %v105, 1e-05
  %v110 = vadd.f32 %v106, 1e-05
  %v111 = vadd.f32 %v107, 1e-05
  %v112 = vrsqrt.pop %v108
  %v113 = vrsqrt.pop %v109
  %v114 = vrsqrt.pop %v110
  %v115 = vrsqrt.pop %v111
  %v116 = vmul.f32 %v84, %v112
  %v117 = vmul.f32 %v85, %v113
  %v118 = vmul.f32 %v86, %v114
  %v119 = vmul.f32 %v87, %v115
  %v121 = vlaneseq
  %v122 = vshrl.u32 %v121, 7
  %v123 = vsub.s32 0, %v122
  %v124 = vrot.slane %v63, %v123
  %v126 = vmul.f32 %v116, %v124
  %v127 = vmul.f32 %v117, %v124
  %v128 = vmul.f32 %v118, %v124
  %v129 = vmul.f32 %v119, %v124
  %v131 = vlaneseq
  %v132 = vshrl.u32 %v131, 7
  %v133 = vsub.s32 0, %v132
  %v134 = vrot.slane %v64, %v133
  %v136 = vadd.f32 %v126, %v134
  %v137 = vadd.f32 %v127, %v134
  %v138 = vadd.f32 %v128, %v134
  %v139 = vadd.f32 %v129, %v134
  %v140 = vld [vmem:[%s5] sm:$0x1]
  %v141 = vld [vmem:[%s6] sm:$0x1]
  %v142 = vsel %vm65, %v49, 0.0
  %143 = vadd.xlane.f32.xlu0 %v142
  %v144 = vpop.xlane.xlu0 %143
  %v145 = vsel %vm69, %v50, 0.0
  %146 = vadd.xlane.f32.xlu0 %v145
  %v147 = vpop.xlane.xlu0 %146
  %v148 = vsel %vm65, %v51, 0.0
  %149 = vadd.xlane.f32.xlu0 %v148
  %v150 = vpop.xlane.xlu0 %149
  %v151 = vsel %vm69, %v52, 0.0
  %152 = vadd.xlane.f32.xlu0 %v151
  %v153 = vpop.xlane.xlu0 %152
  %v154 = vmul.f32 %v144, %v79
  %v155 = vmul.f32 %v147, %v79
  %v156 = vmul.f32 %v150, %v79
  %v157 = vmul.f32 %v153, %v79
  %v158 = vsub.f32 %v49, %v154
  %v159 = vsub.f32 %v50, %v155
  %v160 = vsub.f32 %v51, %v156
  %v161 = vsub.f32 %v52, %v157
  %v162 = vmul.f32 %v158, %v158
  %v163 = vmul.f32 %v159, %v159
  %v164 = vmul.f32 %v160, %v160
  %v165 = vmul.f32 %v161, %v161
  %v166 = vsel %vm65, %v162, 0.0
  %167 = vadd.xlane.f32.xlu0 %v166
  %v168 = vpop.xlane.xlu0 %167
  %v169 = vsel %vm69, %v163, 0.0
  %170 = vadd.xlane.f32.xlu0 %v169
  %v171 = vpop.xlane.xlu0 %170
  %v172 = vsel %vm65, %v164, 0.0
  %173 = vadd.xlane.f32.xlu0 %v172
  %v174 = vpop.xlane.xlu0 %173
  %v175 = vsel %vm69, %v165, 0.0
  %176 = vadd.xlane.f32.xlu0 %v175
  %v177 = vpop.xlane.xlu0 %176
  %v178 = vmul.f32 %v168, %v79
  %v179 = vmul.f32 %v171, %v79
  %v180 = vmul.f32 %v174, %v79
  %v181 = vmul.f32 %v177, %v79
  %v182 = vadd.f32 %v178, 1e-05
  %v183 = vadd.f32 %v179, 1e-05
  %v184 = vadd.f32 %v180, 1e-05
  %v185 = vadd.f32 %v181, 1e-05
  %v186 = vrsqrt.pop %v182
  %v187 = vrsqrt.pop %v183
  %v188 = vrsqrt.pop %v184
  %v189 = vrsqrt.pop %v185
  %v190 = vmul.f32 %v158, %v186
  %v191 = vmul.f32 %v159, %v187
  %v192 = vmul.f32 %v160, %v188
  %v193 = vmul.f32 %v161, %v189
  %v195 = vlaneseq
  %v196 = vshrl.u32 %v195, 7
  %v197 = vsub.s32 0, %v196
  %v198 = vrot.slane %v140, %v197
  %v200 = vmul.f32 %v190, %v198
  %v201 = vmul.f32 %v191, %v198
  %v202 = vmul.f32 %v192, %v198
  %v203 = vmul.f32 %v193, %v198
  %v205 = vlaneseq
  %v206 = vshrl.u32 %v205, 7
  %v207 = vsub.s32 0, %v206
  %v208 = vrot.slane %v141, %v207
  %v210 = vadd.f32 %v200, %v208
  %v211 = vadd.f32 %v201, %v208
  %v212 = vadd.f32 %v202, %v208
  %v213 = vadd.f32 %v203, %v208
  %v215 = vsel %vm65, %v53, 0
  %v218 = vsel %vm65, %v54, 0
  %v221 = vsel %vm65, %v55, 0
  %v224 = vsel %vm65, %v56, 0
  %v227 = vsel %vm65, %v57, 0
  %v230 = vsel %vm65, %v136, 0
  %v233 = vsel %vm65, %v137, 0
  %235 = vmatprep.subr.mxu0 0.0
  %236 = vmatpush1.xpose.msra.mxu0 0.0
  %237 = vmatprep.subr.mxu0 0.0
  %238 = vmatpush1.xpose.msra.mxu0 0.0
  %239 = vmatprep.subr.mxu0 0.0
  %240 = vmatpush1.xpose.msra.mxu0 0.0
  %241 = vmatprep.subr.mxu0 0.0
  %242 = vmatpush1.xpose.msra.mxu0 0.0
  %243 = vmatprep.subr.mxu0 0.0
  %244 = vmatpush1.xpose.msra.mxu0 0.0
  %245 = vmatprep.subr.mxu0 0.0
  %246 = vmatpush1.xpose.msra.mxu0 0.0
  %247 = vmatprep.subr.mxu0 0.0
  %248 = vmatpush1.xpose.msra.mxu0 0.0
  %249 = vmatprep.subr.mxu0 0.0
  %250 = vmatpush1.xpose.msra.mxu0 0.0
  %251 = vmatprep.subr.mxu0 0.0
  %252 = vmatpush1.xpose.msra.mxu0 0.0
  %253 = vmatprep.subr.mxu0 0.0
  %254 = vmatpush1.xpose.msra.mxu0 0.0
  %255 = vmatprep.subr.mxu0 0.0
  %256 = vmatpush1.xpose.msra.mxu0 0.0
  %257 = vmatprep.subr.mxu0 0.0
  %258 = vmatpush1.xpose.msra.mxu0 0.0
  %259 = vmatprep.subr.mxu0 0.0
  %260 = vmatpush1.xpose.msra.mxu0 0.0
  %261 = vmatprep.subr.mxu0 0.0
  %262 = vmatpush1.xpose.msra.mxu0 0.0
  %263 = vmatprep.subr.mxu0 0.0
  %264 = vmatpush1.xpose.msra.mxu0 %v233
  %265 = vmatprep.subr.mxu0 0.0
  %266 = vmatpush1.xpose.msra.mxu0 %v230
  %267 = vmatprep.subr.mxu0 0.0
  %268 = vmatpush2.xpose.msra.mxu0 0.0
  %269 = vmatprep.subr.mxu0 0.0
  %270 = vmatpush2.xpose.msra.mxu0 0.0
  %271 = vmatprep.subr.mxu0 0.0
  %272 = vmatpush2.xpose.msra.mxu0 0.0
  %273 = vmatprep.subr.mxu0 0.0
  %274 = vmatpush2.xpose.msra.mxu0 0.0
  %275 = vmatprep.subr.mxu0 0.0
  %276 = vmatpush2.xpose.msra.mxu0 0.0
  %277 = vmatprep.subr.mxu0 0.0
  %278 = vmatpush2.xpose.msra.mxu0 0.0
  %279 = vmatprep.subr.mxu0 0.0
  %280 = vmatpush2.xpose.msra.mxu0 0.0
  %281 = vmatprep.subr.mxu0 0.0
  %282 = vmatpush2.xpose.msra.mxu0 0.0
  %283 = vmatprep.subr.mxu0 0.0
  %284 = vmatpush2.xpose.msra.mxu0 0.0
  %285 = vmatprep.subr.mxu0 0.0
  %286 = vmatpush2.xpose.msra.mxu0 0.0
  %287 = vmatprep.subr.mxu0 0.0
  %288 = vmatpush2.xpose.msra.mxu0 0.0
  %289 = vmatprep.subr.mxu0 0.0
  %290 = vmatpush2.xpose.msra.mxu0 0.0
  %291 = vmatprep.subr.mxu0 0.0
  %292 = vmatpush2.xpose.msra.mxu0 0.0
  %293 = vmatprep.subr.mxu0 0.0
  %294 = vmatpush2.xpose.msra.mxu0 0.0
  %295 = vmatprep.subr.mxu0 0.0
  %296 = vmatpush2.xpose.msra.mxu0 0.0
  %297 = vmatprep.subr.mxu0 0.0
  %298 = vmatpush2.xpose.msra.mxu0 0.0
  %299 = vmatprep.mubr.f32.mxu0 0.0
  %300 = vmatmul.mubr.f32.gmra.mxu0 %v215
  %v301 = vpop.f32.mrf.mxu0
  %v302 = vadd.f32 0.0, %v301
  %v303 = vpop.f32.mrf.mxu0
  %304 = vmatprep.mubr.f32.mxu0 0.0
  %305 = vmatmul.mubr.f32.gmra.mxu0 %v218
  %v306 = vpop.f32.mrf.mxu0
  %v307 = vadd.f32 0.0, %v306
  %v308 = vpop.f32.mrf.mxu0
  %309 = vmatprep.mubr.f32.mxu0 0.0
  %310 = vmatmul.mubr.f32.gmra.mxu0 %v221
  %v311 = vpop.f32.mrf.mxu0
  %v312 = vadd.f32 0.0, %v311
  %v313 = vpop.f32.mrf.mxu0
  %314 = vmatprep.mubr.f32.mxu0 0.0
  %315 = vmatmul.mubr.f32.gmra.mxu0 %v224
  %v316 = vpop.f32.mrf.mxu0
  %v317 = vadd.f32 0.0, %v316
  %v318 = vpop.f32.mrf.mxu0
  %319 = vmatprep.mubr.f32.mxu0 0.0
  %320 = vmatmul.mubr.f32.gmra.mxu0 %v227
  %v321 = vpop.f32.mrf.mxu0
  %v322 = vadd.f32 0.0, %v321
  %v323 = vpop.f32.mrf.mxu0
  %324 = vdwg.mxu0
  %v326 = vsel %vm65, %v58, 0
  %v329 = vsel %vm65, %v59, 0
  %v332 = vsel %vm65, %v60, 0
  %v335 = vsel %vm65, %v61, 0
  %v338 = vsel %vm65, %v62, 0
  %v341 = vsel %vm65, %v138, 0
  %v344 = vsel %vm65, %v139, 0
  %346 = vmatprep.subr.mxu0 0.0
  %347 = vmatpush1.xpose.msra.mxu0 0.0
  %348 = vmatprep.subr.mxu0 0.0
  %349 = vmatpush1.xpose.msra.mxu0 0.0
  %350 = vmatprep.subr.mxu0 0.0
  %351 = vmatpush1.xpose.msra.mxu0 0.0
  %352 = vmatprep.subr.mxu0 0.0
  %353 = vmatpush1.xpose.msra.mxu0 0.0
  %354 = vmatprep.subr.mxu0 0.0
  %355 = vmatpush1.xpose.msra.mxu0 0.0
  %356 = vmatprep.subr.mxu0 0.0
  %357 = vmatpush1.xpose.msra.mxu0 0.0
  %358 = vmatprep.subr.mxu0 0.0
  %359 = vmatpush1.xpose.msra.mxu0 0.0
  %360 = vmatprep.subr.mxu0 0.0
  %361 = vmatpush1.xpose.msra.mxu0 0.0
  %362 = vmatprep.subr.mxu0 0.0
  %363 = vmatpush1.xpose.msra.mxu0 0.0
  %364 = vmatprep.subr.mxu0 0.0
  %365 = vmatpush1.xpose.msra.mxu0 0.0
  %366 = vmatprep.subr.mxu0 0.0
  %367 = vmatpush1.xpose.msra.mxu0 0.0
  %368 = vmatprep.subr.mxu0 0.0
  %369 = vmatpush1.xpose.msra.mxu0 0.0
  %370 = vmatprep.subr.mxu0 0.0
  %371 = vmatpush1.xpose.msra.mxu0 0.0
  %372 = vmatprep.subr.mxu0 0.0
  %373 = vmatpush1.xpose.msra.mxu0 0.0
  %374 = vmatprep.subr.mxu0 0.0
  %375 = vmatpush1.xpose.msra.mxu0 %v344
  %376 = vmatprep.subr.mxu0 0.0
  %377 = vmatpush1.xpose.msra.mxu0 %v341
  %378 = vmatprep.subr.mxu0 0.0
  %379 = vmatpush2.xpose.msra.mxu0 0.0
  %380 = vmatprep.subr.mxu0 0.0
  %381 = vmatpush2.xpose.msra.mxu0 0.0
  %382 = vmatprep.subr.mxu0 0.0
  %383 = vmatpush2.xpose.msra.mxu0 0.0
  %384 = vmatprep.subr.mxu0 0.0
  %385 = vmatpush2.xpose.msra.mxu0 0.0
  %386 = vmatprep.subr.mxu0 0.0
  %387 = vmatpush2.xpose.msra.mxu0 0.0
  %388 = vmatprep.subr.mxu0 0.0
  %389 = vmatpush2.xpose.msra.mxu0 0.0
  %390 = vmatprep.subr.mxu0 0.0
  %391 = vmatpush2.xpose.msra.mxu0 0.0
  %392 = vmatprep.subr.mxu0 0.0
  %393 = vmatpush2.xpose.msra.mxu0 0.0
  %394 = vmatprep.subr.mxu0 0.0
  %395 = vmatpush2.xpose.msra.mxu0 0.0
  %396 = vmatprep.subr.mxu0 0.0
  %397 = vmatpush2.xpose.msra.mxu0 0.0
  %398 = vmatprep.subr.mxu0 0.0
  %399 = vmatpush2.xpose.msra.mxu0 0.0
  %400 = vmatprep.subr.mxu0 0.0
  %401 = vmatpush2.xpose.msra.mxu0 0.0
  %402 = vmatprep.subr.mxu0 0.0
  %403 = vmatpush2.xpose.msra.mxu0 0.0
  %404 = vmatprep.subr.mxu0 0.0
  %405 = vmatpush2.xpose.msra.mxu0 0.0
  %406 = vmatprep.subr.mxu0 0.0
  %407 = vmatpush2.xpose.msra.mxu0 0.0
  %408 = vmatprep.subr.mxu0 0.0
  %409 = vmatpush2.xpose.msra.mxu0 0.0
  %410 = vmatprep.mubr.f32.mxu0 0.0
  %411 = vmatmul.mubr.f32.gmra.mxu0 %v326
  %v412 = vpop.f32.mrf.mxu0
  %v413 = vadd.f32 0.0, %v412
  %v414 = vpop.f32.mrf.mxu0
  %415 = vmatprep.mubr.f32.mxu0 0.0
  %416 = vmatmul.mubr.f32.gmra.mxu0 %v329
  %v417 = vpop.f32.mrf.mxu0
  %v418 = vadd.f32 0.0, %v417
  %v419 = vpop.f32.mrf.mxu0
  %420 = vmatprep.mubr.f32.mxu0 0.0
  %421 = vmatmul.mubr.f32.gmra.mxu0 %v332
  %v422 = vpop.f32.mrf.mxu0
  %v423 = vadd.f32 0.0, %v422
  %v424 = vpop.f32.mrf.mxu0
  %425 = vmatprep.mubr.f32.mxu0 0.0
  %426 = vmatmul.mubr.f32.gmra.mxu0 %v335
  %v427 = vpop.f32.mrf.mxu0
  %v428 = vadd.f32 0.0, %v427
  %v429 = vpop.f32.mrf.mxu0
  %430 = vmatprep.mubr.f32.mxu0 0.0
  %431 = vmatmul.mubr.f32.gmra.mxu0 %v338
  %v432 = vpop.f32.mrf.mxu0
  %v433 = vadd.f32 0.0, %v432
  %v434 = vpop.f32.mrf.mxu0
  %435 = vdwg.mxu0
  %vm436 = vcmask 72704
  %v437 = vsel %vm436, %v302, -inf
  %438 = vmax.xlane.f32.xlu0 %v437
  %v439 = vpop.xlane.xlu0 %438
  %v440 = vsel %vm436, %v307, -inf
  %441 = vmax.xlane.f32.xlu0 %v440
  %v442 = vpop.xlane.xlu0 %441
  %v443 = vsel %vm436, %v312, -inf
  %444 = vmax.xlane.f32.xlu0 %v443
  %v445 = vpop.xlane.xlu0 %444
  %v446 = vsel %vm436, %v317, -inf
  %447 = vmax.xlane.f32.xlu0 %v446
  %v448 = vpop.xlane.xlu0 %447
  %vm449 = vcmask 65536
  %v450 = vsel %vm449, %v322, -inf
  %451 = vmax.xlane.f32.xlu0 %v450
  %v452 = vpop.xlane.xlu0 %451
  %v453 = vsel %vm436, %v413, -inf
  %454 = vmax.xlane.f32.xlu0 %v453
  %v455 = vpop.xlane.xlu0 %454
  %v456 = vsel %vm436, %v418, -inf
  %457 = vmax.xlane.f32.xlu0 %v456
  %v458 = vpop.xlane.xlu0 %457
  %v459 = vsel %vm436, %v423, -inf
  %460 = vmax.xlane.f32.xlu0 %v459
  %v461 = vpop.xlane.xlu0 %460
  %v462 = vsel %vm436, %v428, -inf
  %463 = vmax.xlane.f32.xlu0 %v462
  %v464 = vpop.xlane.xlu0 %463
  %v465 = vsel %vm449, %v433, -inf
  %466 = vmax.xlane.f32.xlu0 %v465
  %v467 = vpop.xlane.xlu0 %466
  %v468 = vsub.f32 %v302, %v439
  %v469 = vsub.f32 %v307, %v442
  %v470 = vsub.f32 %v312, %v445
  %v471 = vsub.f32 %v317, %v448
  %v472 = vsub.f32 %v322, %v452
  %v473 = vsub.f32 %v413, %v455
  %v474 = vsub.f32 %v418, %v458
  %v475 = vsub.f32 %v423, %v461
  %v476 = vsub.f32 %v428, %v464
  %v477 = vsub.f32 %v433, %v467
  %v478 = vmul.f32 %v468, 1.442695
  %v479 = vpow.pop %v478
  %v480 = vmul.f32 %v469, 1.442695
  %v481 = vpow.pop %v480
  %v482 = vmul.f32 %v470, 1.442695
  %v483 = vpow.pop %v482
  %v484 = vmul.f32 %v471, 1.442695
  %v485 = vpow.pop %v484
  %v486 = vmul.f32 %v472, 1.442695
  %v487 = vpow.pop %v486
  %v488 = vmul.f32 %v473, 1.442695
  %v489 = vpow.pop %v488
  %v490 = vmul.f32 %v474, 1.442695
  %v491 = vpow.pop %v490
  %v492 = vmul.f32 %v475, 1.442695
  %v493 = vpow.pop %v492
  %v494 = vmul.f32 %v476, 1.442695
  %v495 = vpow.pop %v494
  %v496 = vmul.f32 %v477, 1.442695
  %v497 = vpow.pop %v496
  %v498 = vsel %vm436, %v479, 0.0
  %499 = vadd.xlane.f32.xlu0 %v498
  %v500 = vpop.xlane.xlu0 %499
  %v501 = vsel %vm436, %v481, 0.0
  %502 = vadd.xlane.f32.xlu0 %v501
  %v503 = vpop.xlane.xlu0 %502
  %v504 = vsel %vm436, %v483, 0.0
  %505 = vadd.xlane.f32.xlu0 %v504
  %v506 = vpop.xlane.xlu0 %505
  %v507 = vsel %vm436, %v485, 0.0
  %508 = vadd.xlane.f32.xlu0 %v507
  %v509 = vpop.xlane.xlu0 %508
  %v510 = vsel %vm449, %v487, 0.0
  %511 = vadd.xlane.f32.xlu0 %v510
  %v512 = vpop.xlane.xlu0 %511
  %v513 = vsel %vm436, %v489, 0.0
  %514 = vadd.xlane.f32.xlu0 %v513
  %v515 = vpop.xlane.xlu0 %514
  %v516 = vsel %vm436, %v491, 0.0
  %517 = vadd.xlane.f32.xlu0 %v516
  %v518 = vpop.xlane.xlu0 %517
  %v519 = vsel %vm436, %v493, 0.0
  %520 = vadd.xlane.f32.xlu0 %v519
  %v521 = vpop.xlane.xlu0 %520
  %v522 = vsel %vm436, %v495, 0.0
  %523 = vadd.xlane.f32.xlu0 %v522
  %v524 = vpop.xlane.xlu0 %523
  %v525 = vsel %vm449, %v497, 0.0
  %526 = vadd.xlane.f32.xlu0 %v525
  %v527 = vpop.xlane.xlu0 %526
  %v528 = vrcp.pop %v500
  %v529 = vrcp.pop %v503
  %v530 = vrcp.pop %v506
  %v531 = vrcp.pop %v509
  %v532 = vrcp.pop %v512
  %v533 = vrcp.pop %v515
  %v534 = vrcp.pop %v518
  %v535 = vrcp.pop %v521
  %v536 = vrcp.pop %v524
  %v537 = vrcp.pop %v527
  %v538 = vmul.f32 %v479, %v528
  %v539 = vmul.f32 %v481, %v529
  %v540 = vmul.f32 %v483, %v530
  %v541 = vmul.f32 %v485, %v531
  %v542 = vmul.f32 %v487, %v532
  %v543 = vmul.f32 %v489, %v533
  %v544 = vmul.f32 %v491, %v534
  %v545 = vmul.f32 %v493, %v535
  %v546 = vmul.f32 %v495, %v536
  %v547 = vmul.f32 %v497, %v537
  %v549 = vsel %vm436, %v538, 0
  %v552 = vsel %vm436, %v539, 0
  %v555 = vsel %vm436, %v540, 0
  %v558 = vsel %vm436, %v541, 0
  %v561 = vsel %vm436, %v542, 0
  %vm563 = vcmask 1040384
  %v565 = vsel %vm563, %v211, 0
  %567 = vmatprep.subr.mxu0 0.0
  %568 = vmatpush1.msra.mxu0 0.0
  %569 = vmatprep.subr.mxu0 0.0
  %570 = vmatpush1.msra.mxu0 0.0
  %571 = vmatprep.subr.mxu0 0.0
  %572 = vmatpush1.msra.mxu0 0.0
  %573 = vmatprep.subr.mxu0 0.0
  %574 = vmatpush1.msra.mxu0 0.0
  %575 = vmatprep.subr.mxu0 0.0
  %576 = vmatpush1.msra.mxu0 0.0
  %577 = vmatprep.subr.mxu0 0.0
  %578 = vmatpush1.msra.mxu0 0.0
  %579 = vmatprep.subr.mxu0 0.0
  %580 = vmatpush1.msra.mxu0 0.0
  %581 = vmatprep.subr.mxu0 0.0
  %582 = vmatpush1.msra.mxu0 0.0
  %583 = vmatprep.subr.mxu0 0.0
  %584 = vmatpush1.msra.mxu0 0.0
  %585 = vmatprep.subr.mxu0 0.0
  %586 = vmatpush1.msra.mxu0 0.0
  %587 = vmatprep.subr.mxu0 0.0
  %588 = vmatpush1.msra.mxu0 0.0
  %589 = vmatprep.subr.mxu0 0.0
  %590 = vmatpush1.msra.mxu0 0.0
  %591 = vmatprep.subr.mxu0 0.0
  %592 = vmatpush1.msra.mxu0 0.0
  %593 = vmatprep.subr.mxu0 0.0
  %594 = vmatpush1.msra.mxu0 0.0
  %595 = vmatprep.subr.mxu0 0.0
  %596 = vmatpush1.msra.mxu0 %v565
  %597 = vmatprep.subr.mxu0 0.0
  %598 = vmatpush1.msra.mxu0 %v210
  %599 = vmatprep.subr.mxu0 0.0
  %600 = vmatpush2.msra.mxu0 0.0
  %601 = vmatprep.subr.mxu0 0.0
  %602 = vmatpush2.msra.mxu0 0.0
  %603 = vmatprep.subr.mxu0 0.0
  %604 = vmatpush2.msra.mxu0 0.0
  %605 = vmatprep.subr.mxu0 0.0
  %606 = vmatpush2.msra.mxu0 0.0
  %607 = vmatprep.subr.mxu0 0.0
  %608 = vmatpush2.msra.mxu0 0.0
  %609 = vmatprep.subr.mxu0 0.0
  %610 = vmatpush2.msra.mxu0 0.0
  %611 = vmatprep.subr.mxu0 0.0
  %612 = vmatpush2.msra.mxu0 0.0
  %613 = vmatprep.subr.mxu0 0.0
  %614 = vmatpush2.msra.mxu0 0.0
  %615 = vmatprep.subr.mxu0 0.0
  %616 = vmatpush2.msra.mxu0 0.0
  %617 = vmatprep.subr.mxu0 0.0
  %618 = vmatpush2.msra.mxu0 0.0
  %619 = vmatprep.subr.mxu0 0.0
  %620 = vmatpush2.msra.mxu0 0.0
  %621 = vmatprep.subr.mxu0 0.0
  %622 = vmatpush2.msra.mxu0 0.0
  %623 = vmatprep.subr.mxu0 0.0
  %624 = vmatpush2.msra.mxu0 0.0
  %625 = vmatprep.subr.mxu0 0.0
  %626 = vmatpush2.msra.mxu0 0.0
  %627 = vmatprep.subr.mxu0 0.0
  %628 = vmatpush2.msra.mxu0 0.0
  %629 = vmatprep.subr.mxu0 0.0
  %630 = vmatpush2.msra.mxu0 0.0
  %631 = vmatprep.mubr.f32.mxu0 0.0
  %632 = vmatmul.mubr.f32.gmra.mxu0 %v549
  %v633 = vpop.f32.mrf.mxu0
  %v634 = vadd.f32 0.0, %v633
  %v635 = vpop.f32.mrf.mxu0
  %636 = vmatprep.mubr.f32.mxu0 0.0
  %637 = vmatmul.mubr.f32.gmra.mxu0 %v552
  %v638 = vpop.f32.mrf.mxu0
  %v639 = vadd.f32 0.0, %v638
  %v640 = vpop.f32.mrf.mxu0
  %641 = vmatprep.mubr.f32.mxu0 0.0
  %642 = vmatmul.mubr.f32.gmra.mxu0 %v555
  %v643 = vpop.f32.mrf.mxu0
  %v644 = vadd.f32 0.0, %v643
  %v645 = vpop.f32.mrf.mxu0
  %646 = vmatprep.mubr.f32.mxu0 0.0
  %647 = vmatmul.mubr.f32.gmra.mxu0 %v558
  %v648 = vpop.f32.mrf.mxu0
  %v649 = vadd.f32 0.0, %v648
  %v650 = vpop.f32.mrf.mxu0
  %651 = vmatprep.mubr.f32.mxu0 0.0
  %652 = vmatmul.mubr.f32.gmra.mxu0 %v561
  %v653 = vpop.f32.mrf.mxu0
  %v654 = vadd.f32 0.0, %v653
  %v655 = vpop.f32.mrf.mxu0
  %656 = vdwg.mxu0
  %v658 = vsel %vm436, %v543, 0
  %v661 = vsel %vm436, %v544, 0
  %v664 = vsel %vm436, %v545, 0
  %v667 = vsel %vm436, %v546, 0
  %v670 = vsel %vm436, %v547, 0
  %v673 = vsel %vm563, %v213, 0
  %675 = vmatprep.subr.mxu0 0.0
  %676 = vmatpush1.msra.mxu0 0.0
  %677 = vmatprep.subr.mxu0 0.0
  %678 = vmatpush1.msra.mxu0 0.0
  %679 = vmatprep.subr.mxu0 0.0
  %680 = vmatpush1.msra.mxu0 0.0
  %681 = vmatprep.subr.mxu0 0.0
  %682 = vmatpush1.msra.mxu0 0.0
  %683 = vmatprep.subr.mxu0 0.0
  %684 = vmatpush1.msra.mxu0 0.0
  %685 = vmatprep.subr.mxu0 0.0
  %686 = vmatpush1.msra.mxu0 0.0
  %687 = vmatprep.subr.mxu0 0.0
  %688 = vmatpush1.msra.mxu0 0.0
  %689 = vmatprep.subr.mxu0 0.0
  %690 = vmatpush1.msra.mxu0 0.0
  %691 = vmatprep.subr.mxu0 0.0
  %692 = vmatpush1.msra.mxu0 0.0
  %693 = vmatprep.subr.mxu0 0.0
  %694 = vmatpush1.msra.mxu0 0.0
  %695 = vmatprep.subr.mxu0 0.0
  %696 = vmatpush1.msra.mxu0 0.0
  %697 = vmatprep.subr.mxu0 0.0
  %698 = vmatpush1.msra.mxu0 0.0
  %699 = vmatprep.subr.mxu0 0.0
  %700 = vmatpush1.msra.mxu0 0.0
  %701 = vmatprep.subr.mxu0 0.0
  %702 = vmatpush1.msra.mxu0 0.0
  %703 = vmatprep.subr.mxu0 0.0
  %704 = vmatpush1.msra.mxu0 %v673
  %705 = vmatprep.subr.mxu0 0.0
  %706 = vmatpush1.msra.mxu0 %v212
  %707 = vmatprep.subr.mxu0 0.0
  %708 = vmatpush2.msra.mxu0 0.0
  %709 = vmatprep.subr.mxu0 0.0
  %710 = vmatpush2.msra.mxu0 0.0
  %711 = vmatprep.subr.mxu0 0.0
  %712 = vmatpush2.msra.mxu0 0.0
  %713 = vmatprep.subr.mxu0 0.0
  %714 = vmatpush2.msra.mxu0 0.0
  %715 = vmatprep.subr.mxu0 0.0
  %716 = vmatpush2.msra.mxu0 0.0
  %717 = vmatprep.subr.mxu0 0.0
  %718 = vmatpush2.msra.mxu0 0.0
  %719 = vmatprep.subr.mxu0 0.0
  %720 = vmatpush2.msra.mxu0 0.0
  %721 = vmatprep.subr.mxu0 0.0
  %722 = vmatpush2.msra.mxu0 0.0
  %723 = vmatprep.subr.mxu0 0.0
  %724 = vmatpush2.msra.mxu0 0.0
  %725 = vmatprep.subr.mxu0 0.0
  %726 = vmatpush2.msra.mxu0 0.0
  %727 = vmatprep.subr.mxu0 0.0
  %728 = vmatpush2.msra.mxu0 0.0
  %729 = vmatprep.subr.mxu0 0.0
  %730 = vmatpush2.msra.mxu0 0.0
  %731 = vmatprep.subr.mxu0 0.0
  %732 = vmatpush2.msra.mxu0 0.0
  %733 = vmatprep.subr.mxu0 0.0
  %734 = vmatpush2.msra.mxu0 0.0
  %735 = vmatprep.subr.mxu0 0.0
  %736 = vmatpush2.msra.mxu0 0.0
  %737 = vmatprep.subr.mxu0 0.0
  %738 = vmatpush2.msra.mxu0 0.0
  %739 = vmatprep.mubr.f32.mxu0 0.0
  %740 = vmatmul.mubr.f32.gmra.mxu0 %v658
  %v741 = vpop.f32.mrf.mxu0
  %v742 = vadd.f32 0.0, %v741
  %v743 = vpop.f32.mrf.mxu0
  %744 = vmatprep.mubr.f32.mxu0 0.0
  %745 = vmatmul.mubr.f32.gmra.mxu0 %v661
  %v746 = vpop.f32.mrf.mxu0
  %v747 = vadd.f32 0.0, %v746
  %v748 = vpop.f32.mrf.mxu0
  %749 = vmatprep.mubr.f32.mxu0 0.0
  %750 = vmatmul.mubr.f32.gmra.mxu0 %v664
  %v751 = vpop.f32.mrf.mxu0
  %v752 = vadd.f32 0.0, %v751
  %v753 = vpop.f32.mrf.mxu0
  %754 = vmatprep.mubr.f32.mxu0 0.0
  %755 = vmatmul.mubr.f32.gmra.mxu0 %v667
  %v756 = vpop.f32.mrf.mxu0
  %v757 = vadd.f32 0.0, %v756
  %v758 = vpop.f32.mrf.mxu0
  %759 = vmatprep.mubr.f32.mxu0 0.0
  %760 = vmatmul.mubr.f32.gmra.mxu0 %v670
  %v761 = vpop.f32.mrf.mxu0
  %v762 = vadd.f32 0.0, %v761
  %v763 = vpop.f32.mrf.mxu0
  %764 = vdwg.mxu0
  %v765 = vld [vmem:[%s7] sm:$0xff]
  %v766 = vld [vmem:[%s7 + $0x8] sm:$0xff]
  %v767 = vld [vmem:[%s7 + $0x10] sm:$0xff]
  %v768 = vld [vmem:[%s7 + $0x18] sm:$0xff]
  %v769 = vld [vmem:[%s8] sm:$0x1]
  %v770 = vld [vmem:[%s9] sm:$0xff]
  %v771 = vld [vmem:[%s9 + $0x8] sm:$0xff]
  %v772 = vld [vmem:[%s9 + $0x10] sm:$0xff]
  %v773 = vld [vmem:[%s9 + $0x18] sm:$0xff]
  %v774 = vld [vmem:[%s9 + $0x20] sm:$0x1]
  %v776 = vlaneseq
  %v777 = vshrl.u32 %v776, 7
  %v778 = vsub.s32 0, %v777
  %v779 = vrot.slane %v769, %v778
  %v781 = vadd.f32 %v770, %v779
  %v782 = vadd.f32 %v771, %v779
  %v783 = vadd.f32 %v772, %v779
  %v784 = vadd.f32 %v773, %v779
  %v785 = vadd.f32 %v774, %v779
  %v787 = vsel %vm65, %v634, 0
  %v790 = vsel %vm65, %v639, 0
  %v793 = vsel %vm65, %v644, 0
  %v796 = vsel %vm65, %v649, 0
  %v799 = vsel %vm65, %v654, 0
  %801 = vmatprep.subr.mxu0 0.0
  %802 = vmatpush1.msra.mxu0 0.0
  %803 = vmatprep.subr.mxu0 0.0
  %804 = vmatpush1.msra.mxu0 0.0
  %805 = vmatprep.subr.mxu0 0.0
  %806 = vmatpush1.msra.mxu0 0.0
  %807 = vmatprep.subr.mxu0 0.0
  %808 = vmatpush1.msra.mxu0 0.0
  %809 = vmatprep.subr.mxu0 0.0
  %810 = vmatpush1.msra.mxu0 0.0
  %811 = vmatprep.subr.mxu0 0.0
  %812 = vmatpush1.msra.mxu0 0.0
  %813 = vmatprep.subr.mxu0 0.0
  %814 = vmatpush1.msra.mxu0 0.0
  %815 = vmatprep.subr.mxu0 0.0
  %816 = vmatpush1.msra.mxu0 0.0
  %817 = vmatprep.subr.mxu0 0.0
  %818 = vmatpush1.msra.mxu0 0.0
  %819 = vmatprep.subr.mxu0 0.0
  %820 = vmatpush1.msra.mxu0 0.0
  %821 = vmatprep.subr.mxu0 0.0
  %822 = vmatpush1.msra.mxu0 0.0
  %823 = vmatprep.subr.mxu0 0.0
  %824 = vmatpush1.msra.mxu0 0.0
  %825 = vmatprep.subr.mxu0 0.0
  %826 = vmatpush1.msra.mxu0 %v768
  %827 = vmatprep.subr.mxu0 0.0
  %828 = vmatpush1.msra.mxu0 %v767
  %829 = vmatprep.subr.mxu0 0.0
  %830 = vmatpush1.msra.mxu0 %v766
  %831 = vmatprep.subr.mxu0 0.0
  %832 = vmatpush1.msra.mxu0 %v765
  %833 = vmatprep.subr.mxu0 0.0
  %834 = vmatpush2.msra.mxu0 0.0
  %835 = vmatprep.subr.mxu0 0.0
  %836 = vmatpush2.msra.mxu0 0.0
  %837 = vmatprep.subr.mxu0 0.0
  %838 = vmatpush2.msra.mxu0 0.0
  %839 = vmatprep.subr.mxu0 0.0
  %840 = vmatpush2.msra.mxu0 0.0
  %841 = vmatprep.subr.mxu0 0.0
  %842 = vmatpush2.msra.mxu0 0.0
  %843 = vmatprep.subr.mxu0 0.0
  %844 = vmatpush2.msra.mxu0 0.0
  %845 = vmatprep.subr.mxu0 0.0
  %846 = vmatpush2.msra.mxu0 0.0
  %847 = vmatprep.subr.mxu0 0.0
  %848 = vmatpush2.msra.mxu0 0.0
  %849 = vmatprep.subr.mxu0 0.0
  %850 = vmatpush2.msra.mxu0 0.0
  %851 = vmatprep.subr.mxu0 0.0
  %852 = vmatpush2.msra.mxu0 0.0
  %853 = vmatprep.subr.mxu0 0.0
  %854 = vmatpush2.msra.mxu0 0.0
  %855 = vmatprep.subr.mxu0 0.0
  %856 = vmatpush2.msra.mxu0 0.0
  %857 = vmatprep.subr.mxu0 0.0
  %858 = vmatpush2.msra.mxu0 0.0
  %859 = vmatprep.subr.mxu0 0.0
  %860 = vmatpush2.msra.mxu0 0.0
  %861 = vmatprep.subr.mxu0 0.0
  %862 = vmatpush2.msra.mxu0 0.0
  %863 = vmatprep.subr.mxu0 0.0
  %864 = vmatpush2.msra.mxu0 0.0
  %865 = vmatprep.mubr.f32.mxu0 0.0
  %866 = vmatmul.mubr.f32.gmra.mxu0 %v787
  %v867 = vpop.f32.mrf.mxu0
  %v868 = vadd.f32 0.0, %v867
  %v869 = vpop.f32.mrf.mxu0
  %870 = vmatprep.mubr.f32.mxu0 0.0
  %871 = vmatmul.mubr.f32.gmra.mxu0 %v790
  %v872 = vpop.f32.mrf.mxu0
  %v873 = vadd.f32 0.0, %v872
  %v874 = vpop.f32.mrf.mxu0
  %875 = vmatprep.mubr.f32.mxu0 0.0
  %876 = vmatmul.mubr.f32.gmra.mxu0 %v793
  %v877 = vpop.f32.mrf.mxu0
  %v878 = vadd.f32 0.0, %v877
  %v879 = vpop.f32.mrf.mxu0
  %880 = vmatprep.mubr.f32.mxu0 0.0
  %881 = vmatmul.mubr.f32.gmra.mxu0 %v796
  %v882 = vpop.f32.mrf.mxu0
  %v883 = vadd.f32 0.0, %v882
  %v884 = vpop.f32.mrf.mxu0
  %885 = vmatprep.mubr.f32.mxu0 0.0
  %886 = vmatmul.mubr.f32.gmra.mxu0 %v799
  %v887 = vpop.f32.mrf.mxu0
  %v888 = vadd.f32 0.0, %v887
  %v889 = vpop.f32.mrf.mxu0
  %890 = vdwg.mxu0
  %v891 = vadd.f32 %v781, %v868
  %v892 = vadd.f32 %v782, %v873
  %v893 = vadd.f32 %v783, %v878
  %v894 = vadd.f32 %v784, %v883
  %v895 = vadd.f32 %v785, %v888
  %896 = vst.msk [vmem:[%s10] sm:$0xff] %vm65, %v891
  %897 = vst.msk [vmem:[%s10 + $0x8] sm:$0xff] %vm65, %v892
  %898 = vst.msk [vmem:[%s10 + $0x10] sm:$0xff] %vm65, %v893
  %899 = vst.msk [vmem:[%s10 + $0x18] sm:$0xff] %vm65, %v894
  %900 = vst.msk [vmem:[%s10 + $0x20] sm:$0x1] %vm69, %v895
  %s901 = scalar_lea.vmem %s9, 40
  %v902 = vld [vmem:[%s901] sm:$0xff]
  %v903 = vld [vmem:[%s901 + $0x8] sm:$0xff]
  %v904 = vld [vmem:[%s901 + $0x10] sm:$0xff]
  %v905 = vld [vmem:[%s901 + $0x18] sm:$0xff]
  %v906 = vld [vmem:[%s901 + $0x20] sm:$0x1]
  %v907 = vadd.f32 %v902, %v779
  %v908 = vadd.f32 %v903, %v779
  %v909 = vadd.f32 %v904, %v779
  %v910 = vadd.f32 %v905, %v779
  %v911 = vadd.f32 %v906, %v779
  %v913 = vsel %vm65, %v742, 0
  %v916 = vsel %vm65, %v747, 0
  %v919 = vsel %vm65, %v752, 0
  %v922 = vsel %vm65, %v757, 0
  %v925 = vsel %vm65, %v762, 0
  %927 = vmatprep.subr.mxu0 0.0
  %928 = vmatpush1.msra.mxu0 0.0
  %929 = vmatprep.subr.mxu0 0.0
  %930 = vmatpush1.msra.mxu0 0.0
  %931 = vmatprep.subr.mxu0 0.0
  %932 = vmatpush1.msra.mxu0 0.0
  %933 = vmatprep.subr.mxu0 0.0
  %934 = vmatpush1.msra.mxu0 0.0
  %935 = vmatprep.subr.mxu0 0.0
  %936 = vmatpush1.msra.mxu0 0.0
  %937 = vmatprep.subr.mxu0 0.0
  %938 = vmatpush1.msra.mxu0 0.0
  %939 = vmatprep.subr.mxu0 0.0
  %940 = vmatpush1.msra.mxu0 0.0
  %941 = vmatprep.subr.mxu0 0.0
  %942 = vmatpush1.msra.mxu0 0.0
  %943 = vmatprep.subr.mxu0 0.0
  %944 = vmatpush1.msra.mxu0 0.0
  %945 = vmatprep.subr.mxu0 0.0
  %946 = vmatpush1.msra.mxu0 0.0
  %947 = vmatprep.subr.mxu0 0.0
  %948 = vmatpush1.msra.mxu0 0.0
  %949 = vmatprep.subr.mxu0 0.0
  %950 = vmatpush1.msra.mxu0 0.0
  %951 = vmatprep.subr.mxu0 0.0
  %952 = vmatpush1.msra.mxu0 %v768
  %953 = vmatprep.subr.mxu0 0.0
  %954 = vmatpush1.msra.mxu0 %v767
  %955 = vmatprep.subr.mxu0 0.0
  %956 = vmatpush1.msra.mxu0 %v766
  %957 = vmatprep.subr.mxu0 0.0
  %958 = vmatpush1.msra.mxu0 %v765
  %959 = vmatprep.subr.mxu0 0.0
  %960 = vmatpush2.msra.mxu0 0.0
  %961 = vmatprep.subr.mxu0 0.0
  %962 = vmatpush2.msra.mxu0 0.0
  %963 = vmatprep.subr.mxu0 0.0
  %964 = vmatpush2.msra.mxu0 0.0
  %965 = vmatprep.subr.mxu0 0.0
  %966 = vmatpush2.msra.mxu0 0.0
  %967 = vmatprep.subr.mxu0 0.0
  %968 = vmatpush2.msra.mxu0 0.0
  %969 = vmatprep.subr.mxu0 0.0
  %970 = vmatpush2.msra.mxu0 0.0
  %971 = vmatprep.subr.mxu0 0.0
  %972 = vmatpush2.msra.mxu0 0.0
  %973 = vmatprep.subr.mxu0 0.0
  %974 = vmatpush2.msra.mxu0 0.0
  %975 = vmatprep.subr.mxu0 0.0
  %976 = vmatpush2.msra.mxu0 0.0
  %977 = vmatprep.subr.mxu0 0.0
  %978 = vmatpush2.msra.mxu0 0.0
  %979 = vmatprep.subr.mxu0 0.0
  %980 = vmatpush2.msra.mxu0 0.0
  %981 = vmatprep.subr.mxu0 0.0
  %982 = vmatpush2.msra.mxu0 0.0
  %983 = vmatprep.subr.mxu0 0.0
  %984 = vmatpush2.msra.mxu0 0.0
  %985 = vmatprep.subr.mxu0 0.0
  %986 = vmatpush2.msra.mxu0 0.0
  %987 = vmatprep.subr.mxu0 0.0
  %988 = vmatpush2.msra.mxu0 0.0
  %989 = vmatprep.subr.mxu0 0.0
  %990 = vmatpush2.msra.mxu0 0.0
  %991 = vmatprep.mubr.f32.mxu0 0.0
  %992 = vmatmul.mubr.f32.gmra.mxu0 %v913
  %v993 = vpop.f32.mrf.mxu0
  %v994 = vadd.f32 0.0, %v993
  %v995 = vpop.f32.mrf.mxu0
  %996 = vmatprep.mubr.f32.mxu0 0.0
  %997 = vmatmul.mubr.f32.gmra.mxu0 %v916
  %v998 = vpop.f32.mrf.mxu0
  %v999 = vadd.f32 0.0, %v998
  %v1000 = vpop.f32.mrf.mxu0
  %1001 = vmatprep.mubr.f32.mxu0 0.0
  %1002 = vmatmul.mubr.f32.gmra.mxu0 %v919
  %v1003 = vpop.f32.mrf.mxu0
  %v1004 = vadd.f32 0.0, %v1003
  %v1005 = vpop.f32.mrf.mxu0
  %1006 = vmatprep.mubr.f32.mxu0 0.0
  %1007 = vmatmul.mubr.f32.gmra.mxu0 %v922
  %v1008 = vpop.f32.mrf.mxu0
  %v1009 = vadd.f32 0.0, %v1008
  %v1010 = vpop.f32.mrf.mxu0
  %1011 = vmatprep.mubr.f32.mxu0 0.0
  %1012 = vmatmul.mubr.f32.gmra.mxu0 %v925
  %v1013 = vpop.f32.mrf.mxu0
  %v1014 = vadd.f32 0.0, %v1013
  %v1015 = vpop.f32.mrf.mxu0
  %1016 = vdwg.mxu0
  %v1017 = vadd.f32 %v907, %v994
  %v1018 = vadd.f32 %v908, %v999
  %v1019 = vadd.f32 %v909, %v1004
  %v1020 = vadd.f32 %v910, %v1009
  %v1021 = vadd.f32 %v911, %v1014
  %s1022 = scalar_lea.vmem %s10, 40
  %1023 = vst.msk [vmem:[%s1022] sm:$0xff] %vm65, %v1017
  %1024 = vst.msk [vmem:[%s1022 + $0x8] sm:$0xff] %vm65, %v1018
  %1025 = vst.msk [vmem:[%s1022 + $0x10] sm:$0xff] %vm65, %v1019
  %1026 = vst.msk [vmem:[%s1022 + $0x18] sm:$0xff] %vm65, %v1020
  %1027 = vst.msk [vmem:[%s1022 + $0x20] sm:$0x1] %vm69, %v1021
  // Predicated region
  $region42: #{_lambda_.8} parent=0 // pred_check
    _
  $region43: #{_lambda_.8} parent=0 // pred_check_branch
    %1029 = sbr.rel (0) target = $region45
  $region44: #{_lambda_.8} parent=0 // pred_region
    _
  $region45: #{_lambda_.8} parent=0 // pred_fallthru
    _
  // Predicated region
  $region46: #{_lambda_.8} parent=0 // pred_check
    _
  $region47: #{_lambda_.8} parent=0 // pred_check_branch
    %1031 = sbr.rel (0) target = $region49
  $region48: #{_lambda_.8} parent=0 // pred_region
    _
  $region49: #{_lambda_.8} parent=0 // pred_fallthru
    _

// kernel: _lambda_.10
$region0: #{_lambda_.10}
  #allocation0 [shape = 'u32[]', space=smem, size = 0x4, offset = 0x4, fixed_abs, tag = 'smem constant byte address 0x4 - core index']
  #allocation1 [shape = 'u32[144,128]{1,0:T(1,128)}', space=vmem, size = 0x12000, scoped, tag = 'internal scratch']
  %s0 = inlined_call_operand.vmem [shape: f32[66,64], index: 0, kind: input, shape index: {}]
  %s1 = inlined_call_operand.vmem [shape: f32[1,64], index: 1, kind: input, shape index: {}]
  %s2 = inlined_call_operand.vmem [shape: f32[1,64], index: 2, kind: input, shape index: {}]
  %s3 = inlined_call_operand.vmem [shape: f32[64,256], index: 3, kind: input, shape index: {}]
  %s4 = inlined_call_operand.vmem [shape: f32[1,256], index: 4, kind: input, shape index: {}]
  %s5 = inlined_call_operand.vmem [shape: f32[66,256], index: 5, kind: output, shape index: {}]
  %s6 = sld [smem:[#allocation0]]
  $region30: #{_lambda_.10} parent=0
    _
  %s8 = ssub.s32 1, %s6
  %s9 = scalar_select 0, %s8, %s6
  // Predicated region
  $region2: #{_lambda_.10} parent=0 // pred_check
    _
  $region3: #{_lambda_.10} parent=0 // pred_check_branch
    %11 = sbr.rel (0) target = $region5
  $region4: #{_lambda_.10} parent=0 // pred_region
    _
  $region5: #{_lambda_.10} parent=0 // pred_fallthru
    _
  // Predicated region
  $region6: #{_lambda_.10} parent=0 // pred_check
    _
  $region7: #{_lambda_.10} parent=0 // pred_check_branch
    %13 = sbr.rel (0) target = $region9
  $region8: #{_lambda_.10} parent=0 // pred_region
    _
  $region9: #{_lambda_.10} parent=0 // pred_fallthru
    _
  // Predicated region
  $region10: #{_lambda_.10} parent=0 // pred_check
    _
  $region11: #{_lambda_.10} parent=0 // pred_check_branch
    %15 = sbr.rel (0) target = $region13
  $region12: #{_lambda_.10} parent=0 // pred_region
    _
  $region13: #{_lambda_.10} parent=0 // pred_fallthru
    _
  // Predicated region
  $region14: #{_lambda_.10} parent=0 // pred_check
    _
  $region15: #{_lambda_.10} parent=0 // pred_check_branch
    %17 = sbr.rel (0) target = $region17
  $region16: #{_lambda_.10} parent=0 // pred_region
    _
  $region17: #{_lambda_.10} parent=0 // pred_fallthru
    _
  // Predicated region
  $region18: #{_lambda_.10} parent=0 // pred_check
    _
  $region19: #{_lambda_.10} parent=0 // pred_check_branch
    %19 = sbr.rel (0) target = $region21
  $region20: #{_lambda_.10} parent=0 // pred_region
    _
  $region21: #{_lambda_.10} parent=0 // pred_fallthru
    _
  %v20 = vld [vmem:[%s0] sm:$0xff]
  %v21 = vld [vmem:[%s0 + $0x8] sm:$0xff]
  %v22 = vld [vmem:[%s0 + $0x10] sm:$0xff]
  %v23 = vld [vmem:[%s0 + $0x18] sm:$0xff]
  %v24 = vld [vmem:[%s0 + $0x20] sm:$0xff]
  %v25 = vld [vmem:[%s0 + $0x28] sm:$0xff]
  %v26 = vld [vmem:[%s0 + $0x30] sm:$0xff]
  %v27 = vld [vmem:[%s0 + $0x38] sm:$0xff]
  %v28 = vld [vmem:[%s0 + $0x40] sm:$0x3]
  %v29 = vld [vmem:[%s1] sm:$0x1]
  %v30 = vld [vmem:[%s2] sm:$0x1]
  %vm31 = vcmask 523264
  %v32 = vsel %vm31, %v20, 0.0
  %33 = vadd.xlane.f32.xlu0 %v32
  %v34 = vpop.xlane.xlu0 %33
  %v35 = vsel %vm31, %v21, 0.0
  %36 = vadd.xlane.f32.xlu0 %v35
  %v37 = vpop.xlane.xlu0 %36
  %v38 = vsel %vm31, %v22, 0.0
  %39 = vadd.xlane.f32.xlu0 %v38
  %v40 = vpop.xlane.xlu0 %39
  %v41 = vsel %vm31, %v23, 0.0
  %42 = vadd.xlane.f32.xlu0 %v41
  %v43 = vpop.xlane.xlu0 %42
  %v44 = vsel %vm31, %v24, 0.0
  %45 = vadd.xlane.f32.xlu0 %v44
  %v46 = vpop.xlane.xlu0 %45
  %v47 = vsel %vm31, %v25, 0.0
  %48 = vadd.xlane.f32.xlu0 %v47
  %v49 = vpop.xlane.xlu0 %48
  %v50 = vsel %vm31, %v26, 0.0
  %51 = vadd.xlane.f32.xlu0 %v50
  %v52 = vpop.xlane.xlu0 %51
  %v53 = vsel %vm31, %v27, 0.0
  %54 = vadd.xlane.f32.xlu0 %v53
  %v55 = vpop.xlane.xlu0 %54
  %vm56 = vcmask 517120
  %v57 = vsel %vm56, %v28, 0.0
  %58 = vadd.xlane.f32.xlu0 %v57
  %v59 = vpop.xlane.xlu0 %58
  %v60 = vrcp.pop 64.0
  %v61 = vmul.f32 %v34, %v60
  %v62 = vmul.f32 %v37, %v60
  %v63 = vmul.f32 %v40, %v60
  %v64 = vmul.f32 %v43, %v60
  %v65 = vmul.f32 %v46, %v60
  %v66 = vmul.f32 %v49, %v60
  %v67 = vmul.f32 %v52, %v60
  %v68 = vmul.f32 %v55, %v60
  %v69 = vmul.f32 %v59, %v60
  %v70 = vsub.f32 %v20, %v61
  %v71 = vsub.f32 %v21, %v62
  %v72 = vsub.f32 %v22, %v63
  %v73 = vsub.f32 %v23, %v64
  %v74 = vsub.f32 %v24, %v65
  %v75 = vsub.f32 %v25, %v66
  %v76 = vsub.f32 %v26, %v67
  %v77 = vsub.f32 %v27, %v68
  %v78 = vsub.f32 %v28, %v69
  %v79 = vmul.f32 %v70, %v70
  %v80 = vmul.f32 %v71, %v71
  %v81 = vmul.f32 %v72, %v72
  %v82 = vmul.f32 %v73, %v73
  %v83 = vmul.f32 %v74, %v74
  %v84 = vmul.f32 %v75, %v75
  %v85 = vmul.f32 %v76, %v76
  %v86 = vmul.f32 %v77, %v77
  %v87 = vmul.f32 %v78, %v78
  %v88 = vsel %vm31, %v79, 0.0
  %89 = vadd.xlane.f32.xlu0 %v88
  %v90 = vpop.xlane.xlu0 %89
  %v91 = vsel %vm31, %v80, 0.0
  %92 = vadd.xlane.f32.xlu0 %v91
  %v93 = vpop.xlane.xlu0 %92
  %v94 = vsel %vm31, %v81, 0.0
  %95 = vadd.xlane.f32.xlu0 %v94
  %v96 = vpop.xlane.xlu0 %95
  %v97 = vsel %vm31, %v82, 0.0
  %98 = vadd.xlane.f32.xlu0 %v97
  %v99 = vpop.xlane.xlu0 %98
  %v100 = vsel %vm31, %v83, 0.0
  %101 = vadd.xlane.f32.xlu0 %v100
  %v102 = vpop.xlane.xlu0 %101
  %v103 = vsel %vm31, %v84, 0.0
  %104 = vadd.xlane.f32.xlu0 %v103
  %v105 = vpop.xlane.xlu0 %104
  %v106 = vsel %vm31, %v85, 0.0
  %107 = vadd.xlane.f32.xlu0 %v106
  %v108 = vpop.xlane.xlu0 %107
  %v109 = vsel %vm31, %v86, 0.0
  %110 = vadd.xlane.f32.xlu0 %v109
  %v111 = vpop.xlane.xlu0 %110
  %v112 = vsel %vm56, %v87, 0.0
  %113 = vadd.xlane.f32.xlu0 %v112
  %v114 = vpop.xlane.xlu0 %113
  %v115 = vmul.f32 %v90, %v60
  %v116 = vmul.f32 %v93, %v60
  %v117 = vmul.f32 %v96, %v60
  %v118 = vmul.f32 %v99, %v60
  %v119 = vmul.f32 %v102, %v60
  %v120 = vmul.f32 %v105, %v60
  %v121 = vmul.f32 %v108, %v60
  %v122 = vmul.f32 %v111, %v60
  %v123 = vmul.f32 %v114, %v60
  %v124 = vadd.f32 %v115, 1e-06
  %v125 = vadd.f32 %v116, 1e-06
  %v126 = vadd.f32 %v117, 1e-06
  %v127 = vadd.f32 %v118, 1e-06
  %v128 = vadd.f32 %v119, 1e-06
  %v129 = vadd.f32 %v120, 1e-06
  %v130 = vadd.f32 %v121, 1e-06
  %v131 = vadd.f32 %v122, 1e-06
  %v132 = vadd.f32 %v123, 1e-06
  %v133 = vrsqrt.pop %v124
  %v134 = vrsqrt.pop %v125
  %v135 = vrsqrt.pop %v126
  %v136 = vrsqrt.pop %v127
  %v137 = vrsqrt.pop %v128
  %v138 = vrsqrt.pop %v129
  %v139 = vrsqrt.pop %v130
  %v140 = vrsqrt.pop %v131
  %v141 = vrsqrt.pop %v132
  %v142 = vmul.f32 %v70, %v133
  %v143 = vmul.f32 %v71, %v134
  %v144 = vmul.f32 %v72, %v135
  %v145 = vmul.f32 %v73, %v136
  %v146 = vmul.f32 %v74, %v137
  %v147 = vmul.f32 %v75, %v138
  %v148 = vmul.f32 %v76, %v139
  %v149 = vmul.f32 %v77, %v140
  %v150 = vmul.f32 %v78, %v141
  %v152 = vlaneseq
  %v153 = vshrl.u32 %v152, 7
  %v154 = vsub.s32 0, %v153
  %v155 = vrot.slane %v29, %v154
  %v157 = vmul.f32 %v142, %v155
  %v158 = vmul.f32 %v143, %v155
  %v159 = vmul.f32 %v144, %v155
  %v160 = vmul.f32 %v145, %v155
  %v161 = vmul.f32 %v146, %v155
  %v162 = vmul.f32 %v147, %v155
  %v163 = vmul.f32 %v148, %v155
  %v164 = vmul.f32 %v149, %v155
  %v165 = vmul.f32 %v150, %v155
  %v167 = vlaneseq
  %v168 = vshrl.u32 %v167, 7
  %v169 = vsub.s32 0, %v168
  %v170 = vrot.slane %v30, %v169
  %v172 = vadd.f32 %v157, %v170
  %v173 = vadd.f32 %v158, %v170
  %v174 = vadd.f32 %v159, %v170
  %v175 = vadd.f32 %v160, %v170
  %v176 = vadd.f32 %v161, %v170
  %v177 = vadd.f32 %v162, %v170
  %v178 = vadd.f32 %v163, %v170
  %v179 = vadd.f32 %v164, %v170
  %v180 = vadd.f32 %v165, %v170
  %v181 = vld [vmem:[%s3] sm:$0xff]
  %v182 = vld [vmem:[%s3 + $0x8] sm:$0xff]
  %v183 = vld [vmem:[%s3 + $0x10] sm:$0xff]
  %v184 = vld [vmem:[%s3 + $0x18] sm:$0xff]
  %v185 = vld [vmem:[%s3 + $0x20] sm:$0xff]
  %v186 = vld [vmem:[%s3 + $0x28] sm:$0xff]
  %v187 = vld [vmem:[%s3 + $0x30] sm:$0xff]
  %v188 = vld [vmem:[%s3 + $0x38] sm:$0xff]
  %v189 = vld [vmem:[%s3 + $0x40] sm:$0xff]
  %v190 = vld [vmem:[%s3 + $0x48] sm:$0xff]
  %v191 = vld [vmem:[%s3 + $0x50] sm:$0xff]
  %v192 = vld [vmem:[%s3 + $0x58] sm:$0xff]
  %v193 = vld [vmem:[%s3 + $0x60] sm:$0xff]
  %v194 = vld [vmem:[%s3 + $0x68] sm:$0xff]
  %v195 = vld [vmem:[%s3 + $0x70] sm:$0xff]
  %v196 = vld [vmem:[%s3 + $0x78] sm:$0xff]
  %v197 = vld [vmem:[%s4] sm:$0x3]
  %v199 = vlaneseq
  %v200 = vshrl.u32 %v199, 7
  %v201 = vsub.s32 0, %v200
  %v202 = vrot.slane %v197, %v201
  %v203 = vlaneseq
  %v204 = vshrl.u32 %v203, 7
  %v205 = vsub.s32 1, %v204
  %v206 = vrot.slane %v197, %v205
  %v210 = vsel %vm31, %v172, 0
  %v213 = vsel %vm31, %v173, 0
  %v216 = vsel %vm31, %v174, 0
  %v219 = vsel %vm31, %v175, 0
  %v222 = vsel %vm31, %v176, 0
  %v225 = vsel %vm31, %v177, 0
  %v228 = vsel %vm31, %v178, 0
  %v231 = vsel %vm31, %v179, 0
  %v234 = vsel %vm31, %v180, 0
  %236 = vmatprep.subr.mxu0 0.0
  %237 = vmatpush1.msra.mxu0 0.0
  %238 = vmatprep.subr.mxu0 0.0
  %239 = vmatpush1.msra.mxu0 0.0
  %240 = vmatprep.subr.mxu0 0.0
  %241 = vmatpush1.msra.mxu0 0.0
  %242 = vmatprep.subr.mxu0 0.0
  %243 = vmatpush1.msra.mxu0 0.0
  %244 = vmatprep.subr.mxu0 0.0
  %245 = vmatpush1.msra.mxu0 0.0
  %246 = vmatprep.subr.mxu0 0.0
  %247 = vmatpush1.msra.mxu0 0.0
  %248 = vmatprep.subr.mxu0 0.0
  %249 = vmatpush1.msra.mxu0 0.0
  %250 = vmatprep.subr.mxu0 0.0
  %251 = vmatpush1.msra.mxu0 0.0
  %252 = vmatprep.subr.mxu0 %v196
  %253 = vmatpush1.msra.mxu0 %v195
  %254 = vmatprep.subr.mxu0 %v194
  %255 = vmatpush1.msra.mxu0 %v193
  %256 = vmatprep.subr.mxu0 %v192
  %257 = vmatpush1.msra.mxu0 %v191
  %258 = vmatprep.subr.mxu0 %v190
  %259 = vmatpush1.msra.mxu0 %v189
  %260 = vmatprep.subr.mxu0 %v188
  %261 = vmatpush1.msra.mxu0 %v187
  %262 = vmatprep.subr.mxu0 %v186
  %263 = vmatpush1.msra.mxu0 %v185
  %264 = vmatprep.subr.mxu0 %v184
  %265 = vmatpush1.msra.mxu0 %v183
  %266 = vmatprep.subr.mxu0 %v182
  %267 = vmatpush1.msra.mxu0 %v181
  %268 = vmatprep.subr.mxu0 0.0
  %269 = vmatpush2.msra.mxu0 0.0
  %270 = vmatprep.subr.mxu0 0.0
  %271 = vmatpush2.msra.mxu0 0.0
  %272 = vmatprep.subr.mxu0 0.0
  %273 = vmatpush2.msra.mxu0 0.0
  %274 = vmatprep.subr.mxu0 0.0
  %275 = vmatpush2.msra.mxu0 0.0
  %276 = vmatprep.subr.mxu0 0.0
  %277 = vmatpush2.msra.mxu0 0.0
  %278 = vmatprep.subr.mxu0 0.0
  %279 = vmatpush2.msra.mxu0 0.0
  %280 = vmatprep.subr.mxu0 0.0
  %281 = vmatpush2.msra.mxu0 0.0
  %282 = vmatprep.subr.mxu0 0.0
  %283 = vmatpush2.msra.mxu0 0.0
  %284 = vmatprep.subr.mxu0 0.0
  %285 = vmatpush2.msra.mxu0 0.0
  %286 = vmatprep.subr.mxu0 0.0
  %287 = vmatpush2.msra.mxu0 0.0
  %288 = vmatprep.subr.mxu0 0.0
  %289 = vmatpush2.msra.mxu0 0.0
  %290 = vmatprep.subr.mxu0 0.0
  %291 = vmatpush2.msra.mxu0 0.0
  %292 = vmatprep.subr.mxu0 0.0
  %293 = vmatpush2.msra.mxu0 0.0
  %294 = vmatprep.subr.mxu0 0.0
  %295 = vmatpush2.msra.mxu0 0.0
  %296 = vmatprep.subr.mxu0 0.0
  %297 = vmatpush2.msra.mxu0 0.0
  %298 = vmatprep.subr.mxu0 0.0
  %299 = vmatpush2.msra.mxu0 0.0
  %300 = vmatprep.mubr.f32.mxu0 0.0
  %301 = vmatmul.mubr.f32.gmra.mxu0 %v210
  %v302 = vpop.f32.mrf.mxu0
  %v303 = vadd.f32 %v202, %v302
  %v304 = vpop.f32.mrf.mxu0
  %v305 = vadd.f32 %v206, %v304
  %306 = vmatprep.mubr.f32.mxu0 0.0
  %307 = vmatmul.mubr.f32.gmra.mxu0 %v213
  %v308 = vpop.f32.mrf.mxu0
  %v309 = vadd.f32 %v202, %v308
  %v310 = vpop.f32.mrf.mxu0
  %v311 = vadd.f32 %v206, %v310
  %312 = vmatprep.mubr.f32.mxu0 0.0
  %313 = vmatmul.mubr.f32.gmra.mxu0 %v216
  %v314 = vpop.f32.mrf.mxu0
  %v315 = vadd.f32 %v202, %v314
  %v316 = vpop.f32.mrf.mxu0
  %v317 = vadd.f32 %v206, %v316
  %318 = vmatprep.mubr.f32.mxu0 0.0
  %319 = vmatmul.mubr.f32.gmra.mxu0 %v219
  %v320 = vpop.f32.mrf.mxu0
  %v321 = vadd.f32 %v202, %v320
  %v322 = vpop.f32.mrf.mxu0
  %v323 = vadd.f32 %v206, %v322
  %324 = vmatprep.mubr.f32.mxu0 0.0
  %325 = vmatmul.mubr.f32.gmra.mxu0 %v222
  %v326 = vpop.f32.mrf.mxu0
  %v327 = vadd.f32 %v202, %v326
  %v328 = vpop.f32.mrf.mxu0
  %v329 = vadd.f32 %v206, %v328
  %330 = vmatprep.mubr.f32.mxu0 0.0
  %331 = vmatmul.mubr.f32.gmra.mxu0 %v225
  %v332 = vpop.f32.mrf.mxu0
  %v333 = vadd.f32 %v202, %v332
  %v334 = vpop.f32.mrf.mxu0
  %v335 = vadd.f32 %v206, %v334
  %336 = vmatprep.mubr.f32.mxu0 0.0
  %337 = vmatmul.mubr.f32.gmra.mxu0 %v228
  %v338 = vpop.f32.mrf.mxu0
  %v339 = vadd.f32 %v202, %v338
  %v340 = vpop.f32.mrf.mxu0
  %v341 = vadd.f32 %v206, %v340
  %342 = vmatprep.mubr.f32.mxu0 0.0
  %343 = vmatmul.mubr.f32.gmra.mxu0 %v231
  %v344 = vpop.f32.mrf.mxu0
  %v345 = vadd.f32 %v202, %v344
  %v346 = vpop.f32.mrf.mxu0
  %v347 = vadd.f32 %v206, %v346
  %348 = vmatprep.mubr.f32.mxu0 0.0
  %349 = vmatmul.mubr.f32.gmra.mxu0 %v234
  %v350 = vpop.f32.mrf.mxu0
  %v351 = vadd.f32 %v202, %v350
  %v352 = vpop.f32.mrf.mxu0
  %v353 = vadd.f32 %v206, %v352
  %354 = vdwg.mxu0
  %355 = vst [vmem:[%s5] sm:$0xff] %v303
  %356 = vst [vmem:[%s5 + $0x8] sm:$0xff] %v305
  %357 = vst [vmem:[%s5 + $0x10] sm:$0xff] %v309
  %358 = vst [vmem:[%s5 + $0x18] sm:$0xff] %v311
  %359 = vst [vmem:[%s5 + $0x20] sm:$0xff] %v315
  %360 = vst [vmem:[%s5 + $0x28] sm:$0xff] %v317
  %361 = vst [vmem:[%s5 + $0x30] sm:$0xff] %v321
  %362 = vst [vmem:[%s5 + $0x38] sm:$0xff] %v323
  %363 = vst [vmem:[%s5 + $0x40] sm:$0xff] %v327
  %364 = vst [vmem:[%s5 + $0x48] sm:$0xff] %v329
  %365 = vst [vmem:[%s5 + $0x50] sm:$0xff] %v333
  %366 = vst [vmem:[%s5 + $0x58] sm:$0xff] %v335
  %367 = vst [vmem:[%s5 + $0x60] sm:$0xff] %v339
  %368 = vst [vmem:[%s5 + $0x68] sm:$0xff] %v341
  %369 = vst [vmem:[%s5 + $0x70] sm:$0xff] %v345
  %370 = vst [vmem:[%s5 + $0x78] sm:$0xff] %v347
  %371 = vst [vmem:[%s5 + $0x80] sm:$0x3] %v351
  %372 = vst [vmem:[%s5 + $0x88] sm:$0x3] %v353
  // Predicated region
  $region22: #{_lambda_.10} parent=0 // pred_check
    _
  $region23: #{_lambda_.10} parent=0 // pred_check_branch
    %374 = sbr.rel (0) target = $region25
  $region24: #{_lambda_.10} parent=0 // pred_region
    _
  $region25: #{_lambda_.10} parent=0 // pred_fallthru
    _
  // Predicated region
  $region26: #{_lambda_.10} parent=0 // pred_check
    _
  $region27: #{_lambda_.10} parent=0 // pred_check_branch
    %376 = sbr.rel (0) target = $region29
  $region28: #{_lambda_.10} parent=0 // pred_region
    _
  $region29: #{_lambda_.10} parent=0 // pred_fallthru
    _

// kernel: _lambda_.12
$region0: #{_lambda_.12}
  #allocation0 [shape = 'u32[]', space=smem, size = 0x4, offset = 0x4, fixed_abs, tag = 'smem constant byte address 0x4 - core index']
  #allocation1 [shape = 'u32[144,128]{1,0:T(1,128)}', space=vmem, size = 0x12000, scoped, tag = 'internal scratch']
  %s0 = inlined_call_operand.vmem [shape: f32[18,64], index: 0, kind: input, shape index: {}]
  %s1 = inlined_call_operand.vmem [shape: f32[1,64], index: 1, kind: input, shape index: {}]
  %s2 = inlined_call_operand.vmem [shape: f32[1,64], index: 2, kind: input, shape index: {}, may-alias: {2,6}]
  %s3 = inlined_call_operand.vmem [shape: f32[64,256], index: 3, kind: input, shape index: {}]
  %s4 = inlined_call_operand.vmem [shape: f32[1,256], index: 4, kind: input, shape index: {}]
  %s5 = inlined_call_operand.vmem [shape: f32[256,64], index: 5, kind: input, shape index: {}]
  %s6 = inlined_call_operand.vmem [shape: f32[1,64], index: 6, kind: input, shape index: {}, may-alias: {2,6}]
  %s7 = inlined_call_operand.vmem [shape: f32[18,64], index: 7, kind: output, shape index: {}]
  %s8 = sld [smem:[#allocation0]]
  $region38: #{_lambda_.12} parent=0
    _
  %s10 = ssub.s32 1, %s8
  %s11 = scalar_select 0, %s10, %s8
  // Predicated region
  $region2: #{_lambda_.12} parent=0 // pred_check
    _
  $region3: #{_lambda_.12} parent=0 // pred_check_branch
    %13 = sbr.rel (0) target = $region5
  $region4: #{_lambda_.12} parent=0 // pred_region
    _
  $region5: #{_lambda_.12} parent=0 // pred_fallthru
    _
  // Predicated region
  $region6: #{_lambda_.12} parent=0 // pred_check
    _
  $region7: #{_lambda_.12} parent=0 // pred_check_branch
    %15 = sbr.rel (0) target = $region9
  $region8: #{_lambda_.12} parent=0 // pred_region
    _
  $region9: #{_lambda_.12} parent=0 // pred_fallthru
    _
  // Predicated region
  $region10: #{_lambda_.12} parent=0 // pred_check
    _
  $region11: #{_lambda_.12} parent=0 // pred_check_branch
    %17 = sbr.rel (0) target = $region13
  $region12: #{_lambda_.12} parent=0 // pred_region
    _
  $region13: #{_lambda_.12} parent=0 // pred_fallthru
    _
  // Predicated region
  $region14: #{_lambda_.12} parent=0 // pred_check
    _
  $region15: #{_lambda_.12} parent=0 // pred_check_branch
    %19 = sbr.rel (0) target = $region17
  $region16: #{_lambda_.12} parent=0 // pred_region
    _
  $region17: #{_lambda_.12} parent=0 // pred_fallthru
    _
  // Predicated region
  $region18: #{_lambda_.12} parent=0 // pred_check
    _
  $region19: #{_lambda_.12} parent=0 // pred_check_branch
    %21 = sbr.rel (0) target = $region21
  $region20: #{_lambda_.12} parent=0 // pred_region
    _
  $region21: #{_lambda_.12} parent=0 // pred_fallthru
    _
  // Predicated region
  $region22: #{_lambda_.12} parent=0 // pred_check
    _
  $region23: #{_lambda_.12} parent=0 // pred_check_branch
    %23 = sbr.rel (0) target = $region25
  $region24: #{_lambda_.12} parent=0 // pred_region
    _
  $region25: #{_lambda_.12} parent=0 // pred_fallthru
    _
  // Predicated region
  $region26: #{_lambda_.12} parent=0 // pred_check
    _
  $region27: #{_lambda_.12} parent=0 // pred_check_branch
    %25 = sbr.rel (0) target = $region29
  $region28: #{_lambda_.12} parent=0 // pred_region
    _
  $region29: #{_lambda_.12} parent=0 // pred_fallthru
    _
  %v26 = vld [vmem:[%s0] sm:$0xff]
  %v27 = vld [vmem:[%s0 + $0x8] sm:$0xff]
  %v28 = vld [vmem:[%s0 + $0x10] sm:$0x3]
  %v29 = vld [vmem:[%s1] sm:$0x1]
  %v30 = vld [vmem:[%s2] sm:$0x1]
  %vm31 = vcmask 523264
  %v32 = vsel %vm31, %v26, 0.0
  %33 = vadd.xlane.f32.xlu0 %v32
  %v34 = vpop.xlane.xlu0 %33
  %v35 = vsel %vm31, %v27, 0.0
  %36 = vadd.xlane.f32.xlu0 %v35
  %v37 = vpop.xlane.xlu0 %36
  %vm38 = vcmask 517120
  %v39 = vsel %vm38, %v28, 0.0
  %40 = vadd.xlane.f32.xlu0 %v39
  %v41 = vpop.xlane.xlu0 %40
  %v42 = vrcp.pop 64.0
  %v43 = vmul.f32 %v34, %v42
  %v44 = vmul.f32 %v37, %v42
  %v45 = vmul.f32 %v41, %v42
  %v46 = vsub.f32 %v26, %v43
  %v47 = vsub.f32 %v27, %v44
  %v48 = vsub.f32 %v28, %v45
  %v49 = vmul.f32 %v46, %v46
  %v50 = vmul.f32 %v47, %v47
  %v51 = vmul.f32 %v48, %v48
  %v52 = vsel %vm31, %v49, 0.0
  %53 = vadd.xlane.f32.xlu0 %v52
  %v54 = vpop.xlane.xlu0 %53
  %v55 = vsel %vm31, %v50, 0.0
  %56 = vadd.xlane.f32.xlu0 %v55
  %v57 = vpop.xlane.xlu0 %56
  %v58 = vsel %vm38, %v51, 0.0
  %59 = vadd.xlane.f32.xlu0 %v58
  %v60 = vpop.xlane.xlu0 %59
  %v61 = vmul.f32 %v54, %v42
  %v62 = vmul.f32 %v57, %v42
  %v63 = vmul.f32 %v60, %v42
  %v64 = vadd.f32 %v61, 1e-06
  %v65 = vadd.f32 %v62, 1e-06
  %v66 = vadd.f32 %v63, 1e-06
  %v67 = vrsqrt.pop %v64
  %v68 = vrsqrt.pop %v65
  %v69 = vrsqrt.pop %v66
  %v70 = vmul.f32 %v46, %v67
  %v71 = vmul.f32 %v47, %v68
  %v72 = vmul.f32 %v48, %v69
  %v74 = vlaneseq
  %v75 = vshrl.u32 %v74, 7
  %v76 = vsub.s32 0, %v75
  %v77 = vrot.slane %v29, %v76
  %v79 = vmul.f32 %v70, %v77
  %v80 = vmul.f32 %v71, %v77
  %v81 = vmul.f32 %v72, %v77
  %v83 = vlaneseq
  %v84 = vshrl.u32 %v83, 7
  %v85 = vsub.s32 0, %v84
  %v86 = vrot.slane %v30, %v85
  %v88 = vadd.f32 %v79, %v86
  %v89 = vadd.f32 %v80, %v86
  %v90 = vadd.f32 %v81, %v86
  %v91 = vld [vmem:[%s3] sm:$0xff]
  %v92 = vld [vmem:[%s3 + $0x8] sm:$0xff]
  %v93 = vld [vmem:[%s3 + $0x10] sm:$0xff]
  %v94 = vld [vmem:[%s3 + $0x18] sm:$0xff]
  %v95 = vld [vmem:[%s3 + $0x20] sm:$0xff]
  %v96 = vld [vmem:[%s3 + $0x28] sm:$0xff]
  %v97 = vld [vmem:[%s3 + $0x30] sm:$0xff]
  %v98 = vld [vmem:[%s3 + $0x38] sm:$0xff]
  %v99 = vld [vmem:[%s3 + $0x40] sm:$0xff]
  %v100 = vld [vmem:[%s3 + $0x48] sm:$0xff]
  %v101 = vld [vmem:[%s3 + $0x50] sm:$0xff]
  %v102 = vld [vmem:[%s3 + $0x58] sm:$0xff]
  %v103 = vld [vmem:[%s3 + $0x60] sm:$0xff]
  %v104 = vld [vmem:[%s3 + $0x68] sm:$0xff]
  %v105 = vld [vmem:[%s3 + $0x70] sm:$0xff]
  %v106 = vld [vmem:[%s3 + $0x78] sm:$0xff]
  %v107 = vld [vmem:[%s4] sm:$0x3]
  %v109 = vlaneseq
  %v110 = vshrl.u32 %v109, 7
  %v111 = vsub.s32 0, %v110
  %v112 = vrot.slane %v107, %v111
  %v113 = vlaneseq
  %v114 = vshrl.u32 %v113, 7
  %v115 = vsub.s32 1, %v114
  %v116 = vrot.slane %v107, %v115
  %v120 = vsel %vm31, %v88, 0
  %v123 = vsel %vm31, %v89, 0
  %v126 = vsel %vm31, %v90, 0
  %128 = vmatprep.subr.mxu0 0.0
  %129 = vmatpush1.msra.mxu0 0.0
  %130 = vmatprep.subr.mxu0 0.0
  %131 = vmatpush1.msra.mxu0 0.0
  %132 = vmatprep.subr.mxu0 0.0
  %133 = vmatpush1.msra.mxu0 0.0
  %134 = vmatprep.subr.mxu0 0.0
  %135 = vmatpush1.msra.mxu0 0.0
  %136 = vmatprep.subr.mxu0 0.0
  %137 = vmatpush1.msra.mxu0 0.0
  %138 = vmatprep.subr.mxu0 0.0
  %139 = vmatpush1.msra.mxu0 0.0
  %140 = vmatprep.subr.mxu0 0.0
  %141 = vmatpush1.msra.mxu0 0.0
  %142 = vmatprep.subr.mxu0 0.0
  %143 = vmatpush1.msra.mxu0 0.0
  %144 = vmatprep.subr.mxu0 %v106
  %145 = vmatpush1.msra.mxu0 %v105
  %146 = vmatprep.subr.mxu0 %v104
  %147 = vmatpush1.msra.mxu0 %v103
  %148 = vmatprep.subr.mxu0 %v102
  %149 = vmatpush1.msra.mxu0 %v101
  %150 = vmatprep.subr.mxu0 %v100
  %151 = vmatpush1.msra.mxu0 %v99
  %152 = vmatprep.subr.mxu0 %v98
  %153 = vmatpush1.msra.mxu0 %v97
  %154 = vmatprep.subr.mxu0 %v96
  %155 = vmatpush1.msra.mxu0 %v95
  %156 = vmatprep.subr.mxu0 %v94
  %157 = vmatpush1.msra.mxu0 %v93
  %158 = vmatprep.subr.mxu0 %v92
  %159 = vmatpush1.msra.mxu0 %v91
  %160 = vmatprep.subr.mxu0 0.0
  %161 = vmatpush2.msra.mxu0 0.0
  %162 = vmatprep.subr.mxu0 0.0
  %163 = vmatpush2.msra.mxu0 0.0
  %164 = vmatprep.subr.mxu0 0.0
  %165 = vmatpush2.msra.mxu0 0.0
  %166 = vmatprep.subr.mxu0 0.0
  %167 = vmatpush2.msra.mxu0 0.0
  %168 = vmatprep.subr.mxu0 0.0
  %169 = vmatpush2.msra.mxu0 0.0
  %170 = vmatprep.subr.mxu0 0.0
  %171 = vmatpush2.msra.mxu0 0.0
  %172 = vmatprep.subr.mxu0 0.0
  %173 = vmatpush2.msra.mxu0 0.0
  %174 = vmatprep.subr.mxu0 0.0
  %175 = vmatpush2.msra.mxu0 0.0
  %176 = vmatprep.subr.mxu0 0.0
  %177 = vmatpush2.msra.mxu0 0.0
  %178 = vmatprep.subr.mxu0 0.0
  %179 = vmatpush2.msra.mxu0 0.0
  %180 = vmatprep.subr.mxu0 0.0
  %181 = vmatpush2.msra.mxu0 0.0
  %182 = vmatprep.subr.mxu0 0.0
  %183 = vmatpush2.msra.mxu0 0.0
  %184 = vmatprep.subr.mxu0 0.0
  %185 = vmatpush2.msra.mxu0 0.0
  %186 = vmatprep.subr.mxu0 0.0
  %187 = vmatpush2.msra.mxu0 0.0
  %188 = vmatprep.subr.mxu0 0.0
  %189 = vmatpush2.msra.mxu0 0.0
  %190 = vmatprep.subr.mxu0 0.0
  %191 = vmatpush2.msra.mxu0 0.0
  %192 = vmatprep.mubr.f32.mxu0 0.0
  %193 = vmatmul.mubr.f32.gmra.mxu0 %v120
  %v194 = vpop.f32.mrf.mxu0
  %v195 = vadd.f32 %v112, %v194
  %v196 = vpop.f32.mrf.mxu0
  %v197 = vadd.f32 %v116, %v196
  %198 = vmatprep.mubr.f32.mxu0 0.0
  %199 = vmatmul.mubr.f32.gmra.mxu0 %v123
  %v200 = vpop.f32.mrf.mxu0
  %v201 = vadd.f32 %v112, %v200
  %v202 = vpop.f32.mrf.mxu0
  %v203 = vadd.f32 %v116, %v202
  %204 = vmatprep.mubr.f32.mxu0 0.0
  %205 = vmatmul.mubr.f32.gmra.mxu0 %v126
  %v206 = vpop.f32.mrf.mxu0
  %v207 = vadd.f32 %v112, %v206
  %v208 = vpop.f32.mrf.mxu0
  %v209 = vadd.f32 %v116, %v208
  %210 = vdwg.mxu0
  %v211 = vmul.f32 %v195, 0.70710677
  %v212 = vmul.f32 %v197, 0.70710677
  %v213 = vmul.f32 %v201, 0.70710677
  %v214 = vmul.f32 %v203, 0.70710677
  %v215 = vmul.f32 %v207, 0.70710677
  %v216 = vmul.f32 %v209, 0.70710677
  %v217 = vand.u32 2147483647, %v211
  %v218 = vand.u32 2147483647, %v212
  %v219 = vand.u32 2147483647, %v213
  %v220 = vand.u32 2147483647, %v214
  %v221 = vand.u32 2147483647, %v215
  %v222 = vand.u32 2147483647, %v216
  %v223 = vmul.f32 %v217, 0.3275911
  %v224 = vmul.f32 %v218, 0.3275911
  %v225 = vmul.f32 %v219, 0.3275911
  %v226 = vmul.f32 %v220, 0.3275911
  %v227 = vmul.f32 %v221, 0.3275911
  %v228 = vmul.f32 %v222, 0.3275911
  %v229 = vadd.f32 %v223, 1.0
  %v230 = vadd.f32 %v224, 1.0
  %v231 = vadd.f32 %v225, 1.0
  %v232 = vadd.f32 %v226, 1.0
  %v233 = vadd.f32 %v227, 1.0
  %v234 = vadd.f32 %v228, 1.0
  %v235 = vrcp.pop %v229
  %v236 = vmul.f32 1.0, %v235
  %v237 = vrcp.pop %v230
  %v238 = vmul.f32 1.0, %v237
  %v239 = vrcp.pop %v231
  %v240 = vmul.f32 1.0, %v239
  %v241 = vrcp.pop %v232
  %v242 = vmul.f32 1.0, %v241
  %v243 = vrcp.pop %v233
  %v244 = vmul.f32 1.0, %v243
  %v245 = vrcp.pop %v234
  %v246 = vmul.f32 1.0, %v245
  %v247 = vmul.f32 %v236, 1.0614054
  %v248 = vmul.f32 %v238, 1.0614054
  %v249 = vmul.f32 %v240, 1.0614054
  %v250 = vmul.f32 %v242, 1.0614054
  %v251 = vmul.f32 %v244, 1.0614054
  %v252 = vmul.f32 %v246, 1.0614054
  %v253 = vadd.f32 %v247, -1.4531521
  %v254 = vadd.f32 %v248, -1.4531521
  %v255 = vadd.f32 %v249, -1.4531521
  %v256 = vadd.f32 %v250, -1.4531521
  %v257 = vadd.f32 %v251, -1.4531521
  %v258 = vadd.f32 %v252, -1.4531521
  %v259 = vmul.f32 %v253, %v236
  %v260 = vmul.f32 %v254, %v238
  %v261 = vmul.f32 %v255, %v240
  %v262 = vmul.f32 %v256, %v242
  %v263 = vmul.f32 %v257, %v244
  %v264 = vmul.f32 %v258, %v246
  %v265 = vadd.f32 %v259, 1.4214138
  %v266 = vadd.f32 %v260, 1.4214138
  %v267 = vadd.f32 %v261, 1.4214138
  %v268 = vadd.f32 %v262, 1.4214138
  %v269 = vadd.f32 %v263, 1.4214138
  %v270 = vadd.f32 %v264, 1.4214138
  %v271 = vmul.f32 %v265, %v236
  %v272 = vmul.f32 %v266, %v238
  %v273 = vmul.f32 %v267, %v240
  %v274 = vmul.f32 %v268, %v242
  %v275 = vmul.f32 %v269, %v244
  %v276 = vmul.f32 %v270, %v246
  %v277 = vadd.f32 %v271, -0.28449672
  %v278 = vadd.f32 %v272, -0.28449672
  %v279 = vadd.f32 %v273, -0.28449672
  %v280 = vadd.f32 %v274, -0.28449672
  %v281 = vadd.f32 %v275, -0.28449672
  %v282 = vadd.f32 %v276, -0.28449672
  %v283 = vmul.f32 %v277, %v236
  %v284 = vmul.f32 %v278, %v238
  %v285 = vmul.f32 %v279, %v240
  %v286 = vmul.f32 %v280, %v242
  %v287 = vmul.f32 %v281, %v244
  %v288 = vmul.f32 %v282, %v246
  %v289 = vadd.f32 %v283, 0.2548296
  %v290 = vadd.f32 %v284, 0.2548296
  %v291 = vadd.f32 %v285, 0.2548296
  %v292 = vadd.f32 %v286, 0.2548296
  %v293 = vadd.f32 %v287, 0.2548296
  %v294 = vadd.f32 %v288, 0.2548296
  %v295 = vmul.f32 %v289, %v236
  %v296 = vmul.f32 %v290, %v238
  %v297 = vmul.f32 %v291, %v240
  %v298 = vmul.f32 %v292, %v242
  %v299 = vmul.f32 %v293, %v244
  %v300 = vmul.f32 %v294, %v246
  %v301 = vsub.f32 0.0, %v217
  %v302 = vsub.f32 0.0, %v218
  %v303 = vsub.f32 0.0, %v219
  %v304 = vsub.f32 0.0, %v220
  %v305 = vsub.f32 0.0, %v221
  %v306 = vsub.f32 0.0, %v222
  %v307 = vmul.f32 %v301, %v217
  %v308 = vmul.f32 %v302, %v218
  %v309 = vmul.f32 %v303, %v219
  %v310 = vmul.f32 %v304, %v220
  %v311 = vmul.f32 %v305, %v221
  %v312 = vmul.f32 %v306, %v222
  %v313 = vmul.f32 %v307, 1.442695
  %v314 = vpow.pop %v313
  %v315 = vmul.f32 %v308, 1.442695
  %v316 = vpow.pop %v315
  %v317 = vmul.f32 %v309, 1.442695
  %v318 = vpow.pop %v317
  %v319 = vmul.f32 %v310, 1.442695
  %v320 = vpow.pop %v319
  %v321 = vmul.f32 %v311, 1.442695
  %v322 = vpow.pop %v321
  %v323 = vmul.f32 %v312, 1.442695
  %v324 = vpow.pop %v323
  %v325 = vmul.f32 %v295, %v314
  %v326 = vmul.f32 %v296, %v316
  %v327 = vmul.f32 %v297, %v318
  %v328 = vmul.f32 %v298, %v320
  %v329 = vmul.f32 %v299, %v322
  %v330 = vmul.f32 %v300, %v324
  %v331 = vsub.f32 1.0, %v325
  %v332 = vsub.f32 1.0, %v326
  %v333 = vsub.f32 1.0, %v327
  %v334 = vsub.f32 1.0, %v328
  %v335 = vsub.f32 1.0, %v329
  %v336 = vsub.f32 1.0, %v330
  %vm337 = vcmp.ge.f32.partialorder %v211, 0.0
  %vm338 = vcmp.ge.f32.partialorder %v212, 0.0
  %vm339 = vcmp.ge.f32.partialorder %v213, 0.0
  %vm340 = vcmp.ge.f32.partialorder %v214, 0.0
  %vm341 = vcmp.ge.f32.partialorder %v215, 0.0
  %vm342 = vcmp.ge.f32.partialorder %v216, 0.0
  %v343 = vsub.f32 0.0, %v331
  %v344 = vsub.f32 0.0, %v332
  %v345 = vsub.f32 0.0, %v333
  %v346 = vsub.f32 0.0, %v334
  %v347 = vsub.f32 0.0, %v335
  %v348 = vsub.f32 0.0, %v336
  %v349 = vsel %vm337, %v331, %v343
  %v350 = vsel %vm338, %v332, %v344
  %v351 = vsel %vm339, %v333, %v345
  %v352 = vsel %vm340, %v334, %v346
  %v353 = vsel %vm341, %v335, %v347
  %v354 = vsel %vm342, %v336, %v348
  %v355 = vmul.f32 %v195, 0.5
  %v356 = vmul.f32 %v197, 0.5
  %v357 = vmul.f32 %v201, 0.5
  %v358 = vmul.f32 %v203, 0.5
  %v359 = vmul.f32 %v207, 0.5
  %v360 = vmul.f32 %v209, 0.5
  %v361 = vadd.f32 %v349, 1.0
  %v362 = vadd.f32 %v350, 1.0
  %v363 = vadd.f32 %v351, 1.0
  %v364 = vadd.f32 %v352, 1.0
  %v365 = vadd.f32 %v353, 1.0
  %v366 = vadd.f32 %v354, 1.0
  %v367 = vmul.f32 %v355, %v361
  %v368 = vmul.f32 %v356, %v362
  %v369 = vmul.f32 %v357, %v363
  %v370 = vmul.f32 %v358, %v364
  %v371 = vmul.f32 %v359, %v365
  %v372 = vmul.f32 %v360, %v366
  %v373 = vld [vmem:[%s5] sm:$0xff]
  %v374 = vld [vmem:[%s5 + $0x8] sm:$0xff]
  %v375 = vld [vmem:[%s5 + $0x10] sm:$0xff]
  %v376 = vld [vmem:[%s5 + $0x18] sm:$0xff]
  %v377 = vld [vmem:[%s5 + $0x20] sm:$0xff]
  %v378 = vld [vmem:[%s5 + $0x28] sm:$0xff]
  %v379 = vld [vmem:[%s5 + $0x30] sm:$0xff]
  %v380 = vld [vmem:[%s5 + $0x38] sm:$0xff]
  %v381 = vld [vmem:[%s5 + $0x40] sm:$0xff]
  %v382 = vld [vmem:[%s5 + $0x48] sm:$0xff]
  %v383 = vld [vmem:[%s5 + $0x50] sm:$0xff]
  %v384 = vld [vmem:[%s5 + $0x58] sm:$0xff]
  %v385 = vld [vmem:[%s5 + $0x60] sm:$0xff]
  %v386 = vld [vmem:[%s5 + $0x68] sm:$0xff]
  %v387 = vld [vmem:[%s5 + $0x70] sm:$0xff]
  %v388 = vld [vmem:[%s5 + $0x78] sm:$0xff]
  %v389 = vld [vmem:[%s5 + $0x80] sm:$0xff]
  %v390 = vld [vmem:[%s5 + $0x88] sm:$0xff]
  %v391 = vld [vmem:[%s5 + $0x90] sm:$0xff]
  %v392 = vld [vmem:[%s5 + $0x98] sm:$0xff]
  %v393 = vld [vmem:[%s5 + $0xa0] sm:$0xff]
  %v394 = vld [vmem:[%s5 + $0xa8] sm:$0xff]
  %v395 = vld [vmem:[%s5 + $0xb0] sm:$0xff]
  %v396 = vld [vmem:[%s5 + $0xb8] sm:$0xff]
  %v397 = vld [vmem:[%s5 + $0xc0] sm:$0xff]
  %v398 = vld [vmem:[%s5 + $0xc8] sm:$0xff]
  %v399 = vld [vmem:[%s5 + $0xd0] sm:$0xff]
  %v400 = vld [vmem:[%s5 + $0xd8] sm:$0xff]
  %v401 = vld [vmem:[%s5 + $0xe0] sm:$0xff]
  %v402 = vld [vmem:[%s5 + $0xe8] sm:$0xff]
  %v403 = vld [vmem:[%s5 + $0xf0] sm:$0xff]
  %v404 = vld [vmem:[%s5 + $0xf8] sm:$0xff]
  %v405 = vld [vmem:[%s6] sm:$0x1]
  %v407 = vlaneseq
  %v408 = vshrl.u32 %v407, 7
  %v409 = vsub.s32 0, %v408
  %v410 = vrot.slane %v405, %v409
  %412 = vmatprep.subr.mxu0 0.0
  %413 = vmatpush1.msra.mxu0 %v388
  %414 = vmatprep.subr.mxu0 0.0
  %415 = vmatpush1.msra.mxu0 %v387
  %416 = vmatprep.subr.mxu0 0.0
  %417 = vmatpush1.msra.mxu0 %v386
  %418 = vmatprep.subr.mxu0 0.0
  %419 = vmatpush1.msra.mxu0 %v385
  %420 = vmatprep.subr.mxu0 0.0
  %421 = vmatpush1.msra.mxu0 %v384
  %422 = vmatprep.subr.mxu0 0.0
  %423 = vmatpush1.msra.mxu0 %v383
  %424 = vmatprep.subr.mxu0 0.0
  %425 = vmatpush1.msra.mxu0 %v382
  %426 = vmatprep.subr.mxu0 0.0
  %427 = vmatpush1.msra.mxu0 %v381
  %428 = vmatprep.subr.mxu0 0.0
  %429 = vmatpush1.msra.mxu0 %v380
  %430 = vmatprep.subr.mxu0 0.0
  %431 = vmatpush1.msra.mxu0 %v379
  %432 = vmatprep.subr.mxu0 0.0
  %433 = vmatpush1.msra.mxu0 %v378
  %434 = vmatprep.subr.mxu0 0.0
  %435 = vmatpush1.msra.mxu0 %v377
  %436 = vmatprep.subr.mxu0 0.0
  %437 = vmatpush1.msra.mxu0 %v376
  %438 = vmatprep.subr.mxu0 0.0
  %439 = vmatpush1.msra.mxu0 %v375
  %440 = vmatprep.subr.mxu0 0.0
  %441 = vmatpush1.msra.mxu0 %v374
  %442 = vmatprep.subr.mxu0 0.0
  %443 = vmatpush1.msra.mxu0 %v373
  %444 = vmatprep.subr.mxu0 0.0
  %445 = vmatpush2.msra.mxu0 %v404
  %446 = vmatprep.subr.mxu0 0.0
  %447 = vmatpush2.msra.mxu0 %v403
  %448 = vmatprep.subr.mxu0 0.0
  %449 = vmatpush2.msra.mxu0 %v402
  %450 = vmatprep.subr.mxu0 0.0
  %451 = vmatpush2.msra.mxu0 %v401
  %452 = vmatprep.subr.mxu0 0.0
  %453 = vmatpush2.msra.mxu0 %v400
  %454 = vmatprep.subr.mxu0 0.0
  %455 = vmatpush2.msra.mxu0 %v399
  %456 = vmatprep.subr.mxu0 0.0
  %457 = vmatpush2.msra.mxu0 %v398
  %458 = vmatprep.subr.mxu0 0.0
  %459 = vmatpush2.msra.mxu0 %v397
  %460 = vmatprep.subr.mxu0 0.0
  %461 = vmatpush2.msra.mxu0 %v396
  %462 = vmatprep.subr.mxu0 0.0
  %463 = vmatpush2.msra.mxu0 %v395
  %464 = vmatprep.subr.mxu0 0.0
  %465 = vmatpush2.msra.mxu0 %v394
  %466 = vmatprep.subr.mxu0 0.0
  %467 = vmatpush2.msra.mxu0 %v393
  %468 = vmatprep.subr.mxu0 0.0
  %469 = vmatpush2.msra.mxu0 %v392
  %470 = vmatprep.subr.mxu0 0.0
  %471 = vmatpush2.msra.mxu0 %v391
  %472 = vmatprep.subr.mxu0 0.0
  %473 = vmatpush2.msra.mxu0 %v390
  %474 = vmatprep.subr.mxu0 0.0
  %475 = vmatpush2.msra.mxu0 %v389
  %476 = vmatprep.mubr.f32.mxu0 %v368
  %477 = vmatmul.mubr.f32.gmra.mxu0 %v367
  %v478 = vpop.f32.mrf.mxu0
  %v479 = vadd.f32 %v410, %v478
  %v480 = vpop.f32.mrf.mxu0
  %481 = vmatprep.mubr.f32.mxu0 %v370
  %482 = vmatmul.mubr.f32.gmra.mxu0 %v369
  %v483 = vpop.f32.mrf.mxu0
  %v484 = vadd.f32 %v410, %v483
  %v485 = vpop.f32.mrf.mxu0
  %486 = vmatprep.mubr.f32.mxu0 %v372
  %487 = vmatmul.mubr.f32.gmra.mxu0 %v371
  %v488 = vpop.f32.mrf.mxu0
  %v489 = vadd.f32 %v410, %v488
  %v490 = vpop.f32.mrf.mxu0
  %491 = vdwg.mxu0
  %v492 = vadd.f32 %v26, %v479
  %v493 = vadd.f32 %v27, %v484
  %v494 = vadd.f32 %v28, %v489
  %495 = vst.msk [vmem:[%s7] sm:$0xff] %vm31, %v492
  %496 = vst.msk [vmem:[%s7 + $0x8] sm:$0xff] %vm31, %v493
  %497 = vst.msk [vmem:[%s7 + $0x10] sm:$0x3] %vm38, %v494
  // Predicated region
  $region30: #{_lambda_.12} parent=0 // pred_check
    _
  $region31: #{_lambda_.12} parent=0 // pred_check_branch
    %499 = sbr.rel (0) target = $region33
  $region32: #{_lambda_.12} parent=0 // pred_region
    _
  $region33: #{_lambda_.12} parent=0 // pred_fallthru
    _
  // Predicated region
  $region34: #{_lambda_.12} parent=0 // pred_check
    _
  $region35: #{_lambda_.12} parent=0 // pred_check_branch
    %501 = sbr.rel (0) target = $region37
  $region36: #{_lambda_.12} parent=0 // pred_region
    _
  $region37: #{_lambda_.12} parent=0 // pred_fallthru
    _

// kernel: _lambda_.11
$region0: #{_lambda_.11}
  #allocation0 [shape = 'u32[]', space=smem, size = 0x4, offset = 0x4, fixed_abs, tag = 'smem constant byte address 0x4 - core index']
  #allocation1 [shape = 'u32[144,128]{1,0:T(1,128)}', space=vmem, size = 0x12000, scoped, tag = 'internal scratch']
  %s0 = inlined_call_operand.vmem [shape: f32[4,9,32], index: 0, kind: input, shape index: {}]
  %s1 = inlined_call_operand.vmem [shape: f32[4,33,32], index: 1, kind: input, shape index: {}]
  %s2 = inlined_call_operand.vmem [shape: f32[4,33,32], index: 2, kind: input, shape index: {}]
  %s3 = inlined_call_operand.vmem [shape: f32[1,32], index: 3, kind: input, shape index: {}, may-alias: {3,5,7}]
  %s4 = inlined_call_operand.vmem [shape: f32[1,32], index: 4, kind: input, shape index: {}, may-alias: {4,6,8}]
  %s5 = inlined_call_operand.vmem [shape: f32[1,32], index: 5, kind: input, shape index: {}, may-alias: {3,5,7}]
  %s6 = inlined_call_operand.vmem [shape: f32[1,32], index: 6, kind: input, shape index: {}, may-alias: {4,6,8}]
  %s7 = inlined_call_operand.vmem [shape: f32[1,32], index: 7, kind: input, shape index: {}, may-alias: {3,5,7}]
  %s8 = inlined_call_operand.vmem [shape: f32[1,32], index: 8, kind: input, shape index: {}, may-alias: {4,6,8}]
  %s9 = inlined_call_operand.vmem [shape: f32[64,64], index: 9, kind: input, shape index: {}]
  %s10 = inlined_call_operand.vmem [shape: f32[1,64], index: 10, kind: input, shape index: {}]
  %s11 = inlined_call_operand.vmem [shape: f32[2,9,64], index: 11, kind: input, shape index: {}]
  %s12 = inlined_call_operand.vmem [shape: f32[2,9,64], index: 12, kind: output, shape index: {}]
  %s13 = sld [smem:[#allocation0]]
  $region58: #{_lambda_.11} parent=0
    _
  %s15 = ssub.s32 1, %s13
  %s16 = scalar_select 0, %s15, %s13
  // Predicated region
  $region2: #{_lambda_.11} parent=0 // pred_check
    _
  $region3: #{_lambda_.11} parent=0 // pred_check_branch
    %18 = sbr.rel (0) target = $region5
  $region4: #{_lambda_.11} parent=0 // pred_region
    _
  $region5: #{_lambda_.11} parent=0 // pred_fallthru
    _
  // Predicated region
  $region6: #{_lambda_.11} parent=0 // pred_check
    _
  $region7: #{_lambda_.11} parent=0 // pred_check_branch
    %20 = sbr.rel (0) target = $region9
  $region8: #{_lambda_.11} parent=0 // pred_region
    _
  $region9: #{_lambda_.11} parent=0 // pred_fallthru
    _
  // Predicated region
  $region10: #{_lambda_.11} parent=0 // pred_check
    _
  $region11: #{_lambda_.11} parent=0 // pred_check_branch
    %22 = sbr.rel (0) target = $region13
  $region12: #{_lambda_.11} parent=0 // pred_region
    _
  $region13: #{_lambda_.11} parent=0 // pred_fallthru
    _
  // Predicated region
  $region14: #{_lambda_.11} parent=0 // pred_check
    _
  $region15: #{_lambda_.11} parent=0 // pred_check_branch
    %24 = sbr.rel (0) target = $region17
  $region16: #{_lambda_.11} parent=0 // pred_region
    _
  $region17: #{_lambda_.11} parent=0 // pred_fallthru
    _
  // Predicated region
  $region18: #{_lambda_.11} parent=0 // pred_check
    _
  $region19: #{_lambda_.11} parent=0 // pred_check_branch
    %26 = sbr.rel (0) target = $region21
  $region20: #{_lambda_.11} parent=0 // pred_region
    _
  $region21: #{_lambda_.11} parent=0 // pred_fallthru
    _
  // Predicated region
  $region22: #{_lambda_.11} parent=0 // pred_check
    _
  $region23: #{_lambda_.11} parent=0 // pred_check_branch
    %28 = sbr.rel (0) target = $region25
  $region24: #{_lambda_.11} parent=0 // pred_region
    _
  $region25: #{_lambda_.11} parent=0 // pred_fallthru
    _
  // Predicated region
  $region26: #{_lambda_.11} parent=0 // pred_check
    _
  $region27: #{_lambda_.11} parent=0 // pred_check_branch
    %30 = sbr.rel (0) target = $region29
  $region28: #{_lambda_.11} parent=0 // pred_region
    _
  $region29: #{_lambda_.11} parent=0 // pred_fallthru
    _
  // Predicated region
  $region30: #{_lambda_.11} parent=0 // pred_check
    _
  $region31: #{_lambda_.11} parent=0 // pred_check_branch
    %32 = sbr.rel (0) target = $region33
  $region32: #{_lambda_.11} parent=0 // pred_region
    _
  $region33: #{_lambda_.11} parent=0 // pred_fallthru
    _
  // Predicated region
  $region34: #{_lambda_.11} parent=0 // pred_check
    _
  $region35: #{_lambda_.11} parent=0 // pred_check_branch
    %34 = sbr.rel (0) target = $region37
  $region36: #{_lambda_.11} parent=0 // pred_region
    _
  $region37: #{_lambda_.11} parent=0 // pred_fallthru
    _
  // Predicated region
  $region38: #{_lambda_.11} parent=0 // pred_check
    _
  $region39: #{_lambda_.11} parent=0 // pred_check_branch
    %36 = sbr.rel (0) target = $region41
  $region40: #{_lambda_.11} parent=0 // pred_region
    _
  $region41: #{_lambda_.11} parent=0 // pred_fallthru
    _
  // Predicated region
  $region42: #{_lambda_.11} parent=0 // pred_check
    _
  $region43: #{_lambda_.11} parent=0 // pred_check_branch
    %38 = sbr.rel (0) target = $region45
  $region44: #{_lambda_.11} parent=0 // pred_region
    _
  $region45: #{_lambda_.11} parent=0 // pred_fallthru
    _
  // Predicated region
  $region46: #{_lambda_.11} parent=0 // pred_check
    _
  $region47: #{_lambda_.11} parent=0 // pred_check_branch
    %40 = sbr.rel (0) target = $region49
  $region48: #{_lambda_.11} parent=0 // pred_region
    _
  $region49: #{_lambda_.11} parent=0 // pred_fallthru
    _
  %v41 = vld [vmem:[%s0] sm:$0xff]
  %v42 = vld [vmem:[%s0 + $0x8] sm:$0x1]
  %v43 = vld [vmem:[%s0 + $0x10] sm:$0xff]
  %v44 = vld [vmem:[%s0 + $0x18] sm:$0x1]
  %v45 = vld [vmem:[%s0 + $0x20] sm:$0xff]
  %v46 = vld [vmem:[%s0 + $0x28] sm:$0x1]
  %v47 = vld [vmem:[%s0 + $0x30] sm:$0xff]
  %v48 = vld [vmem:[%s0 + $0x38] sm:$0x1]
  %v49 = vld [vmem:[%s1] sm:$0xff]
  %v50 = vld [vmem:[%s1 + $0x8] sm:$0xff]
  %v51 = vld [vmem:[%s1 + $0x10] sm:$0xff]
  %v52 = vld [vmem:[%s1 + $0x18] sm:$0xff]
  %v53 = vld [vmem:[%s1 + $0x20] sm:$0x1]
  %v54 = vld [vmem:[%s1 + $0x28] sm:$0xff]
  %v55 = vld [vmem:[%s1 + $0x30] sm:$0xff]
  %v56 = vld [vmem:[%s1 + $0x38] sm:$0xff]
  %v57 = vld [vmem:[%s1 + $0x40] sm:$0xff]
  %v58 = vld [vmem:[%s1 + $0x48] sm:$0x1]
  %v59 = vld [vmem:[%s1 + $0x50] sm:$0xff]
  %v60 = vld [vmem:[%s1 + $0x58] sm:$0xff]
  %v61 = vld [vmem:[%s1 + $0x60] sm:$0xff]
  %v62 = vld [vmem:[%s1 + $0x68] sm:$0xff]
  %v63 = vld [vmem:[%s1 + $0x70] sm:$0x1]
  %v64 = vld [vmem:[%s1 + $0x78] sm:$0xff]
  %v65 = vld [vmem:[%s1 + $0x80] sm:$0xff]
  %v66 = vld [vmem:[%s1 + $0x88] sm:$0xff]
  %v67 = vld [vmem:[%s1 + $0x90] sm:$0xff]
  %v68 = vld [vmem:[%s1 + $0x98] sm:$0x1]
  %v69 = vld [vmem:[%s2] sm:$0xff]
  %v70 = vld [vmem:[%s2 + $0x8] sm:$0xff]
  %v71 = vld [vmem:[%s2 + $0x10] sm:$0xff]
  %v72 = vld [vmem:[%s2 + $0x18] sm:$0xff]
  %v73 = vld [vmem:[%s2 + $0x20] sm:$0x1]
  %v74 = vld [vmem:[%s2 + $0x28] sm:$0xff]
  %v75 = vld [vmem:[%s2 + $0x30] sm:$0xff]
  %v76 = vld [vmem:[%s2 + $0x38] sm:$0xff]
  %v77 = vld [vmem:[%s2 + $0x40] sm:$0xff]
  %v78 = vld [vmem:[%s2 + $0x48] sm:$0x1]
  %v79 = vld [vmem:[%s2 + $0x50] sm:$0xff]
  %v80 = vld [vmem:[%s2 + $0x58] sm:$0xff]
  %v81 = vld [vmem:[%s2 + $0x60] sm:$0xff]
  %v82 = vld [vmem:[%s2 + $0x68] sm:$0xff]
  %v83 = vld [vmem:[%s2 + $0x70] sm:$0x1]
  %v84 = vld [vmem:[%s2 + $0x78] sm:$0xff]
  %v85 = vld [vmem:[%s2 + $0x80] sm:$0xff]
  %v86 = vld [vmem:[%s2 + $0x88] sm:$0xff]
  %v87 = vld [vmem:[%s2 + $0x90] sm:$0xff]
  %v88 = vld [vmem:[%s2 + $0x98] sm:$0x1]
  %v89 = vld [vmem:[%s3] sm:$0x1]
  %v90 = vld [vmem:[%s4] sm:$0x1]
  %vm91 = vcmask 261120
  %v92 = vsel %vm91, %v41, 0.0
  %93 = vadd.xlane.f32.xlu0 %v92
  %v94 = vpop.xlane.xlu0 %93
  %vm95 = vcmask 253952
  %v96 = vsel %vm95, %v42, 0.0
  %97 = vadd.xlane.f32.xlu0 %v96
  %v98 = vpop.xlane.xlu0 %97
  %v99 = vsel %vm91, %v43, 0.0
  %100 = vadd.xlane.f32.xlu0 %v99
  %v101 = vpop.xlane.xlu0 %100
  %v102 = vsel %vm95, %v44, 0.0
  %103 = vadd.xlane.f32.xlu0 %v102
  %v104 = vpop.xlane.xlu0 %103
  %v105 = vsel %vm91, %v45, 0.0
  %106 = vadd.xlane.f32.xlu0 %v105
  %v107 = vpop.xlane.xlu0 %106
  %v108 = vsel %vm95, %v46, 0.0
  %109 = vadd.xlane.f32.xlu0 %v108
  %v110 = vpop.xlane.xlu0 %109
  %v111 = vsel %vm91, %v47, 0.0
  %112 = vadd.xlane.f32.xlu0 %v111
  %v113 = vpop.xlane.xlu0 %112
  %v114 = vsel %vm95, %v48, 0.0
  %115 = vadd.xlane.f32.xlu0 %v114
  %v116 = vpop.xlane.xlu0 %115
  %v117 = vrcp.pop 32.0
  %v118 = vmul.f32 %v94, %v117
  %v119 = vmul.f32 %v98, %v117
  %v120 = vmul.f32 %v101, %v117
  %v121 = vmul.f32 %v104, %v117
  %v122 = vmul.f32 %v107, %v117
  %v123 = vmul.f32 %v110, %v117
  %v124 = vmul.f32 %v113, %v117
  %v125 = vmul.f32 %v116, %v117
  %v126 = vsub.f32 %v41, %v118
  %v127 = vsub.f32 %v42, %v119
  %v128 = vsub.f32 %v43, %v120
  %v129 = vsub.f32 %v44, %v121
  %v130 = vsub.f32 %v45, %v122
  %v131 = vsub.f32 %v46, %v123
  %v132 = vsub.f32 %v47, %v124
  %v133 = vsub.f32 %v48, %v125
  %v134 = vmul.f32 %v126, %v126
  %v135 = vmul.f32 %v127, %v127
  %v136 = vmul.f32 %v128, %v128
  %v137 = vmul.f32 %v129, %v129
  %v138 = vmul.f32 %v130, %v130
  %v139 = vmul.f32 %v131, %v131
  %v140 = vmul.f32 %v132, %v132
  %v141 = vmul.f32 %v133, %v133
  %v142 = vsel %vm91, %v134, 0.0
  %143 = vadd.xlane.f32.xlu0 %v142
  %v144 = vpop.xlane.xlu0 %143
  %v145 = vsel %vm95, %v135, 0.0
  %146 = vadd.xlane.f32.xlu0 %v145
  %v147 = vpop.xlane.xlu0 %146
  %v148 = vsel %vm91, %v136, 0.0
  %149 = vadd.xlane.f32.xlu0 %v148
  %v150 = vpop.xlane.xlu0 %149
  %v151 = vsel %vm95, %v137, 0.0
  %152 = vadd.xlane.f32.xlu0 %v151
  %v153 = vpop.xlane.xlu0 %152
  %v154 = vsel %vm91, %v138, 0.0
  %155 = vadd.xlane.f32.xlu0 %v154
  %v156 = vpop.xlane.xlu0 %155
  %v157 = vsel %vm95, %v139, 0.0
  %158 = vadd.xlane.f32.xlu0 %v157
  %v159 = vpop.xlane.xlu0 %158
  %v160 = vsel %vm91, %v140, 0.0
  %161 = vadd.xlane.f32.xlu0 %v160
  %v162 = vpop.xlane.xlu0 %161
  %v163 = vsel %vm95, %v141, 0.0
  %164 = vadd.xlane.f32.xlu0 %v163
  %v165 = vpop.xlane.xlu0 %164
  %v166 = vmul.f32 %v144, %v117
  %v167 = vmul.f32 %v147, %v117
  %v168 = vmul.f32 %v150, %v117
  %v169 = vmul.f32 %v153, %v117
  %v170 = vmul.f32 %v156, %v117
  %v171 = vmul.f32 %v159, %v117
  %v172 = vmul.f32 %v162, %v117
  %v173 = vmul.f32 %v165, %v117
  %v174 = vadd.f32 %v166, 1e-05
  %v175 = vadd.f32 %v167, 1e-05
  %v176 = vadd.f32 %v168, 1e-05
  %v177 = vadd.f32 %v169, 1e-05
  %v178 = vadd.f32 %v170, 1e-05
  %v179 = vadd.f32 %v171, 1e-05
  %v180 = vadd.f32 %v172, 1e-05
  %v181 = vadd.f32 %v173, 1e-05
  %v182 = vrsqrt.pop %v174
  %v183 = vrsqrt.pop %v175
  %v184 = vrsqrt.pop %v176
  %v185 = vrsqrt.pop %v177
  %v186 = vrsqrt.pop %v178
  %v187 = vrsqrt.pop %v179
  %v188 = vrsqrt.pop %v180
  %v189 = vrsqrt.pop %v181
  %v190 = vmul.f32 %v126, %v182
  %v191 = vmul.f32 %v127, %v183
  %v192 = vmul.f32 %v128, %v184
  %v193 = vmul.f32 %v129, %v185
  %v194 = vmul.f32 %v130, %v186
  %v195 = vmul.f32 %v131, %v187
  %v196 = vmul.f32 %v132, %v188
  %v197 = vmul.f32 %v133, %v189
  %v199 = vlaneseq
  %v200 = vshrl.u32 %v199, 7
  %v201 = vsub.s32 0, %v200
  %v202 = vrot.slane %v89, %v201
  %v204 = vmul.f32 %v190, %v202
  %v205 = vmul.f32 %v191, %v202
  %v206 = vmul.f32 %v192, %v202
  %v207 = vmul.f32 %v193, %v202
  %v208 = vmul.f32 %v194, %v202
  %v209 = vmul.f32 %v195, %v202
  %v210 = vmul.f32 %v196, %v202
  %v211 = vmul.f32 %v197, %v202
  %v213 = vlaneseq
  %v214 = vshrl.u32 %v213, 7
  %v215 = vsub.s32 0, %v214
  %v216 = vrot.slane %v90, %v215
  %v218 = vadd.f32 %v204, %v216
  %v219 = vadd.f32 %v205, %v216
  %v220 = vadd.f32 %v206, %v216
  %v221 = vadd.f32 %v207, %v216
  %v222 = vadd.f32 %v208, %v216
  %v223 = vadd.f32 %v209, %v216
  %v224 = vadd.f32 %v210, %v216
  %v225 = vadd.f32 %v211, %v216
  %v226 = vmul.f32 %v218, 0.17677669
  %v227 = vmul.f32 %v219, 0.17677669
  %v228 = vmul.f32 %v220, 0.17677669
  %v229 = vmul.f32 %v221, 0.17677669
  %v230 = vmul.f32 %v222, 0.17677669
  %v231 = vmul.f32 %v223, 0.17677669
  %v232 = vmul.f32 %v224, 0.17677669
  %v233 = vmul.f32 %v225, 0.17677669
  %v234 = vld [vmem:[%s5] sm:$0x1]
  %v235 = vld [vmem:[%s6] sm:$0x1]
  %v236 = vsel %vm91, %v49, 0.0
  %237 = vadd.xlane.f32.xlu0 %v236
  %v238 = vpop.xlane.xlu0 %237
  %v239 = vsel %vm91, %v50, 0.0
  %240 = vadd.xlane.f32.xlu0 %v239
  %v241 = vpop.xlane.xlu0 %240
  %v242 = vsel %vm91, %v51, 0.0
  %243 = vadd.xlane.f32.xlu0 %v242
  %v244 = vpop.xlane.xlu0 %243
  %v245 = vsel %vm91, %v52, 0.0
  %246 = vadd.xlane.f32.xlu0 %v245
  %v247 = vpop.xlane.xlu0 %246
  %v248 = vsel %vm95, %v53, 0.0
  %249 = vadd.xlane.f32.xlu0 %v248
  %v250 = vpop.xlane.xlu0 %249
  %v251 = vsel %vm91, %v54, 0.0
  %252 = vadd.xlane.f32.xlu0 %v251
  %v253 = vpop.xlane.xlu0 %252
  %v254 = vsel %vm91, %v55, 0.0
  %255 = vadd.xlane.f32.xlu0 %v254
  %v256 = vpop.xlane.xlu0 %255
  %v257 = vsel %vm91, %v56, 0.0
  %258 = vadd.xlane.f32.xlu0 %v257
  %v259 = vpop.xlane.xlu0 %258
  %v260 = vsel %vm91, %v57, 0.0
  %261 = vadd.xlane.f32.xlu0 %v260
  %v262 = vpop.xlane.xlu0 %261
  %v263 = vsel %vm95, %v58, 0.0
  %264 = vadd.xlane.f32.xlu0 %v263
  %v265 = vpop.xlane.xlu0 %264
  %v266 = vsel %vm91, %v59, 0.0
  %267 = vadd.xlane.f32.xlu0 %v266
  %v268 = vpop.xlane.xlu0 %267
  %v269 = vsel %vm91, %v60, 0.0
  %270 = vadd.xlane.f32.xlu0 %v269
  %v271 = vpop.xlane.xlu0 %270
  %v272 = vsel %vm91, %v61, 0.0
  %273 = vadd.xlane.f32.xlu0 %v272
  %v274 = vpop.xlane.xlu0 %273
  %v275 = vsel %vm91, %v62, 0.0
  %276 = vadd.xlane.f32.xlu0 %v275
  %v277 = vpop.xlane.xlu0 %276
  %v278 = vsel %vm95, %v63, 0.0
  %279 = vadd.xlane.f32.xlu0 %v278
  %v280 = vpop.xlane.xlu0 %279
  %v281 = vsel %vm91, %v64, 0.0
  %282 = vadd.xlane.f32.xlu0 %v281
  %v283 = vpop.xlane.xlu0 %282
  %v284 = vsel %vm91, %v65, 0.0
  %285 = vadd.xlane.f32.xlu0 %v284
  %v286 = vpop.xlane.xlu0 %285
  %v287 = vsel %vm91, %v66, 0.0
  %288 = vadd.xlane.f32.xlu0 %v287
  %v289 = vpop.xlane.xlu0 %288
  %v290 = vsel %vm91, %v67, 0.0
  %291 = vadd.xlane.f32.xlu0 %v290
  %v292 = vpop.xlane.xlu0 %291
  %v293 = vsel %vm95, %v68, 0.0
  %294 = vadd.xlane.f32.xlu0 %v293
  %v295 = vpop.xlane.xlu0 %294
  %v296 = vmul.f32 %v238, %v117
  %v297 = vmul.f32 %v241, %v117
  %v298 = vmul.f32 %v244, %v117
  %v299 = vmul.f32 %v247, %v117
  %v300 = vmul.f32 %v250, %v117
  %v301 = vmul.f32 %v253, %v117
  %v302 = vmul.f32 %v256, %v117
  %v303 = vmul.f32 %v259, %v117
  %v304 = vmul.f32 %v262, %v117
  %v305 = vmul.f32 %v265, %v117
  %v306 = vmul.f32 %v268, %v117
  %v307 = vmul.f32 %v271, %v117
  %v308 = vmul.f32 %v274, %v117
  %v309 = vmul.f32 %v277, %v117
  %v310 = vmul.f32 %v280, %v117
  %v311 = vmul.f32 %v283, %v117
  %v312 = vmul.f32 %v286, %v117
  %v313 = vmul.f32 %v289, %v117
  %v314 = vmul.f32 %v292, %v117
  %v315 = vmul.f32 %v295, %v117
  %v316 = vsub.f32 %v49, %v296
  %v317 = vsub.f32 %v50, %v297
  %v318 = vsub.f32 %v51, %v298
  %v319 = vsub.f32 %v52, %v299
  %v320 = vsub.f32 %v53, %v300
  %v321 = vsub.f32 %v54, %v301
  %v322 = vsub.f32 %v55, %v302
  %v323 = vsub.f32 %v56, %v303
  %v324 = vsub.f32 %v57, %v304
  %v325 = vsub.f32 %v58, %v305
  %v326 = vsub.f32 %v59, %v306
  %v327 = vsub.f32 %v60, %v307
  %v328 = vsub.f32 %v61, %v308
  %v329 = vsub.f32 %v62, %v309
  %v330 = vsub.f32 %v63, %v310
  %v331 = vsub.f32 %v64, %v311
  %v332 = vsub.f32 %v65, %v312
  %v333 = vsub.f32 %v66, %v313
  %v334 = vsub.f32 %v67, %v314
  %v335 = vsub.f32 %v68, %v315
  %v336 = vmul.f32 %v316, %v316
  %v337 = vmul.f32 %v317, %v317
  %v338 = vmul.f32 %v318, %v318
  %v339 = vmul.f32 %v319, %v319
  %v340 = vmul.f32 %v320, %v320
  %v341 = vmul.f32 %v321, %v321
  %v342 = vmul.f32 %v322, %v322
  %v343 = vmul.f32 %v323, %v323
  %v344 = vmul.f32 %v324, %v324
  %v345 = vmul.f32 %v325, %v325
  %v346 = vmul.f32 %v326, %v326
  %v347 = vmul.f32 %v327, %v327
  %v348 = vmul.f32 %v328, %v328
  %v349 = vmul.f32 %v329, %v329
  %v350 = vmul.f32 %v330, %v330
  %v351 = vmul.f32 %v331, %v331
  %v352 = vmul.f32 %v332, %v332
  %v353 = vmul.f32 %v333, %v333
  %v354 = vmul.f32 %v334, %v334
  %v355 = vmul.f32 %v335, %v335
  %v356 = vsel %vm91, %v336, 0.0
  %357 = vadd.xlane.f32.xlu0 %v356
  %v358 = vpop.xlane.xlu0 %357
  %v359 = vsel %vm91, %v337, 0.0
  %360 = vadd.xlane.f32.xlu0 %v359
  %v361 = vpop.xlane.xlu0 %360
  %v362 = vsel %vm91, %v338, 0.0
  %363 = vadd.xlane.f32.xlu0 %v362
  %v364 = vpop.xlane.xlu0 %363
  %v365 = vsel %vm91, %v339, 0.0
  %366 = vadd.xlane.f32.xlu0 %v365
  %v367 = vpop.xlane.xlu0 %366
  %v368 = vsel %vm95, %v340, 0.0
  %369 = vadd.xlane.f32.xlu0 %v368
  %v370 = vpop.xlane.xlu0 %369
  %v371 = vsel %vm91, %v341, 0.0
  %372 = vadd.xlane.f32.xlu0 %v371
  %v373 = vpop.xlane.xlu0 %372
  %v374 = vsel %vm91, %v342, 0.0
  %375 = vadd.xlane.f32.xlu0 %v374
  %v376 = vpop.xlane.xlu0 %375
  %v377 = vsel %vm91, %v343, 0.0
  %378 = vadd.xlane.f32.xlu0 %v377
  %v379 = vpop.xlane.xlu0 %378
  %v380 = vsel %vm91, %v344, 0.0
  %381 = vadd.xlane.f32.xlu0 %v380
  %v382 = vpop.xlane.xlu0 %381
  %v383 = vsel %vm95, %v345, 0.0
  %384 = vadd.xlane.f32.xlu0 %v383
  %v385 = vpop.xlane.xlu0 %384
  %v386 = vsel %vm91, %v346, 0.0
  %387 = vadd.xlane.f32.xlu0 %v386
  %v388 = vpop.xlane.xlu0 %387
  %v389 = vsel %vm91, %v347, 0.0
  %390 = vadd.xlane.f32.xlu0 %v389
  %v391 = vpop.xlane.xlu0 %390
  %v392 = vsel %vm91, %v348, 0.0
  %393 = vadd.xlane.f32.xlu0 %v392
  %v394 = vpop.xlane.xlu0 %393
  %v395 = vsel %vm91, %v349, 0.0
  %396 = vadd.xlane.f32.xlu0 %v395
  %v397 = vpop.xlane.xlu0 %396
  %v398 = vsel %vm95, %v350, 0.0
  %399 = vadd.xlane.f32.xlu0 %v398
  %v400 = vpop.xlane.xlu0 %399
  %v401 = vsel %vm91, %v351, 0.0
  %402 = vadd.xlane.f32.xlu0 %v401
  %v403 = vpop.xlane.xlu0 %402
  %v404 = vsel %vm91, %v352, 0.0
  %405 = vadd.xlane.f32.xlu0 %v404
  %v406 = vpop.xlane.xlu0 %405
  %v407 = vsel %vm91, %v353, 0.0
  %408 = vadd.xlane.f32.xlu0 %v407
  %v409 = vpop.xlane.xlu0 %408
  %v410 = vsel %vm91, %v354, 0.0
  %411 = vadd.xlane.f32.xlu0 %v410
  %v412 = vpop.xlane.xlu0 %411
  %v413 = vsel %vm95, %v355, 0.0
  %414 = vadd.xlane.f32.xlu0 %v413
  %v415 = vpop.xlane.xlu0 %414
  %v416 = vmul.f32 %v358, %v117
  %v417 = vmul.f32 %v361, %v117
  %v418 = vmul.f32 %v364, %v117
  %v419 = vmul.f32 %v367, %v117
  %v420 = vmul.f32 %v370, %v117
  %v421 = vmul.f32 %v373, %v117
  %v422 = vmul.f32 %v376, %v117
  %v423 = vmul.f32 %v379, %v117
  %v424 = vmul.f32 %v382, %v117
  %v425 = vmul.f32 %v385, %v117
  %v426 = vmul.f32 %v388, %v117
  %v427 = vmul.f32 %v391, %v117
  %v428 = vmul.f32 %v394, %v117
  %v429 = vmul.f32 %v397, %v117
  %v430 = vmul.f32 %v400, %v117
  %v431 = vmul.f32 %v403, %v117
  %v432 = vmul.f32 %v406, %v117
  %v433 = vmul.f32 %v409, %v117
  %v434 = vmul.f32 %v412, %v117
  %v435 = vmul.f32 %v415, %v117
  %v436 = vadd.f32 %v416, 1e-05
  %v437 = vadd.f32 %v417, 1e-05
  %v438 = vadd.f32 %v418, 1e-05
  %v439 = vadd.f32 %v419, 1e-05
  %v440 = vadd.f32 %v420, 1e-05
  %v441 = vadd.f32 %v421, 1e-05
  %v442 = vadd.f32 %v422, 1e-05
  %v443 = vadd.f32 %v423, 1e-05
  %v444 = vadd.f32 %v424, 1e-05
  %v445 = vadd.f32 %v425, 1e-05
  %v446 = vadd.f32 %v426, 1e-05
  %v447 = vadd.f32 %v427, 1e-05
  %v448 = vadd.f32 %v428, 1e-05
  %v449 = vadd.f32 %v429, 1e-05
  %v450 = vadd.f32 %v430, 1e-05
  %v451 = vadd.f32 %v431, 1e-05
  %v452 = vadd.f32 %v432, 1e-05
  %v453 = vadd.f32 %v433, 1e-05
  %v454 = vadd.f32 %v434, 1e-05
  %v455 = vadd.f32 %v435, 1e-05
  %v456 = vrsqrt.pop %v436
  %v457 = vrsqrt.pop %v437
  %v458 = vrsqrt.pop %v438
  %v459 = vrsqrt.pop %v439
  %v460 = vrsqrt.pop %v440
  %v461 = vrsqrt.pop %v441
  %v462 = vrsqrt.pop %v442
  %v463 = vrsqrt.pop %v443
  %v464 = vrsqrt.pop %v444
  %v465 = vrsqrt.pop %v445
  %v466 = vrsqrt.pop %v446
  %v467 = vrsqrt.pop %v447
  %v468 = vrsqrt.pop %v448
  %v469 = vrsqrt.pop %v449
  %v470 = vrsqrt.pop %v450
  %v471 = vrsqrt.pop %v451
  %v472 = vrsqrt.pop %v452
  %v473 = vrsqrt.pop %v453
  %v474 = vrsqrt.pop %v454
  %v475 = vrsqrt.pop %v455
  %v476 = vmul.f32 %v316, %v456
  %v477 = vmul.f32 %v317, %v457
  %v478 = vmul.f32 %v318, %v458
  %v479 = vmul.f32 %v319, %v459
  %v480 = vmul.f32 %v320, %v460
  %v481 = vmul.f32 %v321, %v461
  %v482 = vmul.f32 %v322, %v462
  %v483 = vmul.f32 %v323, %v463
  %v484 = vmul.f32 %v324, %v464
  %v485 = vmul.f32 %v325, %v465
  %v486 = vmul.f32 %v326, %v466
  %v487 = vmul.f32 %v327, %v467
  %v488 = vmul.f32 %v328, %v468
  %v489 = vmul.f32 %v329, %v469
  %v490 = vmul.f32 %v330, %v470
  %v491 = vmul.f32 %v331, %v471
  %v492 = vmul.f32 %v332, %v472
  %v493 = vmul.f32 %v333, %v473
  %v494 = vmul.f32 %v334, %v474
  %v495 = vmul.f32 %v335, %v475
  %v497 = vlaneseq
  %v498 = vshrl.u32 %v497, 7
  %v499 = vsub.s32 0, %v498
  %v500 = vrot.slane %v234, %v499
  %v502 = vmul.f32 %v476, %v500
  %v503 = vmul.f32 %v477, %v500
  %v504 = vmul.f32 %v478, %v500
  %v505 = vmul.f32 %v479, %v500
  %v506 = vmul.f32 %v480, %v500
  %v507 = vmul.f32 %v481, %v500
  %v508 = vmul.f32 %v482, %v500
  %v509 = vmul.f32 %v483, %v500
  %v510 = vmul.f32 %v484, %v500
  %v511 = vmul.f32 %v485, %v500
  %v512 = vmul.f32 %v486, %v500
  %v513 = vmul.f32 %v487, %v500
  %v514 = vmul.f32 %v488, %v500
  %v515 = vmul.f32 %v489, %v500
  %v516 = vmul.f32 %v490, %v500
  %v517 = vmul.f32 %v491, %v500
  %v518 = vmul.f32 %v492, %v500
  %v519 = vmul.f32 %v493, %v500
  %v520 = vmul.f32 %v494, %v500
  %v521 = vmul.f32 %v495, %v500
  %v523 = vlaneseq
  %v524 = vshrl.u32 %v523, 7
  %v525 = vsub.s32 0, %v524
  %v526 = vrot.slane %v235, %v525
  %v528 = vadd.f32 %v502, %v526
  %v529 = vadd.f32 %v503, %v526
  %v530 = vadd.f32 %v504, %v526
  %v531 = vadd.f32 %v505, %v526
  %v532 = vadd.f32 %v506, %v526
  %v533 = vadd.f32 %v507, %v526
  %v534 = vadd.f32 %v508, %v526
  %v535 = vadd.f32 %v509, %v526
  %v536 = vadd.f32 %v510, %v526
  %v537 = vadd.f32 %v511, %v526
  %v538 = vadd.f32 %v512, %v526
  %v539 = vadd.f32 %v513, %v526
  %v540 = vadd.f32 %v514, %v526
  %v541 = vadd.f32 %v515, %v526
  %v542 = vadd.f32 %v516, %v526
  %v543 = vadd.f32 %v517, %v526
  %v544 = vadd.f32 %v518, %v526
  %v545 = vadd.f32 %v519, %v526
  %v546 = vadd.f32 %v520, %v526
  %v547 = vadd.f32 %v521, %v526
  %v548 = vld [vmem:[%s7] sm:$0x1]
  %v549 = vld [vmem:[%s8] sm:$0x1]
  %v550 = vsel %vm91, %v69, 0.0
  %551 = vadd.xlane.f32.xlu0 %v550
  %v552 = vpop.xlane.xlu0 %551
  %v553 = vsel %vm91, %v70, 0.0
  %554 = vadd.xlane.f32.xlu0 %v553
  %v555 = vpop.xlane.xlu0 %554
  %v556 = vsel %vm91, %v71, 0.0
  %557 = vadd.xlane.f32.xlu0 %v556
  %v558 = vpop.xlane.xlu0 %557
  %v559 = vsel %vm91, %v72, 0.0
  %560 = vadd.xlane.f32.xlu0 %v559
  %v561 = vpop.xlane.xlu0 %560
  %v562 = vsel %vm95, %v73, 0.0
  %563 = vadd.xlane.f32.xlu0 %v562
  %v564 = vpop.xlane.xlu0 %563
  %v565 = vsel %vm91, %v74, 0.0
  %566 = vadd.xlane.f32.xlu0 %v565
  %v567 = vpop.xlane.xlu0 %566
  %v568 = vsel %vm91, %v75, 0.0
  %569 = vadd.xlane.f32.xlu0 %v568
  %v570 = vpop.xlane.xlu0 %569
  %v571 = vsel %vm91, %v76, 0.0
  %572 = vadd.xlane.f32.xlu0 %v571
  %v573 = vpop.xlane.xlu0 %572
  %v574 = vsel %vm91, %v77, 0.0
  %575 = vadd.xlane.f32.xlu0 %v574
  %v576 = vpop.xlane.xlu0 %575
  %v577 = vsel %vm95, %v78, 0.0
  %578 = vadd.xlane.f32.xlu0 %v577
  %v579 = vpop.xlane.xlu0 %578
  %v580 = vsel %vm91, %v79, 0.0
  %581 = vadd.xlane.f32.xlu0 %v580
  %v582 = vpop.xlane.xlu0 %581
  %v583 = vsel %vm91, %v80, 0.0
  %584 = vadd.xlane.f32.xlu0 %v583
  %v585 = vpop.xlane.xlu0 %584
  %v586 = vsel %vm91, %v81, 0.0
  %587 = vadd.xlane.f32.xlu0 %v586
  %v588 = vpop.xlane.xlu0 %587
  %v589 = vsel %vm91, %v82, 0.0
  %590 = vadd.xlane.f32.xlu0 %v589
  %v591 = vpop.xlane.xlu0 %590
  %v592 = vsel %vm95, %v83, 0.0
  %593 = vadd.xlane.f32.xlu0 %v592
  %v594 = vpop.xlane.xlu0 %593
  %v595 = vsel %vm91, %v84, 0.0
  %596 = vadd.xlane.f32.xlu0 %v595
  %v597 = vpop.xlane.xlu0 %596
  %v598 = vsel %vm91, %v85, 0.0
  %599 = vadd.xlane.f32.xlu0 %v598
  %v600 = vpop.xlane.xlu0 %599
  %v601 = vsel %vm91, %v86, 0.0
  %602 = vadd.xlane.f32.xlu0 %v601
  %v603 = vpop.xlane.xlu0 %602
  %v604 = vsel %vm91, %v87, 0.0
  %605 = vadd.xlane.f32.xlu0 %v604
  %v606 = vpop.xlane.xlu0 %605
  %v607 = vsel %vm95, %v88, 0.0
  %608 = vadd.xlane.f32.xlu0 %v607
  %v609 = vpop.xlane.xlu0 %608
  %v610 = vmul.f32 %v552, %v117
  %v611 = vmul.f32 %v555, %v117
  %v612 = vmul.f32 %v558, %v117
  %v613 = vmul.f32 %v561, %v117
  %v614 = vmul.f32 %v564, %v117
  %v615 = vmul.f32 %v567, %v117
  %v616 = vmul.f32 %v570, %v117
  %v617 = vmul.f32 %v573, %v117
  %v618 = vmul.f32 %v576, %v117
  %v619 = vmul.f32 %v579, %v117
  %v620 = vmul.f32 %v582, %v117
  %v621 = vmul.f32 %v585, %v117
  %v622 = vmul.f32 %v588, %v117
  %v623 = vmul.f32 %v591, %v117
  %v624 = vmul.f32 %v594, %v117
  %v625 = vmul.f32 %v597, %v117
  %v626 = vmul.f32 %v600, %v117
  %v627 = vmul.f32 %v603, %v117
  %v628 = vmul.f32 %v606, %v117
  %v629 = vmul.f32 %v609, %v117
  %v630 = vsub.f32 %v69, %v610
  %v631 = vsub.f32 %v70, %v611
  %v632 = vsub.f32 %v71, %v612
  %v633 = vsub.f32 %v72, %v613
  %v634 = vsub.f32 %v73, %v614
  %v635 = vsub.f32 %v74, %v615
  %v636 = vsub.f32 %v75, %v616
  %v637 = vsub.f32 %v76, %v617
  %v638 = vsub.f32 %v77, %v618
  %v639 = vsub.f32 %v78, %v619
  %v640 = vsub.f32 %v79, %v620
  %v641 = vsub.f32 %v80, %v621
  %v642 = vsub.f32 %v81, %v622
  %v643 = vsub.f32 %v82, %v623
  %v644 = vsub.f32 %v83, %v624
  %v645 = vsub.f32 %v84, %v625
  %v646 = vsub.f32 %v85, %v626
  %v647 = vsub.f32 %v86, %v627
  %v648 = vsub.f32 %v87, %v628
  %v649 = vsub.f32 %v88, %v629
  %v650 = vmul.f32 %v630, %v630
  %v651 = vmul.f32 %v631, %v631
  %v652 = vmul.f32 %v632, %v632
  %v653 = vmul.f32 %v633, %v633
  %v654 = vmul.f32 %v634, %v634
  %v655 = vmul.f32 %v635, %v635
  %v656 = vmul.f32 %v636, %v636
  %v657 = vmul.f32 %v637, %v637
  %v658 = vmul.f32 %v638, %v638
  %v659 = vmul.f32 %v639, %v639
  %v660 = vmul.f32 %v640, %v640
  %v661 = vmul.f32 %v641, %v641
  %v662 = vmul.f32 %v642, %v642
  %v663 = vmul.f32 %v643, %v643
  %v664 = vmul.f32 %v644, %v644
  %v665 = vmul.f32 %v645, %v645
  %v666 = vmul.f32 %v646, %v646
  %v667 = vmul.f32 %v647, %v647
  %v668 = vmul.f32 %v648, %v648
  %v669 = vmul.f32 %v649, %v649
  %v670 = vsel %vm91, %v650, 0.0
  %671 = vadd.xlane.f32.xlu0 %v670
  %v672 = vpop.xlane.xlu0 %671
  %v673 = vsel %vm91, %v651, 0.0
  %674 = vadd.xlane.f32.xlu0 %v673
  %v675 = vpop.xlane.xlu0 %674
  %v676 = vsel %vm91, %v652, 0.0
  %677 = vadd.xlane.f32.xlu0 %v676
  %v678 = vpop.xlane.xlu0 %677
  %v679 = vsel %vm91, %v653, 0.0
  %680 = vadd.xlane.f32.xlu0 %v679
  %v681 = vpop.xlane.xlu0 %680
  %v682 = vsel %vm95, %v654, 0.0
  %683 = vadd.xlane.f32.xlu0 %v682
  %v684 = vpop.xlane.xlu0 %683
  %v685 = vsel %vm91, %v655, 0.0
  %686 = vadd.xlane.f32.xlu0 %v685
  %v687 = vpop.xlane.xlu0 %686
  %v688 = vsel %vm91, %v656, 0.0
  %689 = vadd.xlane.f32.xlu0 %v688
  %v690 = vpop.xlane.xlu0 %689
  %v691 = vsel %vm91, %v657, 0.0
  %692 = vadd.xlane.f32.xlu0 %v691
  %v693 = vpop.xlane.xlu0 %692
  %v694 = vsel %vm91, %v658, 0.0
  %695 = vadd.xlane.f32.xlu0 %v694
  %v696 = vpop.xlane.xlu0 %695
  %v697 = vsel %vm95, %v659, 0.0
  %698 = vadd.xlane.f32.xlu0 %v697
  %v699 = vpop.xlane.xlu0 %698
  %v700 = vsel %vm91, %v660, 0.0
  %701 = vadd.xlane.f32.xlu0 %v700
  %v702 = vpop.xlane.xlu0 %701
  %v703 = vsel %vm91, %v661, 0.0
  %704 = vadd.xlane.f32.xlu0 %v703
  %v705 = vpop.xlane.xlu0 %704
  %v706 = vsel %vm91, %v662, 0.0
  %707 = vadd.xlane.f32.xlu0 %v706
  %v708 = vpop.xlane.xlu0 %707
  %v709 = vsel %vm91, %v663, 0.0
  %710 = vadd.xlane.f32.xlu0 %v709
  %v711 = vpop.xlane.xlu0 %710
  %v712 = vsel %vm95, %v664, 0.0
  %713 = vadd.xlane.f32.xlu0 %v712
  %v714 = vpop.xlane.xlu0 %713
  %v715 = vsel %vm91, %v665, 0.0
  %716 = vadd.xlane.f32.xlu0 %v715
  %v717 = vpop.xlane.xlu0 %716
  %v718 = vsel %vm91, %v666, 0.0
  %719 = vadd.xlane.f32.xlu0 %v718
  %v720 = vpop.xlane.xlu0 %719
  %v721 = vsel %vm91, %v667, 0.0
  %722 = vadd.xlane.f32.xlu0 %v721
  %v723 = vpop.xlane.xlu0 %722
  %v724 = vsel %vm91, %v668, 0.0
  %725 = vadd.xlane.f32.xlu0 %v724
  %v726 = vpop.xlane.xlu0 %725
  %v727 = vsel %vm95, %v669, 0.0
  %728 = vadd.xlane.f32.xlu0 %v727
  %v729 = vpop.xlane.xlu0 %728
  %v730 = vmul.f32 %v672, %v117
  %v731 = vmul.f32 %v675, %v117
  %v732 = vmul.f32 %v678, %v117
  %v733 = vmul.f32 %v681, %v117
  %v734 = vmul.f32 %v684, %v117
  %v735 = vmul.f32 %v687, %v117
  %v736 = vmul.f32 %v690, %v117
  %v737 = vmul.f32 %v693, %v117
  %v738 = vmul.f32 %v696, %v117
  %v739 = vmul.f32 %v699, %v117
  %v740 = vmul.f32 %v702, %v117
  %v741 = vmul.f32 %v705, %v117
  %v742 = vmul.f32 %v708, %v117
  %v743 = vmul.f32 %v711, %v117
  %v744 = vmul.f32 %v714, %v117
  %v745 = vmul.f32 %v717, %v117
  %v746 = vmul.f32 %v720, %v117
  %v747 = vmul.f32 %v723, %v117
  %v748 = vmul.f32 %v726, %v117
  %v749 = vmul.f32 %v729, %v117
  %v750 = vadd.f32 %v730, 1e-05
  %v751 = vadd.f32 %v731, 1e-05
  %v752 = vadd.f32 %v732, 1e-05
  %v753 = vadd.f32 %v733, 1e-05
  %v754 = vadd.f32 %v734, 1e-05
  %v755 = vadd.f32 %v735, 1e-05
  %v756 = vadd.f32 %v736, 1e-05
  %v757 = vadd.f32 %v737, 1e-05
  %v758 = vadd.f32 %v738, 1e-05
  %v759 = vadd.f32 %v739, 1e-05
  %v760 = vadd.f32 %v740, 1e-05
  %v761 = vadd.f32 %v741, 1e-05
  %v762 = vadd.f32 %v742, 1e-05
  %v763 = vadd.f32 %v743, 1e-05
  %v764 = vadd.f32 %v744, 1e-05
  %v765 = vadd.f32 %v745, 1e-05
  %v766 = vadd.f32 %v746, 1e-05
  %v767 = vadd.f32 %v747, 1e-05
  %v768 = vadd.f32 %v748, 1e-05
  %v769 = vadd.f32 %v749, 1e-05
  %v770 = vrsqrt.pop %v750
  %v771 = vrsqrt.pop %v751
  %v772 = vrsqrt.pop %v752
  %v773 = vrsqrt.pop %v753
  %v774 = vrsqrt.pop %v754
  %v775 = vrsqrt.pop %v755
  %v776 = vrsqrt.pop %v756
  %v777 = vrsqrt.pop %v757
  %v778 = vrsqrt.pop %v758
  %v779 = vrsqrt.pop %v759
  %v780 = vrsqrt.pop %v760
  %v781 = vrsqrt.pop %v761
  %v782 = vrsqrt.pop %v762
  %v783 = vrsqrt.pop %v763
  %v784 = vrsqrt.pop %v764
  %v785 = vrsqrt.pop %v765
  %v786 = vrsqrt.pop %v766
  %v787 = vrsqrt.pop %v767
  %v788 = vrsqrt.pop %v768
  %v789 = vrsqrt.pop %v769
  %v790 = vmul.f32 %v630, %v770
  %v791 = vmul.f32 %v631, %v771
  %v792 = vmul.f32 %v632, %v772
  %v793 = vmul.f32 %v633, %v773
  %v794 = vmul.f32 %v634, %v774
  %v795 = vmul.f32 %v635, %v775
  %v796 = vmul.f32 %v636, %v776
  %v797 = vmul.f32 %v637, %v777
  %v798 = vmul.f32 %v638, %v778
  %v799 = vmul.f32 %v639, %v779
  %v800 = vmul.f32 %v640, %v780
  %v801 = vmul.f32 %v641, %v781
  %v802 = vmul.f32 %v642, %v782
  %v803 = vmul.f32 %v643, %v783
  %v804 = vmul.f32 %v644, %v784
  %v805 = vmul.f32 %v645, %v785
  %v806 = vmul.f32 %v646, %v786
  %v807 = vmul.f32 %v647, %v787
  %v808 = vmul.f32 %v648, %v788
  %v809 = vmul.f32 %v649, %v789
  %v811 = vlaneseq
  %v812 = vshrl.u32 %v811, 7
  %v813 = vsub.s32 0, %v812
  %v814 = vrot.slane %v548, %v813
  %v816 = vmul.f32 %v790, %v814
  %v817 = vmul.f32 %v791, %v814
  %v818 = vmul.f32 %v792, %v814
  %v819 = vmul.f32 %v793, %v814
  %v820 = vmul.f32 %v794, %v814
  %v821 = vmul.f32 %v795, %v814
  %v822 = vmul.f32 %v796, %v814
  %v823 = vmul.f32 %v797, %v814
  %v824 = vmul.f32 %v798, %v814
  %v825 = vmul.f32 %v799, %v814
  %v826 = vmul.f32 %v800, %v814
  %v827 = vmul.f32 %v801, %v814
  %v828 = vmul.f32 %v802, %v814
  %v829 = vmul.f32 %v803, %v814
  %v830 = vmul.f32 %v804, %v814
  %v831 = vmul.f32 %v805, %v814
  %v832 = vmul.f32 %v806, %v814
  %v833 = vmul.f32 %v807, %v814
  %v834 = vmul.f32 %v808, %v814
  %v835 = vmul.f32 %v809, %v814
  %v837 = vlaneseq
  %v838 = vshrl.u32 %v837, 7
  %v839 = vsub.s32 0, %v838
  %v840 = vrot.slane %v549, %v839
  %v842 = vadd.f32 %v816, %v840
  %v843 = vadd.f32 %v817, %v840
  %v844 = vadd.f32 %v818, %v840
  %v845 = vadd.f32 %v819, %v840
  %v846 = vadd.f32 %v820, %v840
  %v847 = vadd.f32 %v821, %v840
  %v848 = vadd.f32 %v822, %v840
  %v849 = vadd.f32 %v823, %v840
  %v850 = vadd.f32 %v824, %v840
  %v851 = vadd.f32 %v825, %v840
  %v852 = vadd.f32 %v826, %v840
  %v853 = vadd.f32 %v827, %v840
  %v854 = vadd.f32 %v828, %v840
  %v855 = vadd.f32 %v829, %v840
  %v856 = vadd.f32 %v830, %v840
  %v857 = vadd.f32 %v831, %v840
  %v858 = vadd.f32 %v832, %v840
  %v859 = vadd.f32 %v833, %v840
  %v860 = vadd.f32 %v834, %v840
  %v861 = vadd.f32 %v835, %v840
  %v863 = vsel %vm91, %v226, 0
  %v866 = vsel %vm91, %v227, 0
  %v869 = vsel %vm91, %v528, 0
  %v872 = vsel %vm91, %v529, 0
  %v875 = vsel %vm91, %v530, 0
  %v878 = vsel %vm91, %v531, 0
  %v881 = vsel %vm91, %v532, 0
  %883 = vmatprep.subr.mxu0 0.0
  %884 = vmatpush1.xpose.msra.mxu0 0.0
  %885 = vmatprep.subr.mxu0 0.0
  %886 = vmatpush1.xpose.msra.mxu0 0.0
  %887 = vmatprep.subr.mxu0 0.0
  %888 = vmatpush1.xpose.msra.mxu0 0.0
  %889 = vmatprep.subr.mxu0 0.0
  %890 = vmatpush1.xpose.msra.mxu0 0.0
  %891 = vmatprep.subr.mxu0 0.0
  %892 = vmatpush1.xpose.msra.mxu0 0.0
  %893 = vmatprep.subr.mxu0 0.0
  %894 = vmatpush1.xpose.msra.mxu0 0.0
  %895 = vmatprep.subr.mxu0 0.0
  %896 = vmatpush1.xpose.msra.mxu0 0.0
  %897 = vmatprep.subr.mxu0 0.0
  %898 = vmatpush1.xpose.msra.mxu0 0.0
  %899 = vmatprep.subr.mxu0 0.0
  %900 = vmatpush1.xpose.msra.mxu0 0.0
  %901 = vmatprep.subr.mxu0 0.0
  %902 = vmatpush1.xpose.msra.mxu0 0.0
  %903 = vmatprep.subr.mxu0 0.0
  %904 = vmatpush1.xpose.msra.mxu0 0.0
  %905 = vmatprep.subr.mxu0 0.0
  %906 = vmatpush1.xpose.msra.mxu0 %v881
  %907 = vmatprep.subr.mxu0 0.0
  %908 = vmatpush1.xpose.msra.mxu0 %v878
  %909 = vmatprep.subr.mxu0 0.0
  %910 = vmatpush1.xpose.msra.mxu0 %v875
  %911 = vmatprep.subr.mxu0 0.0
  %912 = vmatpush1.xpose.msra.mxu0 %v872
  %913 = vmatprep.subr.mxu0 0.0
  %914 = vmatpush1.xpose.msra.mxu0 %v869
  %915 = vmatprep.subr.mxu0 0.0
  %916 = vmatpush2.xpose.msra.mxu0 0.0
  %917 = vmatprep.subr.mxu0 0.0
  %918 = vmatpush2.xpose.msra.mxu0 0.0
  %919 = vmatprep.subr.mxu0 0.0
  %920 = vmatpush2.xpose.msra.mxu0 0.0
  %921 = vmatprep.subr.mxu0 0.0
  %922 = vmatpush2.xpose.msra.mxu0 0.0
  %923 = vmatprep.subr.mxu0 0.0
  %924 = vmatpush2.xpose.msra.mxu0 0.0
  %925 = vmatprep.subr.mxu0 0.0
  %926 = vmatpush2.xpose.msra.mxu0 0.0
  %927 = vmatprep.subr.mxu0 0.0
  %928 = vmatpush2.xpose.msra.mxu0 0.0
  %929 = vmatprep.subr.mxu0 0.0
  %930 = vmatpush2.xpose.msra.mxu0 0.0
  %931 = vmatprep.subr.mxu0 0.0
  %932 = vmatpush2.xpose.msra.mxu0 0.0
  %933 = vmatprep.subr.mxu0 0.0
  %934 = vmatpush2.xpose.msra.mxu0 0.0
  %935 = vmatprep.subr.mxu0 0.0
  %936 = vmatpush2.xpose.msra.mxu0 0.0
  %937 = vmatprep.subr.mxu0 0.0
  %938 = vmatpush2.xpose.msra.mxu0 0.0
  %939 = vmatprep.subr.mxu0 0.0
  %940 = vmatpush2.xpose.msra.mxu0 0.0
  %941 = vmatprep.subr.mxu0 0.0
  %942 = vmatpush2.xpose.msra.mxu0 0.0
  %943 = vmatprep.subr.mxu0 0.0
  %944 = vmatpush2.xpose.msra.mxu0 0.0
  %945 = vmatprep.subr.mxu0 0.0
  %946 = vmatpush2.xpose.msra.mxu0 0.0
  %947 = vmatprep.mubr.f32.mxu0 0.0
  %948 = vmatmul.mubr.f32.gmra.mxu0 %v863
  %v949 = vpop.f32.mrf.mxu0
  %v950 = vadd.f32 0.0, %v949
  %v951 = vpop.f32.mrf.mxu0
  %952 = vmatprep.mubr.f32.mxu0 0.0
  %953 = vmatmul.mubr.f32.gmra.mxu0 %v866
  %v954 = vpop.f32.mrf.mxu0
  %v955 = vadd.f32 0.0, %v954
  %v956 = vpop.f32.mrf.mxu0
  %957 = vdwg.mxu0
  %v959 = vsel %vm91, %v228, 0
  %v962 = vsel %vm91, %v229, 0
  %v965 = vsel %vm91, %v533, 0
  %v968 = vsel %vm91, %v534, 0
  %v971 = vsel %vm91, %v535, 0
  %v974 = vsel %vm91, %v536, 0
  %v977 = vsel %vm91, %v537, 0
  %979 = vmatprep.subr.mxu0 0.0
  %980 = vmatpush1.xpose.msra.mxu0 0.0
  %981 = vmatprep.subr.mxu0 0.0
  %982 = vmatpush1.xpose.msra.mxu0 0.0
  %983 = vmatprep.subr.mxu0 0.0
  %984 = vmatpush1.xpose.msra.mxu0 0.0
  %985 = vmatprep.subr.mxu0 0.0
  %986 = vmatpush1.xpose.msra.mxu0 0.0
  %987 = vmatprep.subr.mxu0 0.0
  %988 = vmatpush1.xpose.msra.mxu0 0.0
  %989 = vmatprep.subr.mxu0 0.0
  %990 = vmatpush1.xpose.msra.mxu0 0.0
  %991 = vmatprep.subr.mxu0 0.0
  %992 = vmatpush1.xpose.msra.mxu0 0.0
  %993 = vmatprep.subr.mxu0 0.0
  %994 = vmatpush1.xpose.msra.mxu0 0.0
  %995 = vmatprep.subr.mxu0 0.0
  %996 = vmatpush1.xpose.msra.mxu0 0.0
  %997 = vmatprep.subr.mxu0 0.0
  %998 = vmatpush1.xpose.msra.mxu0 0.0
  %999 = vmatprep.subr.mxu0 0.0
  %1000 = vmatpush1.xpose.msra.mxu0 0.0
  %1001 = vmatprep.subr.mxu0 0.0
  %1002 = vmatpush1.xpose.msra.mxu0 %v977
  %1003 = vmatprep.subr.mxu0 0.0
  %1004 = vmatpush1.xpose.msra.mxu0 %v974
  %1005 = vmatprep.subr.mxu0 0.0
  %1006 = vmatpush1.xpose.msra.mxu0 %v971
  %1007 = vmatprep.subr.mxu0 0.0
  %1008 = vmatpush1.xpose.msra.mxu0 %v968
  %1009 = vmatprep.subr.mxu0 0.0
  %1010 = vmatpush1.xpose.msra.mxu0 %v965
  %1011 = vmatprep.subr.mxu0 0.0
  %1012 = vmatpush2.xpose.msra.mxu0 0.0
  %1013 = vmatprep.subr.mxu0 0.0
  %1014 = vmatpush2.xpose.msra.mxu0 0.0
  %1015 = vmatprep.subr.mxu0 0.0
  %1016 = vmatpush2.xpose.msra.mxu0 0.0
  %1017 = vmatprep.subr.mxu0 0.0
  %1018 = vmatpush2.xpose.msra.mxu0 0.0
  %1019 = vmatprep.subr.mxu0 0.0
  %1020 = vmatpush2.xpose.msra.mxu0 0.0
  %1021 = vmatprep.subr.mxu0 0.0
  %1022 = vmatpush2.xpose.msra.mxu0 0.0
  %1023 = vmatprep.subr.mxu0 0.0
  %1024 = vmatpush2.xpose.msra.mxu0 0.0
  %1025 = vmatprep.subr.mxu0 0.0
  %1026 = vmatpush2.xpose.msra.mxu0 0.0
  %1027 = vmatprep.subr.mxu0 0.0
  %1028 = vmatpush2.xpose.msra.mxu0 0.0
  %1029 = vmatprep.subr.mxu0 0.0
  %1030 = vmatpush2.xpose.msra.mxu0 0.0
  %1031 = vmatprep.subr.mxu0 0.0
  %1032 = vmatpush2.xpose.msra.mxu0 0.0
  %1033 = vmatprep.subr.mxu0 0.0
  %1034 = vmatpush2.xpose.msra.mxu0 0.0
  %1035 = vmatprep.subr.mxu0 0.0
  %1036 = vmatpush2.xpose.msra.mxu0 0.0
  %1037 = vmatprep.subr.mxu0 0.0
  %1038 = vmatpush2.xpose.msra.mxu0 0.0
  %1039 = vmatprep.subr.mxu0 0.0
  %1040 = vmatpush2.xpose.msra.mxu0 0.0
  %1041 = vmatprep.subr.mxu0 0.0
  %1042 = vmatpush2.xpose.msra.mxu0 0.0
  %1043 = vmatprep.mubr.f32.mxu0 0.0
  %1044 = vmatmul.mubr.f32.gmra.mxu0 %v959
  %v1045 = vpop.f32.mrf.mxu0
  %v1046 = vadd.f32 0.0, %v1045
  %v1047 = vpop.f32.mrf.mxu0
  %1048 = vmatprep.mubr.f32.mxu0 0.0
  %1049 = vmatmul.mubr.f32.gmra.mxu0 %v962
  %v1050 = vpop.f32.mrf.mxu0
  %v1051 = vadd.f32 0.0, %v1050
  %v1052 = vpop.f32.mrf.mxu0
  %1053 = vdwg.mxu0
  %v1055 = vsel %vm91, %v230, 0
  %v1058 = vsel %vm91, %v231, 0
  %v1061 = vsel %vm91, %v538, 0
  %v1064 = vsel %vm91, %v539, 0
  %v1067 = vsel %vm91, %v540, 0
  %v1070 = vsel %vm91, %v541, 0
  %v1073 = vsel %vm91, %v542, 0
  %1075 = vmatprep.subr.mxu0 0.0
  %1076 = vmatpush1.xpose.msra.mxu0 0.0
  %1077 = vmatprep.subr.mxu0 0.0
  %1078 = vmatpush1.xpose.msra.mxu0 0.0
  %1079 = vmatprep.subr.mxu0 0.0
  %1080 = vmatpush1.xpose.msra.mxu0 0.0
  %1081 = vmatprep.subr.mxu0 0.0
  %1082 = vmatpush1.xpose.msra.mxu0 0.0
  %1083 = vmatprep.subr.mxu0 0.0
  %1084 = vmatpush1.xpose.msra.mxu0 0.0
  %1085 = vmatprep.subr.mxu0 0.0
  %1086 = vmatpush1.xpose.msra.mxu0 0.0
  %1087 = vmatprep.subr.mxu0 0.0
  %1088 = vmatpush1.xpose.msra.mxu0 0.0
  %1089 = vmatprep.subr.mxu0 0.0
  %1090 = vmatpush1.xpose.msra.mxu0 0.0
  %1091 = vmatprep.subr.mxu0 0.0
  %1092 = vmatpush1.xpose.msra.mxu0 0.0
  %1093 = vmatprep.subr.mxu0 0.0
  %1094 = vmatpush1.xpose.msra.mxu0 0.0
  %1095 = vmatprep.subr.mxu0 0.0
  %1096 = vmatpush1.xpose.msra.mxu0 0.0
  %1097 = vmatprep.subr.mxu0 0.0
  %1098 = vmatpush1.xpose.msra.mxu0 %v1073
  %1099 = vmatprep.subr.mxu0 0.0
  %1100 = vmatpush1.xpose.msra.mxu0 %v1070
  %1101 = vmatprep.subr.mxu0 0.0
  %1102 = vmatpush1.xpose.msra.mxu0 %v1067
  %1103 = vmatprep.subr.mxu0 0.0
  %1104 = vmatpush1.xpose.msra.mxu0 %v1064
  %1105 = vmatprep.subr.mxu0 0.0
  %1106 = vmatpush1.xpose.msra.mxu0 %v1061
  %1107 = vmatprep.subr.mxu0 0.0
  %1108 = vmatpush2.xpose.msra.mxu0 0.0
  %1109 = vmatprep.subr.mxu0 0.0
  %1110 = vmatpush2.xpose.msra.mxu0 0.0
  %1111 = vmatprep.subr.mxu0 0.0
  %1112 = vmatpush2.xpose.msra.mxu0 0.0
  %1113 = vmatprep.subr.mxu0 0.0
  %1114 = vmatpush2.xpose.msra.mxu0 0.0
  %1115 = vmatprep.subr.mxu0 0.0
  %1116 = vmatpush2.xpose.msra.mxu0 0.0
  %1117 = vmatprep.subr.mxu0 0.0
  %1118 = vmatpush2.xpose.msra.mxu0 0.0
  %1119 = vmatprep.subr.mxu0 0.0
  %1120 = vmatpush2.xpose.msra.mxu0 0.0
  %1121 = vmatprep.subr.mxu0 0.0
  %1122 = vmatpush2.xpose.msra.mxu0 0.0
  %1123 = vmatprep.subr.mxu0 0.0
  %1124 = vmatpush2.xpose.msra.mxu0 0.0
  %1125 = vmatprep.subr.mxu0 0.0
  %1126 = vmatpush2.xpose.msra.mxu0 0.0
  %1127 = vmatprep.subr.mxu0 0.0
  %1128 = vmatpush2.xpose.msra.mxu0 0.0
  %1129 = vmatprep.subr.mxu0 0.0
  %1130 = vmatpush2.xpose.msra.mxu0 0.0
  %1131 = vmatprep.subr.mxu0 0.0
  %1132 = vmatpush2.xpose.msra.mxu0 0.0
  %1133 = vmatprep.subr.mxu0 0.0
  %1134 = vmatpush2.xpose.msra.mxu0 0.0
  %1135 = vmatprep.subr.mxu0 0.0
  %1136 = vmatpush2.xpose.msra.mxu0 0.0
  %1137 = vmatprep.subr.mxu0 0.0
  %1138 = vmatpush2.xpose.msra.mxu0 0.0
  %1139 = vmatprep.mubr.f32.mxu0 0.0
  %1140 = vmatmul.mubr.f32.gmra.mxu0 %v1055
  %v1141 = vpop.f32.mrf.mxu0
  %v1142 = vadd.f32 0.0, %v1141
  %v1143 = vpop.f32.mrf.mxu0
  %1144 = vmatprep.mubr.f32.mxu0 0.0
  %1145 = vmatmul.mubr.f32.gmra.mxu0 %v1058
  %v1146 = vpop.f32.mrf.mxu0
  %v1147 = vadd.f32 0.0, %v1146
  %v1148 = vpop.f32.mrf.mxu0
  %1149 = vdwg.mxu0
  %v1151 = vsel %vm91, %v232, 0
  %v1154 = vsel %vm91, %v233, 0
  %v1157 = vsel %vm91, %v543, 0
  %v1160 = vsel %vm91, %v544, 0
  %v1163 = vsel %vm91, %v545, 0
  %v1166 = vsel %vm91, %v546, 0
  %v1169 = vsel %vm91, %v547, 0
  %1171 = vmatprep.subr.mxu0 0.0
  %1172 = vmatpush1.xpose.msra.mxu0 0.0
  %1173 = vmatprep.subr.mxu0 0.0
  %1174 = vmatpush1.xpose.msra.mxu0 0.0
  %1175 = vmatprep.subr.mxu0 0.0
  %1176 = vmatpush1.xpose.msra.mxu0 0.0
  %1177 = vmatprep.subr.mxu0 0.0
  %1178 = vmatpush1.xpose.msra.mxu0 0.0
  %1179 = vmatprep.subr.mxu0 0.0
  %1180 = vmatpush1.xpose.msra.mxu0 0.0
  %1181 = vmatprep.subr.mxu0 0.0
  %1182 = vmatpush1.xpose.msra.mxu0 0.0
  %1183 = vmatprep.subr.mxu0 0.0
  %1184 = vmatpush1.xpose.msra.mxu0 0.0
  %1185 = vmatprep.subr.mxu0 0.0
  %1186 = vmatpush1.xpose.msra.mxu0 0.0
  %1187 = vmatprep.subr.mxu0 0.0
  %1188 = vmatpush1.xpose.msra.mxu0 0.0
  %1189 = vmatprep.subr.mxu0 0.0
  %1190 = vmatpush1.xpose.msra.mxu0 0.0
  %1191 = vmatprep.subr.mxu0 0.0
  %1192 = vmatpush1.xpose.msra.mxu0 0.0
  %1193 = vmatprep.subr.mxu0 0.0
  %1194 = vmatpush1.xpose.msra.mxu0 %v1169
  %1195 = vmatprep.subr.mxu0 0.0
  %1196 = vmatpush1.xpose.msra.mxu0 %v1166
  %1197 = vmatprep.subr.mxu0 0.0
  %1198 = vmatpush1.xpose.msra.mxu0 %v1163
  %1199 = vmatprep.subr.mxu0 0.0
  %1200 = vmatpush1.xpose.msra.mxu0 %v1160
  %1201 = vmatprep.subr.mxu0 0.0
  %1202 = vmatpush1.xpose.msra.mxu0 %v1157
  %1203 = vmatprep.subr.mxu0 0.0
  %1204 = vmatpush2.xpose.msra.mxu0 0.0
  %1205 = vmatprep.subr.mxu0 0.0
  %1206 = vmatpush2.xpose.msra.mxu0 0.0
  %1207 = vmatprep.subr.mxu0 0.0
  %1208 = vmatpush2.xpose.msra.mxu0 0.0
  %1209 = vmatprep.subr.mxu0 0.0
  %1210 = vmatpush2.xpose.msra.mxu0 0.0
  %1211 = vmatprep.subr.mxu0 0.0
  %1212 = vmatpush2.xpose.msra.mxu0 0.0
  %1213 = vmatprep.subr.mxu0 0.0
  %1214 = vmatpush2.xpose.msra.mxu0 0.0
  %1215 = vmatprep.subr.mxu0 0.0
  %1216 = vmatpush2.xpose.msra.mxu0 0.0
  %1217 = vmatprep.subr.mxu0 0.0
  %1218 = vmatpush2.xpose.msra.mxu0 0.0
  %1219 = vmatprep.subr.mxu0 0.0
  %1220 = vmatpush2.xpose.msra.mxu0 0.0
  %1221 = vmatprep.subr.mxu0 0.0
  %1222 = vmatpush2.xpose.msra.mxu0 0.0
  %1223 = vmatprep.subr.mxu0 0.0
  %1224 = vmatpush2.xpose.msra.mxu0 0.0
  %1225 = vmatprep.subr.mxu0 0.0
  %1226 = vmatpush2.xpose.msra.mxu0 0.0
  %1227 = vmatprep.subr.mxu0 0.0
  %1228 = vmatpush2.xpose.msra.mxu0 0.0
  %1229 = vmatprep.subr.mxu0 0.0
  %1230 = vmatpush2.xpose.msra.mxu0 0.0
  %1231 = vmatprep.subr.mxu0 0.0
  %1232 = vmatpush2.xpose.msra.mxu0 0.0
  %1233 = vmatprep.subr.mxu0 0.0
  %1234 = vmatpush2.xpose.msra.mxu0 0.0
  %1235 = vmatprep.mubr.f32.mxu0 0.0
  %1236 = vmatmul.mubr.f32.gmra.mxu0 %v1151
  %v1237 = vpop.f32.mrf.mxu0
  %v1238 = vadd.f32 0.0, %v1237
  %v1239 = vpop.f32.mrf.mxu0
  %1240 = vmatprep.mubr.f32.mxu0 0.0
  %1241 = vmatmul.mubr.f32.gmra.mxu0 %v1154
  %v1242 = vpop.f32.mrf.mxu0
  %v1243 = vadd.f32 0.0, %v1242
  %v1244 = vpop.f32.mrf.mxu0
  %1245 = vdwg.mxu0
  %vm1246 = vcmask 269312
  %v1247 = vsel %vm1246, %v950, -inf
  %1248 = vmax.xlane.f32.xlu0 %v1247
  %v1249 = vpop.xlane.xlu0 %1248
  %vm1250 = vcmask 262144
  %v1251 = vsel %vm1250, %v955, -inf
  %1252 = vmax.xlane.f32.xlu0 %v1251
  %v1253 = vpop.xlane.xlu0 %1252
  %v1254 = vsel %vm1246, %v1046, -inf
  %1255 = vmax.xlane.f32.xlu0 %v1254
  %v1256 = vpop.xlane.xlu0 %1255
  %v1257 = vsel %vm1250, %v1051, -inf
  %1258 = vmax.xlane.f32.xlu0 %v1257
  %v1259 = vpop.xlane.xlu0 %1258
  %v1260 = vsel %vm1246, %v1142, -inf
  %1261 = vmax.xlane.f32.xlu0 %v1260
  %v1262 = vpop.xlane.xlu0 %1261
  %v1263 = vsel %vm1250, %v1147, -inf
  %1264 = vmax.xlane.f32.xlu0 %v1263
  %v1265 = vpop.xlane.xlu0 %1264
  %v1266 = vsel %vm1246, %v1238, -inf
  %1267 = vmax.xlane.f32.xlu0 %v1266
  %v1268 = vpop.xlane.xlu0 %1267
  %v1269 = vsel %vm1250, %v1243, -inf
  %1270 = vmax.xlane.f32.xlu0 %v1269
  %v1271 = vpop.xlane.xlu0 %1270
  %v1272 = vsub.f32 %v950, %v1249
  %v1273 = vsub.f32 %v955, %v1253
  %v1274 = vsub.f32 %v1046, %v1256
  %v1275 = vsub.f32 %v1051, %v1259
  %v1276 = vsub.f32 %v1142, %v1262
  %v1277 = vsub.f32 %v1147, %v1265
  %v1278 = vsub.f32 %v1238, %v1268
  %v1279 = vsub.f32 %v1243, %v1271
  %v1280 = vmul.f32 %v1272, 1.442695
  %v1281 = vpow.pop %v1280
  %v1282 = vmul.f32 %v1273, 1.442695
  %v1283 = vpow.pop %v1282
  %v1284 = vmul.f32 %v1274, 1.442695
  %v1285 = vpow.pop %v1284
  %v1286 = vmul.f32 %v1275, 1.442695
  %v1287 = vpow.pop %v1286
  %v1288 = vmul.f32 %v1276, 1.442695
  %v1289 = vpow.pop %v1288
  %v1290 = vmul.f32 %v1277, 1.442695
  %v1291 = vpow.pop %v1290
  %v1292 = vmul.f32 %v1278, 1.442695
  %v1293 = vpow.pop %v1292
  %v1294 = vmul.f32 %v1279, 1.442695
  %v1295 = vpow.pop %v1294
  %v1296 = vsel %vm1246, %v1281, 0.0
  %1297 = vadd.xlane.f32.xlu0 %v1296
  %v1298 = vpop.xlane.xlu0 %1297
  %v1299 = vsel %vm1250, %v1283, 0.0
  %1300 = vadd.xlane.f32.xlu0 %v1299
  %v1301 = vpop.xlane.xlu0 %1300
  %v1302 = vsel %vm1246, %v1285, 0.0
  %1303 = vadd.xlane.f32.xlu0 %v1302
  %v1304 = vpop.xlane.xlu0 %1303
  %v1305 = vsel %vm1250, %v1287, 0.0
  %1306 = vadd.xlane.f32.xlu0 %v1305
  %v1307 = vpop.xlane.xlu0 %1306
  %v1308 = vsel %vm1246, %v1289, 0.0
  %1309 = vadd.xlane.f32.xlu0 %v1308
  %v1310 = vpop.xlane.xlu0 %1309
  %v1311 = vsel %vm1250, %v1291, 0.0
  %1312 = vadd.xlane.f32.xlu0 %v1311
  %v1313 = vpop.xlane.xlu0 %1312
  %v1314 = vsel %vm1246, %v1293, 0.0
  %1315 = vadd.xlane.f32.xlu0 %v1314
  %v1316 = vpop.xlane.xlu0 %1315
  %v1317 = vsel %vm1250, %v1295, 0.0
  %1318 = vadd.xlane.f32.xlu0 %v1317
  %v1319 = vpop.xlane.xlu0 %1318
  %v1320 = vrcp.pop %v1298
  %v1321 = vrcp.pop %v1301
  %v1322 = vrcp.pop %v1304
  %v1323 = vrcp.pop %v1307
  %v1324 = vrcp.pop %v1310
  %v1325 = vrcp.pop %v1313
  %v1326 = vrcp.pop %v1316
  %v1327 = vrcp.pop %v1319
  %v1328 = vmul.f32 %v1281, %v1320
  %v1329 = vmul.f32 %v1283, %v1321
  %v1330 = vmul.f32 %v1285, %v1322
  %v1331 = vmul.f32 %v1287, %v1323
  %v1332 = vmul.f32 %v1289, %v1324
  %v1333 = vmul.f32 %v1291, %v1325
  %v1334 = vmul.f32 %v1293, %v1326
  %v1335 = vmul.f32 %v1295, %v1327
  %v1337 = vsel %vm1246, %v1328, 0
  %v1340 = vsel %vm1246, %v1329, 0
  %vm1342 = vcmask 1040384
  %v1344 = vsel %vm1342, %v846, 0
  %1346 = vmatprep.subr.mxu0 0.0
  %1347 = vmatpush1.msra.mxu0 0.0
  %1348 = vmatprep.subr.mxu0 0.0
  %1349 = vmatpush1.msra.mxu0 0.0
  %1350 = vmatprep.subr.mxu0 0.0
  %1351 = vmatpush1.msra.mxu0 0.0
  %1352 = vmatprep.subr.mxu0 0.0
  %1353 = vmatpush1.msra.mxu0 0.0
  %1354 = vmatprep.subr.mxu0 0.0
  %1355 = vmatpush1.msra.mxu0 0.0
  %1356 = vmatprep.subr.mxu0 0.0
  %1357 = vmatpush1.msra.mxu0 0.0
  %1358 = vmatprep.subr.mxu0 0.0
  %1359 = vmatpush1.msra.mxu0 0.0
  %1360 = vmatprep.subr.mxu0 0.0
  %1361 = vmatpush1.msra.mxu0 0.0
  %1362 = vmatprep.subr.mxu0 0.0
  %1363 = vmatpush1.msra.mxu0 0.0
  %1364 = vmatprep.subr.mxu0 0.0
  %1365 = vmatpush1.msra.mxu0 0.0
  %1366 = vmatprep.subr.mxu0 0.0
  %1367 = vmatpush1.msra.mxu0 0.0
  %1368 = vmatprep.subr.mxu0 0.0
  %1369 = vmatpush1.msra.mxu0 %v1344
  %1370 = vmatprep.subr.mxu0 0.0
  %1371 = vmatpush1.msra.mxu0 %v845
  %1372 = vmatprep.subr.mxu0 0.0
  %1373 = vmatpush1.msra.mxu0 %v844
  %1374 = vmatprep.subr.mxu0 0.0
  %1375 = vmatpush1.msra.mxu0 %v843
  %1376 = vmatprep.subr.mxu0 0.0
  %1377 = vmatpush1.msra.mxu0 %v842
  %1378 = vmatprep.subr.mxu0 0.0
  %1379 = vmatpush2.msra.mxu0 0.0
  %1380 = vmatprep.subr.mxu0 0.0
  %1381 = vmatpush2.msra.mxu0 0.0
  %1382 = vmatprep.subr.mxu0 0.0
  %1383 = vmatpush2.msra.mxu0 0.0
  %1384 = vmatprep.subr.mxu0 0.0
  %1385 = vmatpush2.msra.mxu0 0.0
  %1386 = vmatprep.subr.mxu0 0.0
  %1387 = vmatpush2.msra.mxu0 0.0
  %1388 = vmatprep.subr.mxu0 0.0
  %1389 = vmatpush2.msra.mxu0 0.0
  %1390 = vmatprep.subr.mxu0 0.0
  %1391 = vmatpush2.msra.mxu0 0.0
  %1392 = vmatprep.subr.mxu0 0.0
  %1393 = vmatpush2.msra.mxu0 0.0
  %1394 = vmatprep.subr.mxu0 0.0
  %1395 = vmatpush2.msra.mxu0 0.0
  %1396 = vmatprep.subr.mxu0 0.0
  %1397 = vmatpush2.msra.mxu0 0.0
  %1398 = vmatprep.subr.mxu0 0.0
  %1399 = vmatpush2.msra.mxu0 0.0
  %1400 = vmatprep.subr.mxu0 0.0
  %1401 = vmatpush2.msra.mxu0 0.0
  %1402 = vmatprep.subr.mxu0 0.0
  %1403 = vmatpush2.msra.mxu0 0.0
  %1404 = vmatprep.subr.mxu0 0.0
  %1405 = vmatpush2.msra.mxu0 0.0
  %1406 = vmatprep.subr.mxu0 0.0
  %1407 = vmatpush2.msra.mxu0 0.0
  %1408 = vmatprep.subr.mxu0 0.0
  %1409 = vmatpush2.msra.mxu0 0.0
  %1410 = vmatprep.mubr.f32.mxu0 0.0
  %1411 = vmatmul.mubr.f32.gmra.mxu0 %v1337
  %v1412 = vpop.f32.mrf.mxu0
  %v1413 = vadd.f32 0.0, %v1412
  %v1414 = vpop.f32.mrf.mxu0
  %1415 = vmatprep.mubr.f32.mxu0 0.0
  %1416 = vmatmul.mubr.f32.gmra.mxu0 %v1340
  %v1417 = vpop.f32.mrf.mxu0
  %v1418 = vadd.f32 0.0, %v1417
  %v1419 = vpop.f32.mrf.mxu0
  %1420 = vdwg.mxu0
  %v1422 = vsel %vm1246, %v1330, 0
  %v1425 = vsel %vm1246, %v1331, 0
  %v1428 = vsel %vm1342, %v851, 0
  %1430 = vmatprep.subr.mxu0 0.0
  %1431 = vmatpush1.msra.mxu0 0.0
  %1432 = vmatprep.subr.mxu0 0.0
  %1433 = vmatpush1.msra.mxu0 0.0
  %1434 = vmatprep.subr.mxu0 0.0
  %1435 = vmatpush1.msra.mxu0 0.0
  %1436 = vmatprep.subr.mxu0 0.0
  %1437 = vmatpush1.msra.mxu0 0.0
  %1438 = vmatprep.subr.mxu0 0.0
  %1439 = vmatpush1.msra.mxu0 0.0
  %1440 = vmatprep.subr.mxu0 0.0
  %1441 = vmatpush1.msra.mxu0 0.0
  %1442 = vmatprep.subr.mxu0 0.0
  %1443 = vmatpush1.msra.mxu0 0.0
  %1444 = vmatprep.subr.mxu0 0.0
  %1445 = vmatpush1.msra.mxu0 0.0
  %1446 = vmatprep.subr.mxu0 0.0
  %1447 = vmatpush1.msra.mxu0 0.0
  %1448 = vmatprep.subr.mxu0 0.0
  %1449 = vmatpush1.msra.mxu0 0.0
  %1450 = vmatprep.subr.mxu0 0.0
  %1451 = vmatpush1.msra.mxu0 0.0
  %1452 = vmatprep.subr.mxu0 0.0
  %1453 = vmatpush1.msra.mxu0 %v1428
  %1454 = vmatprep.subr.mxu0 0.0
  %1455 = vmatpush1.msra.mxu0 %v850
  %1456 = vmatprep.subr.mxu0 0.0
  %1457 = vmatpush1.msra.mxu0 %v849
  %1458 = vmatprep.subr.mxu0 0.0
  %1459 = vmatpush1.msra.mxu0 %v848
  %1460 = vmatprep.subr.mxu0 0.0
  %1461 = vmatpush1.msra.mxu0 %v847
  %1462 = vmatprep.subr.mxu0 0.0
  %1463 = vmatpush2.msra.mxu0 0.0
  %1464 = vmatprep.subr.mxu0 0.0
  %1465 = vmatpush2.msra.mxu0 0.0
  %1466 = vmatprep.subr.mxu0 0.0
  %1467 = vmatpush2.msra.mxu0 0.0
  %1468 = vmatprep.subr.mxu0 0.0
  %1469 = vmatpush2.msra.mxu0 0.0
  %1470 = vmatprep.subr.mxu0 0.0
  %1471 = vmatpush2.msra.mxu0 0.0
  %1472 = vmatprep.subr.mxu0 0.0
  %1473 = vmatpush2.msra.mxu0 0.0
  %1474 = vmatprep.subr.mxu0 0.0
  %1475 = vmatpush2.msra.mxu0 0.0
  %1476 = vmatprep.subr.mxu0 0.0
  %1477 = vmatpush2.msra.mxu0 0.0
  %1478 = vmatprep.subr.mxu0 0.0
  %1479 = vmatpush2.msra.mxu0 0.0
  %1480 = vmatprep.subr.mxu0 0.0
  %1481 = vmatpush2.msra.mxu0 0.0
  %1482 = vmatprep.subr.mxu0 0.0
  %1483 = vmatpush2.msra.mxu0 0.0
  %1484 = vmatprep.subr.mxu0 0.0
  %1485 = vmatpush2.msra.mxu0 0.0
  %1486 = vmatprep.subr.mxu0 0.0
  %1487 = vmatpush2.msra.mxu0 0.0
  %1488 = vmatprep.subr.mxu0 0.0
  %1489 = vmatpush2.msra.mxu0 0.0
  %1490 = vmatprep.subr.mxu0 0.0
  %1491 = vmatpush2.msra.mxu0 0.0
  %1492 = vmatprep.subr.mxu0 0.0
  %1493 = vmatpush2.msra.mxu0 0.0
  %1494 = vmatprep.mubr.f32.mxu0 0.0
  %1495 = vmatmul.mubr.f32.gmra.mxu0 %v1422
  %v1496 = vpop.f32.mrf.mxu0
  %v1497 = vadd.f32 0.0, %v1496
  %v1498 = vpop.f32.mrf.mxu0
  %1499 = vmatprep.mubr.f32.mxu0 0.0
  %1500 = vmatmul.mubr.f32.gmra.mxu0 %v1425
  %v1501 = vpop.f32.mrf.mxu0
  %v1502 = vadd.f32 0.0, %v1501
  %v1503 = vpop.f32.mrf.mxu0
  %1504 = vdwg.mxu0
  %v1506 = vsel %vm1246, %v1332, 0
  %v1509 = vsel %vm1246, %v1333, 0
  %v1512 = vsel %vm1342, %v856, 0
  %1514 = vmatprep.subr.mxu0 0.0
  %1515 = vmatpush1.msra.mxu0 0.0
  %1516 = vmatprep.subr.mxu0 0.0
  %1517 = vmatpush1.msra.mxu0 0.0
  %1518 = vmatprep.subr.mxu0 0.0
  %1519 = vmatpush1.msra.mxu0 0.0
  %1520 = vmatprep.subr.mxu0 0.0
  %1521 = vmatpush1.msra.mxu0 0.0
  %1522 = vmatprep.subr.mxu0 0.0
  %1523 = vmatpush1.msra.mxu0 0.0
  %1524 = vmatprep.subr.mxu0 0.0
  %1525 = vmatpush1.msra.mxu0 0.0
  %1526 = vmatprep.subr.mxu0 0.0
  %1527 = vmatpush1.msra.mxu0 0.0
  %1528 = vmatprep.subr.mxu0 0.0
  %1529 = vmatpush1.msra.mxu0 0.0
  %1530 = vmatprep.subr.mxu0 0.0
  %1531 = vmatpush1.msra.mxu0 0.0
  %1532 = vmatprep.subr.mxu0 0.0
  %1533 = vmatpush1.msra.mxu0 0.0
  %1534 = vmatprep.subr.mxu0 0.0
  %1535 = vmatpush1.msra.mxu0 0.0
  %1536 = vmatprep.subr.mxu0 0.0
  %1537 = vmatpush1.msra.mxu0 %v1512
  %1538 = vmatprep.subr.mxu0 0.0
  %1539 = vmatpush1.msra.mxu0 %v855
  %1540 = vmatprep.subr.mxu0 0.0
  %1541 = vmatpush1.msra.mxu0 %v854
  %1542 = vmatprep.subr.mxu0 0.0
  %1543 = vmatpush1.msra.mxu0 %v853
  %1544 = vmatprep.subr.mxu0 0.0
  %1545 = vmatpush1.msra.mxu0 %v852
  %1546 = vmatprep.subr.mxu0 0.0
  %1547 = vmatpush2.msra.mxu0 0.0
  %1548 = vmatprep.subr.mxu0 0.0
  %1549 = vmatpush2.msra.mxu0 0.0
  %1550 = vmatprep.subr.mxu0 0.0
  %1551 = vmatpush2.msra.mxu0 0.0
  %1552 = vmatprep.subr.mxu0 0.0
  %1553 = vmatpush2.msra.mxu0 0.0
  %1554 = vmatprep.subr.mxu0 0.0
  %1555 = vmatpush2.msra.mxu0 0.0
  %1556 = vmatprep.subr.mxu0 0.0
  %1557 = vmatpush2.msra.mxu0 0.0
  %1558 = vmatprep.subr.mxu0 0.0
  %1559 = vmatpush2.msra.mxu0 0.0
  %1560 = vmatprep.subr.mxu0 0.0
  %1561 = vmatpush2.msra.mxu0 0.0
  %1562 = vmatprep.subr.mxu0 0.0
  %1563 = vmatpush2.msra.mxu0 0.0
  %1564 = vmatprep.subr.mxu0 0.0
  %1565 = vmatpush2.msra.mxu0 0.0
  %1566 = vmatprep.subr.mxu0 0.0
  %1567 = vmatpush2.msra.mxu0 0.0
  %1568 = vmatprep.subr.mxu0 0.0
  %1569 = vmatpush2.msra.mxu0 0.0
  %1570 = vmatprep.subr.mxu0 0.0
  %1571 = vmatpush2.msra.mxu0 0.0
  %1572 = vmatprep.subr.mxu0 0.0
  %1573 = vmatpush2.msra.mxu0 0.0
  %1574 = vmatprep.subr.mxu0 0.0
  %1575 = vmatpush2.msra.mxu0 0.0
  %1576 = vmatprep.subr.mxu0 0.0
  %1577 = vmatpush2.msra.mxu0 0.0
  %1578 = vmatprep.mubr.f32.mxu0 0.0
  %1579 = vmatmul.mubr.f32.gmra.mxu0 %v1506
  %v1580 = vpop.f32.mrf.mxu0
  %v1581 = vadd.f32 0.0, %v1580
  %v1582 = vpop.f32.mrf.mxu0
  %1583 = vmatprep.mubr.f32.mxu0 0.0
  %1584 = vmatmul.mubr.f32.gmra.mxu0 %v1509
  %v1585 = vpop.f32.mrf.mxu0
  %v1586 = vadd.f32 0.0, %v1585
  %v1587 = vpop.f32.mrf.mxu0
  %1588 = vdwg.mxu0
  %v1590 = vsel %vm1246, %v1334, 0
  %v1593 = vsel %vm1246, %v1335, 0
  %v1596 = vsel %vm1342, %v861, 0
  %1598 = vmatprep.subr.mxu0 0.0
  %1599 = vmatpush1.msra.mxu0 0.0
  %1600 = vmatprep.subr.mxu0 0.0
  %1601 = vmatpush1.msra.mxu0 0.0
  %1602 = vmatprep.subr.mxu0 0.0
  %1603 = vmatpush1.msra.mxu0 0.0
  %1604 = vmatprep.subr.mxu0 0.0
  %1605 = vmatpush1.msra.mxu0 0.0
  %1606 = vmatprep.subr.mxu0 0.0
  %1607 = vmatpush1.msra.mxu0 0.0
  %1608 = vmatprep.subr.mxu0 0.0
  %1609 = vmatpush1.msra.mxu0 0.0
  %1610 = vmatprep.subr.mxu0 0.0
  %1611 = vmatpush1.msra.mxu0 0.0
  %1612 = vmatprep.subr.mxu0 0.0
  %1613 = vmatpush1.msra.mxu0 0.0
  %1614 = vmatprep.subr.mxu0 0.0
  %1615 = vmatpush1.msra.mxu0 0.0
  %1616 = vmatprep.subr.mxu0 0.0
  %1617 = vmatpush1.msra.mxu0 0.0
  %1618 = vmatprep.subr.mxu0 0.0
  %1619 = vmatpush1.msra.mxu0 0.0
  %1620 = vmatprep.subr.mxu0 0.0
  %1621 = vmatpush1.msra.mxu0 %v1596
  %1622 = vmatprep.subr.mxu0 0.0
  %1623 = vmatpush1.msra.mxu0 %v860
  %1624 = vmatprep.subr.mxu0 0.0
  %1625 = vmatpush1.msra.mxu0 %v859
  %1626 = vmatprep.subr.mxu0 0.0
  %1627 = vmatpush1.msra.mxu0 %v858
  %1628 = vmatprep.subr.mxu0 0.0
  %1629 = vmatpush1.msra.mxu0 %v857
  %1630 = vmatprep.subr.mxu0 0.0
  %1631 = vmatpush2.msra.mxu0 0.0
  %1632 = vmatprep.subr.mxu0 0.0
  %1633 = vmatpush2.msra.mxu0 0.0
  %1634 = vmatprep.subr.mxu0 0.0
  %1635 = vmatpush2.msra.mxu0 0.0
  %1636 = vmatprep.subr.mxu0 0.0
  %1637 = vmatpush2.msra.mxu0 0.0
  %1638 = vmatprep.subr.mxu0 0.0
  %1639 = vmatpush2.msra.mxu0 0.0
  %1640 = vmatprep.subr.mxu0 0.0
  %1641 = vmatpush2.msra.mxu0 0.0
  %1642 = vmatprep.subr.mxu0 0.0
  %1643 = vmatpush2.msra.mxu0 0.0
  %1644 = vmatprep.subr.mxu0 0.0
  %1645 = vmatpush2.msra.mxu0 0.0
  %1646 = vmatprep.subr.mxu0 0.0
  %1647 = vmatpush2.msra.mxu0 0.0
  %1648 = vmatprep.subr.mxu0 0.0
  %1649 = vmatpush2.msra.mxu0 0.0
  %1650 = vmatprep.subr.mxu0 0.0
  %1651 = vmatpush2.msra.mxu0 0.0
  %1652 = vmatprep.subr.mxu0 0.0
  %1653 = vmatpush2.msra.mxu0 0.0
  %1654 = vmatprep.subr.mxu0 0.0
  %1655 = vmatpush2.msra.mxu0 0.0
  %1656 = vmatprep.subr.mxu0 0.0
  %1657 = vmatpush2.msra.mxu0 0.0
  %1658 = vmatprep.subr.mxu0 0.0
  %1659 = vmatpush2.msra.mxu0 0.0
  %1660 = vmatprep.subr.mxu0 0.0
  %1661 = vmatpush2.msra.mxu0 0.0
  %1662 = vmatprep.mubr.f32.mxu0 0.0
  %1663 = vmatmul.mubr.f32.gmra.mxu0 %v1590
  %v1664 = vpop.f32.mrf.mxu0
  %v1665 = vadd.f32 0.0, %v1664
  %v1666 = vpop.f32.mrf.mxu0
  %1667 = vmatprep.mubr.f32.mxu0 0.0
  %1668 = vmatmul.mubr.f32.gmra.mxu0 %v1593
  %v1669 = vpop.f32.mrf.mxu0
  %v1670 = vadd.f32 0.0, %v1669
  %v1671 = vpop.f32.mrf.mxu0
  %1672 = vdwg.mxu0
  %v1673 = vld [vmem:[%s9] sm:$0xff]
  %v1674 = vld [vmem:[%s9 + $0x8] sm:$0xff]
  %v1675 = vld [vmem:[%s9 + $0x10] sm:$0xff]
  %v1676 = vld [vmem:[%s9 + $0x18] sm:$0xff]
  %v1677 = vld [vmem:[%s9 + $0x20] sm:$0xff]
  %v1678 = vld [vmem:[%s9 + $0x28] sm:$0xff]
  %v1679 = vld [vmem:[%s9 + $0x30] sm:$0xff]
  %v1680 = vld [vmem:[%s9 + $0x38] sm:$0xff]
  %v1681 = vld [vmem:[%s10] sm:$0x1]
  %1684 = vrot.lane.b32.xlu0 %v1497, 32
  %v1685 = vpop.permute.xlu0 %1684
  %1686 = vrot.lane.b32.xlu0 %v1502, 32
  %v1687 = vpop.permute.xlu0 %1686
  %v1690 = vsel %vm91, %v1413, %v1685
  %v1691 = vsel %vm91, %v1418, %v1687
  %v1692 = vld [vmem:[%s11] sm:$0xff]
  %v1693 = vld [vmem:[%s11 + $0x8] sm:$0x1]
  %v1695 = vlaneseq
  %v1696 = vshrl.u32 %v1695, 7
  %v1697 = vsub.s32 0, %v1696
  %v1698 = vrot.slane %v1681, %v1697
  %v1700 = vadd.f32 %v1692, %v1698
  %v1701 = vadd.f32 %v1693, %v1698
  %vm1702 = vcmask 523264
  %v1704 = vsel %vm1702, %v1690, 0
  %v1707 = vsel %vm1702, %v1691, 0
  %1709 = vmatprep.subr.mxu0 0.0
  %1710 = vmatpush1.msra.mxu0 0.0
  %1711 = vmatprep.subr.mxu0 0.0
  %1712 = vmatpush1.msra.mxu0 0.0
  %1713 = vmatprep.subr.mxu0 0.0
  %1714 = vmatpush1.msra.mxu0 0.0
  %1715 = vmatprep.subr.mxu0 0.0
  %1716 = vmatpush1.msra.mxu0 0.0
  %1717 = vmatprep.subr.mxu0 0.0
  %1718 = vmatpush1.msra.mxu0 0.0
  %1719 = vmatprep.subr.mxu0 0.0
  %1720 = vmatpush1.msra.mxu0 0.0
  %1721 = vmatprep.subr.mxu0 0.0
  %1722 = vmatpush1.msra.mxu0 0.0
  %1723 = vmatprep.subr.mxu0 0.0
  %1724 = vmatpush1.msra.mxu0 0.0
  %1725 = vmatprep.subr.mxu0 0.0
  %1726 = vmatpush1.msra.mxu0 %v1680
  %1727 = vmatprep.subr.mxu0 0.0
  %1728 = vmatpush1.msra.mxu0 %v1679
  %1729 = vmatprep.subr.mxu0 0.0
  %1730 = vmatpush1.msra.mxu0 %v1678
  %1731 = vmatprep.subr.mxu0 0.0
  %1732 = vmatpush1.msra.mxu0 %v1677
  %1733 = vmatprep.subr.mxu0 0.0
  %1734 = vmatpush1.msra.mxu0 %v1676
  %1735 = vmatprep.subr.mxu0 0.0
  %1736 = vmatpush1.msra.mxu0 %v1675
  %1737 = vmatprep.subr.mxu0 0.0
  %1738 = vmatpush1.msra.mxu0 %v1674
  %1739 = vmatprep.subr.mxu0 0.0
  %1740 = vmatpush1.msra.mxu0 %v1673
  %1741 = vmatprep.subr.mxu0 0.0
  %1742 = vmatpush2.msra.mxu0 0.0
  %1743 = vmatprep.subr.mxu0 0.0
  %1744 = vmatpush2.msra.mxu0 0.0
  %1745 = vmatprep.subr.mxu0 0.0
  %1746 = vmatpush2.msra.mxu0 0.0
  %1747 = vmatprep.subr.mxu0 0.0
  %1748 = vmatpush2.msra.mxu0 0.0
  %1749 = vmatprep.subr.mxu0 0.0
  %1750 = vmatpush2.msra.mxu0 0.0
  %1751 = vmatprep.subr.mxu0 0.0
  %1752 = vmatpush2.msra.mxu0 0.0
  %1753 = vmatprep.subr.mxu0 0.0
  %1754 = vmatpush2.msra.mxu0 0.0
  %1755 = vmatprep.subr.mxu0 0.0
  %1756 = vmatpush2.msra.mxu0 0.0
  %1757 = vmatprep.subr.mxu0 0.0
  %1758 = vmatpush2.msra.mxu0 0.0
  %1759 = vmatprep.subr.mxu0 0.0
  %1760 = vmatpush2.msra.mxu0 0.0
  %1761 = vmatprep.subr.mxu0 0.0
  %1762 = vmatpush2.msra.mxu0 0.0
  %1763 = vmatprep.subr.mxu0 0.0
  %1764 = vmatpush2.msra.mxu0 0.0
  %1765 = vmatprep.subr.mxu0 0.0
  %1766 = vmatpush2.msra.mxu0 0.0
  %1767 = vmatprep.subr.mxu0 0.0
  %1768 = vmatpush2.msra.mxu0 0.0
  %1769 = vmatprep.subr.mxu0 0.0
  %1770 = vmatpush2.msra.mxu0 0.0
  %1771 = vmatprep.subr.mxu0 0.0
  %1772 = vmatpush2.msra.mxu0 0.0
  %1773 = vmatprep.mubr.f32.mxu0 0.0
  %1774 = vmatmul.mubr.f32.gmra.mxu0 %v1704
  %v1775 = vpop.f32.mrf.mxu0
  %v1776 = vadd.f32 0.0, %v1775
  %v1777 = vpop.f32.mrf.mxu0
  %1778 = vmatprep.mubr.f32.mxu0 0.0
  %1779 = vmatmul.mubr.f32.gmra.mxu0 %v1707
  %v1780 = vpop.f32.mrf.mxu0
  %v1781 = vadd.f32 0.0, %v1780
  %v1782 = vpop.f32.mrf.mxu0
  %1783 = vdwg.mxu0
  %v1784 = vadd.f32 %v1700, %v1776
  %v1785 = vadd.f32 %v1701, %v1781
  %1786 = vst.msk [vmem:[%s12] sm:$0xff] %vm1702, %v1784
  %vm1787 = vcmask 516096
  %1788 = vst.msk [vmem:[%s12 + $0x8] sm:$0x1] %vm1787, %v1785
  %1791 = vrot.lane.b32.xlu0 %v1665, 32
  %v1792 = vpop.permute.xlu0 %1791
  %1793 = vrot.lane.b32.xlu0 %v1670, 32
  %v1794 = vpop.permute.xlu0 %1793
  %v1797 = vsel %vm91, %v1581, %v1792
  %v1798 = vsel %vm91, %v1586, %v1794
  %s1799 = scalar_lea.vmem %s11, 16
  %v1800 = vld [vmem:[%s1799] sm:$0xff]
  %v1801 = vld [vmem:[%s1799 + $0x8] sm:$0x1]
  %v1802 = vadd.f32 %v1800, %v1698
  %v1803 = vadd.f32 %v1801, %v1698
  %v1805 = vsel %vm1702, %v1797, 0
  %v1808 = vsel %vm1702, %v1798, 0
  %1810 = vmatprep.subr.mxu0 0.0
  %1811 = vmatpush1.msra.mxu0 0.0
  %1812 = vmatprep.subr.mxu0 0.0
  %1813 = vmatpush1.msra.mxu0 0.0
  %1814 = vmatprep.subr.mxu0 0.0
  %1815 = vmatpush1.msra.mxu0 0.0
  %1816 = vmatprep.subr.mxu0 0.0
  %1817 = vmatpush1.msra.mxu0 0.0
  %1818 = vmatprep.subr.mxu0 0.0
  %1819 = vmatpush1.msra.mxu0 0.0
  %1820 = vmatprep.subr.mxu0 0.0
  %1821 = vmatpush1.msra.mxu0 0.0
  %1822 = vmatprep.subr.mxu0 0.0
  %1823 = vmatpush1.msra.mxu0 0.0
  %1824 = vmatprep.subr.mxu0 0.0
  %1825 = vmatpush1.msra.mxu0 0.0
  %1826 = vmatprep.subr.mxu0 0.0
  %1827 = vmatpush1.msra.mxu0 %v1680
  %1828 = vmatprep.subr.mxu0 0.0
  %1829 = vmatpush1.msra.mxu0 %v1679
  %1830 = vmatprep.subr.mxu0 0.0
  %1831 = vmatpush1.msra.mxu0 %v1678
  %1832 = vmatprep.subr.mxu0 0.0
  %1833 = vmatpush1.msra.mxu0 %v1677
  %1834 = vmatprep.subr.mxu0 0.0
  %1835 = vmatpush1.msra.mxu0 %v1676
  %1836 = vmatprep.subr.mxu0 0.0
  %1837 = vmatpush1.msra.mxu0 %v1675
  %1838 = vmatprep.subr.mxu0 0.0
  %1839 = vmatpush1.msra.mxu0 %v1674
  %1840 = vmatprep.subr.mxu0 0.0
  %1841 = vmatpush1.msra.mxu0 %v1673
  %1842 = vmatprep.subr.mxu0 0.0
  %1843 = vmatpush2.msra.mxu0 0.0
  %1844 = vmatprep.subr.mxu0 0.0
  %1845 = vmatpush2.msra.mxu0 0.0
  %1846 = vmatprep.subr.mxu0 0.0
  %1847 = vmatpush2.msra.mxu0 0.0
  %1848 = vmatprep.subr.mxu0 0.0
  %1849 = vmatpush2.msra.mxu0 0.0
  %1850 = vmatprep.subr.mxu0 0.0
  %1851 = vmatpush2.msra.mxu0 0.0
  %1852 = vmatprep.subr.mxu0 0.0
  %1853 = vmatpush2.msra.mxu0 0.0
  %1854 = vmatprep.subr.mxu0 0.0
  %1855 = vmatpush2.msra.mxu0 0.0
  %1856 = vmatprep.subr.mxu0 0.0
  %1857 = vmatpush2.msra.mxu0 0.0
  %1858 = vmatprep.subr.mxu0 0.0
  %1859 = vmatpush2.msra.mxu0 0.0
  %1860 = vmatprep.subr.mxu0 0.0
  %1861 = vmatpush2.msra.mxu0 0.0
  %1862 = vmatprep.subr.mxu0 0.0
  %1863 = vmatpush2.msra.mxu0 0.0
  %1864 = vmatprep.subr.mxu0 0.0
  %1865 = vmatpush2.msra.mxu0 0.0
  %1866 = vmatprep.subr.mxu0 0.0
  %1867 = vmatpush2.msra.mxu0 0.0
  %1868 = vmatprep.subr.mxu0 0.0
  %1869 = vmatpush2.msra.mxu0 0.0
  %1870 = vmatprep.subr.mxu0 0.0
  %1871 = vmatpush2.msra.mxu0 0.0
  %1872 = vmatprep.subr.mxu0 0.0
  %1873 = vmatpush2.msra.mxu0 0.0
  %1874 = vmatprep.mubr.f32.mxu0 0.0
  %1875 = vmatmul.mubr.f32.gmra.mxu0 %v1805
  %v1876 = vpop.f32.mrf.mxu0
  %v1877 = vadd.f32 0.0, %v1876
  %v1878 = vpop.f32.mrf.mxu0
  %1879 = vmatprep.mubr.f32.mxu0 0.0
  %1880 = vmatmul.mubr.f32.gmra.mxu0 %v1808
  %v1881 = vpop.f32.mrf.mxu0
  %v1882 = vadd.f32 0.0, %v1881
  %v1883 = vpop.f32.mrf.mxu0
  %1884 = vdwg.mxu0
  %v1885 = vadd.f32 %v1802, %v1877
  %v1886 = vadd.f32 %v1803, %v1882
  %s1887 = scalar_lea.vmem %s12, 16
  %1888 = vst.msk [vmem:[%s1887] sm:$0xff] %vm1702, %v1885
  %1889 = vst.msk [vmem:[%s1887 + $0x8] sm:$0x1] %vm1787, %v1886
  // Predicated region
  $region50: #{_lambda_.11} parent=0 // pred_check
    _
  $region51: #{_lambda_.11} parent=0 // pred_check_branch
    %1891 = sbr.rel (0) target = $region53
  $region52: #{_lambda_.11} parent=0 // pred_region
    _
  $region53: #{_lambda_.11} parent=0 // pred_fallthru
    _
  // Predicated region
  $region54: #{_lambda_.11} parent=0 // pred_check
    _
  $region55: #{_lambda_.11} parent=0 // pred_check_branch
    %1893 = sbr.rel (0) target = $region57
  $region56: #{_lambda_.11} parent=0 // pred_region
    _
  $region57: #{_lambda_.11} parent=0 // pred_fallthru
    _

// kernel: _lambda_.13
$region0: #{_lambda_.13}
  #allocation0 [shape = 'u32[]', space=smem, size = 0x4, offset = 0x4, fixed_abs, tag = 'smem constant byte address 0x4 - core index']
  #allocation1 [shape = 'u32[144,128]{1,0:T(1,128)}', space=vmem, size = 0x12000, scoped, tag = 'internal scratch']
  %s0 = inlined_call_operand.vmem [shape: f32[2,64], index: 0, kind: input, shape index: {}]
  %s1 = inlined_call_operand.vmem [shape: f32[1,64], index: 1, kind: input, shape index: {}]
  %s2 = inlined_call_operand.vmem [shape: f32[1,64], index: 2, kind: input, shape index: {}]
  %s3 = inlined_call_operand.vmem [shape: f32[64,8], index: 3, kind: input, shape index: {}]
  %s4 = inlined_call_operand.vmem [shape: f32[1,8], index: 4, kind: input, shape index: {}]
  %s5 = inlined_call_operand.hbm [shape: f32[2,8], index: 5, kind: output, shape index: {}]
  %s6 = sld [smem:[#allocation0]]
  $region30: #{_lambda_.13} parent=0
    _
  %s8 = ssub.s32 1, %s6
  %s9 = scalar_select 0, %s8, %s6
  $region1: #{_lambda_.13} parent=0
    #allocation2 [shape = 'u8[1024]{0}', space=vmem, size = 0x400, scoped, tag = 'output window, operand 0, single buffered']
    #allocation3 [shape = 's32[1]{0}', space=sflag, size = 0x4, scoped, tag = 'scoped memory for _lambda_.13']
    %10 = vsyncpa [#allocation3], 0
    // Predicated region
    $region2: #{_lambda_.13} parent=1 // pred_check
      _
    $region3: #{_lambda_.13} parent=1 // pred_check_branch
      %12 = sbr.rel (0) target = $region5
    $region4: #{_lambda_.13} parent=1 // pred_region
      _
    $region5: #{_lambda_.13} parent=1 // pred_fallthru
      _
    // Predicated region
    $region6: #{_lambda_.13} parent=1 // pred_check
      _
    $region7: #{_lambda_.13} parent=1 // pred_check_branch
      %14 = sbr.rel (0) target = $region9
    $region8: #{_lambda_.13} parent=1 // pred_region
      _
    $region9: #{_lambda_.13} parent=1 // pred_fallthru
      _
    // Predicated region
    $region10: #{_lambda_.13} parent=1 // pred_check
      _
    $region11: #{_lambda_.13} parent=1 // pred_check_branch
      %16 = sbr.rel (0) target = $region13
    $region12: #{_lambda_.13} parent=1 // pred_region
      _
    $region13: #{_lambda_.13} parent=1 // pred_fallthru
      _
    // Predicated region
    $region14: #{_lambda_.13} parent=1 // pred_check
      _
    $region15: #{_lambda_.13} parent=1 // pred_check_branch
      %18 = sbr.rel (0) target = $region17
    $region16: #{_lambda_.13} parent=1 // pred_region
      _
    $region17: #{_lambda_.13} parent=1 // pred_fallthru
      _
    // Predicated region
    $region18: #{_lambda_.13} parent=1 // pred_check
      _
    $region19: #{_lambda_.13} parent=1 // pred_check_branch
      %20 = sbr.rel (0) target = $region21
    $region20: #{_lambda_.13} parent=1 // pred_region
      _
    $region21: #{_lambda_.13} parent=1 // pred_fallthru
      _
    %v21 = vld [vmem:[%s0] sm:$0x3]
    %v22 = vld [vmem:[%s1] sm:$0x1]
    %v23 = vld [vmem:[%s2] sm:$0x1]
    %vm24 = vcmask 517120
    %v25 = vsel %vm24, %v21, 0.0
    %26 = vadd.xlane.f32.xlu0 %v25
    %v27 = vpop.xlane.xlu0 %26
    %v28 = vrcp.pop 64.0
    %v29 = vmul.f32 %v27, %v28
    %v30 = vsub.f32 %v21, %v29
    %v31 = vmul.f32 %v30, %v30
    %v32 = vsel %vm24, %v31, 0.0
    %33 = vadd.xlane.f32.xlu0 %v32
    %v34 = vpop.xlane.xlu0 %33
    %v35 = vmul.f32 %v34, %v28
    %v36 = vadd.f32 %v35, 1e-06
    %v37 = vrsqrt.pop %v36
    %v38 = vmul.f32 %v30, %v37
    %v40 = vlaneseq
    %v41 = vshrl.u32 %v40, 7
    %v42 = vsub.s32 0, %v41
    %v43 = vrot.slane %v22, %v42
    %v45 = vmul.f32 %v38, %v43
    %v47 = vlaneseq
    %v48 = vshrl.u32 %v47, 7
    %v49 = vsub.s32 0, %v48
    %v50 = vrot.slane %v23, %v49
    %v52 = vadd.f32 %v45, %v50
    %v53 = vld [vmem:[%s3] sm:$0xff]
    %v54 = vld [vmem:[%s3 + $0x8] sm:$0xff]
    %v55 = vld [vmem:[%s3 + $0x10] sm:$0xff]
    %v56 = vld [vmem:[%s3 + $0x18] sm:$0xff]
    %v57 = vld [vmem:[%s3 + $0x20] sm:$0xff]
    %v58 = vld [vmem:[%s3 + $0x28] sm:$0xff]
    %v59 = vld [vmem:[%s3 + $0x30] sm:$0xff]
    %v60 = vld [vmem:[%s3 + $0x38] sm:$0xff]
    %v61 = vld [vmem:[%s4] sm:$0x1]
    %v63 = vlaneseq
    %v64 = vshrl.u32 %v63, 7
    %v65 = vsub.s32 0, %v64
    %v66 = vrot.slane %v61, %v65
    %vm68 = vcmask 523264
    %v70 = vsel %vm68, %v52, 0
    %72 = vmatprep.subr.mxu0 0.0
    %73 = vmatpush1.msra.mxu0 0.0
    %74 = vmatprep.subr.mxu0 0.0
    %75 = vmatpush1.msra.mxu0 0.0
    %76 = vmatprep.subr.mxu0 0.0
    %77 = vmatpush1.msra.mxu0 0.0
    %78 = vmatprep.subr.mxu0 0.0
    %79 = vmatpush1.msra.mxu0 0.0
    %80 = vmatprep.subr.mxu0 0.0
    %81 = vmatpush1.msra.mxu0 0.0
    %82 = vmatprep.subr.mxu0 0.0
    %83 = vmatpush1.msra.mxu0 0.0
    %84 = vmatprep.subr.mxu0 0.0
    %85 = vmatpush1.msra.mxu0 0.0
    %86 = vmatprep.subr.mxu0 0.0
    %87 = vmatpush1.msra.mxu0 0.0
    %88 = vmatprep.subr.mxu0 0.0
    %89 = vmatpush1.msra.mxu0 %v60
    %90 = vmatprep.subr.mxu0 0.0
    %91 = vmatpush1.msra.mxu0 %v59
    %92 = vmatprep.subr.mxu0 0.0
    %93 = vmatpush1.msra.mxu0 %v58
    %94 = vmatprep.subr.mxu0 0.0
    %95 = vmatpush1.msra.mxu0 %v57
    %96 = vmatprep.subr.mxu0 0.0
    %97 = vmatpush1.msra.mxu0 %v56
    %98 = vmatprep.subr.mxu0 0.0
    %99 = vmatpush1.msra.mxu0 %v55
    %100 = vmatprep.subr.mxu0 0.0
    %101 = vmatpush1.msra.mxu0 %v54
    %102 = vmatprep.subr.mxu0 0.0
    %103 = vmatpush1.msra.mxu0 %v53
    %104 = vmatprep.subr.mxu0 0.0
    %105 = vmatpush2.msra.mxu0 0.0
    %106 = vmatprep.subr.mxu0 0.0
    %107 = vmatpush2.msra.mxu0 0.0
    %108 = vmatprep.subr.mxu0 0.0
    %109 = vmatpush2.msra.mxu0 0.0
    %110 = vmatprep.subr.mxu0 0.0
    %111 = vmatpush2.msra.mxu0 0.0
    %112 = vmatprep.subr.mxu0 0.0
    %113 = vmatpush2.msra.mxu0 0.0
    %114 = vmatprep.subr.mxu0 0.0
    %115 = vmatpush2.msra.mxu0 0.0
    %116 = vmatprep.subr.mxu0 0.0
    %117 = vmatpush2.msra.mxu0 0.0
    %118 = vmatprep.subr.mxu0 0.0
    %119 = vmatpush2.msra.mxu0 0.0
    %120 = vmatprep.subr.mxu0 0.0
    %121 = vmatpush2.msra.mxu0 0.0
    %122 = vmatprep.subr.mxu0 0.0
    %123 = vmatpush2.msra.mxu0 0.0
    %124 = vmatprep.subr.mxu0 0.0
    %125 = vmatpush2.msra.mxu0 0.0
    %126 = vmatprep.subr.mxu0 0.0
    %127 = vmatpush2.msra.mxu0 0.0
    %128 = vmatprep.subr.mxu0 0.0
    %129 = vmatpush2.msra.mxu0 0.0
    %130 = vmatprep.subr.mxu0 0.0
    %131 = vmatpush2.msra.mxu0 0.0
    %132 = vmatprep.subr.mxu0 0.0
    %133 = vmatpush2.msra.mxu0 0.0
    %134 = vmatprep.subr.mxu0 0.0
    %135 = vmatpush2.msra.mxu0 0.0
    %136 = vmatprep.mubr.f32.mxu0 0.0
    %137 = vmatmul.mubr.f32.gmra.mxu0 %v70
    %v138 = vpop.f32.mrf.mxu0
    %v139 = vadd.f32 %v66, %v138
    %v140 = vpop.f32.mrf.mxu0
    %141 = vdwg.mxu0
    %vm142 = vcmask 58368
    %v143 = vsel %vm142, %v139, -inf
    %144 = vmax.xlane.f32.xlu0 %v143
    %v145 = vpop.xlane.xlu0 %144
    %v146 = vsub.f32 %v139, %v145
    %v147 = vmul.f32 %v146, 1.442695
    %v148 = vpow.pop %v147
    %v149 = vsel %vm142, %v148, 0.0
    %150 = vadd.xlane.f32.xlu0 %v149
    %v151 = vpop.xlane.xlu0 %150
    %v152 = vrcp.pop %v151
    %v153 = vmul.f32 %v148, %v152
    %154 = vst.msk [vmem:[#allocation2] sm:$0x3] %vm142, %v153
    // Predicated region
    $region22: #{_lambda_.13} parent=1 // pred_check
      _
    $region23: #{_lambda_.13} parent=1 // pred_check_branch
      %156 = sbr.rel (0) target = $region25
    $region24: #{_lambda_.13} parent=1 // pred_region
      %s158 = ssub.s32 32, 32
      %159 = vsyncadd [#allocation3], %s158
      %s161 = sshll.u32 [#allocation2], 4
      %s162 = int_to_ptr.vmem [resolvable:$true] %s161
      %164 = dma.vmem_to_hbm [thread:$0]  %s162, 32, %s5, [#allocation3]
    $region25: #{_lambda_.13} parent=1 // pred_fallthru
      _
    // Predicated region
    $region26: #{_lambda_.13} parent=1 // pred_check
      _
    $region27: #{_lambda_.13} parent=1 // pred_check_branch
      %166 = sbr.rel (0) target = $region29
    $region28: #{_lambda_.13} parent=1 // pred_region
      %167 = dma.done [#allocation3], 32
    $region29: #{_lambda_.13} parent=1 // pred_fallthru
      _
    %168 = vsyncpa [#allocation3], 1

</llo_original>
